<compile_context>
chip_gen: v7x
topology: tpu7x:2x2x1
jax: 0.10.0
libtpu: 0.0.40
codegen_flags: <defaults>
</compile_context>

<pallas_src>
import functools

import numpy as np

import jax
import jax.numpy as jnp
from jax.experimental import pallas as pl
from jax.experimental.pallas import tpu as pltpu


def _round_up(n, m):
    return ((n + m - 1) // m) * m


# ----------------------------------------------------------------------------
# Weight packing (trace-time, jit-safe): per-kernel-row Toeplitz slabs with the
# even/odd pooled-column halves merged along N, flatten permutation, lane padding.
# ----------------------------------------------------------------------------
def _conv_pool_toeplitz(w, win, wout_half, k_pad, n_pad):
    """Stack of per-kernel-row Toeplitz matrices, shape (kh, k_pad, 2*n_pad).

    The matmul LHS for kernel-row offset `di` has lane layout wcol*cin + ci
    (zero padded to k_pad lanes).  Output lanes [0, wout_half*cout) of the
    first n_pad half hold pooled-column parity 0 (conv column 2j), the second
    half parity 1 (conv column 2j+1); remaining lanes are zero padding so that
    the 2x2 pool's column max is a max of two 128-lane-aligned slices.
    `w` is the PyTorch conv weight (cout, cin, kh, kw).
    """
    cout, cin, kh, kw = w.shape
    d_idx, r_idx, c_idx, w_idx = [], [], [], []
    for di in range(kh):
        for q in range(2):                 # pooled-column parity
            for j in range(wout_half):     # pooled output column
                for dj in range(kw):
                    wcol = 2 * j + q + dj  # input column, always < win
                    for ci in range(cin):
                        for co in range(cout):
                            d_idx.append(di)
                            r_idx.append(wcol * cin + ci)
                            c_idx.append(q * n_pad + j * cout + co)
                            w_idx.append(((co * cin + ci) * kh + di) * kw + dj)
    vals = w.reshape(-1)[np.asarray(w_idx)]
    t = jnp.zeros((kh, k_pad, 2 * n_pad), jnp.float32)
    return t.at[np.asarray(d_idx), np.asarray(r_idx), np.asarray(c_idx)].set(vals)


def pack_params(params):
    """Torch-layout params -> kernel operands (bf16 matmul weights, f32 biases)."""
    bf16 = jnp.bfloat16
    w1, b1 = params["w1"], params["b1"]          # (6,1,5,5), (6,)
    w2, b2 = params["w2"], params["b2"]          # (16,6,5,5), (16,)
    wf1, bf1 = params["wf1"], params["bf1"]      # (1024,400), (1024,)
    wf2, bf2 = params["wf2"], params["bf2"]      # (128,1024), (128,)
    wf3, bf3 = params["wf3"], params["bf3"]      # (nc,128), (nc,)
    nc = wf3.shape[0]
    assert nc <= 128

    packed = dict(
        t1=_conv_pool_toeplitz(w1, 32, 14, 32, 128).astype(bf16),    # (5, 32, 256)
        b1=jnp.pad(jnp.tile(b1, 14), (0, 128 - 84)).reshape(1, 128).astype(jnp.float32),
        t2=_conv_pool_toeplitz(w2, 14, 5, 128, 128).astype(bf16),    # (5, 128, 256)
        b2=jnp.pad(jnp.tile(b2, 5), (0, 128 - 80)).reshape(1, 128).astype(jnp.float32),
    )

    # FC1: fold torch.flatten(NCHW) ordering (c*25 + h*5 + w) into a row permutation
    # of wf1^T and split by pooled row h -> (5, 128, 1024) (rows 80..127 are zero,
    # matching the zero-padded lanes of the pooled conv2 activation).
    perm = np.empty((5, 80), np.int32)
    for h in range(5):
        for w in range(5):
            for c in range(16):
                perm[h, w * 16 + c] = c * 25 + h * 5 + w
    wf1p = jnp.transpose(wf1)[perm.reshape(-1), :].reshape(5, 80, 1024)
    packed["wf1"] = jnp.pad(wf1p, ((0, 0), (0, 48), (0, 0))).astype(bf16)
    packed["bf1"] = bf1.reshape(1, 1024).astype(jnp.float32)
    packed["wf2"] = jnp.transpose(wf2).astype(bf16)                  # (1024, 128)
    packed["bf2"] = bf2.reshape(1, 128).astype(jnp.float32)
    # FC3: pad the class dim to 128 so the kernel's only HBM store is lane-dense.
    packed["wf3"] = (jnp.zeros((128, 128), jnp.float32)
                     .at[:, :nc].set(jnp.transpose(wf3)).astype(bf16))
    packed["bf3"] = jnp.zeros((1, 128), jnp.float32).at[0, :nc].set(bf3)
    return packed


# ----------------------------------------------------------------------------
# The fused kernel: TB images per grid step, row-major activation layout
# (row index = spatial_row * TB + image_in_block).
# ----------------------------------------------------------------------------
def _lenet5_kernel(x_ref, t1_ref, b1_ref, t2_ref, b2_ref,
                   wf1_ref, bf1_ref, wf2_ref, bf2_ref, wf3_ref, bf3_ref,
                   out_ref, y1_ref, p1_ref, y2_ref, *, tb):
    f32, bf16 = jnp.float32, jnp.bfloat16

    def pool_block(y_ref, top, bias):
        """2x2 max-pool of one pooled-row block: max over the row pair and over
        the even/odd column halves (both lane-tile aligned), then bias + ReLU."""
        t_blk = y_ref[pl.ds(top, tb), :]            # conv row 2r   (tb, 256)
        b_blk = y_ref[pl.ds(top + tb, tb), :]       # conv row 2r+1
        blk = jnp.maximum(jnp.maximum(t_blk[:, :128], t_blk[:, 128:]),
                          jnp.maximum(b_blk[:, :128], b_blk[:, 128:]))
        return jnp.maximum(blk + bias, 0.0)         # bias is per-channel; ReLU∘max ok

    # ---- conv1 (1->6, 5x5) + ReLU + 2x2 maxpool -------------------------------
    # 5 accumulated MXU passes (one per kernel row), each a contiguous row slice.
    y1_ref[...] = jnp.dot(x_ref[pl.ds(0, 28 * tb), :].astype(bf16),
                          t1_ref[0], preferred_element_type=f32)
    for di in range(1, 5):
        y1_ref[...] += jnp.dot(x_ref[pl.ds(di * tb, 28 * tb), :].astype(bf16),
                               t1_ref[di], preferred_element_type=f32)
    b1 = jnp.broadcast_to(b1_ref[...], (tb, 128))
    for r in range(14):
        p1_ref[pl.ds(r * tb, tb), :] = pool_block(y1_ref, 2 * r * tb, b1)

    # ---- conv2 (6->16, 5x5) + ReLU + 2x2 maxpool ------------------------------
    y2_ref[...] = jnp.dot(p1_ref[pl.ds(0, 10 * tb), :].astype(bf16),
                          t2_ref[0], preferred_element_type=f32)
    for di in range(1, 5):
        y2_ref[...] += jnp.dot(p1_ref[pl.ds(di * tb, 10 * tb), :].astype(bf16),
                               t2_ref[di], preferred_element_type=f32)
    b2 = jnp.broadcast_to(b2_ref[...], (tb, 128))
    p2 = [pool_block(y2_ref, 2 * j * tb, b2).astype(bf16) for j in range(5)]  # 5x (tb,128)

    # ---- dense head (torch.flatten order folded into wf1 rows) ----------------
    acc = jnp.dot(p2[0], wf1_ref[0], preferred_element_type=f32)
    for h in range(1, 5):
        acc = acc + jnp.dot(p2[h], wf1_ref[h], preferred_element_type=f32)
    h1 = jnp.maximum(acc + bf1_ref[...], 0.0).astype(bf16)                 # (tb, 1024)
    h2 = jnp.maximum(jnp.dot(h1, wf2_ref[...], preferred_element_type=f32)
                     + bf2_ref[...], 0.0).astype(bf16)                     # (tb, 128)
    out_ref[...] = (jnp.dot(h2, wf3_ref[...], preferred_element_type=f32)
                    + bf3_ref[...]).astype(out_ref.dtype)                  # lane-dense


# ----------------------------------------------------------------------------
# Forward pass wrapper (PyTorch NCHW interface).
# ----------------------------------------------------------------------------
def lenet5_forward(x, params, num_classes=10, block_b=16):
    """x: (B, 1, 32, 32) float32 NCHW, params: PyTorch-layout weights."""
    assert block_b % 8 == 0 and block_b >= 8
    B = x.shape[0]
    assert x.shape[1:] == (1, 32, 32)

    TB = min(block_b, _round_up(B, 8))       # images per grid step (multiple of 8)
    B_pad = _round_up(B, TB)
    nb = B_pad // TB

    packed = pack_params(params)             # trace-time repacking (tiny XLA ops)

    x2d = x[:, 0, :, :].astype(jnp.float32)  # (B, 32, 32)
    if B_pad != B:
        x2d = jnp.pad(x2d, ((0, B_pad - B), (0, 0), (0, 0)))
    # Row-major per block: (nb, TB, 32, 32) -> (nb, 32, TB, 32) -> (nb, 32*TB, 32);
    # row index inside a block = spatial_row*TB + image.  bf16 halves the input DMA
    # (only when TB keeps the contiguous slices bf16-sublane-tile aligned).
    x_dtype = jnp.bfloat16 if TB % 16 == 0 else jnp.float32
    x_rm = (x2d.reshape(nb, TB, 32, 32)
               .transpose(0, 2, 1, 3)
               .reshape(nb, 32 * TB, 32)
               .astype(x_dtype))

    def w_spec(shape):
        n = len(shape)
        return pl.BlockSpec(shape, (lambda b: (0, 0, 0)) if n == 3 else (lambda b: (0, 0)))

    kernel = functools.partial(_lenet5_kernel, tb=TB)

    out = pl.pallas_call(
        kernel,
        grid=(nb,),
        out_shape=jax.ShapeDtypeStruct((B_pad, 128), jnp.float32),
        in_specs=[
            pl.BlockSpec((None, 32 * TB, 32), lambda b: (b, 0, 0)),   # TB images / step
            w_spec((5, 32, 256)),  w_spec((1, 128)),                  # conv1 Toeplitz, bias
            w_spec((5, 128, 256)), w_spec((1, 128)),                  # conv2 Toeplitz, bias
            w_spec((5, 128, 1024)), w_spec((1, 1024)),                # fc1
            w_spec((1024, 128)),    w_spec((1, 128)),                 # fc2
            w_spec((128, 128)),     w_spec((1, 128)),                 # fc3 (class-padded)
        ],
        out_specs=pl.BlockSpec((TB, 128), lambda b: (b, 0)),
        scratch_shapes=[
            pltpu.VMEM((28 * TB, 256), jnp.float32),   # conv1 pre-pool activations
            pltpu.VMEM((14 * TB, 128), jnp.float32),   # pooled conv1 activations
            pltpu.VMEM((10 * TB, 256), jnp.float32),   # conv2 pre-pool activations
        ],
        compiler_params=pltpu.CompilerParams(
            dimension_semantics=("parallel",)),
    )(x_rm,
      packed["t1"], packed["b1"], packed["t2"], packed["b2"],
      packed["wf1"], packed["bf1"], packed["wf2"], packed["bf2"],
      packed["wf3"], packed["bf3"])
    return out[:B, :num_classes]


# ----------------------------------------------------------------------------
# Deterministic synthetic params (PyTorch shape conventions) + f32 XLA reference.
# ----------------------------------------------------------------------------
def init_params(key, num_classes=10):
    keys = jax.random.split(key, 10)
    s = 0.05

    def rnd(k, shape):
        return s * jax.random.normal(k, shape, dtype=jnp.float32)

    return dict(
        w1=rnd(keys[0], (6, 1, 5, 5)),   b1=rnd(keys[1], (6,)),
        w2=rnd(keys[2], (16, 6, 5, 5)),  b2=rnd(keys[3], (16,)),
        wf1=rnd(keys[4], (1024, 400)),   bf1=rnd(keys[5], (1024,)),
        wf2=rnd(keys[6], (128, 1024)),   bf2=rnd(keys[7], (128,)),
        wf3=rnd(keys[8], (num_classes, 128)), bf3=rnd(keys[9], (num_classes,)),
    )


def lenet5_reference(x, params):
    """Pure-XLA float32 reference matching the PyTorch module exactly."""
    def conv(y, w, b):
        y = jax.lax.conv_general_dilated(
            y, w, window_strides=(1, 1), padding="VALID",
            dimension_numbers=("NCHW", "OIHW", "NCHW"))
        return y + b[None, :, None, None]

    def maxpool2(y):
        return jax.lax.reduce_window(
            y, -jnp.inf, jax.lax.max, (1, 1, 2, 2), (1, 1, 2, 2), "VALID")

    y = maxpool2(jnp.maximum(conv(x, params["w1"], params["b1"]), 0.0))
    y = maxpool2(jnp.maximum(conv(y, params["w2"], params["b2"]), 0.0))
    y = y.reshape(y.shape[0], -1)                     # torch.flatten(x, 1)
    y = jnp.maximum(y @ params["wf1"].T + params["bf1"], 0.0)
    y = jnp.maximum(y @ params["wf2"].T + params["bf2"], 0.0)
    return y @ params["wf3"].T + params["bf3"]


if __name__ == "__main__":
    key = jax.random.PRNGKey(0)
    k_x, k_p, k_x2 = jax.random.split(key, 3)

    # LeNet-5 needs a 1x32x32 input so the flattened feature is 16*5*5 = 400.
    params = init_params(k_p, num_classes=10)
    fwd = jax.jit(lenet5_forward)
    ref_fn = jax.jit(lenet5_reference)

    # Small batch (B=2 -> padded to one TB=8 block, f32 input path).
    x = jax.random.normal(k_x, (2, 1, 32, 32), dtype=jnp.float32)
    logits = jax.block_until_ready(fwd(x, params))
    assert logits.shape == (2, 10), logits.shape
    ref = jax.block_until_ready(ref_fn(x, params))
    np.testing.assert_allclose(np.asarray(logits), np.asarray(ref), rtol=0.0, atol=2e-2)

    # Multi-step grid (B=48 -> 3 grid steps of TB=16 images, bf16 input path).
    x2 = jax.random.normal(k_x2, (48, 1, 32, 32), dtype=jnp.float32)
    logits2 = jax.block_until_ready(fwd(x2, params))
    assert logits2.shape == (48, 10), logits2.shape
    ref2 = jax.block_until_ready(ref_fn(x2, params))
    np.testing.assert_allclose(np.asarray(logits2), np.asarray(ref2), rtol=0.0, atol=2e-2)

    print("KERNEL_OK")
</pallas_src>

<mosaic_0001>
module attributes {stable_mosaic.version = 11 : i64} {
  func.func @_lenet5_kernel(%arg0: i32, %arg1: memref<1x256x32xf32, #tpu.memory_space<vmem>>, %arg2: memref<5x32x256xbf16, #tpu.memory_space<vmem>>, %arg3: memref<1x128xf32, #tpu.memory_space<vmem>>, %arg4: memref<5x128x256xbf16, #tpu.memory_space<vmem>>, %arg5: memref<1x128xf32, #tpu.memory_space<vmem>>, %arg6: memref<5x128x1024xbf16, #tpu.memory_space<vmem>>, %arg7: memref<1x1024xf32, #tpu.memory_space<vmem>>, %arg8: memref<1024x128xbf16, #tpu.memory_space<vmem>>, %arg9: memref<1x128xf32, #tpu.memory_space<vmem>>, %arg10: memref<128x128xbf16, #tpu.memory_space<vmem>>, %arg11: memref<1x128xf32, #tpu.memory_space<vmem>>, %arg12: memref<8x128xf32, #tpu.memory_space<vmem>>, %arg13: memref<224x256xf32, #tpu.memory_space<vmem>>, %arg14: memref<112x128xf32, #tpu.memory_space<vmem>>, %arg15: memref<80x256xf32, #tpu.memory_space<vmem>>) attributes {dimension_semantics = [#tpu.dimension_semantics<parallel>], iteration_bounds = array<i64: 1>, scalar_prefetch = 0 : i64, scratch_operands = 3 : i64, tpu.core_type = #tpu.core_type<tc>, window_params = [{transform_indices = @transform_0, window_bounds = array<i64: 1, 256, 32>}, {pipeline_mode = #tpu.pipeline_mode<synchronous>, transform_indices = @transform_1, window_bounds = array<i64: 5, 32, 256>}, {pipeline_mode = #tpu.pipeline_mode<synchronous>, transform_indices = @transform_2, window_bounds = array<i64: 1, 128>}, {pipeline_mode = #tpu.pipeline_mode<synchronous>, transform_indices = @transform_3, window_bounds = array<i64: 5, 128, 256>}, {pipeline_mode = #tpu.pipeline_mode<synchronous>, transform_indices = @transform_4, window_bounds = array<i64: 1, 128>}, {pipeline_mode = #tpu.pipeline_mode<synchronous>, transform_indices = @transform_5, window_bounds = array<i64: 5, 128, 1024>}, {pipeline_mode = #tpu.pipeline_mode<synchronous>, transform_indices = @transform_6, window_bounds = array<i64: 1, 1024>}, {pipeline_mode = #tpu.pipeline_mode<synchronous>, transform_indices = @transform_7, window_bounds = array<i64: 1024, 128>}, {pipeline_mode = #tpu.pipeline_mode<synchronous>, transform_indices = @transform_8, window_bounds = array<i64: 1, 128>}, {pipeline_mode = #tpu.pipeline_mode<synchronous>, transform_indices = @transform_9, window_bounds = array<i64: 128, 128>}, {pipeline_mode = #tpu.pipeline_mode<synchronous>, transform_indices = @transform_10, window_bounds = array<i64: 1, 128>}, {transform_indices = @transform_11, window_bounds = array<i64: 8, 128>}]} {
    %c0 = arith.constant 0 : index
    %c0_0 = arith.constant 0 : index
    %c0_1 = arith.constant 0 : index
    %0 = vector.load %arg1[%c0, %c0_0, %c0_1] : memref<1x256x32xf32, #tpu.memory_space<vmem>>, vector<1x224x32xf32>
    %1 = vector.shape_cast %0 : vector<1x224x32xf32> to vector<224x32xf32>
    %2 = arith.truncf %1 : vector<224x32xf32> to vector<224x32xbf16>
    %c0_2 = arith.constant 0 : index
    %c0_3 = arith.constant 0 : index
    %c0_4 = arith.constant 0 : index
    %3 = vector.load %arg2[%c0_2, %c0_3, %c0_4] : memref<5x32x256xbf16, #tpu.memory_space<vmem>>, vector<1x32x256xbf16>
    %4 = vector.shape_cast %3 : vector<1x32x256xbf16> to vector<32x256xbf16>
    %cst = arith.constant dense<0.000000e+00> : vector<224x256xf32>
    %5 = tpu.matmul %2, %4, %cst {dimension_numbers = #tpu.dot_dimension_numbers<[1], [0], [0], [1], [0, 0, 1, 1], [], []>} : vector<224x32xbf16>, vector<32x256xbf16>, vector<224x256xf32> -> vector<224x256xf32>
    %c0_5 = arith.constant 0 : index
    %c0_6 = arith.constant 0 : index
    %6 = vector.load %arg13[%c0_5, %c0_6] : memref<224x256xf32, #tpu.memory_space<vmem>>, vector<224x256xf32>
    tpu.vector_store %arg13[%c0_5, %c0_6], %5 {strides = array<i32>} : memref<224x256xf32, #tpu.memory_space<vmem>>, vector<224x256xf32>,
    %c0_7 = arith.constant 0 : index
    %c0_8 = arith.constant 0 : index
    %7 = vector.load %arg13[%c0_7, %c0_8] : memref<224x256xf32, #tpu.memory_space<vmem>>, vector<224x256xf32>
    %c0_9 = arith.constant 0 : index
    %c8 = arith.constant 8 : index
    %c0_10 = arith.constant 0 : index
    %8 = vector.load %arg1[%c0_9, %c8, %c0_10] : memref<1x256x32xf32, #tpu.memory_space<vmem>>, vector<1x224x32xf32>
    %9 = vector.shape_cast %8 : vector<1x224x32xf32> to vector<224x32xf32>
    %10 = arith.truncf %9 : vector<224x32xf32> to vector<224x32xbf16>
    %c1 = arith.constant 1 : index
    %c0_11 = arith.constant 0 : index
    %c0_12 = arith.constant 0 : index
    %11 = vector.load %arg2[%c1, %c0_11, %c0_12] : memref<5x32x256xbf16, #tpu.memory_space<vmem>>, vector<1x32x256xbf16>
    %12 = vector.shape_cast %11 : vector<1x32x256xbf16> to vector<32x256xbf16>
    %cst_13 = arith.constant dense<0.000000e+00> : vector<224x256xf32>
    %13 = tpu.matmul %10, %12, %cst_13 {dimension_numbers = #tpu.dot_dimension_numbers<[1], [0], [0], [1], [0, 0, 1, 1], [], []>} : vector<224x32xbf16>, vector<32x256xbf16>, vector<224x256xf32> -> vector<224x256xf32>
    %14 = arith.addf %7, %13 : vector<224x256xf32>
    %c0_14 = arith.constant 0 : index
    %c0_15 = arith.constant 0 : index
    %15 = vector.load %arg13[%c0_14, %c0_15] : memref<224x256xf32, #tpu.memory_space<vmem>>, vector<224x256xf32>
    tpu.vector_store %arg13[%c0_14, %c0_15], %14 {strides = array<i32>} : memref<224x256xf32, #tpu.memory_space<vmem>>, vector<224x256xf32>,
    %c0_16 = arith.constant 0 : index
    %c0_17 = arith.constant 0 : index
    %16 = vector.load %arg13[%c0_16, %c0_17] : memref<224x256xf32, #tpu.memory_space<vmem>>, vector<224x256xf32>
    %c0_18 = arith.constant 0 : index
    %c16 = arith.constant 16 : index
    %c0_19 = arith.constant 0 : index
    %17 = vector.load %arg1[%c0_18, %c16, %c0_19] : memref<1x256x32xf32, #tpu.memory_space<vmem>>, vector<1x224x32xf32>
    %18 = vector.shape_cast %17 : vector<1x224x32xf32> to vector<224x32xf32>
    %19 = arith.truncf %18 : vector<224x32xf32> to vector<224x32xbf16>
    %c2 = arith.constant 2 : index
    %c0_20 = arith.constant 0 : index
    %c0_21 = arith.constant 0 : index
    %20 = vector.load %arg2[%c2, %c0_20, %c0_21] : memref<5x32x256xbf16, #tpu.memory_space<vmem>>, vector<1x32x256xbf16>
    %21 = vector.shape_cast %20 : vector<1x32x256xbf16> to vector<32x256xbf16>
    %cst_22 = arith.constant dense<0.000000e+00> : vector<224x256xf32>
    %22 = tpu.matmul %19, %21, %cst_22 {dimension_numbers = #tpu.dot_dimension_numbers<[1], [0], [0], [1], [0, 0, 1, 1], [], []>} : vector<224x32xbf16>, vector<32x256xbf16>, vector<224x256xf32> -> vector<224x256xf32>
    %23 = arith.addf %16, %22 : vector<224x256xf32>
    %c0_23 = arith.constant 0 : index
    %c0_24 = arith.constant 0 : index
    %24 = vector.load %arg13[%c0_23, %c0_24] : memref<224x256xf32, #tpu.memory_space<vmem>>, vector<224x256xf32>
    tpu.vector_store %arg13[%c0_23, %c0_24], %23 {strides = array<i32>} : memref<224x256xf32, #tpu.memory_space<vmem>>, vector<224x256xf32>,
    %c0_25 = arith.constant 0 : index
    %c0_26 = arith.constant 0 : index
    %25 = vector.load %arg13[%c0_25, %c0_26] : memref<224x256xf32, #tpu.memory_space<vmem>>, vector<224x256xf32>
    %c0_27 = arith.constant 0 : index
    %c24 = arith.constant 24 : index
    %c0_28 = arith.constant 0 : index
    %26 = vector.load %arg1[%c0_27, %c24, %c0_28] : memref<1x256x32xf32, #tpu.memory_space<vmem>>, vector<1x224x32xf32>
    %27 = vector.shape_cast %26 : vector<1x224x32xf32> to vector<224x32xf32>
    %28 = arith.truncf %27 : vector<224x32xf32> to vector<224x32xbf16>
    %c3 = arith.constant 3 : index
    %c0_29 = arith.constant 0 : index
    %c0_30 = arith.constant 0 : index
    %29 = vector.load %arg2[%c3, %c0_29, %c0_30] : memref<5x32x256xbf16, #tpu.memory_space<vmem>>, vector<1x32x256xbf16>
    %30 = vector.shape_cast %29 : vector<1x32x256xbf16> to vector<32x256xbf16>
    %cst_31 = arith.constant dense<0.000000e+00> : vector<224x256xf32>
    %31 = tpu.matmul %28, %30, %cst_31 {dimension_numbers = #tpu.dot_dimension_numbers<[1], [0], [0], [1], [0, 0, 1, 1], [], []>} : vector<224x32xbf16>, vector<32x256xbf16>, vector<224x256xf32> -> vector<224x256xf32>
    %32 = arith.addf %25, %31 : vector<224x256xf32>
    %c0_32 = arith.constant 0 : index
    %c0_33 = arith.constant 0 : index
    %33 = vector.load %arg13[%c0_32, %c0_33] : memref<224x256xf32, #tpu.memory_space<vmem>>, vector<224x256xf32>
    tpu.vector_store %arg13[%c0_32, %c0_33], %32 {strides = array<i32>} : memref<224x256xf32, #tpu.memory_space<vmem>>, vector<224x256xf32>,
    %c0_34 = arith.constant 0 : index
    %c0_35 = arith.constant 0 : index
    %34 = vector.load %arg13[%c0_34, %c0_35] : memref<224x256xf32, #tpu.memory_space<vmem>>, vector<224x256xf32>
    %c0_36 = arith.constant 0 : index
    %c32 = arith.constant 32 : index
    %c0_37 = arith.constant 0 : index
    %35 = vector.load %arg1[%c0_36, %c32, %c0_37] : memref<1x256x32xf32, #tpu.memory_space<vmem>>, vector<1x224x32xf32>
    %36 = vector.shape_cast %35 : vector<1x224x32xf32> to vector<224x32xf32>
    %37 = arith.truncf %36 : vector<224x32xf32> to vector<224x32xbf16>
    %c4 = arith.constant 4 : index
    %c0_38 = arith.constant 0 : index
    %c0_39 = arith.constant 0 : index
    %38 = vector.load %arg2[%c4, %c0_38, %c0_39] : memref<5x32x256xbf16, #tpu.memory_space<vmem>>, vector<1x32x256xbf16>
    %39 = vector.shape_cast %38 : vector<1x32x256xbf16> to vector<32x256xbf16>
    %cst_40 = arith.constant dense<0.000000e+00> : vector<224x256xf32>
    %40 = tpu.matmul %37, %39, %cst_40 {dimension_numbers = #tpu.dot_dimension_numbers<[1], [0], [0], [1], [0, 0, 1, 1], [], []>} : vector<224x32xbf16>, vector<32x256xbf16>, vector<224x256xf32> -> vector<224x256xf32>
    %41 = arith.addf %34, %40 : vector<224x256xf32>
    %c0_41 = arith.constant 0 : index
    %c0_42 = arith.constant 0 : index
    %42 = vector.load %arg13[%c0_41, %c0_42] : memref<224x256xf32, #tpu.memory_space<vmem>>, vector<224x256xf32>
    tpu.vector_store %arg13[%c0_41, %c0_42], %41 {strides = array<i32>} : memref<224x256xf32, #tpu.memory_space<vmem>>, vector<224x256xf32>,
    %c0_43 = arith.constant 0 : index
    %c0_44 = arith.constant 0 : index
    %43 = vector.load %arg3[%c0_43, %c0_44] : memref<1x128xf32, #tpu.memory_space<vmem>>, vector<1x128xf32>
    %44 = vector.shape_cast %43 : vector<1x128xf32> to vector<1x128xf32>
    %45 = vector.broadcast %44 : vector<1x128xf32> to vector<8x128xf32>
    %c0_45 = arith.constant 0 : index
    %c0_46 = arith.constant 0 : index
    %46 = vector.load %arg13[%c0_45, %c0_46] : memref<224x256xf32, #tpu.memory_space<vmem>>, vector<8x256xf32>
    %c8_47 = arith.constant 8 : index
    %c0_48 = arith.constant 0 : index
    %47 = vector.load %arg13[%c8_47, %c0_48] : memref<224x256xf32, #tpu.memory_space<vmem>>, vector<8x256xf32>
    %48 = vector.extract_strided_slice %46 {offsets = [0, 0], sizes = [8, 128], strides = [1, 1]} : vector<8x256xf32> to vector<8x128xf32>
    %49 = vector.extract_strided_slice %46 {offsets = [0, 128], sizes = [8, 128], strides = [1, 1]} : vector<8x256xf32> to vector<8x128xf32>
    %50 = arith.maximumf %48, %49 : vector<8x128xf32>
    %51 = vector.extract_strided_slice %47 {offsets = [0, 0], sizes = [8, 128], strides = [1, 1]} : vector<8x256xf32> to vector<8x128xf32>
    %52 = vector.extract_strided_slice %47 {offsets = [0, 128], sizes = [8, 128], strides = [1, 1]} : vector<8x256xf32> to vector<8x128xf32>
    %53 = arith.maximumf %51, %52 : vector<8x128xf32>
    %54 = arith.maximumf %50, %53 : vector<8x128xf32>
    %55 = arith.addf %54, %45 : vector<8x128xf32>
    %cst_49 = arith.constant 0.000000e+00 : f32
    %56 = vector.broadcast %cst_49 : f32 to vector<8x128xf32>
    %57 = arith.maximumf %55, %56 : vector<8x128xf32>
    %c0_50 = arith.constant 0 : index
    %c0_51 = arith.constant 0 : index
    %58 = vector.load %arg14[%c0_50, %c0_51] : memref<112x128xf32, #tpu.memory_space<vmem>>, vector<8x128xf32>
    tpu.vector_store %arg14[%c0_50, %c0_51], %57 {strides = array<i32>} : memref<112x128xf32, #tpu.memory_space<vmem>>, vector<8x128xf32>,
    %c16_52 = arith.constant 16 : index
    %c0_53 = arith.constant 0 : index
    %59 = vector.load %arg13[%c16_52, %c0_53] : memref<224x256xf32, #tpu.memory_space<vmem>>, vector<8x256xf32>
    %c24_54 = arith.constant 24 : index
    %c0_55 = arith.constant 0 : index
    %60 = vector.load %arg13[%c24_54, %c0_55] : memref<224x256xf32, #tpu.memory_space<vmem>>, vector<8x256xf32>
    %61 = vector.extract_strided_slice %59 {offsets = [0, 0], sizes = [8, 128], strides = [1, 1]} : vector<8x256xf32> to vector<8x128xf32>
    %62 = vector.extract_strided_slice %59 {offsets = [0, 128], sizes = [8, 128], strides = [1, 1]} : vector<8x256xf32> to vector<8x128xf32>
    %63 = arith.maximumf %61, %62 : vector<8x128xf32>
    %64 = vector.extract_strided_slice %60 {offsets = [0, 0], sizes = [8, 128], strides = [1, 1]} : vector<8x256xf32> to vector<8x128xf32>
    %65 = vector.extract_strided_slice %60 {offsets = [0, 128], sizes = [8, 128], strides = [1, 1]} : vector<8x256xf32> to vector<8x128xf32>
    %66 = arith.maximumf %64, %65 : vector<8x128xf32>
    %67 = arith.maximumf %63, %66 : vector<8x128xf32>
    %68 = arith.addf %67, %45 : vector<8x128xf32>
    %cst_56 = arith.constant 0.000000e+00 : f32
    %69 = vector.broadcast %cst_56 : f32 to vector<8x128xf32>
    %70 = arith.maximumf %68, %69 : vector<8x128xf32>
    %c8_57 = arith.constant 8 : index
    %c0_58 = arith.constant 0 : index
    %71 = vector.load %arg14[%c8_57, %c0_58] : memref<112x128xf32, #tpu.memory_space<vmem>>, vector<8x128xf32>
    tpu.vector_store %arg14[%c8_57, %c0_58], %70 {strides = array<i32>} : memref<112x128xf32, #tpu.memory_space<vmem>>, vector<8x128xf32>,
    %c32_59 = arith.constant 32 : index
    %c0_60 = arith.constant 0 : index
    %72 = vector.load %arg13[%c32_59, %c0_60] : memref<224x256xf32, #tpu.memory_space<vmem>>, vector<8x256xf32>
    %c40 = arith.constant 40 : index
    %c0_61 = arith.constant 0 : index
    %73 = vector.load %arg13[%c40, %c0_61] : memref<224x256xf32, #tpu.memory_space<vmem>>, vector<8x256xf32>
    %74 = vector.extract_strided_slice %72 {offsets = [0, 0], sizes = [8, 128], strides = [1, 1]} : vector<8x256xf32> to vector<8x128xf32>
    %75 = vector.extract_strided_slice %72 {offsets = [0, 128], sizes = [8, 128], strides = [1, 1]} : vector<8x256xf32> to vector<8x128xf32>
    %76 = arith.maximumf %74, %75 : vector<8x128xf32>
    %77 = vector.extract_strided_slice %73 {offsets = [0, 0], sizes = [8, 128], strides = [1, 1]} : vector<8x256xf32> to vector<8x128xf32>
    %78 = vector.extract_strided_slice %73 {offsets = [0, 128], sizes = [8, 128], strides = [1, 1]} : vector<8x256xf32> to vector<8x128xf32>
    %79 = arith.maximumf %77, %78 : vector<8x128xf32>
    %80 = arith.maximumf %76, %79 : vector<8x128xf32>
    %81 = arith.addf %80, %45 : vector<8x128xf32>
    %cst_62 = arith.constant 0.000000e+00 : f32
    %82 = vector.broadcast %cst_62 : f32 to vector<8x128xf32>
    %83 = arith.maximumf %81, %82 : vector<8x128xf32>
    %c16_63 = arith.constant 16 : index
    %c0_64 = arith.constant 0 : index
    %84 = vector.load %arg14[%c16_63, %c0_64] : memref<112x128xf32, #tpu.memory_space<vmem>>, vector<8x128xf32>
    tpu.vector_store %arg14[%c16_63, %c0_64], %83 {strides = array<i32>} : memref<112x128xf32, #tpu.memory_space<vmem>>, vector<8x128xf32>,
    %c48 = arith.constant 48 : index
    %c0_65 = arith.constant 0 : index
    %85 = vector.load %arg13[%c48, %c0_65] : memref<224x256xf32, #tpu.memory_space<vmem>>, vector<8x256xf32>
    %c56 = arith.constant 56 : index
    %c0_66 = arith.constant 0 : index
    %86 = vector.load %arg13[%c56, %c0_66] : memref<224x256xf32, #tpu.memory_space<vmem>>, vector<8x256xf32>
    %87 = vector.extract_strided_slice %85 {offsets = [0, 0], sizes = [8, 128], strides = [1, 1]} : vector<8x256xf32> to vector<8x128xf32>
    %88 = vector.extract_strided_slice %85 {offsets = [0, 128], sizes = [8, 128], strides = [1, 1]} : vector<8x256xf32> to vector<8x128xf32>
    %89 = arith.maximumf %87, %88 : vector<8x128xf32>
    %90 = vector.extract_strided_slice %86 {offsets = [0, 0], sizes = [8, 128], strides = [1, 1]} : vector<8x256xf32> to vector<8x128xf32>
    %91 = vector.extract_strided_slice %86 {offsets = [0, 128], sizes = [8, 128], strides = [1, 1]} : vector<8x256xf32> to vector<8x128xf32>
    %92 = arith.maximumf %90, %91 : vector<8x128xf32>
    %93 = arith.maximumf %89, %92 : vector<8x128xf32>
    %94 = arith.addf %93, %45 : vector<8x128xf32>
    %cst_67 = arith.constant 0.000000e+00 : f32
    %95 = vector.broadcast %cst_67 : f32 to vector<8x128xf32>
    %96 = arith.maximumf %94, %95 : vector<8x128xf32>
    %c24_68 = arith.constant 24 : index
    %c0_69 = arith.constant 0 : index
    %97 = vector.load %arg14[%c24_68, %c0_69] : memref<112x128xf32, #tpu.memory_space<vmem>>, vector<8x128xf32>
    tpu.vector_store %arg14[%c24_68, %c0_69], %96 {strides = array<i32>} : memref<112x128xf32, #tpu.memory_space<vmem>>, vector<8x128xf32>,
    %c64 = arith.constant 64 : index
    %c0_70 = arith.constant 0 : index
    %98 = vector.load %arg13[%c64, %c0_70] : memref<224x256xf32, #tpu.memory_space<vmem>>, vector<8x256xf32>
    %c72 = arith.constant 72 : index
    %c0_71 = arith.constant 0 : index
    %99 = vector.load %arg13[%c72, %c0_71] : memref<224x256xf32, #tpu.memory_space<vmem>>, vector<8x256xf32>
    %100 = vector.extract_strided_slice %98 {offsets = [0, 0], sizes = [8, 128], strides = [1, 1]} : vector<8x256xf32> to vector<8x128xf32>
    %101 = vector.extract_strided_slice %98 {offsets = [0, 128], sizes = [8, 128], strides = [1, 1]} : vector<8x256xf32> to vector<8x128xf32>
    %102 = arith.maximumf %100, %101 : vector<8x128xf32>
    %103 = vector.extract_strided_slice %99 {offsets = [0, 0], sizes = [8, 128], strides = [1, 1]} : vector<8x256xf32> to vector<8x128xf32>
    %104 = vector.extract_strided_slice %99 {offsets = [0, 128], sizes = [8, 128], strides = [1, 1]} : vector<8x256xf32> to vector<8x128xf32>
    %105 = arith.maximumf %103, %104 : vector<8x128xf32>
    %106 = arith.maximumf %102, %105 : vector<8x128xf32>
    %107 = arith.addf %106, %45 : vector<8x128xf32>
    %cst_72 = arith.constant 0.000000e+00 : f32
    %108 = vector.broadcast %cst_72 : f32 to vector<8x128xf32>
    %109 = arith.maximumf %107, %108 : vector<8x128xf32>
    %c32_73 = arith.constant 32 : index
    %c0_74 = arith.constant 0 : index
    %110 = vector.load %arg14[%c32_73, %c0_74] : memref<112x128xf32, #tpu.memory_space<vmem>>, vector<8x128xf32>
    tpu.vector_store %arg14[%c32_73, %c0_74], %109 {strides = array<i32>} : memref<112x128xf32, #tpu.memory_space<vmem>>, vector<8x128xf32>,
    %c80 = arith.constant 80 : index
    %c0_75 = arith.constant 0 : index
    %111 = vector.load %arg13[%c80, %c0_75] : memref<224x256xf32, #tpu.memory_space<vmem>>, vector<8x256xf32>
    %c88 = arith.constant 88 : index
    %c0_76 = arith.constant 0 : index
    %112 = vector.load %arg13[%c88, %c0_76] : memref<224x256xf32, #tpu.memory_space<vmem>>, vector<8x256xf32>
    %113 = vector.extract_strided_slice %111 {offsets = [0, 0], sizes = [8, 128], strides = [1, 1]} : vector<8x256xf32> to vector<8x128xf32>
    %114 = vector.extract_strided_slice %111 {offsets = [0, 128], sizes = [8, 128], strides = [1, 1]} : vector<8x256xf32> to vector<8x128xf32>
    %115 = arith.maximumf %113, %114 : vector<8x128xf32>
    %116 = vector.extract_strided_slice %112 {offsets = [0, 0], sizes = [8, 128], strides = [1, 1]} : vector<8x256xf32> to vector<8x128xf32>
    %117 = vector.extract_strided_slice %112 {offsets = [0, 128], sizes = [8, 128], strides = [1, 1]} : vector<8x256xf32> to vector<8x128xf32>
    %118 = arith.maximumf %116, %117 : vector<8x128xf32>
    %119 = arith.maximumf %115, %118 : vector<8x128xf32>
    %120 = arith.addf %119, %45 : vector<8x128xf32>
    %cst_77 = arith.constant 0.000000e+00 : f32
    %121 = vector.broadcast %cst_77 : f32 to vector<8x128xf32>
    %122 = arith.maximumf %120, %121 : vector<8x128xf32>
    %c40_78 = arith.constant 40 : index
    %c0_79 = arith.constant 0 : index
    %123 = vector.load %arg14[%c40_78, %c0_79] : memref<112x128xf32, #tpu.memory_space<vmem>>, vector<8x128xf32>
    tpu.vector_store %arg14[%c40_78, %c0_79], %122 {strides = array<i32>} : memref<112x128xf32, #tpu.memory_space<vmem>>, vector<8x128xf32>,
    %c96 = arith.constant 96 : index
    %c0_80 = arith.constant 0 : index
    %124 = vector.load %arg13[%c96, %c0_80] : memref<224x256xf32, #tpu.memory_space<vmem>>, vector<8x256xf32>
    %c104 = arith.constant 104 : index
    %c0_81 = arith.constant 0 : index
    %125 = vector.load %arg13[%c104, %c0_81] : memref<224x256xf32, #tpu.memory_space<vmem>>, vector<8x256xf32>
    %126 = vector.extract_strided_slice %124 {offsets = [0, 0], sizes = [8, 128], strides = [1, 1]} : vector<8x256xf32> to vector<8x128xf32>
    %127 = vector.extract_strided_slice %124 {offsets = [0, 128], sizes = [8, 128], strides = [1, 1]} : vector<8x256xf32> to vector<8x128xf32>
    %128 = arith.maximumf %126, %127 : vector<8x128xf32>
    %129 = vector.extract_strided_slice %125 {offsets = [0, 0], sizes = [8, 128], strides = [1, 1]} : vector<8x256xf32> to vector<8x128xf32>
    %130 = vector.extract_strided_slice %125 {offsets = [0, 128], sizes = [8, 128], strides = [1, 1]} : vector<8x256xf32> to vector<8x128xf32>
    %131 = arith.maximumf %129, %130 : vector<8x128xf32>
    %132 = arith.maximumf %128, %131 : vector<8x128xf32>
    %133 = arith.addf %132, %45 : vector<8x128xf32>
    %cst_82 = arith.constant 0.000000e+00 : f32
    %134 = vector.broadcast %cst_82 : f32 to vector<8x128xf32>
    %135 = arith.maximumf %133, %134 : vector<8x128xf32>
    %c48_83 = arith.constant 48 : index
    %c0_84 = arith.constant 0 : index
    %136 = vector.load %arg14[%c48_83, %c0_84] : memref<112x128xf32, #tpu.memory_space<vmem>>, vector<8x128xf32>
    tpu.vector_store %arg14[%c48_83, %c0_84], %135 {strides = array<i32>} : memref<112x128xf32, #tpu.memory_space<vmem>>, vector<8x128xf32>,
    %c112 = arith.constant 112 : index
    %c0_85 = arith.constant 0 : index
    %137 = vector.load %arg13[%c112, %c0_85] : memref<224x256xf32, #tpu.memory_space<vmem>>, vector<8x256xf32>
    %c120 = arith.constant 120 : index
    %c0_86 = arith.constant 0 : index
    %138 = vector.load %arg13[%c120, %c0_86] : memref<224x256xf32, #tpu.memory_space<vmem>>, vector<8x256xf32>
    %139 = vector.extract_strided_slice %137 {offsets = [0, 0], sizes = [8, 128], strides = [1, 1]} : vector<8x256xf32> to vector<8x128xf32>
    %140 = vector.extract_strided_slice %137 {offsets = [0, 128], sizes = [8, 128], strides = [1, 1]} : vector<8x256xf32> to vector<8x128xf32>
    %141 = arith.maximumf %139, %140 : vector<8x128xf32>
    %142 = vector.extract_strided_slice %138 {offsets = [0, 0], sizes = [8, 128], strides = [1, 1]} : vector<8x256xf32> to vector<8x128xf32>
    %143 = vector.extract_strided_slice %138 {offsets = [0, 128], sizes = [8, 128], strides = [1, 1]} : vector<8x256xf32> to vector<8x128xf32>
    %144 = arith.maximumf %142, %143 : vector<8x128xf32>
    %145 = arith.maximumf %141, %144 : vector<8x128xf32>
    %146 = arith.addf %145, %45 : vector<8x128xf32>
    %cst_87 = arith.constant 0.000000e+00 : f32
    %147 = vector.broadcast %cst_87 : f32 to vector<8x128xf32>
    %148 = arith.maximumf %146, %147 : vector<8x128xf32>
    %c56_88 = arith.constant 56 : index
    %c0_89 = arith.constant 0 : index
    %149 = vector.load %arg14[%c56_88, %c0_89] : memref<112x128xf32, #tpu.memory_space<vmem>>, vector<8x128xf32>
    tpu.vector_store %arg14[%c56_88, %c0_89], %148 {strides = array<i32>} : memref<112x128xf32, #tpu.memory_space<vmem>>, vector<8x128xf32>,
    %c128 = arith.constant 128 : index
    %c0_90 = arith.constant 0 : index
    %150 = vector.load %arg13[%c128, %c0_90] : memref<224x256xf32, #tpu.memory_space<vmem>>, vector<8x256xf32>
    %c136 = arith.constant 136 : index
    %c0_91 = arith.constant 0 : index
    %151 = vector.load %arg13[%c136, %c0_91] : memref<224x256xf32, #tpu.memory_space<vmem>>, vector<8x256xf32>
    %152 = vector.extract_strided_slice %150 {offsets = [0, 0], sizes = [8, 128], strides = [1, 1]} : vector<8x256xf32> to vector<8x128xf32>
    %153 = vector.extract_strided_slice %150 {offsets = [0, 128], sizes = [8, 128], strides = [1, 1]} : vector<8x256xf32> to vector<8x128xf32>
    %154 = arith.maximumf %152, %153 : vector<8x128xf32>
    %155 = vector.extract_strided_slice %151 {offsets = [0, 0], sizes = [8, 128], strides = [1, 1]} : vector<8x256xf32> to vector<8x128xf32>
    %156 = vector.extract_strided_slice %151 {offsets = [0, 128], sizes = [8, 128], strides = [1, 1]} : vector<8x256xf32> to vector<8x128xf32>
    %157 = arith.maximumf %155, %156 : vector<8x128xf32>
    %158 = arith.maximumf %154, %157 : vector<8x128xf32>
    %159 = arith.addf %158, %45 : vector<8x128xf32>
    %cst_92 = arith.constant 0.000000e+00 : f32
    %160 = vector.broadcast %cst_92 : f32 to vector<8x128xf32>
    %161 = arith.maximumf %159, %160 : vector<8x128xf32>
    %c64_93 = arith.constant 64 : index
    %c0_94 = arith.constant 0 : index
    %162 = vector.load %arg14[%c64_93, %c0_94] : memref<112x128xf32, #tpu.memory_space<vmem>>, vector<8x128xf32>
    tpu.vector_store %arg14[%c64_93, %c0_94], %161 {strides = array<i32>} : memref<112x128xf32, #tpu.memory_space<vmem>>, vector<8x128xf32>,
    %c144 = arith.constant 144 : index
    %c0_95 = arith.constant 0 : index
    %163 = vector.load %arg13[%c144, %c0_95] : memref<224x256xf32, #tpu.memory_space<vmem>>, vector<8x256xf32>
    %c152 = arith.constant 152 : index
    %c0_96 = arith.constant 0 : index
    %164 = vector.load %arg13[%c152, %c0_96] : memref<224x256xf32, #tpu.memory_space<vmem>>, vector<8x256xf32>
    %165 = vector.extract_strided_slice %163 {offsets = [0, 0], sizes = [8, 128], strides = [1, 1]} : vector<8x256xf32> to vector<8x128xf32>
    %166 = vector.extract_strided_slice %163 {offsets = [0, 128], sizes = [8, 128], strides = [1, 1]} : vector<8x256xf32> to vector<8x128xf32>
    %167 = arith.maximumf %165, %166 : vector<8x128xf32>
    %168 = vector.extract_strided_slice %164 {offsets = [0, 0], sizes = [8, 128], strides = [1, 1]} : vector<8x256xf32> to vector<8x128xf32>
    %169 = vector.extract_strided_slice %164 {offsets = [0, 128], sizes = [8, 128], strides = [1, 1]} : vector<8x256xf32> to vector<8x128xf32>
    %170 = arith.maximumf %168, %169 : vector<8x128xf32>
    %171 = arith.maximumf %167, %170 : vector<8x128xf32>
    %172 = arith.addf %171, %45 : vector<8x128xf32>
    %cst_97 = arith.constant 0.000000e+00 : f32
    %173 = vector.broadcast %cst_97 : f32 to vector<8x128xf32>
    %174 = arith.maximumf %172, %173 : vector<8x128xf32>
    %c72_98 = arith.constant 72 : index
    %c0_99 = arith.constant 0 : index
    %175 = vector.load %arg14[%c72_98, %c0_99] : memref<112x128xf32, #tpu.memory_space<vmem>>, vector<8x128xf32>
    tpu.vector_store %arg14[%c72_98, %c0_99], %174 {strides = array<i32>} : memref<112x128xf32, #tpu.memory_space<vmem>>, vector<8x128xf32>,
    %c160 = arith.constant 160 : index
    %c0_100 = arith.constant 0 : index
    %176 = vector.load %arg13[%c160, %c0_100] : memref<224x256xf32, #tpu.memory_space<vmem>>, vector<8x256xf32>
    %c168 = arith.constant 168 : index
    %c0_101 = arith.constant 0 : index
    %177 = vector.load %arg13[%c168, %c0_101] : memref<224x256xf32, #tpu.memory_space<vmem>>, vector<8x256xf32>
    %178 = vector.extract_strided_slice %176 {offsets = [0, 0], sizes = [8, 128], strides = [1, 1]} : vector<8x256xf32> to vector<8x128xf32>
    %179 = vector.extract_strided_slice %176 {offsets = [0, 128], sizes = [8, 128], strides = [1, 1]} : vector<8x256xf32> to vector<8x128xf32>
    %180 = arith.maximumf %178, %179 : vector<8x128xf32>
    %181 = vector.extract_strided_slice %177 {offsets = [0, 0], sizes = [8, 128], strides = [1, 1]} : vector<8x256xf32> to vector<8x128xf32>
    %182 = vector.extract_strided_slice %177 {offsets = [0, 128], sizes = [8, 128], strides = [1, 1]} : vector<8x256xf32> to vector<8x128xf32>
    %183 = arith.maximumf %181, %182 : vector<8x128xf32>
    %184 = arith.maximumf %180, %183 : vector<8x128xf32>
    %185 = arith.addf %184, %45 : vector<8x128xf32>
    %cst_102 = arith.constant 0.000000e+00 : f32
    %186 = vector.broadcast %cst_102 : f32 to vector<8x128xf32>
    %187 = arith.maximumf %185, %186 : vector<8x128xf32>
    %c80_103 = arith.constant 80 : index
    %c0_104 = arith.constant 0 : index
    %188 = vector.load %arg14[%c80_103, %c0_104] : memref<112x128xf32, #tpu.memory_space<vmem>>, vector<8x128xf32>
    tpu.vector_store %arg14[%c80_103, %c0_104], %187 {strides = array<i32>} : memref<112x128xf32, #tpu.memory_space<vmem>>, vector<8x128xf32>,
    %c176 = arith.constant 176 : index
    %c0_105 = arith.constant 0 : index
    %189 = vector.load %arg13[%c176, %c0_105] : memref<224x256xf32, #tpu.memory_space<vmem>>, vector<8x256xf32>
    %c184 = arith.constant 184 : index
    %c0_106 = arith.constant 0 : index
    %190 = vector.load %arg13[%c184, %c0_106] : memref<224x256xf32, #tpu.memory_space<vmem>>, vector<8x256xf32>
    %191 = vector.extract_strided_slice %189 {offsets = [0, 0], sizes = [8, 128], strides = [1, 1]} : vector<8x256xf32> to vector<8x128xf32>
    %192 = vector.extract_strided_slice %189 {offsets = [0, 128], sizes = [8, 128], strides = [1, 1]} : vector<8x256xf32> to vector<8x128xf32>
    %193 = arith.maximumf %191, %192 : vector<8x128xf32>
    %194 = vector.extract_strided_slice %190 {offsets = [0, 0], sizes = [8, 128], strides = [1, 1]} : vector<8x256xf32> to vector<8x128xf32>
    %195 = vector.extract_strided_slice %190 {offsets = [0, 128], sizes = [8, 128], strides = [1, 1]} : vector<8x256xf32> to vector<8x128xf32>
    %196 = arith.maximumf %194, %195 : vector<8x128xf32>
    %197 = arith.maximumf %193, %196 : vector<8x128xf32>
    %198 = arith.addf %197, %45 : vector<8x128xf32>
    %cst_107 = arith.constant 0.000000e+00 : f32
    %199 = vector.broadcast %cst_107 : f32 to vector<8x128xf32>
    %200 = arith.maximumf %198, %199 : vector<8x128xf32>
    %c88_108 = arith.constant 88 : index
    %c0_109 = arith.constant 0 : index
    %201 = vector.load %arg14[%c88_108, %c0_109] : memref<112x128xf32, #tpu.memory_space<vmem>>, vector<8x128xf32>
    tpu.vector_store %arg14[%c88_108, %c0_109], %200 {strides = array<i32>} : memref<112x128xf32, #tpu.memory_space<vmem>>, vector<8x128xf32>,
    %c192 = arith.constant 192 : index
    %c0_110 = arith.constant 0 : index
    %202 = vector.load %arg13[%c192, %c0_110] : memref<224x256xf32, #tpu.memory_space<vmem>>, vector<8x256xf32>
    %c200 = arith.constant 200 : index
    %c0_111 = arith.constant 0 : index
    %203 = vector.load %arg13[%c200, %c0_111] : memref<224x256xf32, #tpu.memory_space<vmem>>, vector<8x256xf32>
    %204 = vector.extract_strided_slice %202 {offsets = [0, 0], sizes = [8, 128], strides = [1, 1]} : vector<8x256xf32> to vector<8x128xf32>
    %205 = vector.extract_strided_slice %202 {offsets = [0, 128], sizes = [8, 128], strides = [1, 1]} : vector<8x256xf32> to vector<8x128xf32>
    %206 = arith.maximumf %204, %205 : vector<8x128xf32>
    %207 = vector.extract_strided_slice %203 {offsets = [0, 0], sizes = [8, 128], strides = [1, 1]} : vector<8x256xf32> to vector<8x128xf32>
    %208 = vector.extract_strided_slice %203 {offsets = [0, 128], sizes = [8, 128], strides = [1, 1]} : vector<8x256xf32> to vector<8x128xf32>
    %209 = arith.maximumf %207, %208 : vector<8x128xf32>
    %210 = arith.maximumf %206, %209 : vector<8x128xf32>
    %211 = arith.addf %210, %45 : vector<8x128xf32>
    %cst_112 = arith.constant 0.000000e+00 : f32
    %212 = vector.broadcast %cst_112 : f32 to vector<8x128xf32>
    %213 = arith.maximumf %211, %212 : vector<8x128xf32>
    %c96_113 = arith.constant 96 : index
    %c0_114 = arith.constant 0 : index
    %214 = vector.load %arg14[%c96_113, %c0_114] : memref<112x128xf32, #tpu.memory_space<vmem>>, vector<8x128xf32>
    tpu.vector_store %arg14[%c96_113, %c0_114], %213 {strides = array<i32>} : memref<112x128xf32, #tpu.memory_space<vmem>>, vector<8x128xf32>,
    %c208 = arith.constant 208 : index
    %c0_115 = arith.constant 0 : index
    %215 = vector.load %arg13[%c208, %c0_115] : memref<224x256xf32, #tpu.memory_space<vmem>>, vector<8x256xf32>
    %c216 = arith.constant 216 : index
    %c0_116 = arith.constant 0 : index
    %216 = vector.load %arg13[%c216, %c0_116] : memref<224x256xf32, #tpu.memory_space<vmem>>, vector<8x256xf32>
    %217 = vector.extract_strided_slice %215 {offsets = [0, 0], sizes = [8, 128], strides = [1, 1]} : vector<8x256xf32> to vector<8x128xf32>
    %218 = vector.extract_strided_slice %215 {offsets = [0, 128], sizes = [8, 128], strides = [1, 1]} : vector<8x256xf32> to vector<8x128xf32>
    %219 = arith.maximumf %217, %218 : vector<8x128xf32>
    %220 = vector.extract_strided_slice %216 {offsets = [0, 0], sizes = [8, 128], strides = [1, 1]} : vector<8x256xf32> to vector<8x128xf32>
    %221 = vector.extract_strided_slice %216 {offsets = [0, 128], sizes = [8, 128], strides = [1, 1]} : vector<8x256xf32> to vector<8x128xf32>
    %222 = arith.maximumf %220, %221 : vector<8x128xf32>
    %223 = arith.maximumf %219, %222 : vector<8x128xf32>
    %224 = arith.addf %223, %45 : vector<8x128xf32>
    %cst_117 = arith.constant 0.000000e+00 : f32
    %225 = vector.broadcast %cst_117 : f32 to vector<8x128xf32>
    %226 = arith.maximumf %224, %225 : vector<8x128xf32>
    %c104_118 = arith.constant 104 : index
    %c0_119 = arith.constant 0 : index
    %227 = vector.load %arg14[%c104_118, %c0_119] : memref<112x128xf32, #tpu.memory_space<vmem>>, vector<8x128xf32>
    tpu.vector_store %arg14[%c104_118, %c0_119], %226 {strides = array<i32>} : memref<112x128xf32, #tpu.memory_space<vmem>>, vector<8x128xf32>,
    %c0_120 = arith.constant 0 : index
    %c0_121 = arith.constant 0 : index
    %228 = vector.load %arg14[%c0_120, %c0_121] : memref<112x128xf32, #tpu.memory_space<vmem>>, vector<80x128xf32>
    %229 = arith.truncf %228 : vector<80x128xf32> to vector<80x128xbf16>
    %c0_122 = arith.constant 0 : index
    %c0_123 = arith.constant 0 : index
    %c0_124 = arith.constant 0 : index
    %230 = vector.load %arg4[%c0_122, %c0_123, %c0_124] : memref<5x128x256xbf16, #tpu.memory_space<vmem>>, vector<1x128x256xbf16>
    %231 = vector.shape_cast %230 : vector<1x128x256xbf16> to vector<128x256xbf16>
    %cst_125 = arith.constant dense<0.000000e+00> : vector<80x256xf32>
    %232 = tpu.matmul %229, %231, %cst_125 {dimension_numbers = #tpu.dot_dimension_numbers<[1], [0], [0], [1], [0, 0, 1, 1], [], []>} : vector<80x128xbf16>, vector<128x256xbf16>, vector<80x256xf32> -> vector<80x256xf32>
    %c0_126 = arith.constant 0 : index
    %c0_127 = arith.constant 0 : index
    %233 = vector.load %arg15[%c0_126, %c0_127] : memref<80x256xf32, #tpu.memory_space<vmem>>, vector<80x256xf32>
    tpu.vector_store %arg15[%c0_126, %c0_127], %232 {strides = array<i32>} : memref<80x256xf32, #tpu.memory_space<vmem>>, vector<80x256xf32>,
    %c0_128 = arith.constant 0 : index
    %c0_129 = arith.constant 0 : index
    %234 = vector.load %arg15[%c0_128, %c0_129] : memref<80x256xf32, #tpu.memory_space<vmem>>, vector<80x256xf32>
    %c8_130 = arith.constant 8 : index
    %c0_131 = arith.constant 0 : index
    %235 = vector.load %arg14[%c8_130, %c0_131] : memref<112x128xf32, #tpu.memory_space<vmem>>, vector<80x128xf32>
    %236 = arith.truncf %235 : vector<80x128xf32> to vector<80x128xbf16>
    %c1_132 = arith.constant 1 : index
    %c0_133 = arith.constant 0 : index
    %c0_134 = arith.constant 0 : index
    %237 = vector.load %arg4[%c1_132, %c0_133, %c0_134] : memref<5x128x256xbf16, #tpu.memory_space<vmem>>, vector<1x128x256xbf16>
    %238 = vector.shape_cast %237 : vector<1x128x256xbf16> to vector<128x256xbf16>
    %cst_135 = arith.constant dense<0.000000e+00> : vector<80x256xf32>
    %239 = tpu.matmul %236, %238, %cst_135 {dimension_numbers = #tpu.dot_dimension_numbers<[1], [0], [0], [1], [0, 0, 1, 1], [], []>} : vector<80x128xbf16>, vector<128x256xbf16>, vector<80x256xf32> -> vector<80x256xf32>
    %240 = arith.addf %234, %239 : vector<80x256xf32>
    %c0_136 = arith.constant 0 : index
    %c0_137 = arith.constant 0 : index
    %241 = vector.load %arg15[%c0_136, %c0_137] : memref<80x256xf32, #tpu.memory_space<vmem>>, vector<80x256xf32>
    tpu.vector_store %arg15[%c0_136, %c0_137], %240 {strides = array<i32>} : memref<80x256xf32, #tpu.memory_space<vmem>>, vector<80x256xf32>,
    %c0_138 = arith.constant 0 : index
    %c0_139 = arith.constant 0 : index
    %242 = vector.load %arg15[%c0_138, %c0_139] : memref<80x256xf32, #tpu.memory_space<vmem>>, vector<80x256xf32>
    %c16_140 = arith.constant 16 : index
    %c0_141 = arith.constant 0 : index
    %243 = vector.load %arg14[%c16_140, %c0_141] : memref<112x128xf32, #tpu.memory_space<vmem>>, vector<80x128xf32>
    %244 = arith.truncf %243 : vector<80x128xf32> to vector<80x128xbf16>
    %c2_142 = arith.constant 2 : index
    %c0_143 = arith.constant 0 : index
    %c0_144 = arith.constant 0 : index
    %245 = vector.load %arg4[%c2_142, %c0_143, %c0_144] : memref<5x128x256xbf16, #tpu.memory_space<vmem>>, vector<1x128x256xbf16>
    %246 = vector.shape_cast %245 : vector<1x128x256xbf16> to vector<128x256xbf16>
    %cst_145 = arith.constant dense<0.000000e+00> : vector<80x256xf32>
    %247 = tpu.matmul %244, %246, %cst_145 {dimension_numbers = #tpu.dot_dimension_numbers<[1], [0], [0], [1], [0, 0, 1, 1], [], []>} : vector<80x128xbf16>, vector<128x256xbf16>, vector<80x256xf32> -> vector<80x256xf32>
    %248 = arith.addf %242, %247 : vector<80x256xf32>
    %c0_146 = arith.constant 0 : index
    %c0_147 = arith.constant 0 : index
    %249 = vector.load %arg15[%c0_146, %c0_147] : memref<80x256xf32, #tpu.memory_space<vmem>>, vector<80x256xf32>
    tpu.vector_store %arg15[%c0_146, %c0_147], %248 {strides = array<i32>} : memref<80x256xf32, #tpu.memory_space<vmem>>, vector<80x256xf32>,
    %c0_148 = arith.constant 0 : index
    %c0_149 = arith.constant 0 : index
    %250 = vector.load %arg15[%c0_148, %c0_149] : memref<80x256xf32, #tpu.memory_space<vmem>>, vector<80x256xf32>
    %c24_150 = arith.constant 24 : index
    %c0_151 = arith.constant 0 : index
    %251 = vector.load %arg14[%c24_150, %c0_151] : memref<112x128xf32, #tpu.memory_space<vmem>>, vector<80x128xf32>
    %252 = arith.truncf %251 : vector<80x128xf32> to vector<80x128xbf16>
    %c3_152 = arith.constant 3 : index
    %c0_153 = arith.constant 0 : index
    %c0_154 = arith.constant 0 : index
    %253 = vector.load %arg4[%c3_152, %c0_153, %c0_154] : memref<5x128x256xbf16, #tpu.memory_space<vmem>>, vector<1x128x256xbf16>
    %254 = vector.shape_cast %253 : vector<1x128x256xbf16> to vector<128x256xbf16>
    %cst_155 = arith.constant dense<0.000000e+00> : vector<80x256xf32>
    %255 = tpu.matmul %252, %254, %cst_155 {dimension_numbers = #tpu.dot_dimension_numbers<[1], [0], [0], [1], [0, 0, 1, 1], [], []>} : vector<80x128xbf16>, vector<128x256xbf16>, vector<80x256xf32> -> vector<80x256xf32>
    %256 = arith.addf %250, %255 : vector<80x256xf32>
    %c0_156 = arith.constant 0 : index
    %c0_157 = arith.constant 0 : index
    %257 = vector.load %arg15[%c0_156, %c0_157] : memref<80x256xf32, #tpu.memory_space<vmem>>, vector<80x256xf32>
    tpu.vector_store %arg15[%c0_156, %c0_157], %256 {strides = array<i32>} : memref<80x256xf32, #tpu.memory_space<vmem>>, vector<80x256xf32>,
    %c0_158 = arith.constant 0 : index
    %c0_159 = arith.constant 0 : index
    %258 = vector.load %arg15[%c0_158, %c0_159] : memref<80x256xf32, #tpu.memory_space<vmem>>, vector<80x256xf32>
    %c32_160 = arith.constant 32 : index
    %c0_161 = arith.constant 0 : index
    %259 = vector.load %arg14[%c32_160, %c0_161] : memref<112x128xf32, #tpu.memory_space<vmem>>, vector<80x128xf32>
    %260 = arith.truncf %259 : vector<80x128xf32> to vector<80x128xbf16>
    %c4_162 = arith.constant 4 : index
    %c0_163 = arith.constant 0 : index
    %c0_164 = arith.constant 0 : index
    %261 = vector.load %arg4[%c4_162, %c0_163, %c0_164] : memref<5x128x256xbf16, #tpu.memory_space<vmem>>, vector<1x128x256xbf16>
    %262 = vector.shape_cast %261 : vector<1x128x256xbf16> to vector<128x256xbf16>
    %cst_165 = arith.constant dense<0.000000e+00> : vector<80x256xf32>
    %263 = tpu.matmul %260, %262, %cst_165 {dimension_numbers = #tpu.dot_dimension_numbers<[1], [0], [0], [1], [0, 0, 1, 1], [], []>} : vector<80x128xbf16>, vector<128x256xbf16>, vector<80x256xf32> -> vector<80x256xf32>
    %264 = arith.addf %258, %263 : vector<80x256xf32>
    %c0_166 = arith.constant 0 : index
    %c0_167 = arith.constant 0 : index
    %265 = vector.load %arg15[%c0_166, %c0_167] : memref<80x256xf32, #tpu.memory_space<vmem>>, vector<80x256xf32>
    tpu.vector_store %arg15[%c0_166, %c0_167], %264 {strides = array<i32>} : memref<80x256xf32, #tpu.memory_space<vmem>>, vector<80x256xf32>,
    %c0_168 = arith.constant 0 : index
    %c0_169 = arith.constant 0 : index
    %266 = vector.load %arg5[%c0_168, %c0_169] : memref<1x128xf32, #tpu.memory_space<vmem>>, vector<1x128xf32>
    %267 = vector.shape_cast %266 : vector<1x128xf32> to vector<1x128xf32>
    %268 = vector.broadcast %267 : vector<1x128xf32> to vector<8x128xf32>
    %c0_170 = arith.constant 0 : index
    %c0_171 = arith.constant 0 : index
    %269 = vector.load %arg15[%c0_170, %c0_171] : memref<80x256xf32, #tpu.memory_space<vmem>>, vector<8x256xf32>
    %c8_172 = arith.constant 8 : index
    %c0_173 = arith.constant 0 : index
    %270 = vector.load %arg15[%c8_172, %c0_173] : memref<80x256xf32, #tpu.memory_space<vmem>>, vector<8x256xf32>
    %271 = vector.extract_strided_slice %269 {offsets = [0, 0], sizes = [8, 128], strides = [1, 1]} : vector<8x256xf32> to vector<8x128xf32>
    %272 = vector.extract_strided_slice %269 {offsets = [0, 128], sizes = [8, 128], strides = [1, 1]} : vector<8x256xf32> to vector<8x128xf32>
    %273 = arith.maximumf %271, %272 : vector<8x128xf32>
    %274 = vector.extract_strided_slice %270 {offsets = [0, 0], sizes = [8, 128], strides = [1, 1]} : vector<8x256xf32> to vector<8x128xf32>
    %275 = vector.extract_strided_slice %270 {offsets = [0, 128], sizes = [8, 128], strides = [1, 1]} : vector<8x256xf32> to vector<8x128xf32>
    %276 = arith.maximumf %274, %275 : vector<8x128xf32>
    %277 = arith.maximumf %273, %276 : vector<8x128xf32>
    %278 = arith.addf %277, %268 : vector<8x128xf32>
    %cst_174 = arith.constant 0.000000e+00 : f32
    %279 = vector.broadcast %cst_174 : f32 to vector<8x128xf32>
    %280 = arith.maximumf %278, %279 : vector<8x128xf32>
    %281 = arith.truncf %280 : vector<8x128xf32> to vector<8x128xbf16>
    %c16_175 = arith.constant 16 : index
    %c0_176 = arith.constant 0 : index
    %282 = vector.load %arg15[%c16_175, %c0_176] : memref<80x256xf32, #tpu.memory_space<vmem>>, vector<8x256xf32>
    %c24_177 = arith.constant 24 : index
    %c0_178 = arith.constant 0 : index
    %283 = vector.load %arg15[%c24_177, %c0_178] : memref<80x256xf32, #tpu.memory_space<vmem>>, vector<8x256xf32>
    %284 = vector.extract_strided_slice %282 {offsets = [0, 0], sizes = [8, 128], strides = [1, 1]} : vector<8x256xf32> to vector<8x128xf32>
    %285 = vector.extract_strided_slice %282 {offsets = [0, 128], sizes = [8, 128], strides = [1, 1]} : vector<8x256xf32> to vector<8x128xf32>
    %286 = arith.maximumf %284, %285 : vector<8x128xf32>
    %287 = vector.extract_strided_slice %283 {offsets = [0, 0], sizes = [8, 128], strides = [1, 1]} : vector<8x256xf32> to vector<8x128xf32>
    %288 = vector.extract_strided_slice %283 {offsets = [0, 128], sizes = [8, 128], strides = [1, 1]} : vector<8x256xf32> to vector<8x128xf32>
    %289 = arith.maximumf %287, %288 : vector<8x128xf32>
    %290 = arith.maximumf %286, %289 : vector<8x128xf32>
    %291 = arith.addf %290, %268 : vector<8x128xf32>
    %cst_179 = arith.constant 0.000000e+00 : f32
    %292 = vector.broadcast %cst_179 : f32 to vector<8x128xf32>
    %293 = arith.maximumf %291, %292 : vector<8x128xf32>
    %294 = arith.truncf %293 : vector<8x128xf32> to vector<8x128xbf16>
    %c32_180 = arith.constant 32 : index
    %c0_181 = arith.constant 0 : index
    %295 = vector.load %arg15[%c32_180, %c0_181] : memref<80x256xf32, #tpu.memory_space<vmem>>, vector<8x256xf32>
    %c40_182 = arith.constant 40 : index
    %c0_183 = arith.constant 0 : index
    %296 = vector.load %arg15[%c40_182, %c0_183] : memref<80x256xf32, #tpu.memory_space<vmem>>, vector<8x256xf32>
    %297 = vector.extract_strided_slice %295 {offsets = [0, 0], sizes = [8, 128], strides = [1, 1]} : vector<8x256xf32> to vector<8x128xf32>
    %298 = vector.extract_strided_slice %295 {offsets = [0, 128], sizes = [8, 128], strides = [1, 1]} : vector<8x256xf32> to vector<8x128xf32>
    %299 = arith.maximumf %297, %298 : vector<8x128xf32>
    %300 = vector.extract_strided_slice %296 {offsets = [0, 0], sizes = [8, 128], strides = [1, 1]} : vector<8x256xf32> to vector<8x128xf32>
    %301 = vector.extract_strided_slice %296 {offsets = [0, 128], sizes = [8, 128], strides = [1, 1]} : vector<8x256xf32> to vector<8x128xf32>
    %302 = arith.maximumf %300, %301 : vector<8x128xf32>
    %303 = arith.maximumf %299, %302 : vector<8x128xf32>
    %304 = arith.addf %303, %268 : vector<8x128xf32>
    %cst_184 = arith.constant 0.000000e+00 : f32
    %305 = vector.broadcast %cst_184 : f32 to vector<8x128xf32>
    %306 = arith.maximumf %304, %305 : vector<8x128xf32>
    %307 = arith.truncf %306 : vector<8x128xf32> to vector<8x128xbf16>
    %c48_185 = arith.constant 48 : index
    %c0_186 = arith.constant 0 : index
    %308 = vector.load %arg15[%c48_185, %c0_186] : memref<80x256xf32, #tpu.memory_space<vmem>>, vector<8x256xf32>
    %c56_187 = arith.constant 56 : index
    %c0_188 = arith.constant 0 : index
    %309 = vector.load %arg15[%c56_187, %c0_188] : memref<80x256xf32, #tpu.memory_space<vmem>>, vector<8x256xf32>
    %310 = vector.extract_strided_slice %308 {offsets = [0, 0], sizes = [8, 128], strides = [1, 1]} : vector<8x256xf32> to vector<8x128xf32>
    %311 = vector.extract_strided_slice %308 {offsets = [0, 128], sizes = [8, 128], strides = [1, 1]} : vector<8x256xf32> to vector<8x128xf32>
    %312 = arith.maximumf %310, %311 : vector<8x128xf32>
    %313 = vector.extract_strided_slice %309 {offsets = [0, 0], sizes = [8, 128], strides = [1, 1]} : vector<8x256xf32> to vector<8x128xf32>
    %314 = vector.extract_strided_slice %309 {offsets = [0, 128], sizes = [8, 128], strides = [1, 1]} : vector<8x256xf32> to vector<8x128xf32>
    %315 = arith.maximumf %313, %314 : vector<8x128xf32>
    %316 = arith.maximumf %312, %315 : vector<8x128xf32>
    %317 = arith.addf %316, %268 : vector<8x128xf32>
    %cst_189 = arith.constant 0.000000e+00 : f32
    %318 = vector.broadcast %cst_189 : f32 to vector<8x128xf32>
    %319 = arith.maximumf %317, %318 : vector<8x128xf32>
    %320 = arith.truncf %319 : vector<8x128xf32> to vector<8x128xbf16>
    %c64_190 = arith.constant 64 : index
    %c0_191 = arith.constant 0 : index
    %321 = vector.load %arg15[%c64_190, %c0_191] : memref<80x256xf32, #tpu.memory_space<vmem>>, vector<8x256xf32>
    %c72_192 = arith.constant 72 : index
    %c0_193 = arith.constant 0 : index
    %322 = vector.load %arg15[%c72_192, %c0_193] : memref<80x256xf32, #tpu.memory_space<vmem>>, vector<8x256xf32>
    %323 = vector.extract_strided_slice %321 {offsets = [0, 0], sizes = [8, 128], strides = [1, 1]} : vector<8x256xf32> to vector<8x128xf32>
    %324 = vector.extract_strided_slice %321 {offsets = [0, 128], sizes = [8, 128], strides = [1, 1]} : vector<8x256xf32> to vector<8x128xf32>
    %325 = arith.maximumf %323, %324 : vector<8x128xf32>
    %326 = vector.extract_strided_slice %322 {offsets = [0, 0], sizes = [8, 128], strides = [1, 1]} : vector<8x256xf32> to vector<8x128xf32>
    %327 = vector.extract_strided_slice %322 {offsets = [0, 128], sizes = [8, 128], strides = [1, 1]} : vector<8x256xf32> to vector<8x128xf32>
    %328 = arith.maximumf %326, %327 : vector<8x128xf32>
    %329 = arith.maximumf %325, %328 : vector<8x128xf32>
    %330 = arith.addf %329, %268 : vector<8x128xf32>
    %cst_194 = arith.constant 0.000000e+00 : f32
    %331 = vector.broadcast %cst_194 : f32 to vector<8x128xf32>
    %332 = arith.maximumf %330, %331 : vector<8x128xf32>
    %333 = arith.truncf %332 : vector<8x128xf32> to vector<8x128xbf16>
    %c0_195 = arith.constant 0 : index
    %c0_196 = arith.constant 0 : index
    %c0_197 = arith.constant 0 : index
    %334 = vector.load %arg6[%c0_195, %c0_196, %c0_197] : memref<5x128x1024xbf16, #tpu.memory_space<vmem>>, vector<1x128x1024xbf16>
    %335 = vector.shape_cast %334 : vector<1x128x1024xbf16> to vector<128x1024xbf16>
    %cst_198 = arith.constant dense<0.000000e+00> : vector<8x1024xf32>
    %336 = tpu.matmul %281, %335, %cst_198 {dimension_numbers = #tpu.dot_dimension_numbers<[1], [0], [0], [1], [0, 0, 1, 1], [], []>} : vector<8x128xbf16>, vector<128x1024xbf16>, vector<8x1024xf32> -> vector<8x1024xf32>
    %c1_199 = arith.constant 1 : index
    %c0_200 = arith.constant 0 : index
    %c0_201 = arith.constant 0 : index
    %337 = vector.load %arg6[%c1_199, %c0_200, %c0_201] : memref<5x128x1024xbf16, #tpu.memory_space<vmem>>, vector<1x128x1024xbf16>
    %338 = vector.shape_cast %337 : vector<1x128x1024xbf16> to vector<128x1024xbf16>
    %cst_202 = arith.constant dense<0.000000e+00> : vector<8x1024xf32>
    %339 = tpu.matmul %294, %338, %cst_202 {dimension_numbers = #tpu.dot_dimension_numbers<[1], [0], [0], [1], [0, 0, 1, 1], [], []>} : vector<8x128xbf16>, vector<128x1024xbf16>, vector<8x1024xf32> -> vector<8x1024xf32>
    %340 = arith.addf %336, %339 : vector<8x1024xf32>
    %c2_203 = arith.constant 2 : index
    %c0_204 = arith.constant 0 : index
    %c0_205 = arith.constant 0 : index
    %341 = vector.load %arg6[%c2_203, %c0_204, %c0_205] : memref<5x128x1024xbf16, #tpu.memory_space<vmem>>, vector<1x128x1024xbf16>
    %342 = vector.shape_cast %341 : vector<1x128x1024xbf16> to vector<128x1024xbf16>
    %cst_206 = arith.constant dense<0.000000e+00> : vector<8x1024xf32>
    %343 = tpu.matmul %307, %342, %cst_206 {dimension_numbers = #tpu.dot_dimension_numbers<[1], [0], [0], [1], [0, 0, 1, 1], [], []>} : vector<8x128xbf16>, vector<128x1024xbf16>, vector<8x1024xf32> -> vector<8x1024xf32>
    %344 = arith.addf %340, %343 : vector<8x1024xf32>
    %c3_207 = arith.constant 3 : index
    %c0_208 = arith.constant 0 : index
    %c0_209 = arith.constant 0 : index
    %345 = vector.load %arg6[%c3_207, %c0_208, %c0_209] : memref<5x128x1024xbf16, #tpu.memory_space<vmem>>, vector<1x128x1024xbf16>
    %346 = vector.shape_cast %345 : vector<1x128x1024xbf16> to vector<128x1024xbf16>
    %cst_210 = arith.constant dense<0.000000e+00> : vector<8x1024xf32>
    %347 = tpu.matmul %320, %346, %cst_210 {dimension_numbers = #tpu.dot_dimension_numbers<[1], [0], [0], [1], [0, 0, 1, 1], [], []>} : vector<8x128xbf16>, vector<128x1024xbf16>, vector<8x1024xf32> -> vector<8x1024xf32>
    %348 = arith.addf %344, %347 : vector<8x1024xf32>
    %c4_211 = arith.constant 4 : index
    %c0_212 = arith.constant 0 : index
    %c0_213 = arith.constant 0 : index
    %349 = vector.load %arg6[%c4_211, %c0_212, %c0_213] : memref<5x128x1024xbf16, #tpu.memory_space<vmem>>, vector<1x128x1024xbf16>
    %350 = vector.shape_cast %349 : vector<1x128x1024xbf16> to vector<128x1024xbf16>
    %cst_214 = arith.constant dense<0.000000e+00> : vector<8x1024xf32>
    %351 = tpu.matmul %333, %350, %cst_214 {dimension_numbers = #tpu.dot_dimension_numbers<[1], [0], [0], [1], [0, 0, 1, 1], [], []>} : vector<8x128xbf16>, vector<128x1024xbf16>, vector<8x1024xf32> -> vector<8x1024xf32>
    %352 = arith.addf %348, %351 : vector<8x1024xf32>
    %c0_215 = arith.constant 0 : index
    %c0_216 = arith.constant 0 : index
    %353 = vector.load %arg7[%c0_215, %c0_216] : memref<1x1024xf32, #tpu.memory_space<vmem>>, vector<1x1024xf32>
    %354 = vector.broadcast %353 : vector<1x1024xf32> to vector<8x1024xf32>
    %355 = arith.addf %352, %354 : vector<8x1024xf32>
    %cst_217 = arith.constant 0.000000e+00 : f32
    %356 = vector.broadcast %cst_217 : f32 to vector<8x1024xf32>
    %357 = arith.maximumf %355, %356 : vector<8x1024xf32>
    %358 = arith.truncf %357 : vector<8x1024xf32> to vector<8x1024xbf16>
    %c0_218 = arith.constant 0 : index
    %c0_219 = arith.constant 0 : index
    %359 = vector.load %arg8[%c0_218, %c0_219] : memref<1024x128xbf16, #tpu.memory_space<vmem>>, vector<1024x128xbf16>
    %cst_220 = arith.constant dense<0.000000e+00> : vector<8x128xf32>
    %360 = tpu.matmul %358, %359, %cst_220 {dimension_numbers = #tpu.dot_dimension_numbers<[1], [0], [0], [1], [0, 0, 1, 1], [], []>} : vector<8x1024xbf16>, vector<1024x128xbf16>, vector<8x128xf32> -> vector<8x128xf32>
    %c0_221 = arith.constant 0 : index
    %c0_222 = arith.constant 0 : index
    %361 = vector.load %arg9[%c0_221, %c0_222] : memref<1x128xf32, #tpu.memory_space<vmem>>, vector<1x128xf32>
    %362 = vector.broadcast %361 : vector<1x128xf32> to vector<8x128xf32>
    %363 = arith.addf %360, %362 : vector<8x128xf32>
    %cst_223 = arith.constant 0.000000e+00 : f32
    %364 = vector.broadcast %cst_223 : f32 to vector<8x128xf32>
    %365 = arith.maximumf %363, %364 : vector<8x128xf32>
    %366 = arith.truncf %365 : vector<8x128xf32> to vector<8x128xbf16>
    %c0_224 = arith.constant 0 : index
    %c0_225 = arith.constant 0 : index
    %367 = vector.load %arg10[%c0_224, %c0_225] : memref<128x128xbf16, #tpu.memory_space<vmem>>, vector<128x128xbf16>
    %cst_226 = arith.constant dense<0.000000e+00> : vector<8x128xf32>
    %368 = tpu.matmul %366, %367, %cst_226 {dimension_numbers = #tpu.dot_dimension_numbers<[1], [0], [0], [1], [0, 0, 1, 1], [], []>} : vector<8x128xbf16>, vector<128x128xbf16>, vector<8x128xf32> -> vector<8x128xf32>
    %c0_227 = arith.constant 0 : index
    %c0_228 = arith.constant 0 : index
    %369 = vector.load %arg11[%c0_227, %c0_228] : memref<1x128xf32, #tpu.memory_space<vmem>>, vector<1x128xf32>
    %370 = vector.broadcast %369 : vector<1x128xf32> to vector<8x128xf32>
    %371 = arith.addf %368, %370 : vector<8x128xf32>
    %c0_229 = arith.constant 0 : index
    %c0_230 = arith.constant 0 : index
    %372 = vector.load %arg12[%c0_229, %c0_230] : memref<8x128xf32, #tpu.memory_space<vmem>>, vector<8x128xf32>
    tpu.vector_store %arg12[%c0_229, %c0_230], %371 {strides = array<i32>} : memref<8x128xf32, #tpu.memory_space<vmem>>, vector<8x128xf32>,
    return
  }
  func.func @transform_0(%arg0: i32) -> (i32, i32, i32) {
    %c0_i32 = arith.constant 0 : i32
    %c0_i32_0 = arith.constant 0 : i32
    %c0_i32_1 = arith.constant 0 : i32
    return %arg0, %c0_i32, %c0_i32_0 : i32, i32, i32
  }
  func.func @transform_1(%arg0: i32) -> (i32, i32, i32) {
    %c0_i32 = arith.constant 0 : i32
    %c0_i32_0 = arith.constant 0 : i32
    %c0_i32_1 = arith.constant 0 : i32
    %c0_i32_2 = arith.constant 0 : i32
    return %c0_i32, %c0_i32_0, %c0_i32_1 : i32, i32, i32
  }
  func.func @transform_2(%arg0: i32) -> (i32, i32) {
    %c0_i32 = arith.constant 0 : i32
    %c0_i32_0 = arith.constant 0 : i32
    %c0_i32_1 = arith.constant 0 : i32
    return %c0_i32, %c0_i32_0 : i32, i32
  }
  func.func @transform_3(%arg0: i32) -> (i32, i32, i32) {
    %c0_i32 = arith.constant 0 : i32
    %c0_i32_0 = arith.constant 0 : i32
    %c0_i32_1 = arith.constant 0 : i32
    %c0_i32_2 = arith.constant 0 : i32
    return %c0_i32, %c0_i32_0, %c0_i32_1 : i32, i32, i32
  }
  func.func @transform_4(%arg0: i32) -> (i32, i32) {
    %c0_i32 = arith.constant 0 : i32
    %c0_i32_0 = arith.constant 0 : i32
    %c0_i32_1 = arith.constant 0 : i32
    return %c0_i32, %c0_i32_0 : i32, i32
  }
  func.func @transform_5(%arg0: i32) -> (i32, i32, i32) {
    %c0_i32 = arith.constant 0 : i32
    %c0_i32_0 = arith.constant 0 : i32
    %c0_i32_1 = arith.constant 0 : i32
    %c0_i32_2 = arith.constant 0 : i32
    return %c0_i32, %c0_i32_0, %c0_i32_1 : i32, i32, i32
  }
  func.func @transform_6(%arg0: i32) -> (i32, i32) {
    %c0_i32 = arith.constant 0 : i32
    %c0_i32_0 = arith.constant 0 : i32
    %c0_i32_1 = arith.constant 0 : i32
    return %c0_i32, %c0_i32_0 : i32, i32
  }
  func.func @transform_7(%arg0: i32) -> (i32, i32) {
    %c0_i32 = arith.constant 0 : i32
    %c0_i32_0 = arith.constant 0 : i32
    %c0_i32_1 = arith.constant 0 : i32
    return %c0_i32, %c0_i32_0 : i32, i32
  }
  func.func @transform_8(%arg0: i32) -> (i32, i32) {
    %c0_i32 = arith.constant 0 : i32
    %c0_i32_0 = arith.constant 0 : i32
    %c0_i32_1 = arith.constant 0 : i32
    return %c0_i32, %c0_i32_0 : i32, i32
  }
  func.func @transform_9(%arg0: i32) -> (i32, i32) {
    %c0_i32 = arith.constant 0 : i32
    %c0_i32_0 = arith.constant 0 : i32
    %c0_i32_1 = arith.constant 0 : i32
    return %c0_i32, %c0_i32_0 : i32, i32
  }
  func.func @transform_10(%arg0: i32) -> (i32, i32) {
    %c0_i32 = arith.constant 0 : i32
    %c0_i32_0 = arith.constant 0 : i32
    %c0_i32_1 = arith.constant 0 : i32
    return %c0_i32, %c0_i32_0 : i32, i32
  }
  func.func @transform_11(%arg0: i32) -> (i32, i32) {
    %c0_i32 = arith.constant 0 : i32
    %c0_i32_0 = arith.constant 0 : i32
    return %arg0, %c0_i32 : i32, i32
  }
}

</mosaic_0001>

<llo_original>
// kernel: tile.13
$region0: #{tile.13}
  #allocation2 [shape = 's32[1]{0}', space=sflag, size = 0x4, scoped, tag = 'scoped memory for tile.13']
  %s0 = inlined_call_operand.hbm [shape: f32[6], index: 0, kind: input, shape index: {}]
  %s1 = inlined_call_operand.vmem [shape: f32[14,6], index: 1, kind: output, shape index: {}]
  $region1: #{tile.13} parent=0
    #allocation0 [shape = 'u8[512]{0}', space=vmem, size = 0x400, scoped, tag = 'operand span for operand 0']
    #allocation1 [shape = 's32[1]{0}', space=sflag, size = 0x4, scoped, tag = 'scoped memory for tile.13']
    %2 = vsyncpa [#allocation1], 0
    // Predicated region
    $region2: #{tile.13} parent=1 // pred_check
      _
    $region3: #{tile.13} parent=1 // pred_check_branch
      %4 = sbr.rel (0) target = $region5
    $region4: #{tile.13} parent=1 // pred_region
      %s6 = ssub.s32 16, 16
      %7 = vsyncadd [#allocation1], %s6
      %s9 = sshll.u32 [#allocation0], 4
      %s10 = int_to_ptr.vmem [resolvable:$true] %s9
      %12 = dma.hbm_to_vmem [thread:$0]  %s0, 16, %s10, [#allocation1]
    $region5: #{tile.13} parent=1 // pred_fallthru
      _
    // Predicated region
    $region6: #{tile.13} parent=1 // pred_check
      _
    $region7: #{tile.13} parent=1 // pred_check_branch
      %14 = sbr.rel (0) target = $region9
    $region8: #{tile.13} parent=1 // pred_region
      %15 = dma.done [#allocation1], 16
    $region9: #{tile.13} parent=1 // pred_fallthru
      _
    %v16 = vld [vmem:[#allocation0] ss:$0 sm:$0xff]
    %17 = vst [vmem:[%s1] sm:$0xff] %v16
    %s18 = scalar_lea.vmem %s1, 8
    %19 = vst [vmem:[%s18] sm:$0xff] %v16
    %20 = vsyncpa [#allocation1], 1

// kernel: tile.18
$region0: #{tile.18}
  #allocation2 [shape = 's32[1]{0}', space=sflag, size = 0x4, scoped, tag = 'scoped memory for tile.18']
  %s0 = inlined_call_operand.hbm [shape: f32[16], index: 0, kind: input, shape index: {}]
  %s1 = inlined_call_operand.vmem [shape: f32[5,16], index: 1, kind: output, shape index: {}]
  $region1: #{tile.18} parent=0
    #allocation0 [shape = 'u8[512]{0}', space=vmem, size = 0x400, scoped, tag = 'operand span for operand 0']
    #allocation1 [shape = 's32[1]{0}', space=sflag, size = 0x4, scoped, tag = 'scoped memory for tile.18']
    %2 = vsyncpa [#allocation1], 0
    // Predicated region
    $region2: #{tile.18} parent=1 // pred_check
      _
    $region3: #{tile.18} parent=1 // pred_check_branch
      %4 = sbr.rel (0) target = $region5
    $region4: #{tile.18} parent=1 // pred_region
      %s6 = ssub.s32 16, 16
      %7 = vsyncadd [#allocation1], %s6
      %s9 = sshll.u32 [#allocation0], 4
      %s10 = int_to_ptr.vmem [resolvable:$true] %s9
      %12 = dma.hbm_to_vmem [thread:$0]  %s0, 16, %s10, [#allocation1]
    $region5: #{tile.18} parent=1 // pred_fallthru
      _
    // Predicated region
    $region6: #{tile.18} parent=1 // pred_check
      _
    $region7: #{tile.18} parent=1 // pred_check_branch
      %14 = sbr.rel (0) target = $region9
    $region8: #{tile.18} parent=1 // pred_region
      %15 = dma.done [#allocation1], 16
    $region9: #{tile.18} parent=1 // pred_fallthru
      _
    %v16 = vld [vmem:[#allocation0] ss:$0 sm:$0xff]
    %17 = vst [vmem:[%s1] sm:$0xff] %v16
    %18 = vsyncpa [#allocation1], 1

// kernel: tile.19
$region0: #{tile.19}
  %s0 = inlined_call_operand.vmem [shape: f32[5,16], index: 0, kind: input, shape index: {}]
  %s1 = inlined_call_operand.vmem [shape: f32[80], index: 1, kind: output, shape index: {}]
  $region1: #{tile.19} parent=0
    #allocation0 [shape = 'u8[4096]{0}', space=vmem, size = 0x1000, scoped, tag = 'scoped mem for output reshape']
    %v2 = vld [vmem:[%s0] sm:$0x1]
    %vm3 = vcmask 130048
    %4 = vst.msk [vmem:[#allocation0] sm:$0x1] %vm3, %v2
    %s5 = scalar_lea.vmem %s0, 4
    %v6 = vld [vmem:[%s5] sm:$0x1]
    %7 = vrot.lane.b32.xlu0 %v6, 64
    %v8 = vpop.permute.xlu0 %7
    %vm9 = vcmask 654848
    %10 = vst.msk [vmem:[#allocation0] sm:$0x1] %vm9, %v8
    %s11 = scalar_lea.vmem %s0, 3
    %v12 = vld [vmem:[%s11] sm:$0x1]
    %13 = vrot.lane.b32.xlu0 %v12, 48
    %v14 = vpop.permute.xlu0 %13
    %vm15 = vcmask 523648
    %16 = vst.msk [vmem:[#allocation0] sm:$0x1] %vm15, %v14
    %s17 = scalar_lea.vmem %s0, 2
    %v18 = vld [vmem:[%s17] sm:$0x1]
    %19 = vrot.lane.b32.xlu0 %v18, 32
    %v20 = vpop.permute.xlu0 %19
    %vm21 = vcmask 392448
    %22 = vst.msk [vmem:[#allocation0] sm:$0x1] %vm21, %v20
    %s23 = scalar_lea.vmem %s0, 1
    %v24 = vld [vmem:[%s23] sm:$0x1]
    %25 = vrot.lane.b32.xlu0 %v24, 16
    %v26 = vpop.permute.xlu0 %25
    %vm27 = vcmask 261248
    %28 = vst.msk [vmem:[#allocation0] sm:$0x1] %vm27, %v26
    %s30 = sshllo.u32 0, 1
    %v32 = vld [vmem:[#allocation0] sm:%s30]
    %s33 = sshllo.u32 0, 1
    %34 = vst [vmem:[%s1] sm:%s33] %v32

// kernel: tile.14
$region0: #{tile.14}
  %s0 = inlined_call_operand.vmem [shape: f32[14,6], index: 0, kind: input, shape index: {}]
  %s1 = inlined_call_operand.vmem [shape: f32[84], index: 1, kind: output, shape index: {}]
  $region1: #{tile.14} parent=0
    #allocation0 [shape = 'u8[4096]{0}', space=vmem, size = 0x1000, scoped, tag = 'scoped mem for output reshape']
    %v2 = vld [vmem:[%s0] sm:$0x1]
    %vm3 = vcmask 48128
    %4 = vst.msk [vmem:[#allocation0] sm:$0x1] %vm3, %v2
    %s5 = scalar_lea.vmem %s0, 13
    %v6 = vld [vmem:[%s5] sm:$0x1]
    %7 = vrot.lane.b32.xlu0 %v6, 78
    %v8 = vpop.permute.xlu0 %7
    %vm9 = vcmask 687728
    %10 = vst.msk [vmem:[#allocation0] sm:$0x1] %vm9, %v8
    %s11 = scalar_lea.vmem %s0, 12
    %v12 = vld [vmem:[%s11] sm:$0x1]
    %13 = vrot.lane.b32.xlu0 %v12, 72
    %v14 = vpop.permute.xlu0 %13
    %vm15 = vcmask 638528
    %16 = vst.msk [vmem:[#allocation0] sm:$0x1] %vm15, %v14
    %s17 = scalar_lea.vmem %s0, 11
    %v18 = vld [vmem:[%s17] sm:$0x1]
    %19 = vrot.lane.b32.xlu0 %v18, 66
    %v20 = vpop.permute.xlu0 %19
    %vm21 = vcmask 589328
    %22 = vst.msk [vmem:[#allocation0] sm:$0x1] %vm21, %v20
    %s23 = scalar_lea.vmem %s0, 10
    %v24 = vld [vmem:[%s23] sm:$0x1]
    %25 = vrot.lane.b32.xlu0 %v24, 60
    %v26 = vpop.permute.xlu0 %25
    %vm27 = vcmask 540128
    %28 = vst.msk [vmem:[#allocation0] sm:$0x1] %vm27, %v26
    %s29 = scalar_lea.vmem %s0, 9
    %v30 = vld [vmem:[%s29] sm:$0x1]
    %31 = vrot.lane.b32.xlu0 %v30, 54
    %v32 = vpop.permute.xlu0 %31
    %vm33 = vcmask 490928
    %34 = vst.msk [vmem:[#allocation0] sm:$0x1] %vm33, %v32
    %s35 = scalar_lea.vmem %s0, 8
    %v36 = vld [vmem:[%s35] sm:$0x1]
    %37 = vrot.lane.b32.xlu0 %v36, 48
    %v38 = vpop.permute.xlu0 %37
    %vm39 = vcmask 441728
    %40 = vst.msk [vmem:[#allocation0] sm:$0x1] %vm39, %v38
    %s41 = scalar_lea.vmem %s0, 7
    %v42 = vld [vmem:[%s41] sm:$0x1]
    %43 = vrot.lane.b32.xlu0 %v42, 42
    %v44 = vpop.permute.xlu0 %43
    %vm45 = vcmask 392528
    %46 = vst.msk [vmem:[#allocation0] sm:$0x1] %vm45, %v44
    %s47 = scalar_lea.vmem %s0, 6
    %v48 = vld [vmem:[%s47] sm:$0x1]
    %49 = vrot.lane.b32.xlu0 %v48, 36
    %v50 = vpop.permute.xlu0 %49
    %vm51 = vcmask 343328
    %52 = vst.msk [vmem:[#allocation0] sm:$0x1] %vm51, %v50
    %s53 = scalar_lea.vmem %s0, 5
    %v54 = vld [vmem:[%s53] sm:$0x1]
    %55 = vrot.lane.b32.xlu0 %v54, 30
    %v56 = vpop.permute.xlu0 %55
    %vm57 = vcmask 294128
    %58 = vst.msk [vmem:[#allocation0] sm:$0x1] %vm57, %v56
    %s59 = scalar_lea.vmem %s0, 4
    %v60 = vld [vmem:[%s59] sm:$0x1]
    %61 = vrot.lane.b32.xlu0 %v60, 24
    %v62 = vpop.permute.xlu0 %61
    %vm63 = vcmask 244928
    %64 = vst.msk [vmem:[#allocation0] sm:$0x1] %vm63, %v62
    %s65 = scalar_lea.vmem %s0, 3
    %v66 = vld [vmem:[%s65] sm:$0x1]
    %67 = vrot.lane.b32.xlu0 %v66, 18
    %v68 = vpop.permute.xlu0 %67
    %vm69 = vcmask 195728
    %70 = vst.msk [vmem:[#allocation0] sm:$0x1] %vm69, %v68
    %s71 = scalar_lea.vmem %s0, 2
    %v72 = vld [vmem:[%s71] sm:$0x1]
    %73 = vrot.lane.b32.xlu0 %v72, 12
    %v74 = vpop.permute.xlu0 %73
    %vm75 = vcmask 146528
    %76 = vst.msk [vmem:[#allocation0] sm:$0x1] %vm75, %v74
    %s77 = scalar_lea.vmem %s0, 1
    %v78 = vld [vmem:[%s77] sm:$0x1]
    %79 = vrot.lane.b32.xlu0 %v78, 6
    %v80 = vpop.permute.xlu0 %79
    %vm81 = vcmask 97328
    %82 = vst.msk [vmem:[#allocation0] sm:$0x1] %vm81, %v80
    %s84 = sshllo.u32 0, 1
    %v86 = vld [vmem:[#allocation0] sm:%s84]
    %s87 = sshllo.u32 0, 1
    %88 = vst [vmem:[%s1] sm:%s87] %v86

// kernel: lenet5_forward.1
$region0: #{lenet5_forward.1}
  #allocation0 [shape = 'u32[]', space=smem, size = 0x4, offset = 0x4, fixed_abs, tag = 'smem constant byte address 0x4 - core index']
  #allocation1 [shape = 'u32[144,128]{1,0:T(1,128)}', space=vmem, size = 0x12000, scoped, tag = 'internal scratch']
  #allocation2 [shape = 'f32[224,256]{1,0:T(8,128)}', space=vmem, size = 0x38000, scoped, tag = 'scratch operand']
  #allocation3 [shape = 'f32[112,128]{1,0:T(8,128)}', space=vmem, size = 0xe000, scoped, tag = 'scratch operand']
  #allocation4 [shape = 'f32[80,256]{1,0:T(8,128)}', space=vmem, size = 0x14000, scoped, tag = 'scratch operand']
  %s0 = inlined_call_operand.vmem [shape: f32[1,256,32], index: 0, kind: input, shape index: {}]
  %s1 = inlined_call_operand.vmem [shape: bf16[5,32,256], index: 1, kind: input, shape index: {}]
  %s2 = inlined_call_operand.vmem [shape: f32[1,128], index: 2, kind: input, shape index: {}]
  %s3 = inlined_call_operand.vmem [shape: bf16[5,128,256], index: 3, kind: input, shape index: {}]
  %s4 = inlined_call_operand.vmem [shape: f32[1,128], index: 4, kind: input, shape index: {}]
  %s5 = inlined_call_operand.vmem [shape: bf16[5,128,1024], index: 5, kind: input, shape index: {}]
  %s6 = inlined_call_operand.vmem [shape: f32[1,1024], index: 6, kind: input, shape index: {}]
  %s7 = inlined_call_operand.vmem [shape: bf16[1024,128], index: 7, kind: input, shape index: {}]
  %s8 = inlined_call_operand.vmem [shape: f32[1,128], index: 8, kind: input, shape index: {}]
  %s9 = inlined_call_operand.vmem [shape: bf16[128,128], index: 9, kind: input, shape index: {}]
  %s10 = inlined_call_operand.vmem [shape: f32[1,128], index: 10, kind: input, shape index: {}]
  %s11 = inlined_call_operand.vmem [shape: f32[8,128], index: 11, kind: output, shape index: {}]
  %s12 = sld [smem:[#allocation0]]
  $region54: #{lenet5_forward.1} parent=0
    _
  %s14 = ssub.s32 1, %s12
  %s15 = scalar_select 0, %s14, %s12
  // Predicated region
  $region2: #{lenet5_forward.1} parent=0 // pred_check
    _
  $region3: #{lenet5_forward.1} parent=0 // pred_check_branch
    %17 = sbr.rel (0) target = $region5
  $region4: #{lenet5_forward.1} parent=0 // pred_region
    _
  $region5: #{lenet5_forward.1} parent=0 // pred_fallthru
    _
  // Predicated region
  $region6: #{lenet5_forward.1} parent=0 // pred_check
    _
  $region7: #{lenet5_forward.1} parent=0 // pred_check_branch
    %19 = sbr.rel (0) target = $region9
  $region8: #{lenet5_forward.1} parent=0 // pred_region
    _
  $region9: #{lenet5_forward.1} parent=0 // pred_fallthru
    _
  // Predicated region
  $region10: #{lenet5_forward.1} parent=0 // pred_check
    _
  $region11: #{lenet5_forward.1} parent=0 // pred_check_branch
    %21 = sbr.rel (0) target = $region13
  $region12: #{lenet5_forward.1} parent=0 // pred_region
    _
  $region13: #{lenet5_forward.1} parent=0 // pred_fallthru
    _
  // Predicated region
  $region14: #{lenet5_forward.1} parent=0 // pred_check
    _
  $region15: #{lenet5_forward.1} parent=0 // pred_check_branch
    %23 = sbr.rel (0) target = $region17
  $region16: #{lenet5_forward.1} parent=0 // pred_region
    _
  $region17: #{lenet5_forward.1} parent=0 // pred_fallthru
    _
  // Predicated region
  $region18: #{lenet5_forward.1} parent=0 // pred_check
    _
  $region19: #{lenet5_forward.1} parent=0 // pred_check_branch
    %25 = sbr.rel (0) target = $region21
  $region20: #{lenet5_forward.1} parent=0 // pred_region
    _
  $region21: #{lenet5_forward.1} parent=0 // pred_fallthru
    _
  // Predicated region
  $region22: #{lenet5_forward.1} parent=0 // pred_check
    _
  $region23: #{lenet5_forward.1} parent=0 // pred_check_branch
    %27 = sbr.rel (0) target = $region25
  $region24: #{lenet5_forward.1} parent=0 // pred_region
    _
  $region25: #{lenet5_forward.1} parent=0 // pred_fallthru
    _
  // Predicated region
  $region26: #{lenet5_forward.1} parent=0 // pred_check
    _
  $region27: #{lenet5_forward.1} parent=0 // pred_check_branch
    %29 = sbr.rel (0) target = $region29
  $region28: #{lenet5_forward.1} parent=0 // pred_region
    _
  $region29: #{lenet5_forward.1} parent=0 // pred_fallthru
    _
  // Predicated region
  $region30: #{lenet5_forward.1} parent=0 // pred_check
    _
  $region31: #{lenet5_forward.1} parent=0 // pred_check_branch
    %31 = sbr.rel (0) target = $region33
  $region32: #{lenet5_forward.1} parent=0 // pred_region
    _
  $region33: #{lenet5_forward.1} parent=0 // pred_fallthru
    _
  // Predicated region
  $region34: #{lenet5_forward.1} parent=0 // pred_check
    _
  $region35: #{lenet5_forward.1} parent=0 // pred_check_branch
    %33 = sbr.rel (0) target = $region37
  $region36: #{lenet5_forward.1} parent=0 // pred_region
    _
  $region37: #{lenet5_forward.1} parent=0 // pred_fallthru
    _
  // Predicated region
  $region38: #{lenet5_forward.1} parent=0 // pred_check
    _
  $region39: #{lenet5_forward.1} parent=0 // pred_check_branch
    %35 = sbr.rel (0) target = $region41
  $region40: #{lenet5_forward.1} parent=0 // pred_region
    _
  $region41: #{lenet5_forward.1} parent=0 // pred_fallthru
    _
  // Predicated region
  $region42: #{lenet5_forward.1} parent=0 // pred_check
    _
  $region43: #{lenet5_forward.1} parent=0 // pred_check_branch
    %37 = sbr.rel (0) target = $region45
  $region44: #{lenet5_forward.1} parent=0 // pred_region
    _
  $region45: #{lenet5_forward.1} parent=0 // pred_fallthru
    _
  %v39 = vld [vmem:[%s0] sm:$0xff]
  %v40 = vld [vmem:[%s0 + $0x8] sm:$0xff]
  %v41 = vld [vmem:[%s0 + $0x10] sm:$0xff]
  %v42 = vld [vmem:[%s0 + $0x18] sm:$0xff]
  %v43 = vld [vmem:[%s0 + $0x20] sm:$0xff]
  %v44 = vld [vmem:[%s0 + $0x28] sm:$0xff]
  %v45 = vld [vmem:[%s0 + $0x30] sm:$0xff]
  %v46 = vld [vmem:[%s0 + $0x38] sm:$0xff]
  %v47 = vld [vmem:[%s0 + $0x40] sm:$0xff]
  %v48 = vld [vmem:[%s0 + $0x48] sm:$0xff]
  %v49 = vld [vmem:[%s0 + $0x50] sm:$0xff]
  %v50 = vld [vmem:[%s0 + $0x58] sm:$0xff]
  %v51 = vld [vmem:[%s0 + $0x60] sm:$0xff]
  %v52 = vld [vmem:[%s0 + $0x68] sm:$0xff]
  %v53 = vld [vmem:[%s0 + $0x70] sm:$0xff]
  %v54 = vld [vmem:[%s0 + $0x78] sm:$0xff]
  %v55 = vld [vmem:[%s0 + $0x80] sm:$0xff]
  %v56 = vld [vmem:[%s0 + $0x88] sm:$0xff]
  %v57 = vld [vmem:[%s0 + $0x90] sm:$0xff]
  %v58 = vld [vmem:[%s0 + $0x98] sm:$0xff]
  %v59 = vld [vmem:[%s0 + $0xa0] sm:$0xff]
  %v60 = vld [vmem:[%s0 + $0xa8] sm:$0xff]
  %v61 = vld [vmem:[%s0 + $0xb0] sm:$0xff]
  %v62 = vld [vmem:[%s0 + $0xb8] sm:$0xff]
  %v63 = vld [vmem:[%s0 + $0xc0] sm:$0xff]
  %v64 = vld [vmem:[%s0 + $0xc8] sm:$0xff]
  %v65 = vld [vmem:[%s0 + $0xd0] sm:$0xff]
  %v66 = vld [vmem:[%s0 + $0xd8] sm:$0xff]
  %v67 = vpack.c.bf16 %v40, %v39
  %v68 = vpack.c.bf16 %v42, %v41
  %v69 = vpack.c.bf16 %v44, %v43
  %v70 = vpack.c.bf16 %v46, %v45
  %v71 = vpack.c.bf16 %v48, %v47
  %v72 = vpack.c.bf16 %v50, %v49
  %v73 = vpack.c.bf16 %v52, %v51
  %v74 = vpack.c.bf16 %v54, %v53
  %v75 = vpack.c.bf16 %v56, %v55
  %v76 = vpack.c.bf16 %v58, %v57
  %v77 = vpack.c.bf16 %v60, %v59
  %v78 = vpack.c.bf16 %v62, %v61
  %v79 = vpack.c.bf16 %v64, %v63
  %v80 = vpack.c.bf16 %v66, %v65
  %v81 = vld [vmem:[%s1] sm:$0xff]
  %v82 = vld [vmem:[%s1 + $0x8] sm:$0xff]
  %v83 = vld [vmem:[%s1 + $0x10] sm:$0xff]
  %v84 = vld [vmem:[%s1 + $0x18] sm:$0xff]
  %v89 = vunpack.c.l.b16 %v81
  %v90 = vunpack.c.h.b16 %v81
  %v91 = vunpack.c.l.b16 %v82
  %v92 = vunpack.c.h.b16 %v82
  %v93 = vunpack.c.l.b16 %v83
  %v94 = vunpack.c.h.b16 %v83
  %v95 = vunpack.c.l.b16 %v84
  %v96 = vunpack.c.h.b16 %v84
  %v97 = vpack.c.b16 %v91, %v89
  %v98 = vpack.c.b16 %v92, %v90
  %v99 = vpack.c.b16 %v95, %v93
  %v100 = vpack.c.b16 %v96, %v94
  %vm105 = vcmask 261120
  %v107 = vsel %vm105, %v67, 0
  %v110 = vsel %vm105, %v68, 0
  %v113 = vsel %vm105, %v69, 0
  %v116 = vsel %vm105, %v70, 0
  %v119 = vsel %vm105, %v71, 0
  %v122 = vsel %vm105, %v72, 0
  %v125 = vsel %vm105, %v73, 0
  %v128 = vsel %vm105, %v74, 0
  %v131 = vsel %vm105, %v75, 0
  %v134 = vsel %vm105, %v76, 0
  %v137 = vsel %vm105, %v77, 0
  %v140 = vsel %vm105, %v78, 0
  %v143 = vsel %vm105, %v79, 0
  %v146 = vsel %vm105, %v80, 0
  %148 = vmatprep.subr.bf16.mxu0 %v98
  %149 = vmatpush1.bf16.msra.mxu0 %v97
  %150 = vmatprep.subr.bf16.mxu0 %v100
  %151 = vmatpush1.bf16.msra.mxu0 %v99
  %152 = vmatprep.subr.bf16.mxu0 0
  %153 = vmatpush1.bf16.msra.mxu0 0
  %154 = vmatprep.subr.bf16.mxu0 0
  %155 = vmatpush1.bf16.msra.mxu0 0
  %156 = vmatprep.subr.bf16.mxu0 0
  %157 = vmatpush1.bf16.msra.mxu0 0
  %158 = vmatprep.subr.bf16.mxu0 0
  %159 = vmatpush1.bf16.msra.mxu0 0
  %160 = vmatprep.subr.bf16.mxu0 0
  %161 = vmatpush1.bf16.msra.mxu0 0
  %162 = vmatprep.subr.bf16.mxu0 0
  %163 = vmatpush1.bf16.msra.mxu0 0
  %164 = vmatprep.subr.bf16.mxu0 0
  %165 = vmatpush1.bf16.msra.mxu0 0
  %166 = vmatprep.subr.bf16.mxu0 0
  %167 = vmatpush1.bf16.msra.mxu0 0
  %168 = vmatprep.subr.bf16.mxu0 0
  %169 = vmatpush1.bf16.msra.mxu0 0
  %170 = vmatprep.subr.bf16.mxu0 0
  %171 = vmatpush1.bf16.msra.mxu0 0
  %172 = vmatprep.subr.bf16.mxu0 0
  %173 = vmatpush1.bf16.msra.mxu0 0
  %174 = vmatprep.subr.bf16.mxu0 0
  %175 = vmatpush1.bf16.msra.mxu0 0
  %176 = vmatprep.subr.bf16.mxu0 0
  %177 = vmatpush1.bf16.msra.mxu0 0
  %178 = vmatprep.subr.bf16.mxu0 0
  %179 = vmatpush1.bf16.msra.mxu0 0
  %180 = vmatprep.mubr.bf16.mxu0 0
  %181 = vmatmul.mubr.bf16.gmra.mrb[0].mxu0 %v107
  %v182 = vpop.f32.mrb[0].mxu0
  %v183 = vadd.f32 0.0, %v182
  %v184 = vpop.f32.mrb[0].mxu0
  %v185 = vadd.f32 0.0, %v184
  %v186 = vpop.f32.mrb[0].mxu0
  %v187 = vadd.f32 0.0, %v186
  %v188 = vpop.f32.mrb[0].mxu0
  %v189 = vadd.f32 0.0, %v188
  %190 = vmatprep.mubr.bf16.mxu0 0
  %191 = vmatmul.mubr.bf16.gmra.mrb[0].mxu0 %v110
  %v192 = vpop.f32.mrb[0].mxu0
  %v193 = vadd.f32 0.0, %v192
  %v194 = vpop.f32.mrb[0].mxu0
  %v195 = vadd.f32 0.0, %v194
  %v196 = vpop.f32.mrb[0].mxu0
  %v197 = vadd.f32 0.0, %v196
  %v198 = vpop.f32.mrb[0].mxu0
  %v199 = vadd.f32 0.0, %v198
  %200 = vmatprep.mubr.bf16.mxu0 0
  %201 = vmatmul.mubr.bf16.gmra.mrb[0].mxu0 %v113
  %v202 = vpop.f32.mrb[0].mxu0
  %v203 = vadd.f32 0.0, %v202
  %v204 = vpop.f32.mrb[0].mxu0
  %v205 = vadd.f32 0.0, %v204
  %v206 = vpop.f32.mrb[0].mxu0
  %v207 = vadd.f32 0.0, %v206
  %v208 = vpop.f32.mrb[0].mxu0
  %v209 = vadd.f32 0.0, %v208
  %210 = vmatprep.mubr.bf16.mxu0 0
  %211 = vmatmul.mubr.bf16.gmra.mrb[0].mxu0 %v116
  %v212 = vpop.f32.mrb[0].mxu0
  %v213 = vadd.f32 0.0, %v212
  %v214 = vpop.f32.mrb[0].mxu0
  %v215 = vadd.f32 0.0, %v214
  %v216 = vpop.f32.mrb[0].mxu0
  %v217 = vadd.f32 0.0, %v216
  %v218 = vpop.f32.mrb[0].mxu0
  %v219 = vadd.f32 0.0, %v218
  %220 = vmatprep.mubr.bf16.mxu0 0
  %221 = vmatmul.mubr.bf16.gmra.mrb[0].mxu0 %v119
  %v222 = vpop.f32.mrb[0].mxu0
  %v223 = vadd.f32 0.0, %v222
  %v224 = vpop.f32.mrb[0].mxu0
  %v225 = vadd.f32 0.0, %v224
  %v226 = vpop.f32.mrb[0].mxu0
  %v227 = vadd.f32 0.0, %v226
  %v228 = vpop.f32.mrb[0].mxu0
  %v229 = vadd.f32 0.0, %v228
  %230 = vmatprep.mubr.bf16.mxu0 0
  %231 = vmatmul.mubr.bf16.gmra.mrb[0].mxu0 %v122
  %v232 = vpop.f32.mrb[0].mxu0
  %v233 = vadd.f32 0.0, %v232
  %v234 = vpop.f32.mrb[0].mxu0
  %v235 = vadd.f32 0.0, %v234
  %v236 = vpop.f32.mrb[0].mxu0
  %v237 = vadd.f32 0.0, %v236
  %v238 = vpop.f32.mrb[0].mxu0
  %v239 = vadd.f32 0.0, %v238
  %240 = vmatprep.mubr.bf16.mxu0 0
  %241 = vmatmul.mubr.bf16.gmra.mrb[0].mxu0 %v125
  %v242 = vpop.f32.mrb[0].mxu0
  %v243 = vadd.f32 0.0, %v242
  %v244 = vpop.f32.mrb[0].mxu0
  %v245 = vadd.f32 0.0, %v244
  %v246 = vpop.f32.mrb[0].mxu0
  %v247 = vadd.f32 0.0, %v246
  %v248 = vpop.f32.mrb[0].mxu0
  %v249 = vadd.f32 0.0, %v248
  %250 = vmatprep.mubr.bf16.mxu0 0
  %251 = vmatmul.mubr.bf16.gmra.mrb[0].mxu0 %v128
  %v252 = vpop.f32.mrb[0].mxu0
  %v253 = vadd.f32 0.0, %v252
  %v254 = vpop.f32.mrb[0].mxu0
  %v255 = vadd.f32 0.0, %v254
  %v256 = vpop.f32.mrb[0].mxu0
  %v257 = vadd.f32 0.0, %v256
  %v258 = vpop.f32.mrb[0].mxu0
  %v259 = vadd.f32 0.0, %v258
  %260 = vmatprep.mubr.bf16.mxu0 0
  %261 = vmatmul.mubr.bf16.gmra.mrb[0].mxu0 %v131
  %v262 = vpop.f32.mrb[0].mxu0
  %v263 = vadd.f32 0.0, %v262
  %v264 = vpop.f32.mrb[0].mxu0
  %v265 = vadd.f32 0.0, %v264
  %v266 = vpop.f32.mrb[0].mxu0
  %v267 = vadd.f32 0.0, %v266
  %v268 = vpop.f32.mrb[0].mxu0
  %v269 = vadd.f32 0.0, %v268
  %270 = vmatprep.mubr.bf16.mxu0 0
  %271 = vmatmul.mubr.bf16.gmra.mrb[0].mxu0 %v134
  %v272 = vpop.f32.mrb[0].mxu0
  %v273 = vadd.f32 0.0, %v272
  %v274 = vpop.f32.mrb[0].mxu0
  %v275 = vadd.f32 0.0, %v274
  %v276 = vpop.f32.mrb[0].mxu0
  %v277 = vadd.f32 0.0, %v276
  %v278 = vpop.f32.mrb[0].mxu0
  %v279 = vadd.f32 0.0, %v278
  %280 = vmatprep.mubr.bf16.mxu0 0
  %281 = vmatmul.mubr.bf16.gmra.mrb[0].mxu0 %v137
  %v282 = vpop.f32.mrb[0].mxu0
  %v283 = vadd.f32 0.0, %v282
  %v284 = vpop.f32.mrb[0].mxu0
  %v285 = vadd.f32 0.0, %v284
  %v286 = vpop.f32.mrb[0].mxu0
  %v287 = vadd.f32 0.0, %v286
  %v288 = vpop.f32.mrb[0].mxu0
  %v289 = vadd.f32 0.0, %v288
  %290 = vmatprep.mubr.bf16.mxu0 0
  %291 = vmatmul.mubr.bf16.gmra.mrb[0].mxu0 %v140
  %v292 = vpop.f32.mrb[0].mxu0
  %v293 = vadd.f32 0.0, %v292
  %v294 = vpop.f32.mrb[0].mxu0
  %v295 = vadd.f32 0.0, %v294
  %v296 = vpop.f32.mrb[0].mxu0
  %v297 = vadd.f32 0.0, %v296
  %v298 = vpop.f32.mrb[0].mxu0
  %v299 = vadd.f32 0.0, %v298
  %300 = vmatprep.mubr.bf16.mxu0 0
  %301 = vmatmul.mubr.bf16.gmra.mrb[0].mxu0 %v143
  %v302 = vpop.f32.mrb[0].mxu0
  %v303 = vadd.f32 0.0, %v302
  %v304 = vpop.f32.mrb[0].mxu0
  %v305 = vadd.f32 0.0, %v304
  %v306 = vpop.f32.mrb[0].mxu0
  %v307 = vadd.f32 0.0, %v306
  %v308 = vpop.f32.mrb[0].mxu0
  %v309 = vadd.f32 0.0, %v308
  %310 = vmatprep.mubr.bf16.mxu0 0
  %311 = vmatmul.mubr.bf16.gmra.mrb[0].mxu0 %v146
  %v312 = vpop.f32.mrb[0].mxu0
  %v313 = vadd.f32 0.0, %v312
  %v314 = vpop.f32.mrb[0].mxu0
  %v315 = vadd.f32 0.0, %v314
  %v316 = vpop.f32.mrb[0].mxu0
  %v317 = vadd.f32 0.0, %v316
  %v318 = vpop.f32.mrb[0].mxu0
  %v319 = vadd.f32 0.0, %v318
  %320 = vdwg.mxu0
  %321 = vst [vmem:[#allocation2] sm:$0xff] %v183
  %322 = vst [vmem:[#allocation2 + $0x8] sm:$0xff] %v185
  %323 = vst [vmem:[#allocation2 + $0x10] sm:$0xff] %v187
  %324 = vst [vmem:[#allocation2 + $0x18] sm:$0xff] %v189
  %325 = vst [vmem:[#allocation2 + $0x20] sm:$0xff] %v193
  %326 = vst [vmem:[#allocation2 + $0x28] sm:$0xff] %v195
  %327 = vst [vmem:[#allocation2 + $0x30] sm:$0xff] %v197
  %328 = vst [vmem:[#allocation2 + $0x38] sm:$0xff] %v199
  %329 = vst [vmem:[#allocation2 + $0x40] sm:$0xff] %v203
  %330 = vst [vmem:[#allocation2 + $0x48] sm:$0xff] %v205
  %331 = vst [vmem:[#allocation2 + $0x50] sm:$0xff] %v207
  %332 = vst [vmem:[#allocation2 + $0x58] sm:$0xff] %v209
  %333 = vst [vmem:[#allocation2 + $0x60] sm:$0xff] %v213
  %334 = vst [vmem:[#allocation2 + $0x68] sm:$0xff] %v215
  %335 = vst [vmem:[#allocation2 + $0x70] sm:$0xff] %v217
  %336 = vst [vmem:[#allocation2 + $0x78] sm:$0xff] %v219
  %337 = vst [vmem:[#allocation2 + $0x80] sm:$0xff] %v223
  %338 = vst [vmem:[#allocation2 + $0x88] sm:$0xff] %v225
  %339 = vst [vmem:[#allocation2 + $0x90] sm:$0xff] %v227
  %340 = vst [vmem:[#allocation2 + $0x98] sm:$0xff] %v229
  %341 = vst [vmem:[#allocation2 + $0xa0] sm:$0xff] %v233
  %342 = vst [vmem:[#allocation2 + $0xa8] sm:$0xff] %v235
  %343 = vst [vmem:[#allocation2 + $0xb0] sm:$0xff] %v237
  %344 = vst [vmem:[#allocation2 + $0xb8] sm:$0xff] %v239
  %345 = vst [vmem:[#allocation2 + $0xc0] sm:$0xff] %v243
  %346 = vst [vmem:[#allocation2 + $0xc8] sm:$0xff] %v245
  %347 = vst [vmem:[#allocation2 + $0xd0] sm:$0xff] %v247
  %348 = vst [vmem:[#allocation2 + $0xd8] sm:$0xff] %v249
  %349 = vst [vmem:[#allocation2 + $0xe0] sm:$0xff] %v253
  %350 = vst [vmem:[#allocation2 + $0xe8] sm:$0xff] %v255
  %351 = vst [vmem:[#allocation2 + $0xf0] sm:$0xff] %v257
  %352 = vst [vmem:[#allocation2 + $0xf8] sm:$0xff] %v259
  %353 = vst [vmem:[#allocation2 + $0x100] sm:$0xff] %v263
  %354 = vst [vmem:[#allocation2 + $0x108] sm:$0xff] %v265
  %355 = vst [vmem:[#allocation2 + $0x110] sm:$0xff] %v267
  %356 = vst [vmem:[#allocation2 + $0x118] sm:$0xff] %v269
  %357 = vst [vmem:[#allocation2 + $0x120] sm:$0xff] %v273
  %358 = vst [vmem:[#allocation2 + $0x128] sm:$0xff] %v275
  %359 = vst [vmem:[#allocation2 + $0x130] sm:$0xff] %v277
  %360 = vst [vmem:[#allocation2 + $0x138] sm:$0xff] %v279
  %361 = vst [vmem:[#allocation2 + $0x140] sm:$0xff] %v283
  %362 = vst [vmem:[#allocation2 + $0x148] sm:$0xff] %v285
  %363 = vst [vmem:[#allocation2 + $0x150] sm:$0xff] %v287
  %364 = vst [vmem:[#allocation2 + $0x158] sm:$0xff] %v289
  %365 = vst [vmem:[#allocation2 + $0x160] sm:$0xff] %v293
  %366 = vst [vmem:[#allocation2 + $0x168] sm:$0xff] %v295
  %367 = vst [vmem:[#allocation2 + $0x170] sm:$0xff] %v297
  %368 = vst [vmem:[#allocation2 + $0x178] sm:$0xff] %v299
  %369 = vst [vmem:[#allocation2 + $0x180] sm:$0xff] %v303
  %370 = vst [vmem:[#allocation2 + $0x188] sm:$0xff] %v305
  %371 = vst [vmem:[#allocation2 + $0x190] sm:$0xff] %v307
  %372 = vst [vmem:[#allocation2 + $0x198] sm:$0xff] %v309
  %373 = vst [vmem:[#allocation2 + $0x1a0] sm:$0xff] %v313
  %374 = vst [vmem:[#allocation2 + $0x1a8] sm:$0xff] %v315
  %375 = vst [vmem:[#allocation2 + $0x1b0] sm:$0xff] %v317
  %376 = vst [vmem:[#allocation2 + $0x1b8] sm:$0xff] %v319
  %v377 = vld [vmem:[#allocation2] sm:$0xff]
  %v378 = vld [vmem:[#allocation2 + $0x8] sm:$0xff]
  %v379 = vld [vmem:[#allocation2 + $0x10] sm:$0xff]
  %v380 = vld [vmem:[#allocation2 + $0x18] sm:$0xff]
  %v381 = vld [vmem:[#allocation2 + $0x20] sm:$0xff]
  %v382 = vld [vmem:[#allocation2 + $0x28] sm:$0xff]
  %v383 = vld [vmem:[#allocation2 + $0x30] sm:$0xff]
  %v384 = vld [vmem:[#allocation2 + $0x38] sm:$0xff]
  %v385 = vld [vmem:[#allocation2 + $0x40] sm:$0xff]
  %v386 = vld [vmem:[#allocation2 + $0x48] sm:$0xff]
  %v387 = vld [vmem:[#allocation2 + $0x50] sm:$0xff]
  %v388 = vld [vmem:[#allocation2 + $0x58] sm:$0xff]
  %v389 = vld [vmem:[#allocation2 + $0x60] sm:$0xff]
  %v390 = vld [vmem:[#allocation2 + $0x68] sm:$0xff]
  %v391 = vld [vmem:[#allocation2 + $0x70] sm:$0xff]
  %v392 = vld [vmem:[#allocation2 + $0x78] sm:$0xff]
  %v393 = vld [vmem:[#allocation2 + $0x80] sm:$0xff]
  %v394 = vld [vmem:[#allocation2 + $0x88] sm:$0xff]
  %v395 = vld [vmem:[#allocation2 + $0x90] sm:$0xff]
  %v396 = vld [vmem:[#allocation2 + $0x98] sm:$0xff]
  %v397 = vld [vmem:[#allocation2 + $0xa0] sm:$0xff]
  %v398 = vld [vmem:[#allocation2 + $0xa8] sm:$0xff]
  %v399 = vld [vmem:[#allocation2 + $0xb0] sm:$0xff]
  %v400 = vld [vmem:[#allocation2 + $0xb8] sm:$0xff]
  %v401 = vld [vmem:[#allocation2 + $0xc0] sm:$0xff]
  %v402 = vld [vmem:[#allocation2 + $0xc8] sm:$0xff]
  %v403 = vld [vmem:[#allocation2 + $0xd0] sm:$0xff]
  %v404 = vld [vmem:[#allocation2 + $0xd8] sm:$0xff]
  %v405 = vld [vmem:[#allocation2 + $0xe0] sm:$0xff]
  %v406 = vld [vmem:[#allocation2 + $0xe8] sm:$0xff]
  %v407 = vld [vmem:[#allocation2 + $0xf0] sm:$0xff]
  %v408 = vld [vmem:[#allocation2 + $0xf8] sm:$0xff]
  %v409 = vld [vmem:[#allocation2 + $0x100] sm:$0xff]
  %v410 = vld [vmem:[#allocation2 + $0x108] sm:$0xff]
  %v411 = vld [vmem:[#allocation2 + $0x110] sm:$0xff]
  %v412 = vld [vmem:[#allocation2 + $0x118] sm:$0xff]
  %v413 = vld [vmem:[#allocation2 + $0x120] sm:$0xff]
  %v414 = vld [vmem:[#allocation2 + $0x128] sm:$0xff]
  %v415 = vld [vmem:[#allocation2 + $0x130] sm:$0xff]
  %v416 = vld [vmem:[#allocation2 + $0x138] sm:$0xff]
  %v417 = vld [vmem:[#allocation2 + $0x140] sm:$0xff]
  %v418 = vld [vmem:[#allocation2 + $0x148] sm:$0xff]
  %v419 = vld [vmem:[#allocation2 + $0x150] sm:$0xff]
  %v420 = vld [vmem:[#allocation2 + $0x158] sm:$0xff]
  %v421 = vld [vmem:[#allocation2 + $0x160] sm:$0xff]
  %v422 = vld [vmem:[#allocation2 + $0x168] sm:$0xff]
  %v423 = vld [vmem:[#allocation2 + $0x170] sm:$0xff]
  %v424 = vld [vmem:[#allocation2 + $0x178] sm:$0xff]
  %v425 = vld [vmem:[#allocation2 + $0x180] sm:$0xff]
  %v426 = vld [vmem:[#allocation2 + $0x188] sm:$0xff]
  %v427 = vld [vmem:[#allocation2 + $0x190] sm:$0xff]
  %v428 = vld [vmem:[#allocation2 + $0x198] sm:$0xff]
  %v429 = vld [vmem:[#allocation2 + $0x1a0] sm:$0xff]
  %v430 = vld [vmem:[#allocation2 + $0x1a8] sm:$0xff]
  %v431 = vld [vmem:[#allocation2 + $0x1b0] sm:$0xff]
  %v432 = vld [vmem:[#allocation2 + $0x1b8] sm:$0xff]
  %v433 = vld [vmem:[%s0 + $0x8] sm:$0xff]
  %v434 = vld [vmem:[%s0 + $0x10] sm:$0xff]
  %v435 = vld [vmem:[%s0 + $0x18] sm:$0xff]
  %v436 = vld [vmem:[%s0 + $0x20] sm:$0xff]
  %v437 = vld [vmem:[%s0 + $0x28] sm:$0xff]
  %v438 = vld [vmem:[%s0 + $0x30] sm:$0xff]
  %v439 = vld [vmem:[%s0 + $0x38] sm:$0xff]
  %v440 = vld [vmem:[%s0 + $0x40] sm:$0xff]
  %v441 = vld [vmem:[%s0 + $0x48] sm:$0xff]
  %v442 = vld [vmem:[%s0 + $0x50] sm:$0xff]
  %v443 = vld [vmem:[%s0 + $0x58] sm:$0xff]
  %v444 = vld [vmem:[%s0 + $0x60] sm:$0xff]
  %v445 = vld [vmem:[%s0 + $0x68] sm:$0xff]
  %v446 = vld [vmem:[%s0 + $0x70] sm:$0xff]
  %v447 = vld [vmem:[%s0 + $0x78] sm:$0xff]
  %v448 = vld [vmem:[%s0 + $0x80] sm:$0xff]
  %v449 = vld [vmem:[%s0 + $0x88] sm:$0xff]
  %v450 = vld [vmem:[%s0 + $0x90] sm:$0xff]
  %v451 = vld [vmem:[%s0 + $0x98] sm:$0xff]
  %v452 = vld [vmem:[%s0 + $0xa0] sm:$0xff]
  %v453 = vld [vmem:[%s0 + $0xa8] sm:$0xff]
  %v454 = vld [vmem:[%s0 + $0xb0] sm:$0xff]
  %v455 = vld [vmem:[%s0 + $0xb8] sm:$0xff]
  %v456 = vld [vmem:[%s0 + $0xc0] sm:$0xff]
  %v457 = vld [vmem:[%s0 + $0xc8] sm:$0xff]
  %v458 = vld [vmem:[%s0 + $0xd0] sm:$0xff]
  %v459 = vld [vmem:[%s0 + $0xd8] sm:$0xff]
  %v460 = vld [vmem:[%s0 + $0xe0] sm:$0xff]
  %v461 = vpack.c.bf16 %v434, %v433
  %v462 = vpack.c.bf16 %v436, %v435
  %v463 = vpack.c.bf16 %v438, %v437
  %v464 = vpack.c.bf16 %v440, %v439
  %v465 = vpack.c.bf16 %v442, %v441
  %v466 = vpack.c.bf16 %v444, %v443
  %v467 = vpack.c.bf16 %v446, %v445
  %v468 = vpack.c.bf16 %v448, %v447
  %v469 = vpack.c.bf16 %v450, %v449
  %v470 = vpack.c.bf16 %v452, %v451
  %v471 = vpack.c.bf16 %v454, %v453
  %v472 = vpack.c.bf16 %v456, %v455
  %v473 = vpack.c.bf16 %v458, %v457
  %v474 = vpack.c.bf16 %v460, %v459
  %s475 = scalar_lea.vmem %s1, 32
  %v476 = vld [vmem:[%s475] sm:$0xff]
  %v477 = vld [vmem:[%s475 + $0x8] sm:$0xff]
  %v478 = vld [vmem:[%s475 + $0x10] sm:$0xff]
  %v479 = vld [vmem:[%s475 + $0x18] sm:$0xff]
  %v484 = vunpack.c.l.b16 %v476
  %v485 = vunpack.c.h.b16 %v476
  %v486 = vunpack.c.l.b16 %v477
  %v487 = vunpack.c.h.b16 %v477
  %v488 = vunpack.c.l.b16 %v478
  %v489 = vunpack.c.h.b16 %v478
  %v490 = vunpack.c.l.b16 %v479
  %v491 = vunpack.c.h.b16 %v479
  %v492 = vpack.c.b16 %v486, %v484
  %v493 = vpack.c.b16 %v487, %v485
  %v494 = vpack.c.b16 %v490, %v488
  %v495 = vpack.c.b16 %v491, %v489
  %v501 = vsel %vm105, %v461, 0
  %v504 = vsel %vm105, %v462, 0
  %v507 = vsel %vm105, %v463, 0
  %v510 = vsel %vm105, %v464, 0
  %v513 = vsel %vm105, %v465, 0
  %v516 = vsel %vm105, %v466, 0
  %v519 = vsel %vm105, %v467, 0
  %v522 = vsel %vm105, %v468, 0
  %v525 = vsel %vm105, %v469, 0
  %v528 = vsel %vm105, %v470, 0
  %v531 = vsel %vm105, %v471, 0
  %v534 = vsel %vm105, %v472, 0
  %v537 = vsel %vm105, %v473, 0
  %v540 = vsel %vm105, %v474, 0
  %542 = vmatprep.subr.bf16.mxu0 %v493
  %543 = vmatpush1.bf16.msra.mxu0 %v492
  %544 = vmatprep.subr.bf16.mxu0 %v495
  %545 = vmatpush1.bf16.msra.mxu0 %v494
  %546 = vmatprep.subr.bf16.mxu0 0
  %547 = vmatpush1.bf16.msra.mxu0 0
  %548 = vmatprep.subr.bf16.mxu0 0
  %549 = vmatpush1.bf16.msra.mxu0 0
  %550 = vmatprep.subr.bf16.mxu0 0
  %551 = vmatpush1.bf16.msra.mxu0 0
  %552 = vmatprep.subr.bf16.mxu0 0
  %553 = vmatpush1.bf16.msra.mxu0 0
  %554 = vmatprep.subr.bf16.mxu0 0
  %555 = vmatpush1.bf16.msra.mxu0 0
  %556 = vmatprep.subr.bf16.mxu0 0
  %557 = vmatpush1.bf16.msra.mxu0 0
  %558 = vmatprep.subr.bf16.mxu0 0
  %559 = vmatpush1.bf16.msra.mxu0 0
  %560 = vmatprep.subr.bf16.mxu0 0
  %561 = vmatpush1.bf16.msra.mxu0 0
  %562 = vmatprep.subr.bf16.mxu0 0
  %563 = vmatpush1.bf16.msra.mxu0 0
  %564 = vmatprep.subr.bf16.mxu0 0
  %565 = vmatpush1.bf16.msra.mxu0 0
  %566 = vmatprep.subr.bf16.mxu0 0
  %567 = vmatpush1.bf16.msra.mxu0 0
  %568 = vmatprep.subr.bf16.mxu0 0
  %569 = vmatpush1.bf16.msra.mxu0 0
  %570 = vmatprep.subr.bf16.mxu0 0
  %571 = vmatpush1.bf16.msra.mxu0 0
  %572 = vmatprep.subr.bf16.mxu0 0
  %573 = vmatpush1.bf16.msra.mxu0 0
  %574 = vmatprep.mubr.bf16.mxu0 0
  %575 = vmatmul.mubr.bf16.gmra.mrb[0].mxu0 %v501
  %v576 = vpop.f32.mrb[0].mxu0
  %v577 = vadd.f32 0.0, %v576
  %v578 = vpop.f32.mrb[0].mxu0
  %v579 = vadd.f32 0.0, %v578
  %v580 = vpop.f32.mrb[0].mxu0
  %v581 = vadd.f32 0.0, %v580
  %v582 = vpop.f32.mrb[0].mxu0
  %v583 = vadd.f32 0.0, %v582
  %584 = vmatprep.mubr.bf16.mxu0 0
  %585 = vmatmul.mubr.bf16.gmra.mrb[0].mxu0 %v504
  %v586 = vpop.f32.mrb[0].mxu0
  %v587 = vadd.f32 0.0, %v586
  %v588 = vpop.f32.mrb[0].mxu0
  %v589 = vadd.f32 0.0, %v588
  %v590 = vpop.f32.mrb[0].mxu0
  %v591 = vadd.f32 0.0, %v590
  %v592 = vpop.f32.mrb[0].mxu0
  %v593 = vadd.f32 0.0, %v592
  %594 = vmatprep.mubr.bf16.mxu0 0
  %595 = vmatmul.mubr.bf16.gmra.mrb[0].mxu0 %v507
  %v596 = vpop.f32.mrb[0].mxu0
  %v597 = vadd.f32 0.0, %v596
  %v598 = vpop.f32.mrb[0].mxu0
  %v599 = vadd.f32 0.0, %v598
  %v600 = vpop.f32.mrb[0].mxu0
  %v601 = vadd.f32 0.0, %v600
  %v602 = vpop.f32.mrb[0].mxu0
  %v603 = vadd.f32 0.0, %v602
  %604 = vmatprep.mubr.bf16.mxu0 0
  %605 = vmatmul.mubr.bf16.gmra.mrb[0].mxu0 %v510
  %v606 = vpop.f32.mrb[0].mxu0
  %v607 = vadd.f32 0.0, %v606
  %v608 = vpop.f32.mrb[0].mxu0
  %v609 = vadd.f32 0.0, %v608
  %v610 = vpop.f32.mrb[0].mxu0
  %v611 = vadd.f32 0.0, %v610
  %v612 = vpop.f32.mrb[0].mxu0
  %v613 = vadd.f32 0.0, %v612
  %614 = vmatprep.mubr.bf16.mxu0 0
  %615 = vmatmul.mubr.bf16.gmra.mrb[0].mxu0 %v513
  %v616 = vpop.f32.mrb[0].mxu0
  %v617 = vadd.f32 0.0, %v616
  %v618 = vpop.f32.mrb[0].mxu0
  %v619 = vadd.f32 0.0, %v618
  %v620 = vpop.f32.mrb[0].mxu0
  %v621 = vadd.f32 0.0, %v620
  %v622 = vpop.f32.mrb[0].mxu0
  %v623 = vadd.f32 0.0, %v622
  %624 = vmatprep.mubr.bf16.mxu0 0
  %625 = vmatmul.mubr.bf16.gmra.mrb[0].mxu0 %v516
  %v626 = vpop.f32.mrb[0].mxu0
  %v627 = vadd.f32 0.0, %v626
  %v628 = vpop.f32.mrb[0].mxu0
  %v629 = vadd.f32 0.0, %v628
  %v630 = vpop.f32.mrb[0].mxu0
  %v631 = vadd.f32 0.0, %v630
  %v632 = vpop.f32.mrb[0].mxu0
  %v633 = vadd.f32 0.0, %v632
  %634 = vmatprep.mubr.bf16.mxu0 0
  %635 = vmatmul.mubr.bf16.gmra.mrb[0].mxu0 %v519
  %v636 = vpop.f32.mrb[0].mxu0
  %v637 = vadd.f32 0.0, %v636
  %v638 = vpop.f32.mrb[0].mxu0
  %v639 = vadd.f32 0.0, %v638
  %v640 = vpop.f32.mrb[0].mxu0
  %v641 = vadd.f32 0.0, %v640
  %v642 = vpop.f32.mrb[0].mxu0
  %v643 = vadd.f32 0.0, %v642
  %644 = vmatprep.mubr.bf16.mxu0 0
  %645 = vmatmul.mubr.bf16.gmra.mrb[0].mxu0 %v522
  %v646 = vpop.f32.mrb[0].mxu0
  %v647 = vadd.f32 0.0, %v646
  %v648 = vpop.f32.mrb[0].mxu0
  %v649 = vadd.f32 0.0, %v648
  %v650 = vpop.f32.mrb[0].mxu0
  %v651 = vadd.f32 0.0, %v650
  %v652 = vpop.f32.mrb[0].mxu0
  %v653 = vadd.f32 0.0, %v652
  %654 = vmatprep.mubr.bf16.mxu0 0
  %655 = vmatmul.mubr.bf16.gmra.mrb[0].mxu0 %v525
  %v656 = vpop.f32.mrb[0].mxu0
  %v657 = vadd.f32 0.0, %v656
  %v658 = vpop.f32.mrb[0].mxu0
  %v659 = vadd.f32 0.0, %v658
  %v660 = vpop.f32.mrb[0].mxu0
  %v661 = vadd.f32 0.0, %v660
  %v662 = vpop.f32.mrb[0].mxu0
  %v663 = vadd.f32 0.0, %v662
  %664 = vmatprep.mubr.bf16.mxu0 0
  %665 = vmatmul.mubr.bf16.gmra.mrb[0].mxu0 %v528
  %v666 = vpop.f32.mrb[0].mxu0
  %v667 = vadd.f32 0.0, %v666
  %v668 = vpop.f32.mrb[0].mxu0
  %v669 = vadd.f32 0.0, %v668
  %v670 = vpop.f32.mrb[0].mxu0
  %v671 = vadd.f32 0.0, %v670
  %v672 = vpop.f32.mrb[0].mxu0
  %v673 = vadd.f32 0.0, %v672
  %674 = vmatprep.mubr.bf16.mxu0 0
  %675 = vmatmul.mubr.bf16.gmra.mrb[0].mxu0 %v531
  %v676 = vpop.f32.mrb[0].mxu0
  %v677 = vadd.f32 0.0, %v676
  %v678 = vpop.f32.mrb[0].mxu0
  %v679 = vadd.f32 0.0, %v678
  %v680 = vpop.f32.mrb[0].mxu0
  %v681 = vadd.f32 0.0, %v680
  %v682 = vpop.f32.mrb[0].mxu0
  %v683 = vadd.f32 0.0, %v682
  %684 = vmatprep.mubr.bf16.mxu0 0
  %685 = vmatmul.mubr.bf16.gmra.mrb[0].mxu0 %v534
  %v686 = vpop.f32.mrb[0].mxu0
  %v687 = vadd.f32 0.0, %v686
  %v688 = vpop.f32.mrb[0].mxu0
  %v689 = vadd.f32 0.0, %v688
  %v690 = vpop.f32.mrb[0].mxu0
  %v691 = vadd.f32 0.0, %v690
  %v692 = vpop.f32.mrb[0].mxu0
  %v693 = vadd.f32 0.0, %v692
  %694 = vmatprep.mubr.bf16.mxu0 0
  %695 = vmatmul.mubr.bf16.gmra.mrb[0].mxu0 %v537
  %v696 = vpop.f32.mrb[0].mxu0
  %v697 = vadd.f32 0.0, %v696
  %v698 = vpop.f32.mrb[0].mxu0
  %v699 = vadd.f32 0.0, %v698
  %v700 = vpop.f32.mrb[0].mxu0
  %v701 = vadd.f32 0.0, %v700
  %v702 = vpop.f32.mrb[0].mxu0
  %v703 = vadd.f32 0.0, %v702
  %704 = vmatprep.mubr.bf16.mxu0 0
  %705 = vmatmul.mubr.bf16.gmra.mrb[0].mxu0 %v540
  %v706 = vpop.f32.mrb[0].mxu0
  %v707 = vadd.f32 0.0, %v706
  %v708 = vpop.f32.mrb[0].mxu0
  %v709 = vadd.f32 0.0, %v708
  %v710 = vpop.f32.mrb[0].mxu0
  %v711 = vadd.f32 0.0, %v710
  %v712 = vpop.f32.mrb[0].mxu0
  %v713 = vadd.f32 0.0, %v712
  %714 = vdwg.mxu0
  %v715 = vadd.f32 %v377, %v577
  %v716 = vadd.f32 %v378, %v579
  %v717 = vadd.f32 %v379, %v581
  %v718 = vadd.f32 %v380, %v583
  %v719 = vadd.f32 %v381, %v587
  %v720 = vadd.f32 %v382, %v589
  %v721 = vadd.f32 %v383, %v591
  %v722 = vadd.f32 %v384, %v593
  %v723 = vadd.f32 %v385, %v597
  %v724 = vadd.f32 %v386, %v599
  %v725 = vadd.f32 %v387, %v601
  %v726 = vadd.f32 %v388, %v603
  %v727 = vadd.f32 %v389, %v607
  %v728 = vadd.f32 %v390, %v609
  %v729 = vadd.f32 %v391, %v611
  %v730 = vadd.f32 %v392, %v613
  %v731 = vadd.f32 %v393, %v617
  %v732 = vadd.f32 %v394, %v619
  %v733 = vadd.f32 %v395, %v621
  %v734 = vadd.f32 %v396, %v623
  %v735 = vadd.f32 %v397, %v627
  %v736 = vadd.f32 %v398, %v629
  %v737 = vadd.f32 %v399, %v631
  %v738 = vadd.f32 %v400, %v633
  %v739 = vadd.f32 %v401, %v637
  %v740 = vadd.f32 %v402, %v639
  %v741 = vadd.f32 %v403, %v641
  %v742 = vadd.f32 %v404, %v643
  %v743 = vadd.f32 %v405, %v647
  %v744 = vadd.f32 %v406, %v649
  %v745 = vadd.f32 %v407, %v651
  %v746 = vadd.f32 %v408, %v653
  %v747 = vadd.f32 %v409, %v657
  %v748 = vadd.f32 %v410, %v659
  %v749 = vadd.f32 %v411, %v661
  %v750 = vadd.f32 %v412, %v663
  %v751 = vadd.f32 %v413, %v667
  %v752 = vadd.f32 %v414, %v669
  %v753 = vadd.f32 %v415, %v671
  %v754 = vadd.f32 %v416, %v673
  %v755 = vadd.f32 %v417, %v677
  %v756 = vadd.f32 %v418, %v679
  %v757 = vadd.f32 %v419, %v681
  %v758 = vadd.f32 %v420, %v683
  %v759 = vadd.f32 %v421, %v687
  %v760 = vadd.f32 %v422, %v689
  %v761 = vadd.f32 %v423, %v691
  %v762 = vadd.f32 %v424, %v693
  %v763 = vadd.f32 %v425, %v697
  %v764 = vadd.f32 %v426, %v699
  %v765 = vadd.f32 %v427, %v701
  %v766 = vadd.f32 %v428, %v703
  %v767 = vadd.f32 %v429, %v707
  %v768 = vadd.f32 %v430, %v709
  %v769 = vadd.f32 %v431, %v711
  %v770 = vadd.f32 %v432, %v713
  %771 = vst [vmem:[#allocation2] sm:$0xff] %v715
  %772 = vst [vmem:[#allocation2 + $0x8] sm:$0xff] %v716
  %773 = vst [vmem:[#allocation2 + $0x10] sm:$0xff] %v717
  %774 = vst [vmem:[#allocation2 + $0x18] sm:$0xff] %v718
  %775 = vst [vmem:[#allocation2 + $0x20] sm:$0xff] %v719
  %776 = vst [vmem:[#allocation2 + $0x28] sm:$0xff] %v720
  %777 = vst [vmem:[#allocation2 + $0x30] sm:$0xff] %v721
  %778 = vst [vmem:[#allocation2 + $0x38] sm:$0xff] %v722
  %779 = vst [vmem:[#allocation2 + $0x40] sm:$0xff] %v723
  %780 = vst [vmem:[#allocation2 + $0x48] sm:$0xff] %v724
  %781 = vst [vmem:[#allocation2 + $0x50] sm:$0xff] %v725
  %782 = vst [vmem:[#allocation2 + $0x58] sm:$0xff] %v726
  %783 = vst [vmem:[#allocation2 + $0x60] sm:$0xff] %v727
  %784 = vst [vmem:[#allocation2 + $0x68] sm:$0xff] %v728
  %785 = vst [vmem:[#allocation2 + $0x70] sm:$0xff] %v729
  %786 = vst [vmem:[#allocation2 + $0x78] sm:$0xff] %v730
  %787 = vst [vmem:[#allocation2 + $0x80] sm:$0xff] %v731
  %788 = vst [vmem:[#allocation2 + $0x88] sm:$0xff] %v732
  %789 = vst [vmem:[#allocation2 + $0x90] sm:$0xff] %v733
  %790 = vst [vmem:[#allocation2 + $0x98] sm:$0xff] %v734
  %791 = vst [vmem:[#allocation2 + $0xa0] sm:$0xff] %v735
  %792 = vst [vmem:[#allocation2 + $0xa8] sm:$0xff] %v736
  %793 = vst [vmem:[#allocation2 + $0xb0] sm:$0xff] %v737
  %794 = vst [vmem:[#allocation2 + $0xb8] sm:$0xff] %v738
  %795 = vst [vmem:[#allocation2 + $0xc0] sm:$0xff] %v739
  %796 = vst [vmem:[#allocation2 + $0xc8] sm:$0xff] %v740
  %797 = vst [vmem:[#allocation2 + $0xd0] sm:$0xff] %v741
  %798 = vst [vmem:[#allocation2 + $0xd8] sm:$0xff] %v742
  %799 = vst [vmem:[#allocation2 + $0xe0] sm:$0xff] %v743
  %800 = vst [vmem:[#allocation2 + $0xe8] sm:$0xff] %v744
  %801 = vst [vmem:[#allocation2 + $0xf0] sm:$0xff] %v745
  %802 = vst [vmem:[#allocation2 + $0xf8] sm:$0xff] %v746
  %803 = vst [vmem:[#allocation2 + $0x100] sm:$0xff] %v747
  %804 = vst [vmem:[#allocation2 + $0x108] sm:$0xff] %v748
  %805 = vst [vmem:[#allocation2 + $0x110] sm:$0xff] %v749
  %806 = vst [vmem:[#allocation2 + $0x118] sm:$0xff] %v750
  %807 = vst [vmem:[#allocation2 + $0x120] sm:$0xff] %v751
  %808 = vst [vmem:[#allocation2 + $0x128] sm:$0xff] %v752
  %809 = vst [vmem:[#allocation2 + $0x130] sm:$0xff] %v753
  %810 = vst [vmem:[#allocation2 + $0x138] sm:$0xff] %v754
  %811 = vst [vmem:[#allocation2 + $0x140] sm:$0xff] %v755
  %812 = vst [vmem:[#allocation2 + $0x148] sm:$0xff] %v756
  %813 = vst [vmem:[#allocation2 + $0x150] sm:$0xff] %v757
  %814 = vst [vmem:[#allocation2 + $0x158] sm:$0xff] %v758
  %815 = vst [vmem:[#allocation2 + $0x160] sm:$0xff] %v759
  %816 = vst [vmem:[#allocation2 + $0x168] sm:$0xff] %v760
  %817 = vst [vmem:[#allocation2 + $0x170] sm:$0xff] %v761
  %818 = vst [vmem:[#allocation2 + $0x178] sm:$0xff] %v762
  %819 = vst [vmem:[#allocation2 + $0x180] sm:$0xff] %v763
  %820 = vst [vmem:[#allocation2 + $0x188] sm:$0xff] %v764
  %821 = vst [vmem:[#allocation2 + $0x190] sm:$0xff] %v765
  %822 = vst [vmem:[#allocation2 + $0x198] sm:$0xff] %v766
  %823 = vst [vmem:[#allocation2 + $0x1a0] sm:$0xff] %v767
  %824 = vst [vmem:[#allocation2 + $0x1a8] sm:$0xff] %v768
  %825 = vst [vmem:[#allocation2 + $0x1b0] sm:$0xff] %v769
  %826 = vst [vmem:[#allocation2 + $0x1b8] sm:$0xff] %v770
  %v827 = vld [vmem:[#allocation2] sm:$0xff]
  %v828 = vld [vmem:[#allocation2 + $0x8] sm:$0xff]
  %v829 = vld [vmem:[#allocation2 + $0x10] sm:$0xff]
  %v830 = vld [vmem:[#allocation2 + $0x18] sm:$0xff]
  %v831 = vld [vmem:[#allocation2 + $0x20] sm:$0xff]
  %v832 = vld [vmem:[#allocation2 + $0x28] sm:$0xff]
  %v833 = vld [vmem:[#allocation2 + $0x30] sm:$0xff]
  %v834 = vld [vmem:[#allocation2 + $0x38] sm:$0xff]
  %v835 = vld [vmem:[#allocation2 + $0x40] sm:$0xff]
  %v836 = vld [vmem:[#allocation2 + $0x48] sm:$0xff]
  %v837 = vld [vmem:[#allocation2 + $0x50] sm:$0xff]
  %v838 = vld [vmem:[#allocation2 + $0x58] sm:$0xff]
  %v839 = vld [vmem:[#allocation2 + $0x60] sm:$0xff]
  %v840 = vld [vmem:[#allocation2 + $0x68] sm:$0xff]
  %v841 = vld [vmem:[#allocation2 + $0x70] sm:$0xff]
  %v842 = vld [vmem:[#allocation2 + $0x78] sm:$0xff]
  %v843 = vld [vmem:[#allocation2 + $0x80] sm:$0xff]
  %v844 = vld [vmem:[#allocation2 + $0x88] sm:$0xff]
  %v845 = vld [vmem:[#allocation2 + $0x90] sm:$0xff]
  %v846 = vld [vmem:[#allocation2 + $0x98] sm:$0xff]
  %v847 = vld [vmem:[#allocation2 + $0xa0] sm:$0xff]
  %v848 = vld [vmem:[#allocation2 + $0xa8] sm:$0xff]
  %v849 = vld [vmem:[#allocation2 + $0xb0] sm:$0xff]
  %v850 = vld [vmem:[#allocation2 + $0xb8] sm:$0xff]
  %v851 = vld [vmem:[#allocation2 + $0xc0] sm:$0xff]
  %v852 = vld [vmem:[#allocation2 + $0xc8] sm:$0xff]
  %v853 = vld [vmem:[#allocation2 + $0xd0] sm:$0xff]
  %v854 = vld [vmem:[#allocation2 + $0xd8] sm:$0xff]
  %v855 = vld [vmem:[#allocation2 + $0xe0] sm:$0xff]
  %v856 = vld [vmem:[#allocation2 + $0xe8] sm:$0xff]
  %v857 = vld [vmem:[#allocation2 + $0xf0] sm:$0xff]
  %v858 = vld [vmem:[#allocation2 + $0xf8] sm:$0xff]
  %v859 = vld [vmem:[#allocation2 + $0x100] sm:$0xff]
  %v860 = vld [vmem:[#allocation2 + $0x108] sm:$0xff]
  %v861 = vld [vmem:[#allocation2 + $0x110] sm:$0xff]
  %v862 = vld [vmem:[#allocation2 + $0x118] sm:$0xff]
  %v863 = vld [vmem:[#allocation2 + $0x120] sm:$0xff]
  %v864 = vld [vmem:[#allocation2 + $0x128] sm:$0xff]
  %v865 = vld [vmem:[#allocation2 + $0x130] sm:$0xff]
  %v866 = vld [vmem:[#allocation2 + $0x138] sm:$0xff]
  %v867 = vld [vmem:[#allocation2 + $0x140] sm:$0xff]
  %v868 = vld [vmem:[#allocation2 + $0x148] sm:$0xff]
  %v869 = vld [vmem:[#allocation2 + $0x150] sm:$0xff]
  %v870 = vld [vmem:[#allocation2 + $0x158] sm:$0xff]
  %v871 = vld [vmem:[#allocation2 + $0x160] sm:$0xff]
  %v872 = vld [vmem:[#allocation2 + $0x168] sm:$0xff]
  %v873 = vld [vmem:[#allocation2 + $0x170] sm:$0xff]
  %v874 = vld [vmem:[#allocation2 + $0x178] sm:$0xff]
  %v875 = vld [vmem:[#allocation2 + $0x180] sm:$0xff]
  %v876 = vld [vmem:[#allocation2 + $0x188] sm:$0xff]
  %v877 = vld [vmem:[#allocation2 + $0x190] sm:$0xff]
  %v878 = vld [vmem:[#allocation2 + $0x198] sm:$0xff]
  %v879 = vld [vmem:[#allocation2 + $0x1a0] sm:$0xff]
  %v880 = vld [vmem:[#allocation2 + $0x1a8] sm:$0xff]
  %v881 = vld [vmem:[#allocation2 + $0x1b0] sm:$0xff]
  %v882 = vld [vmem:[#allocation2 + $0x1b8] sm:$0xff]
  %v883 = vld [vmem:[%s0 + $0x10] sm:$0xff]
  %v884 = vld [vmem:[%s0 + $0x18] sm:$0xff]
  %v885 = vld [vmem:[%s0 + $0x20] sm:$0xff]
  %v886 = vld [vmem:[%s0 + $0x28] sm:$0xff]
  %v887 = vld [vmem:[%s0 + $0x30] sm:$0xff]
  %v888 = vld [vmem:[%s0 + $0x38] sm:$0xff]
  %v889 = vld [vmem:[%s0 + $0x40] sm:$0xff]
  %v890 = vld [vmem:[%s0 + $0x48] sm:$0xff]
  %v891 = vld [vmem:[%s0 + $0x50] sm:$0xff]
  %v892 = vld [vmem:[%s0 + $0x58] sm:$0xff]
  %v893 = vld [vmem:[%s0 + $0x60] sm:$0xff]
  %v894 = vld [vmem:[%s0 + $0x68] sm:$0xff]
  %v895 = vld [vmem:[%s0 + $0x70] sm:$0xff]
  %v896 = vld [vmem:[%s0 + $0x78] sm:$0xff]
  %v897 = vld [vmem:[%s0 + $0x80] sm:$0xff]
  %v898 = vld [vmem:[%s0 + $0x88] sm:$0xff]
  %v899 = vld [vmem:[%s0 + $0x90] sm:$0xff]
  %v900 = vld [vmem:[%s0 + $0x98] sm:$0xff]
  %v901 = vld [vmem:[%s0 + $0xa0] sm:$0xff]
  %v902 = vld [vmem:[%s0 + $0xa8] sm:$0xff]
  %v903 = vld [vmem:[%s0 + $0xb0] sm:$0xff]
  %v904 = vld [vmem:[%s0 + $0xb8] sm:$0xff]
  %v905 = vld [vmem:[%s0 + $0xc0] sm:$0xff]
  %v906 = vld [vmem:[%s0 + $0xc8] sm:$0xff]
  %v907 = vld [vmem:[%s0 + $0xd0] sm:$0xff]
  %v908 = vld [vmem:[%s0 + $0xd8] sm:$0xff]
  %v909 = vld [vmem:[%s0 + $0xe0] sm:$0xff]
  %v910 = vld [vmem:[%s0 + $0xe8] sm:$0xff]
  %v911 = vpack.c.bf16 %v884, %v883
  %v912 = vpack.c.bf16 %v886, %v885
  %v913 = vpack.c.bf16 %v888, %v887
  %v914 = vpack.c.bf16 %v890, %v889
  %v915 = vpack.c.bf16 %v892, %v891
  %v916 = vpack.c.bf16 %v894, %v893
  %v917 = vpack.c.bf16 %v896, %v895
  %v918 = vpack.c.bf16 %v898, %v897
  %v919 = vpack.c.bf16 %v900, %v899
  %v920 = vpack.c.bf16 %v902, %v901
  %v921 = vpack.c.bf16 %v904, %v903
  %v922 = vpack.c.bf16 %v906, %v905
  %v923 = vpack.c.bf16 %v908, %v907
  %v924 = vpack.c.bf16 %v910, %v909
  %s925 = scalar_lea.vmem %s1, 64
  %v926 = vld [vmem:[%s925] sm:$0xff]
  %v927 = vld [vmem:[%s925 + $0x8] sm:$0xff]
  %v928 = vld [vmem:[%s925 + $0x10] sm:$0xff]
  %v929 = vld [vmem:[%s925 + $0x18] sm:$0xff]
  %v934 = vunpack.c.l.b16 %v926
  %v935 = vunpack.c.h.b16 %v926
  %v936 = vunpack.c.l.b16 %v927
  %v937 = vunpack.c.h.b16 %v927
  %v938 = vunpack.c.l.b16 %v928
  %v939 = vunpack.c.h.b16 %v928
  %v940 = vunpack.c.l.b16 %v929
  %v941 = vunpack.c.h.b16 %v929
  %v942 = vpack.c.b16 %v936, %v934
  %v943 = vpack.c.b16 %v937, %v935
  %v944 = vpack.c.b16 %v940, %v938
  %v945 = vpack.c.b16 %v941, %v939
  %v951 = vsel %vm105, %v911, 0
  %v954 = vsel %vm105, %v912, 0
  %v957 = vsel %vm105, %v913, 0
  %v960 = vsel %vm105, %v914, 0
  %v963 = vsel %vm105, %v915, 0
  %v966 = vsel %vm105, %v916, 0
  %v969 = vsel %vm105, %v917, 0
  %v972 = vsel %vm105, %v918, 0
  %v975 = vsel %vm105, %v919, 0
  %v978 = vsel %vm105, %v920, 0
  %v981 = vsel %vm105, %v921, 0
  %v984 = vsel %vm105, %v922, 0
  %v987 = vsel %vm105, %v923, 0
  %v990 = vsel %vm105, %v924, 0
  %992 = vmatprep.subr.bf16.mxu0 %v943
  %993 = vmatpush1.bf16.msra.mxu0 %v942
  %994 = vmatprep.subr.bf16.mxu0 %v945
  %995 = vmatpush1.bf16.msra.mxu0 %v944
  %996 = vmatprep.subr.bf16.mxu0 0
  %997 = vmatpush1.bf16.msra.mxu0 0
  %998 = vmatprep.subr.bf16.mxu0 0
  %999 = vmatpush1.bf16.msra.mxu0 0
  %1000 = vmatprep.subr.bf16.mxu0 0
  %1001 = vmatpush1.bf16.msra.mxu0 0
  %1002 = vmatprep.subr.bf16.mxu0 0
  %1003 = vmatpush1.bf16.msra.mxu0 0
  %1004 = vmatprep.subr.bf16.mxu0 0
  %1005 = vmatpush1.bf16.msra.mxu0 0
  %1006 = vmatprep.subr.bf16.mxu0 0
  %1007 = vmatpush1.bf16.msra.mxu0 0
  %1008 = vmatprep.subr.bf16.mxu0 0
  %1009 = vmatpush1.bf16.msra.mxu0 0
  %1010 = vmatprep.subr.bf16.mxu0 0
  %1011 = vmatpush1.bf16.msra.mxu0 0
  %1012 = vmatprep.subr.bf16.mxu0 0
  %1013 = vmatpush1.bf16.msra.mxu0 0
  %1014 = vmatprep.subr.bf16.mxu0 0
  %1015 = vmatpush1.bf16.msra.mxu0 0
  %1016 = vmatprep.subr.bf16.mxu0 0
  %1017 = vmatpush1.bf16.msra.mxu0 0
  %1018 = vmatprep.subr.bf16.mxu0 0
  %1019 = vmatpush1.bf16.msra.mxu0 0
  %1020 = vmatprep.subr.bf16.mxu0 0
  %1021 = vmatpush1.bf16.msra.mxu0 0
  %1022 = vmatprep.subr.bf16.mxu0 0
  %1023 = vmatpush1.bf16.msra.mxu0 0
  %1024 = vmatprep.mubr.bf16.mxu0 0
  %1025 = vmatmul.mubr.bf16.gmra.mrb[0].mxu0 %v951
  %v1026 = vpop.f32.mrb[0].mxu0
  %v1027 = vadd.f32 0.0, %v1026
  %v1028 = vpop.f32.mrb[0].mxu0
  %v1029 = vadd.f32 0.0, %v1028
  %v1030 = vpop.f32.mrb[0].mxu0
  %v1031 = vadd.f32 0.0, %v1030
  %v1032 = vpop.f32.mrb[0].mxu0
  %v1033 = vadd.f32 0.0, %v1032
  %1034 = vmatprep.mubr.bf16.mxu0 0
  %1035 = vmatmul.mubr.bf16.gmra.mrb[0].mxu0 %v954
  %v1036 = vpop.f32.mrb[0].mxu0
  %v1037 = vadd.f32 0.0, %v1036
  %v1038 = vpop.f32.mrb[0].mxu0
  %v1039 = vadd.f32 0.0, %v1038
  %v1040 = vpop.f32.mrb[0].mxu0
  %v1041 = vadd.f32 0.0, %v1040
  %v1042 = vpop.f32.mrb[0].mxu0
  %v1043 = vadd.f32 0.0, %v1042
  %1044 = vmatprep.mubr.bf16.mxu0 0
  %1045 = vmatmul.mubr.bf16.gmra.mrb[0].mxu0 %v957
  %v1046 = vpop.f32.mrb[0].mxu0
  %v1047 = vadd.f32 0.0, %v1046
  %v1048 = vpop.f32.mrb[0].mxu0
  %v1049 = vadd.f32 0.0, %v1048
  %v1050 = vpop.f32.mrb[0].mxu0
  %v1051 = vadd.f32 0.0, %v1050
  %v1052 = vpop.f32.mrb[0].mxu0
  %v1053 = vadd.f32 0.0, %v1052
  %1054 = vmatprep.mubr.bf16.mxu0 0
  %1055 = vmatmul.mubr.bf16.gmra.mrb[0].mxu0 %v960
  %v1056 = vpop.f32.mrb[0].mxu0
  %v1057 = vadd.f32 0.0, %v1056
  %v1058 = vpop.f32.mrb[0].mxu0
  %v1059 = vadd.f32 0.0, %v1058
  %v1060 = vpop.f32.mrb[0].mxu0
  %v1061 = vadd.f32 0.0, %v1060
  %v1062 = vpop.f32.mrb[0].mxu0
  %v1063 = vadd.f32 0.0, %v1062
  %1064 = vmatprep.mubr.bf16.mxu0 0
  %1065 = vmatmul.mubr.bf16.gmra.mrb[0].mxu0 %v963
  %v1066 = vpop.f32.mrb[0].mxu0
  %v1067 = vadd.f32 0.0, %v1066
  %v1068 = vpop.f32.mrb[0].mxu0
  %v1069 = vadd.f32 0.0, %v1068
  %v1070 = vpop.f32.mrb[0].mxu0
  %v1071 = vadd.f32 0.0, %v1070
  %v1072 = vpop.f32.mrb[0].mxu0
  %v1073 = vadd.f32 0.0, %v1072
  %1074 = vmatprep.mubr.bf16.mxu0 0
  %1075 = vmatmul.mubr.bf16.gmra.mrb[0].mxu0 %v966
  %v1076 = vpop.f32.mrb[0].mxu0
  %v1077 = vadd.f32 0.0, %v1076
  %v1078 = vpop.f32.mrb[0].mxu0
  %v1079 = vadd.f32 0.0, %v1078
  %v1080 = vpop.f32.mrb[0].mxu0
  %v1081 = vadd.f32 0.0, %v1080
  %v1082 = vpop.f32.mrb[0].mxu0
  %v1083 = vadd.f32 0.0, %v1082
  %1084 = vmatprep.mubr.bf16.mxu0 0
  %1085 = vmatmul.mubr.bf16.gmra.mrb[0].mxu0 %v969
  %v1086 = vpop.f32.mrb[0].mxu0
  %v1087 = vadd.f32 0.0, %v1086
  %v1088 = vpop.f32.mrb[0].mxu0
  %v1089 = vadd.f32 0.0, %v1088
  %v1090 = vpop.f32.mrb[0].mxu0
  %v1091 = vadd.f32 0.0, %v1090
  %v1092 = vpop.f32.mrb[0].mxu0
  %v1093 = vadd.f32 0.0, %v1092
  %1094 = vmatprep.mubr.bf16.mxu0 0
  %1095 = vmatmul.mubr.bf16.gmra.mrb[0].mxu0 %v972
  %v1096 = vpop.f32.mrb[0].mxu0
  %v1097 = vadd.f32 0.0, %v1096
  %v1098 = vpop.f32.mrb[0].mxu0
  %v1099 = vadd.f32 0.0, %v1098
  %v1100 = vpop.f32.mrb[0].mxu0
  %v1101 = vadd.f32 0.0, %v1100
  %v1102 = vpop.f32.mrb[0].mxu0
  %v1103 = vadd.f32 0.0, %v1102
  %1104 = vmatprep.mubr.bf16.mxu0 0
  %1105 = vmatmul.mubr.bf16.gmra.mrb[0].mxu0 %v975
  %v1106 = vpop.f32.mrb[0].mxu0
  %v1107 = vadd.f32 0.0, %v1106
  %v1108 = vpop.f32.mrb[0].mxu0
  %v1109 = vadd.f32 0.0, %v1108
  %v1110 = vpop.f32.mrb[0].mxu0
  %v1111 = vadd.f32 0.0, %v1110
  %v1112 = vpop.f32.mrb[0].mxu0
  %v1113 = vadd.f32 0.0, %v1112
  %1114 = vmatprep.mubr.bf16.mxu0 0
  %1115 = vmatmul.mubr.bf16.gmra.mrb[0].mxu0 %v978
  %v1116 = vpop.f32.mrb[0].mxu0
  %v1117 = vadd.f32 0.0, %v1116
  %v1118 = vpop.f32.mrb[0].mxu0
  %v1119 = vadd.f32 0.0, %v1118
  %v1120 = vpop.f32.mrb[0].mxu0
  %v1121 = vadd.f32 0.0, %v1120
  %v1122 = vpop.f32.mrb[0].mxu0
  %v1123 = vadd.f32 0.0, %v1122
  %1124 = vmatprep.mubr.bf16.mxu0 0
  %1125 = vmatmul.mubr.bf16.gmra.mrb[0].mxu0 %v981
  %v1126 = vpop.f32.mrb[0].mxu0
  %v1127 = vadd.f32 0.0, %v1126
  %v1128 = vpop.f32.mrb[0].mxu0
  %v1129 = vadd.f32 0.0, %v1128
  %v1130 = vpop.f32.mrb[0].mxu0
  %v1131 = vadd.f32 0.0, %v1130
  %v1132 = vpop.f32.mrb[0].mxu0
  %v1133 = vadd.f32 0.0, %v1132
  %1134 = vmatprep.mubr.bf16.mxu0 0
  %1135 = vmatmul.mubr.bf16.gmra.mrb[0].mxu0 %v984
  %v1136 = vpop.f32.mrb[0].mxu0
  %v1137 = vadd.f32 0.0, %v1136
  %v1138 = vpop.f32.mrb[0].mxu0
  %v1139 = vadd.f32 0.0, %v1138
  %v1140 = vpop.f32.mrb[0].mxu0
  %v1141 = vadd.f32 0.0, %v1140
  %v1142 = vpop.f32.mrb[0].mxu0
  %v1143 = vadd.f32 0.0, %v1142
  %1144 = vmatprep.mubr.bf16.mxu0 0
  %1145 = vmatmul.mubr.bf16.gmra.mrb[0].mxu0 %v987
  %v1146 = vpop.f32.mrb[0].mxu0
  %v1147 = vadd.f32 0.0, %v1146
  %v1148 = vpop.f32.mrb[0].mxu0
  %v1149 = vadd.f32 0.0, %v1148
  %v1150 = vpop.f32.mrb[0].mxu0
  %v1151 = vadd.f32 0.0, %v1150
  %v1152 = vpop.f32.mrb[0].mxu0
  %v1153 = vadd.f32 0.0, %v1152
  %1154 = vmatprep.mubr.bf16.mxu0 0
  %1155 = vmatmul.mubr.bf16.gmra.mrb[0].mxu0 %v990
  %v1156 = vpop.f32.mrb[0].mxu0
  %v1157 = vadd.f32 0.0, %v1156
  %v1158 = vpop.f32.mrb[0].mxu0
  %v1159 = vadd.f32 0.0, %v1158
  %v1160 = vpop.f32.mrb[0].mxu0
  %v1161 = vadd.f32 0.0, %v1160
  %v1162 = vpop.f32.mrb[0].mxu0
  %v1163 = vadd.f32 0.0, %v1162
  %1164 = vdwg.mxu0
  %v1165 = vadd.f32 %v827, %v1027
  %v1166 = vadd.f32 %v828, %v1029
  %v1167 = vadd.f32 %v829, %v1031
  %v1168 = vadd.f32 %v830, %v1033
  %v1169 = vadd.f32 %v831, %v1037
  %v1170 = vadd.f32 %v832, %v1039
  %v1171 = vadd.f32 %v833, %v1041
  %v1172 = vadd.f32 %v834, %v1043
  %v1173 = vadd.f32 %v835, %v1047
  %v1174 = vadd.f32 %v836, %v1049
  %v1175 = vadd.f32 %v837, %v1051
  %v1176 = vadd.f32 %v838, %v1053
  %v1177 = vadd.f32 %v839, %v1057
  %v1178 = vadd.f32 %v840, %v1059
  %v1179 = vadd.f32 %v841, %v1061
  %v1180 = vadd.f32 %v842, %v1063
  %v1181 = vadd.f32 %v843, %v1067
  %v1182 = vadd.f32 %v844, %v1069
  %v1183 = vadd.f32 %v845, %v1071
  %v1184 = vadd.f32 %v846, %v1073
  %v1185 = vadd.f32 %v847, %v1077
  %v1186 = vadd.f32 %v848, %v1079
  %v1187 = vadd.f32 %v849, %v1081
  %v1188 = vadd.f32 %v850, %v1083
  %v1189 = vadd.f32 %v851, %v1087
  %v1190 = vadd.f32 %v852, %v1089
  %v1191 = vadd.f32 %v853, %v1091
  %v1192 = vadd.f32 %v854, %v1093
  %v1193 = vadd.f32 %v855, %v1097
  %v1194 = vadd.f32 %v856, %v1099
  %v1195 = vadd.f32 %v857, %v1101
  %v1196 = vadd.f32 %v858, %v1103
  %v1197 = vadd.f32 %v859, %v1107
  %v1198 = vadd.f32 %v860, %v1109
  %v1199 = vadd.f32 %v861, %v1111
  %v1200 = vadd.f32 %v862, %v1113
  %v1201 = vadd.f32 %v863, %v1117
  %v1202 = vadd.f32 %v864, %v1119
  %v1203 = vadd.f32 %v865, %v1121
  %v1204 = vadd.f32 %v866, %v1123
  %v1205 = vadd.f32 %v867, %v1127
  %v1206 = vadd.f32 %v868, %v1129
  %v1207 = vadd.f32 %v869, %v1131
  %v1208 = vadd.f32 %v870, %v1133
  %v1209 = vadd.f32 %v871, %v1137
  %v1210 = vadd.f32 %v872, %v1139
  %v1211 = vadd.f32 %v873, %v1141
  %v1212 = vadd.f32 %v874, %v1143
  %v1213 = vadd.f32 %v875, %v1147
  %v1214 = vadd.f32 %v876, %v1149
  %v1215 = vadd.f32 %v877, %v1151
  %v1216 = vadd.f32 %v878, %v1153
  %v1217 = vadd.f32 %v879, %v1157
  %v1218 = vadd.f32 %v880, %v1159
  %v1219 = vadd.f32 %v881, %v1161
  %v1220 = vadd.f32 %v882, %v1163
  %1221 = vst [vmem:[#allocation2] sm:$0xff] %v1165
  %1222 = vst [vmem:[#allocation2 + $0x8] sm:$0xff] %v1166
  %1223 = vst [vmem:[#allocation2 + $0x10] sm:$0xff] %v1167
  %1224 = vst [vmem:[#allocation2 + $0x18] sm:$0xff] %v1168
  %1225 = vst [vmem:[#allocation2 + $0x20] sm:$0xff] %v1169
  %1226 = vst [vmem:[#allocation2 + $0x28] sm:$0xff] %v1170
  %1227 = vst [vmem:[#allocation2 + $0x30] sm:$0xff] %v1171
  %1228 = vst [vmem:[#allocation2 + $0x38] sm:$0xff] %v1172
  %1229 = vst [vmem:[#allocation2 + $0x40] sm:$0xff] %v1173
  %1230 = vst [vmem:[#allocation2 + $0x48] sm:$0xff] %v1174
  %1231 = vst [vmem:[#allocation2 + $0x50] sm:$0xff] %v1175
  %1232 = vst [vmem:[#allocation2 + $0x58] sm:$0xff] %v1176
  %1233 = vst [vmem:[#allocation2 + $0x60] sm:$0xff] %v1177
  %1234 = vst [vmem:[#allocation2 + $0x68] sm:$0xff] %v1178
  %1235 = vst [vmem:[#allocation2 + $0x70] sm:$0xff] %v1179
  %1236 = vst [vmem:[#allocation2 + $0x78] sm:$0xff] %v1180
  %1237 = vst [vmem:[#allocation2 + $0x80] sm:$0xff] %v1181
  %1238 = vst [vmem:[#allocation2 + $0x88] sm:$0xff] %v1182
  %1239 = vst [vmem:[#allocation2 + $0x90] sm:$0xff] %v1183
  %1240 = vst [vmem:[#allocation2 + $0x98] sm:$0xff] %v1184
  %1241 = vst [vmem:[#allocation2 + $0xa0] sm:$0xff] %v1185
  %1242 = vst [vmem:[#allocation2 + $0xa8] sm:$0xff] %v1186
  %1243 = vst [vmem:[#allocation2 + $0xb0] sm:$0xff] %v1187
  %1244 = vst [vmem:[#allocation2 + $0xb8] sm:$0xff] %v1188
  %1245 = vst [vmem:[#allocation2 + $0xc0] sm:$0xff] %v1189
  %1246 = vst [vmem:[#allocation2 + $0xc8] sm:$0xff] %v1190
  %1247 = vst [vmem:[#allocation2 + $0xd0] sm:$0xff] %v1191
  %1248 = vst [vmem:[#allocation2 + $0xd8] sm:$0xff] %v1192
  %1249 = vst [vmem:[#allocation2 + $0xe0] sm:$0xff] %v1193
  %1250 = vst [vmem:[#allocation2 + $0xe8] sm:$0xff] %v1194
  %1251 = vst [vmem:[#allocation2 + $0xf0] sm:$0xff] %v1195
  %1252 = vst [vmem:[#allocation2 + $0xf8] sm:$0xff] %v1196
  %1253 = vst [vmem:[#allocation2 + $0x100] sm:$0xff] %v1197
  %1254 = vst [vmem:[#allocation2 + $0x108] sm:$0xff] %v1198
  %1255 = vst [vmem:[#allocation2 + $0x110] sm:$0xff] %v1199
  %1256 = vst [vmem:[#allocation2 + $0x118] sm:$0xff] %v1200
  %1257 = vst [vmem:[#allocation2 + $0x120] sm:$0xff] %v1201
  %1258 = vst [vmem:[#allocation2 + $0x128] sm:$0xff] %v1202
  %1259 = vst [vmem:[#allocation2 + $0x130] sm:$0xff] %v1203
  %1260 = vst [vmem:[#allocation2 + $0x138] sm:$0xff] %v1204
  %1261 = vst [vmem:[#allocation2 + $0x140] sm:$0xff] %v1205
  %1262 = vst [vmem:[#allocation2 + $0x148] sm:$0xff] %v1206
  %1263 = vst [vmem:[#allocation2 + $0x150] sm:$0xff] %v1207
  %1264 = vst [vmem:[#allocation2 + $0x158] sm:$0xff] %v1208
  %1265 = vst [vmem:[#allocation2 + $0x160] sm:$0xff] %v1209
  %1266 = vst [vmem:[#allocation2 + $0x168] sm:$0xff] %v1210
  %1267 = vst [vmem:[#allocation2 + $0x170] sm:$0xff] %v1211
  %1268 = vst [vmem:[#allocation2 + $0x178] sm:$0xff] %v1212
  %1269 = vst [vmem:[#allocation2 + $0x180] sm:$0xff] %v1213
  %1270 = vst [vmem:[#allocation2 + $0x188] sm:$0xff] %v1214
  %1271 = vst [vmem:[#allocation2 + $0x190] sm:$0xff] %v1215
  %1272 = vst [vmem:[#allocation2 + $0x198] sm:$0xff] %v1216
  %1273 = vst [vmem:[#allocation2 + $0x1a0] sm:$0xff] %v1217
  %1274 = vst [vmem:[#allocation2 + $0x1a8] sm:$0xff] %v1218
  %1275 = vst [vmem:[#allocation2 + $0x1b0] sm:$0xff] %v1219
  %1276 = vst [vmem:[#allocation2 + $0x1b8] sm:$0xff] %v1220
  %v1277 = vld [vmem:[#allocation2] sm:$0xff]
  %v1278 = vld [vmem:[#allocation2 + $0x8] sm:$0xff]
  %v1279 = vld [vmem:[#allocation2 + $0x10] sm:$0xff]
  %v1280 = vld [vmem:[#allocation2 + $0x18] sm:$0xff]
  %v1281 = vld [vmem:[#allocation2 + $0x20] sm:$0xff]
  %v1282 = vld [vmem:[#allocation2 + $0x28] sm:$0xff]
  %v1283 = vld [vmem:[#allocation2 + $0x30] sm:$0xff]
  %v1284 = vld [vmem:[#allocation2 + $0x38] sm:$0xff]
  %v1285 = vld [vmem:[#allocation2 + $0x40] sm:$0xff]
  %v1286 = vld [vmem:[#allocation2 + $0x48] sm:$0xff]
  %v1287 = vld [vmem:[#allocation2 + $0x50] sm:$0xff]
  %v1288 = vld [vmem:[#allocation2 + $0x58] sm:$0xff]
  %v1289 = vld [vmem:[#allocation2 + $0x60] sm:$0xff]
  %v1290 = vld [vmem:[#allocation2 + $0x68] sm:$0xff]
  %v1291 = vld [vmem:[#allocation2 + $0x70] sm:$0xff]
  %v1292 = vld [vmem:[#allocation2 + $0x78] sm:$0xff]
  %v1293 = vld [vmem:[#allocation2 + $0x80] sm:$0xff]
  %v1294 = vld [vmem:[#allocation2 + $0x88] sm:$0xff]
  %v1295 = vld [vmem:[#allocation2 + $0x90] sm:$0xff]
  %v1296 = vld [vmem:[#allocation2 + $0x98] sm:$0xff]
  %v1297 = vld [vmem:[#allocation2 + $0xa0] sm:$0xff]
  %v1298 = vld [vmem:[#allocation2 + $0xa8] sm:$0xff]
  %v1299 = vld [vmem:[#allocation2 + $0xb0] sm:$0xff]
  %v1300 = vld [vmem:[#allocation2 + $0xb8] sm:$0xff]
  %v1301 = vld [vmem:[#allocation2 + $0xc0] sm:$0xff]
  %v1302 = vld [vmem:[#allocation2 + $0xc8] sm:$0xff]
  %v1303 = vld [vmem:[#allocation2 + $0xd0] sm:$0xff]
  %v1304 = vld [vmem:[#allocation2 + $0xd8] sm:$0xff]
  %v1305 = vld [vmem:[#allocation2 + $0xe0] sm:$0xff]
  %v1306 = vld [vmem:[#allocation2 + $0xe8] sm:$0xff]
  %v1307 = vld [vmem:[#allocation2 + $0xf0] sm:$0xff]
  %v1308 = vld [vmem:[#allocation2 + $0xf8] sm:$0xff]
  %v1309 = vld [vmem:[#allocation2 + $0x100] sm:$0xff]
  %v1310 = vld [vmem:[#allocation2 + $0x108] sm:$0xff]
  %v1311 = vld [vmem:[#allocation2 + $0x110] sm:$0xff]
  %v1312 = vld [vmem:[#allocation2 + $0x118] sm:$0xff]
  %v1313 = vld [vmem:[#allocation2 + $0x120] sm:$0xff]
  %v1314 = vld [vmem:[#allocation2 + $0x128] sm:$0xff]
  %v1315 = vld [vmem:[#allocation2 + $0x130] sm:$0xff]
  %v1316 = vld [vmem:[#allocation2 + $0x138] sm:$0xff]
  %v1317 = vld [vmem:[#allocation2 + $0x140] sm:$0xff]
  %v1318 = vld [vmem:[#allocation2 + $0x148] sm:$0xff]
  %v1319 = vld [vmem:[#allocation2 + $0x150] sm:$0xff]
  %v1320 = vld [vmem:[#allocation2 + $0x158] sm:$0xff]
  %v1321 = vld [vmem:[#allocation2 + $0x160] sm:$0xff]
  %v1322 = vld [vmem:[#allocation2 + $0x168] sm:$0xff]
  %v1323 = vld [vmem:[#allocation2 + $0x170] sm:$0xff]
  %v1324 = vld [vmem:[#allocation2 + $0x178] sm:$0xff]
  %v1325 = vld [vmem:[#allocation2 + $0x180] sm:$0xff]
  %v1326 = vld [vmem:[#allocation2 + $0x188] sm:$0xff]
  %v1327 = vld [vmem:[#allocation2 + $0x190] sm:$0xff]
  %v1328 = vld [vmem:[#allocation2 + $0x198] sm:$0xff]
  %v1329 = vld [vmem:[#allocation2 + $0x1a0] sm:$0xff]
  %v1330 = vld [vmem:[#allocation2 + $0x1a8] sm:$0xff]
  %v1331 = vld [vmem:[#allocation2 + $0x1b0] sm:$0xff]
  %v1332 = vld [vmem:[#allocation2 + $0x1b8] sm:$0xff]
  %v1333 = vld [vmem:[%s0 + $0x18] sm:$0xff]
  %v1334 = vld [vmem:[%s0 + $0x20] sm:$0xff]
  %v1335 = vld [vmem:[%s0 + $0x28] sm:$0xff]
  %v1336 = vld [vmem:[%s0 + $0x30] sm:$0xff]
  %v1337 = vld [vmem:[%s0 + $0x38] sm:$0xff]
  %v1338 = vld [vmem:[%s0 + $0x40] sm:$0xff]
  %v1339 = vld [vmem:[%s0 + $0x48] sm:$0xff]
  %v1340 = vld [vmem:[%s0 + $0x50] sm:$0xff]
  %v1341 = vld [vmem:[%s0 + $0x58] sm:$0xff]
  %v1342 = vld [vmem:[%s0 + $0x60] sm:$0xff]
  %v1343 = vld [vmem:[%s0 + $0x68] sm:$0xff]
  %v1344 = vld [vmem:[%s0 + $0x70] sm:$0xff]
  %v1345 = vld [vmem:[%s0 + $0x78] sm:$0xff]
  %v1346 = vld [vmem:[%s0 + $0x80] sm:$0xff]
  %v1347 = vld [vmem:[%s0 + $0x88] sm:$0xff]
  %v1348 = vld [vmem:[%s0 + $0x90] sm:$0xff]
  %v1349 = vld [vmem:[%s0 + $0x98] sm:$0xff]
  %v1350 = vld [vmem:[%s0 + $0xa0] sm:$0xff]
  %v1351 = vld [vmem:[%s0 + $0xa8] sm:$0xff]
  %v1352 = vld [vmem:[%s0 + $0xb0] sm:$0xff]
  %v1353 = vld [vmem:[%s0 + $0xb8] sm:$0xff]
  %v1354 = vld [vmem:[%s0 + $0xc0] sm:$0xff]
  %v1355 = vld [vmem:[%s0 + $0xc8] sm:$0xff]
  %v1356 = vld [vmem:[%s0 + $0xd0] sm:$0xff]
  %v1357 = vld [vmem:[%s0 + $0xd8] sm:$0xff]
  %v1358 = vld [vmem:[%s0 + $0xe0] sm:$0xff]
  %v1359 = vld [vmem:[%s0 + $0xe8] sm:$0xff]
  %v1360 = vld [vmem:[%s0 + $0xf0] sm:$0xff]
  %v1361 = vpack.c.bf16 %v1334, %v1333
  %v1362 = vpack.c.bf16 %v1336, %v1335
  %v1363 = vpack.c.bf16 %v1338, %v1337
  %v1364 = vpack.c.bf16 %v1340, %v1339
  %v1365 = vpack.c.bf16 %v1342, %v1341
  %v1366 = vpack.c.bf16 %v1344, %v1343
  %v1367 = vpack.c.bf16 %v1346, %v1345
  %v1368 = vpack.c.bf16 %v1348, %v1347
  %v1369 = vpack.c.bf16 %v1350, %v1349
  %v1370 = vpack.c.bf16 %v1352, %v1351
  %v1371 = vpack.c.bf16 %v1354, %v1353
  %v1372 = vpack.c.bf16 %v1356, %v1355
  %v1373 = vpack.c.bf16 %v1358, %v1357
  %v1374 = vpack.c.bf16 %v1360, %v1359
  %s1375 = scalar_lea.vmem %s1, 96
  %v1376 = vld [vmem:[%s1375] sm:$0xff]
  %v1377 = vld [vmem:[%s1375 + $0x8] sm:$0xff]
  %v1378 = vld [vmem:[%s1375 + $0x10] sm:$0xff]
  %v1379 = vld [vmem:[%s1375 + $0x18] sm:$0xff]
  %v1384 = vunpack.c.l.b16 %v1376
  %v1385 = vunpack.c.h.b16 %v1376
  %v1386 = vunpack.c.l.b16 %v1377
  %v1387 = vunpack.c.h.b16 %v1377
  %v1388 = vunpack.c.l.b16 %v1378
  %v1389 = vunpack.c.h.b16 %v1378
  %v1390 = vunpack.c.l.b16 %v1379
  %v1391 = vunpack.c.h.b16 %v1379
  %v1392 = vpack.c.b16 %v1386, %v1384
  %v1393 = vpack.c.b16 %v1387, %v1385
  %v1394 = vpack.c.b16 %v1390, %v1388
  %v1395 = vpack.c.b16 %v1391, %v1389
  %v1401 = vsel %vm105, %v1361, 0
  %v1404 = vsel %vm105, %v1362, 0
  %v1407 = vsel %vm105, %v1363, 0
  %v1410 = vsel %vm105, %v1364, 0
  %v1413 = vsel %vm105, %v1365, 0
  %v1416 = vsel %vm105, %v1366, 0
  %v1419 = vsel %vm105, %v1367, 0
  %v1422 = vsel %vm105, %v1368, 0
  %v1425 = vsel %vm105, %v1369, 0
  %v1428 = vsel %vm105, %v1370, 0
  %v1431 = vsel %vm105, %v1371, 0
  %v1434 = vsel %vm105, %v1372, 0
  %v1437 = vsel %vm105, %v1373, 0
  %v1440 = vsel %vm105, %v1374, 0
  %1442 = vmatprep.subr.bf16.mxu0 %v1393
  %1443 = vmatpush1.bf16.msra.mxu0 %v1392
  %1444 = vmatprep.subr.bf16.mxu0 %v1395
  %1445 = vmatpush1.bf16.msra.mxu0 %v1394
  %1446 = vmatprep.subr.bf16.mxu0 0
  %1447 = vmatpush1.bf16.msra.mxu0 0
  %1448 = vmatprep.subr.bf16.mxu0 0
  %1449 = vmatpush1.bf16.msra.mxu0 0
  %1450 = vmatprep.subr.bf16.mxu0 0
  %1451 = vmatpush1.bf16.msra.mxu0 0
  %1452 = vmatprep.subr.bf16.mxu0 0
  %1453 = vmatpush1.bf16.msra.mxu0 0
  %1454 = vmatprep.subr.bf16.mxu0 0
  %1455 = vmatpush1.bf16.msra.mxu0 0
  %1456 = vmatprep.subr.bf16.mxu0 0
  %1457 = vmatpush1.bf16.msra.mxu0 0
  %1458 = vmatprep.subr.bf16.mxu0 0
  %1459 = vmatpush1.bf16.msra.mxu0 0
  %1460 = vmatprep.subr.bf16.mxu0 0
  %1461 = vmatpush1.bf16.msra.mxu0 0
  %1462 = vmatprep.subr.bf16.mxu0 0
  %1463 = vmatpush1.bf16.msra.mxu0 0
  %1464 = vmatprep.subr.bf16.mxu0 0
  %1465 = vmatpush1.bf16.msra.mxu0 0
  %1466 = vmatprep.subr.bf16.mxu0 0
  %1467 = vmatpush1.bf16.msra.mxu0 0
  %1468 = vmatprep.subr.bf16.mxu0 0
  %1469 = vmatpush1.bf16.msra.mxu0 0
  %1470 = vmatprep.subr.bf16.mxu0 0
  %1471 = vmatpush1.bf16.msra.mxu0 0
  %1472 = vmatprep.subr.bf16.mxu0 0
  %1473 = vmatpush1.bf16.msra.mxu0 0
  %1474 = vmatprep.mubr.bf16.mxu0 0
  %1475 = vmatmul.mubr.bf16.gmra.mrb[0].mxu0 %v1401
  %v1476 = vpop.f32.mrb[0].mxu0
  %v1477 = vadd.f32 0.0, %v1476
  %v1478 = vpop.f32.mrb[0].mxu0
  %v1479 = vadd.f32 0.0, %v1478
  %v1480 = vpop.f32.mrb[0].mxu0
  %v1481 = vadd.f32 0.0, %v1480
  %v1482 = vpop.f32.mrb[0].mxu0
  %v1483 = vadd.f32 0.0, %v1482
  %1484 = vmatprep.mubr.bf16.mxu0 0
  %1485 = vmatmul.mubr.bf16.gmra.mrb[0].mxu0 %v1404
  %v1486 = vpop.f32.mrb[0].mxu0
  %v1487 = vadd.f32 0.0, %v1486
  %v1488 = vpop.f32.mrb[0].mxu0
  %v1489 = vadd.f32 0.0, %v1488
  %v1490 = vpop.f32.mrb[0].mxu0
  %v1491 = vadd.f32 0.0, %v1490
  %v1492 = vpop.f32.mrb[0].mxu0
  %v1493 = vadd.f32 0.0, %v1492
  %1494 = vmatprep.mubr.bf16.mxu0 0
  %1495 = vmatmul.mubr.bf16.gmra.mrb[0].mxu0 %v1407
  %v1496 = vpop.f32.mrb[0].mxu0
  %v1497 = vadd.f32 0.0, %v1496
  %v1498 = vpop.f32.mrb[0].mxu0
  %v1499 = vadd.f32 0.0, %v1498
  %v1500 = vpop.f32.mrb[0].mxu0
  %v1501 = vadd.f32 0.0, %v1500
  %v1502 = vpop.f32.mrb[0].mxu0
  %v1503 = vadd.f32 0.0, %v1502
  %1504 = vmatprep.mubr.bf16.mxu0 0
  %1505 = vmatmul.mubr.bf16.gmra.mrb[0].mxu0 %v1410
  %v1506 = vpop.f32.mrb[0].mxu0
  %v1507 = vadd.f32 0.0, %v1506
  %v1508 = vpop.f32.mrb[0].mxu0
  %v1509 = vadd.f32 0.0, %v1508
  %v1510 = vpop.f32.mrb[0].mxu0
  %v1511 = vadd.f32 0.0, %v1510
  %v1512 = vpop.f32.mrb[0].mxu0
  %v1513 = vadd.f32 0.0, %v1512
  %1514 = vmatprep.mubr.bf16.mxu0 0
  %1515 = vmatmul.mubr.bf16.gmra.mrb[0].mxu0 %v1413
  %v1516 = vpop.f32.mrb[0].mxu0
  %v1517 = vadd.f32 0.0, %v1516
  %v1518 = vpop.f32.mrb[0].mxu0
  %v1519 = vadd.f32 0.0, %v1518
  %v1520 = vpop.f32.mrb[0].mxu0
  %v1521 = vadd.f32 0.0, %v1520
  %v1522 = vpop.f32.mrb[0].mxu0
  %v1523 = vadd.f32 0.0, %v1522
  %1524 = vmatprep.mubr.bf16.mxu0 0
  %1525 = vmatmul.mubr.bf16.gmra.mrb[0].mxu0 %v1416
  %v1526 = vpop.f32.mrb[0].mxu0
  %v1527 = vadd.f32 0.0, %v1526
  %v1528 = vpop.f32.mrb[0].mxu0
  %v1529 = vadd.f32 0.0, %v1528
  %v1530 = vpop.f32.mrb[0].mxu0
  %v1531 = vadd.f32 0.0, %v1530
  %v1532 = vpop.f32.mrb[0].mxu0
  %v1533 = vadd.f32 0.0, %v1532
  %1534 = vmatprep.mubr.bf16.mxu0 0
  %1535 = vmatmul.mubr.bf16.gmra.mrb[0].mxu0 %v1419
  %v1536 = vpop.f32.mrb[0].mxu0
  %v1537 = vadd.f32 0.0, %v1536
  %v1538 = vpop.f32.mrb[0].mxu0
  %v1539 = vadd.f32 0.0, %v1538
  %v1540 = vpop.f32.mrb[0].mxu0
  %v1541 = vadd.f32 0.0, %v1540
  %v1542 = vpop.f32.mrb[0].mxu0
  %v1543 = vadd.f32 0.0, %v1542
  %1544 = vmatprep.mubr.bf16.mxu0 0
  %1545 = vmatmul.mubr.bf16.gmra.mrb[0].mxu0 %v1422
  %v1546 = vpop.f32.mrb[0].mxu0
  %v1547 = vadd.f32 0.0, %v1546
  %v1548 = vpop.f32.mrb[0].mxu0
  %v1549 = vadd.f32 0.0, %v1548
  %v1550 = vpop.f32.mrb[0].mxu0
  %v1551 = vadd.f32 0.0, %v1550
  %v1552 = vpop.f32.mrb[0].mxu0
  %v1553 = vadd.f32 0.0, %v1552
  %1554 = vmatprep.mubr.bf16.mxu0 0
  %1555 = vmatmul.mubr.bf16.gmra.mrb[0].mxu0 %v1425
  %v1556 = vpop.f32.mrb[0].mxu0
  %v1557 = vadd.f32 0.0, %v1556
  %v1558 = vpop.f32.mrb[0].mxu0
  %v1559 = vadd.f32 0.0, %v1558
  %v1560 = vpop.f32.mrb[0].mxu0
  %v1561 = vadd.f32 0.0, %v1560
  %v1562 = vpop.f32.mrb[0].mxu0
  %v1563 = vadd.f32 0.0, %v1562
  %1564 = vmatprep.mubr.bf16.mxu0 0
  %1565 = vmatmul.mubr.bf16.gmra.mrb[0].mxu0 %v1428
  %v1566 = vpop.f32.mrb[0].mxu0
  %v1567 = vadd.f32 0.0, %v1566
  %v1568 = vpop.f32.mrb[0].mxu0
  %v1569 = vadd.f32 0.0, %v1568
  %v1570 = vpop.f32.mrb[0].mxu0
  %v1571 = vadd.f32 0.0, %v1570
  %v1572 = vpop.f32.mrb[0].mxu0
  %v1573 = vadd.f32 0.0, %v1572
  %1574 = vmatprep.mubr.bf16.mxu0 0
  %1575 = vmatmul.mubr.bf16.gmra.mrb[0].mxu0 %v1431
  %v1576 = vpop.f32.mrb[0].mxu0
  %v1577 = vadd.f32 0.0, %v1576
  %v1578 = vpop.f32.mrb[0].mxu0
  %v1579 = vadd.f32 0.0, %v1578
  %v1580 = vpop.f32.mrb[0].mxu0
  %v1581 = vadd.f32 0.0, %v1580
  %v1582 = vpop.f32.mrb[0].mxu0
  %v1583 = vadd.f32 0.0, %v1582
  %1584 = vmatprep.mubr.bf16.mxu0 0
  %1585 = vmatmul.mubr.bf16.gmra.mrb[0].mxu0 %v1434
  %v1586 = vpop.f32.mrb[0].mxu0
  %v1587 = vadd.f32 0.0, %v1586
  %v1588 = vpop.f32.mrb[0].mxu0
  %v1589 = vadd.f32 0.0, %v1588
  %v1590 = vpop.f32.mrb[0].mxu0
  %v1591 = vadd.f32 0.0, %v1590
  %v1592 = vpop.f32.mrb[0].mxu0
  %v1593 = vadd.f32 0.0, %v1592
  %1594 = vmatprep.mubr.bf16.mxu0 0
  %1595 = vmatmul.mubr.bf16.gmra.mrb[0].mxu0 %v1437
  %v1596 = vpop.f32.mrb[0].mxu0
  %v1597 = vadd.f32 0.0, %v1596
  %v1598 = vpop.f32.mrb[0].mxu0
  %v1599 = vadd.f32 0.0, %v1598
  %v1600 = vpop.f32.mrb[0].mxu0
  %v1601 = vadd.f32 0.0, %v1600
  %v1602 = vpop.f32.mrb[0].mxu0
  %v1603 = vadd.f32 0.0, %v1602
  %1604 = vmatprep.mubr.bf16.mxu0 0
  %1605 = vmatmul.mubr.bf16.gmra.mrb[0].mxu0 %v1440
  %v1606 = vpop.f32.mrb[0].mxu0
  %v1607 = vadd.f32 0.0, %v1606
  %v1608 = vpop.f32.mrb[0].mxu0
  %v1609 = vadd.f32 0.0, %v1608
  %v1610 = vpop.f32.mrb[0].mxu0
  %v1611 = vadd.f32 0.0, %v1610
  %v1612 = vpop.f32.mrb[0].mxu0
  %v1613 = vadd.f32 0.0, %v1612
  %1614 = vdwg.mxu0
  %v1615 = vadd.f32 %v1277, %v1477
  %v1616 = vadd.f32 %v1278, %v1479
  %v1617 = vadd.f32 %v1279, %v1481
  %v1618 = vadd.f32 %v1280, %v1483
  %v1619 = vadd.f32 %v1281, %v1487
  %v1620 = vadd.f32 %v1282, %v1489
  %v1621 = vadd.f32 %v1283, %v1491
  %v1622 = vadd.f32 %v1284, %v1493
  %v1623 = vadd.f32 %v1285, %v1497
  %v1624 = vadd.f32 %v1286, %v1499
  %v1625 = vadd.f32 %v1287, %v1501
  %v1626 = vadd.f32 %v1288, %v1503
  %v1627 = vadd.f32 %v1289, %v1507
  %v1628 = vadd.f32 %v1290, %v1509
  %v1629 = vadd.f32 %v1291, %v1511
  %v1630 = vadd.f32 %v1292, %v1513
  %v1631 = vadd.f32 %v1293, %v1517
  %v1632 = vadd.f32 %v1294, %v1519
  %v1633 = vadd.f32 %v1295, %v1521
  %v1634 = vadd.f32 %v1296, %v1523
  %v1635 = vadd.f32 %v1297, %v1527
  %v1636 = vadd.f32 %v1298, %v1529
  %v1637 = vadd.f32 %v1299, %v1531
  %v1638 = vadd.f32 %v1300, %v1533
  %v1639 = vadd.f32 %v1301, %v1537
  %v1640 = vadd.f32 %v1302, %v1539
  %v1641 = vadd.f32 %v1303, %v1541
  %v1642 = vadd.f32 %v1304, %v1543
  %v1643 = vadd.f32 %v1305, %v1547
  %v1644 = vadd.f32 %v1306, %v1549
  %v1645 = vadd.f32 %v1307, %v1551
  %v1646 = vadd.f32 %v1308, %v1553
  %v1647 = vadd.f32 %v1309, %v1557
  %v1648 = vadd.f32 %v1310, %v1559
  %v1649 = vadd.f32 %v1311, %v1561
  %v1650 = vadd.f32 %v1312, %v1563
  %v1651 = vadd.f32 %v1313, %v1567
  %v1652 = vadd.f32 %v1314, %v1569
  %v1653 = vadd.f32 %v1315, %v1571
  %v1654 = vadd.f32 %v1316, %v1573
  %v1655 = vadd.f32 %v1317, %v1577
  %v1656 = vadd.f32 %v1318, %v1579
  %v1657 = vadd.f32 %v1319, %v1581
  %v1658 = vadd.f32 %v1320, %v1583
  %v1659 = vadd.f32 %v1321, %v1587
  %v1660 = vadd.f32 %v1322, %v1589
  %v1661 = vadd.f32 %v1323, %v1591
  %v1662 = vadd.f32 %v1324, %v1593
  %v1663 = vadd.f32 %v1325, %v1597
  %v1664 = vadd.f32 %v1326, %v1599
  %v1665 = vadd.f32 %v1327, %v1601
  %v1666 = vadd.f32 %v1328, %v1603
  %v1667 = vadd.f32 %v1329, %v1607
  %v1668 = vadd.f32 %v1330, %v1609
  %v1669 = vadd.f32 %v1331, %v1611
  %v1670 = vadd.f32 %v1332, %v1613
  %1671 = vst [vmem:[#allocation2] sm:$0xff] %v1615
  %1672 = vst [vmem:[#allocation2 + $0x8] sm:$0xff] %v1616
  %1673 = vst [vmem:[#allocation2 + $0x10] sm:$0xff] %v1617
  %1674 = vst [vmem:[#allocation2 + $0x18] sm:$0xff] %v1618
  %1675 = vst [vmem:[#allocation2 + $0x20] sm:$0xff] %v1619
  %1676 = vst [vmem:[#allocation2 + $0x28] sm:$0xff] %v1620
  %1677 = vst [vmem:[#allocation2 + $0x30] sm:$0xff] %v1621
  %1678 = vst [vmem:[#allocation2 + $0x38] sm:$0xff] %v1622
  %1679 = vst [vmem:[#allocation2 + $0x40] sm:$0xff] %v1623
  %1680 = vst [vmem:[#allocation2 + $0x48] sm:$0xff] %v1624
  %1681 = vst [vmem:[#allocation2 + $0x50] sm:$0xff] %v1625
  %1682 = vst [vmem:[#allocation2 + $0x58] sm:$0xff] %v1626
  %1683 = vst [vmem:[#allocation2 + $0x60] sm:$0xff] %v1627
  %1684 = vst [vmem:[#allocation2 + $0x68] sm:$0xff] %v1628
  %1685 = vst [vmem:[#allocation2 + $0x70] sm:$0xff] %v1629
  %1686 = vst [vmem:[#allocation2 + $0x78] sm:$0xff] %v1630
  %1687 = vst [vmem:[#allocation2 + $0x80] sm:$0xff] %v1631
  %1688 = vst [vmem:[#allocation2 + $0x88] sm:$0xff] %v1632
  %1689 = vst [vmem:[#allocation2 + $0x90] sm:$0xff] %v1633
  %1690 = vst [vmem:[#allocation2 + $0x98] sm:$0xff] %v1634
  %1691 = vst [vmem:[#allocation2 + $0xa0] sm:$0xff] %v1635
  %1692 = vst [vmem:[#allocation2 + $0xa8] sm:$0xff] %v1636
  %1693 = vst [vmem:[#allocation2 + $0xb0] sm:$0xff] %v1637
  %1694 = vst [vmem:[#allocation2 + $0xb8] sm:$0xff] %v1638
  %1695 = vst [vmem:[#allocation2 + $0xc0] sm:$0xff] %v1639
  %1696 = vst [vmem:[#allocation2 + $0xc8] sm:$0xff] %v1640
  %1697 = vst [vmem:[#allocation2 + $0xd0] sm:$0xff] %v1641
  %1698 = vst [vmem:[#allocation2 + $0xd8] sm:$0xff] %v1642
  %1699 = vst [vmem:[#allocation2 + $0xe0] sm:$0xff] %v1643
  %1700 = vst [vmem:[#allocation2 + $0xe8] sm:$0xff] %v1644
  %1701 = vst [vmem:[#allocation2 + $0xf0] sm:$0xff] %v1645
  %1702 = vst [vmem:[#allocation2 + $0xf8] sm:$0xff] %v1646
  %1703 = vst [vmem:[#allocation2 + $0x100] sm:$0xff] %v1647
  %1704 = vst [vmem:[#allocation2 + $0x108] sm:$0xff] %v1648
  %1705 = vst [vmem:[#allocation2 + $0x110] sm:$0xff] %v1649
  %1706 = vst [vmem:[#allocation2 + $0x118] sm:$0xff] %v1650
  %1707 = vst [vmem:[#allocation2 + $0x120] sm:$0xff] %v1651
  %1708 = vst [vmem:[#allocation2 + $0x128] sm:$0xff] %v1652
  %1709 = vst [vmem:[#allocation2 + $0x130] sm:$0xff] %v1653
  %1710 = vst [vmem:[#allocation2 + $0x138] sm:$0xff] %v1654
  %1711 = vst [vmem:[#allocation2 + $0x140] sm:$0xff] %v1655
  %1712 = vst [vmem:[#allocation2 + $0x148] sm:$0xff] %v1656
  %1713 = vst [vmem:[#allocation2 + $0x150] sm:$0xff] %v1657
  %1714 = vst [vmem:[#allocation2 + $0x158] sm:$0xff] %v1658
  %1715 = vst [vmem:[#allocation2 + $0x160] sm:$0xff] %v1659
  %1716 = vst [vmem:[#allocation2 + $0x168] sm:$0xff] %v1660
  %1717 = vst [vmem:[#allocation2 + $0x170] sm:$0xff] %v1661
  %1718 = vst [vmem:[#allocation2 + $0x178] sm:$0xff] %v1662
  %1719 = vst [vmem:[#allocation2 + $0x180] sm:$0xff] %v1663
  %1720 = vst [vmem:[#allocation2 + $0x188] sm:$0xff] %v1664
  %1721 = vst [vmem:[#allocation2 + $0x190] sm:$0xff] %v1665
  %1722 = vst [vmem:[#allocation2 + $0x198] sm:$0xff] %v1666
  %1723 = vst [vmem:[#allocation2 + $0x1a0] sm:$0xff] %v1667
  %1724 = vst [vmem:[#allocation2 + $0x1a8] sm:$0xff] %v1668
  %1725 = vst [vmem:[#allocation2 + $0x1b0] sm:$0xff] %v1669
  %1726 = vst [vmem:[#allocation2 + $0x1b8] sm:$0xff] %v1670
  %v1727 = vld [vmem:[#allocation2] sm:$0xff]
  %v1728 = vld [vmem:[#allocation2 + $0x8] sm:$0xff]
  %v1729 = vld [vmem:[#allocation2 + $0x10] sm:$0xff]
  %v1730 = vld [vmem:[#allocation2 + $0x18] sm:$0xff]
  %v1731 = vld [vmem:[#allocation2 + $0x20] sm:$0xff]
  %v1732 = vld [vmem:[#allocation2 + $0x28] sm:$0xff]
  %v1733 = vld [vmem:[#allocation2 + $0x30] sm:$0xff]
  %v1734 = vld [vmem:[#allocation2 + $0x38] sm:$0xff]
  %v1735 = vld [vmem:[#allocation2 + $0x40] sm:$0xff]
  %v1736 = vld [vmem:[#allocation2 + $0x48] sm:$0xff]
  %v1737 = vld [vmem:[#allocation2 + $0x50] sm:$0xff]
  %v1738 = vld [vmem:[#allocation2 + $0x58] sm:$0xff]
  %v1739 = vld [vmem:[#allocation2 + $0x60] sm:$0xff]
  %v1740 = vld [vmem:[#allocation2 + $0x68] sm:$0xff]
  %v1741 = vld [vmem:[#allocation2 + $0x70] sm:$0xff]
  %v1742 = vld [vmem:[#allocation2 + $0x78] sm:$0xff]
  %v1743 = vld [vmem:[#allocation2 + $0x80] sm:$0xff]
  %v1744 = vld [vmem:[#allocation2 + $0x88] sm:$0xff]
  %v1745 = vld [vmem:[#allocation2 + $0x90] sm:$0xff]
  %v1746 = vld [vmem:[#allocation2 + $0x98] sm:$0xff]
  %v1747 = vld [vmem:[#allocation2 + $0xa0] sm:$0xff]
  %v1748 = vld [vmem:[#allocation2 + $0xa8] sm:$0xff]
  %v1749 = vld [vmem:[#allocation2 + $0xb0] sm:$0xff]
  %v1750 = vld [vmem:[#allocation2 + $0xb8] sm:$0xff]
  %v1751 = vld [vmem:[#allocation2 + $0xc0] sm:$0xff]
  %v1752 = vld [vmem:[#allocation2 + $0xc8] sm:$0xff]
  %v1753 = vld [vmem:[#allocation2 + $0xd0] sm:$0xff]
  %v1754 = vld [vmem:[#allocation2 + $0xd8] sm:$0xff]
  %v1755 = vld [vmem:[#allocation2 + $0xe0] sm:$0xff]
  %v1756 = vld [vmem:[#allocation2 + $0xe8] sm:$0xff]
  %v1757 = vld [vmem:[#allocation2 + $0xf0] sm:$0xff]
  %v1758 = vld [vmem:[#allocation2 + $0xf8] sm:$0xff]
  %v1759 = vld [vmem:[#allocation2 + $0x100] sm:$0xff]
  %v1760 = vld [vmem:[#allocation2 + $0x108] sm:$0xff]
  %v1761 = vld [vmem:[#allocation2 + $0x110] sm:$0xff]
  %v1762 = vld [vmem:[#allocation2 + $0x118] sm:$0xff]
  %v1763 = vld [vmem:[#allocation2 + $0x120] sm:$0xff]
  %v1764 = vld [vmem:[#allocation2 + $0x128] sm:$0xff]
  %v1765 = vld [vmem:[#allocation2 + $0x130] sm:$0xff]
  %v1766 = vld [vmem:[#allocation2 + $0x138] sm:$0xff]
  %v1767 = vld [vmem:[#allocation2 + $0x140] sm:$0xff]
  %v1768 = vld [vmem:[#allocation2 + $0x148] sm:$0xff]
  %v1769 = vld [vmem:[#allocation2 + $0x150] sm:$0xff]
  %v1770 = vld [vmem:[#allocation2 + $0x158] sm:$0xff]
  %v1771 = vld [vmem:[#allocation2 + $0x160] sm:$0xff]
  %v1772 = vld [vmem:[#allocation2 + $0x168] sm:$0xff]
  %v1773 = vld [vmem:[#allocation2 + $0x170] sm:$0xff]
  %v1774 = vld [vmem:[#allocation2 + $0x178] sm:$0xff]
  %v1775 = vld [vmem:[#allocation2 + $0x180] sm:$0xff]
  %v1776 = vld [vmem:[#allocation2 + $0x188] sm:$0xff]
  %v1777 = vld [vmem:[#allocation2 + $0x190] sm:$0xff]
  %v1778 = vld [vmem:[#allocation2 + $0x198] sm:$0xff]
  %v1779 = vld [vmem:[#allocation2 + $0x1a0] sm:$0xff]
  %v1780 = vld [vmem:[#allocation2 + $0x1a8] sm:$0xff]
  %v1781 = vld [vmem:[#allocation2 + $0x1b0] sm:$0xff]
  %v1782 = vld [vmem:[#allocation2 + $0x1b8] sm:$0xff]
  %v1783 = vld [vmem:[%s0 + $0x20] sm:$0xff]
  %v1784 = vld [vmem:[%s0 + $0x28] sm:$0xff]
  %v1785 = vld [vmem:[%s0 + $0x30] sm:$0xff]
  %v1786 = vld [vmem:[%s0 + $0x38] sm:$0xff]
  %v1787 = vld [vmem:[%s0 + $0x40] sm:$0xff]
  %v1788 = vld [vmem:[%s0 + $0x48] sm:$0xff]
  %v1789 = vld [vmem:[%s0 + $0x50] sm:$0xff]
  %v1790 = vld [vmem:[%s0 + $0x58] sm:$0xff]
  %v1791 = vld [vmem:[%s0 + $0x60] sm:$0xff]
  %v1792 = vld [vmem:[%s0 + $0x68] sm:$0xff]
  %v1793 = vld [vmem:[%s0 + $0x70] sm:$0xff]
  %v1794 = vld [vmem:[%s0 + $0x78] sm:$0xff]
  %v1795 = vld [vmem:[%s0 + $0x80] sm:$0xff]
  %v1796 = vld [vmem:[%s0 + $0x88] sm:$0xff]
  %v1797 = vld [vmem:[%s0 + $0x90] sm:$0xff]
  %v1798 = vld [vmem:[%s0 + $0x98] sm:$0xff]
  %v1799 = vld [vmem:[%s0 + $0xa0] sm:$0xff]
  %v1800 = vld [vmem:[%s0 + $0xa8] sm:$0xff]
  %v1801 = vld [vmem:[%s0 + $0xb0] sm:$0xff]
  %v1802 = vld [vmem:[%s0 + $0xb8] sm:$0xff]
  %v1803 = vld [vmem:[%s0 + $0xc0] sm:$0xff]
  %v1804 = vld [vmem:[%s0 + $0xc8] sm:$0xff]
  %v1805 = vld [vmem:[%s0 + $0xd0] sm:$0xff]
  %v1806 = vld [vmem:[%s0 + $0xd8] sm:$0xff]
  %v1807 = vld [vmem:[%s0 + $0xe0] sm:$0xff]
  %v1808 = vld [vmem:[%s0 + $0xe8] sm:$0xff]
  %v1809 = vld [vmem:[%s0 + $0xf0] sm:$0xff]
  %v1810 = vld [vmem:[%s0 + $0xf8] sm:$0xff]
  %v1811 = vpack.c.bf16 %v1784, %v1783
  %v1812 = vpack.c.bf16 %v1786, %v1785
  %v1813 = vpack.c.bf16 %v1788, %v1787
  %v1814 = vpack.c.bf16 %v1790, %v1789
  %v1815 = vpack.c.bf16 %v1792, %v1791
  %v1816 = vpack.c.bf16 %v1794, %v1793
  %v1817 = vpack.c.bf16 %v1796, %v1795
  %v1818 = vpack.c.bf16 %v1798, %v1797
  %v1819 = vpack.c.bf16 %v1800, %v1799
  %v1820 = vpack.c.bf16 %v1802, %v1801
  %v1821 = vpack.c.bf16 %v1804, %v1803
  %v1822 = vpack.c.bf16 %v1806, %v1805
  %v1823 = vpack.c.bf16 %v1808, %v1807
  %v1824 = vpack.c.bf16 %v1810, %v1809
  %s1825 = scalar_lea.vmem %s1, 128
  %v1826 = vld [vmem:[%s1825] sm:$0xff]
  %v1827 = vld [vmem:[%s1825 + $0x8] sm:$0xff]
  %v1828 = vld [vmem:[%s1825 + $0x10] sm:$0xff]
  %v1829 = vld [vmem:[%s1825 + $0x18] sm:$0xff]
  %v1834 = vunpack.c.l.b16 %v1826
  %v1835 = vunpack.c.h.b16 %v1826
  %v1836 = vunpack.c.l.b16 %v1827
  %v1837 = vunpack.c.h.b16 %v1827
  %v1838 = vunpack.c.l.b16 %v1828
  %v1839 = vunpack.c.h.b16 %v1828
  %v1840 = vunpack.c.l.b16 %v1829
  %v1841 = vunpack.c.h.b16 %v1829
  %v1842 = vpack.c.b16 %v1836, %v1834
  %v1843 = vpack.c.b16 %v1837, %v1835
  %v1844 = vpack.c.b16 %v1840, %v1838
  %v1845 = vpack.c.b16 %v1841, %v1839
  %v1851 = vsel %vm105, %v1811, 0
  %v1854 = vsel %vm105, %v1812, 0
  %v1857 = vsel %vm105, %v1813, 0
  %v1860 = vsel %vm105, %v1814, 0
  %v1863 = vsel %vm105, %v1815, 0
  %v1866 = vsel %vm105, %v1816, 0
  %v1869 = vsel %vm105, %v1817, 0
  %v1872 = vsel %vm105, %v1818, 0
  %v1875 = vsel %vm105, %v1819, 0
  %v1878 = vsel %vm105, %v1820, 0
  %v1881 = vsel %vm105, %v1821, 0
  %v1884 = vsel %vm105, %v1822, 0
  %v1887 = vsel %vm105, %v1823, 0
  %v1890 = vsel %vm105, %v1824, 0
  %1892 = vmatprep.subr.bf16.mxu0 %v1843
  %1893 = vmatpush1.bf16.msra.mxu0 %v1842
  %1894 = vmatprep.subr.bf16.mxu0 %v1845
  %1895 = vmatpush1.bf16.msra.mxu0 %v1844
  %1896 = vmatprep.subr.bf16.mxu0 0
  %1897 = vmatpush1.bf16.msra.mxu0 0
  %1898 = vmatprep.subr.bf16.mxu0 0
  %1899 = vmatpush1.bf16.msra.mxu0 0
  %1900 = vmatprep.subr.bf16.mxu0 0
  %1901 = vmatpush1.bf16.msra.mxu0 0
  %1902 = vmatprep.subr.bf16.mxu0 0
  %1903 = vmatpush1.bf16.msra.mxu0 0
  %1904 = vmatprep.subr.bf16.mxu0 0
  %1905 = vmatpush1.bf16.msra.mxu0 0
  %1906 = vmatprep.subr.bf16.mxu0 0
  %1907 = vmatpush1.bf16.msra.mxu0 0
  %1908 = vmatprep.subr.bf16.mxu0 0
  %1909 = vmatpush1.bf16.msra.mxu0 0
  %1910 = vmatprep.subr.bf16.mxu0 0
  %1911 = vmatpush1.bf16.msra.mxu0 0
  %1912 = vmatprep.subr.bf16.mxu0 0
  %1913 = vmatpush1.bf16.msra.mxu0 0
  %1914 = vmatprep.subr.bf16.mxu0 0
  %1915 = vmatpush1.bf16.msra.mxu0 0
  %1916 = vmatprep.subr.bf16.mxu0 0
  %1917 = vmatpush1.bf16.msra.mxu0 0
  %1918 = vmatprep.subr.bf16.mxu0 0
  %1919 = vmatpush1.bf16.msra.mxu0 0
  %1920 = vmatprep.subr.bf16.mxu0 0
  %1921 = vmatpush1.bf16.msra.mxu0 0
  %1922 = vmatprep.subr.bf16.mxu0 0
  %1923 = vmatpush1.bf16.msra.mxu0 0
  %1924 = vmatprep.mubr.bf16.mxu0 0
  %1925 = vmatmul.mubr.bf16.gmra.mrb[0].mxu0 %v1851
  %v1926 = vpop.f32.mrb[0].mxu0
  %v1927 = vadd.f32 0.0, %v1926
  %v1928 = vpop.f32.mrb[0].mxu0
  %v1929 = vadd.f32 0.0, %v1928
  %v1930 = vpop.f32.mrb[0].mxu0
  %v1931 = vadd.f32 0.0, %v1930
  %v1932 = vpop.f32.mrb[0].mxu0
  %v1933 = vadd.f32 0.0, %v1932
  %1934 = vmatprep.mubr.bf16.mxu0 0
  %1935 = vmatmul.mubr.bf16.gmra.mrb[0].mxu0 %v1854
  %v1936 = vpop.f32.mrb[0].mxu0
  %v1937 = vadd.f32 0.0, %v1936
  %v1938 = vpop.f32.mrb[0].mxu0
  %v1939 = vadd.f32 0.0, %v1938
  %v1940 = vpop.f32.mrb[0].mxu0
  %v1941 = vadd.f32 0.0, %v1940
  %v1942 = vpop.f32.mrb[0].mxu0
  %v1943 = vadd.f32 0.0, %v1942
  %1944 = vmatprep.mubr.bf16.mxu0 0
  %1945 = vmatmul.mubr.bf16.gmra.mrb[0].mxu0 %v1857
  %v1946 = vpop.f32.mrb[0].mxu0
  %v1947 = vadd.f32 0.0, %v1946
  %v1948 = vpop.f32.mrb[0].mxu0
  %v1949 = vadd.f32 0.0, %v1948
  %v1950 = vpop.f32.mrb[0].mxu0
  %v1951 = vadd.f32 0.0, %v1950
  %v1952 = vpop.f32.mrb[0].mxu0
  %v1953 = vadd.f32 0.0, %v1952
  %1954 = vmatprep.mubr.bf16.mxu0 0
  %1955 = vmatmul.mubr.bf16.gmra.mrb[0].mxu0 %v1860
  %v1956 = vpop.f32.mrb[0].mxu0
  %v1957 = vadd.f32 0.0, %v1956
  %v1958 = vpop.f32.mrb[0].mxu0
  %v1959 = vadd.f32 0.0, %v1958
  %v1960 = vpop.f32.mrb[0].mxu0
  %v1961 = vadd.f32 0.0, %v1960
  %v1962 = vpop.f32.mrb[0].mxu0
  %v1963 = vadd.f32 0.0, %v1962
  %1964 = vmatprep.mubr.bf16.mxu0 0
  %1965 = vmatmul.mubr.bf16.gmra.mrb[0].mxu0 %v1863
  %v1966 = vpop.f32.mrb[0].mxu0
  %v1967 = vadd.f32 0.0, %v1966
  %v1968 = vpop.f32.mrb[0].mxu0
  %v1969 = vadd.f32 0.0, %v1968
  %v1970 = vpop.f32.mrb[0].mxu0
  %v1971 = vadd.f32 0.0, %v1970
  %v1972 = vpop.f32.mrb[0].mxu0
  %v1973 = vadd.f32 0.0, %v1972
  %1974 = vmatprep.mubr.bf16.mxu0 0
  %1975 = vmatmul.mubr.bf16.gmra.mrb[0].mxu0 %v1866
  %v1976 = vpop.f32.mrb[0].mxu0
  %v1977 = vadd.f32 0.0, %v1976
  %v1978 = vpop.f32.mrb[0].mxu0
  %v1979 = vadd.f32 0.0, %v1978
  %v1980 = vpop.f32.mrb[0].mxu0
  %v1981 = vadd.f32 0.0, %v1980
  %v1982 = vpop.f32.mrb[0].mxu0
  %v1983 = vadd.f32 0.0, %v1982
  %1984 = vmatprep.mubr.bf16.mxu0 0
  %1985 = vmatmul.mubr.bf16.gmra.mrb[0].mxu0 %v1869
  %v1986 = vpop.f32.mrb[0].mxu0
  %v1987 = vadd.f32 0.0, %v1986
  %v1988 = vpop.f32.mrb[0].mxu0
  %v1989 = vadd.f32 0.0, %v1988
  %v1990 = vpop.f32.mrb[0].mxu0
  %v1991 = vadd.f32 0.0, %v1990
  %v1992 = vpop.f32.mrb[0].mxu0
  %v1993 = vadd.f32 0.0, %v1992
  %1994 = vmatprep.mubr.bf16.mxu0 0
  %1995 = vmatmul.mubr.bf16.gmra.mrb[0].mxu0 %v1872
  %v1996 = vpop.f32.mrb[0].mxu0
  %v1997 = vadd.f32 0.0, %v1996
  %v1998 = vpop.f32.mrb[0].mxu0
  %v1999 = vadd.f32 0.0, %v1998
  %v2000 = vpop.f32.mrb[0].mxu0
  %v2001 = vadd.f32 0.0, %v2000
  %v2002 = vpop.f32.mrb[0].mxu0
  %v2003 = vadd.f32 0.0, %v2002
  %2004 = vmatprep.mubr.bf16.mxu0 0
  %2005 = vmatmul.mubr.bf16.gmra.mrb[0].mxu0 %v1875
  %v2006 = vpop.f32.mrb[0].mxu0
  %v2007 = vadd.f32 0.0, %v2006
  %v2008 = vpop.f32.mrb[0].mxu0
  %v2009 = vadd.f32 0.0, %v2008
  %v2010 = vpop.f32.mrb[0].mxu0
  %v2011 = vadd.f32 0.0, %v2010
  %v2012 = vpop.f32.mrb[0].mxu0
  %v2013 = vadd.f32 0.0, %v2012
  %2014 = vmatprep.mubr.bf16.mxu0 0
  %2015 = vmatmul.mubr.bf16.gmra.mrb[0].mxu0 %v1878
  %v2016 = vpop.f32.mrb[0].mxu0
  %v2017 = vadd.f32 0.0, %v2016
  %v2018 = vpop.f32.mrb[0].mxu0
  %v2019 = vadd.f32 0.0, %v2018
  %v2020 = vpop.f32.mrb[0].mxu0
  %v2021 = vadd.f32 0.0, %v2020
  %v2022 = vpop.f32.mrb[0].mxu0
  %v2023 = vadd.f32 0.0, %v2022
  %2024 = vmatprep.mubr.bf16.mxu0 0
  %2025 = vmatmul.mubr.bf16.gmra.mrb[0].mxu0 %v1881
  %v2026 = vpop.f32.mrb[0].mxu0
  %v2027 = vadd.f32 0.0, %v2026
  %v2028 = vpop.f32.mrb[0].mxu0
  %v2029 = vadd.f32 0.0, %v2028
  %v2030 = vpop.f32.mrb[0].mxu0
  %v2031 = vadd.f32 0.0, %v2030
  %v2032 = vpop.f32.mrb[0].mxu0
  %v2033 = vadd.f32 0.0, %v2032
  %2034 = vmatprep.mubr.bf16.mxu0 0
  %2035 = vmatmul.mubr.bf16.gmra.mrb[0].mxu0 %v1884
  %v2036 = vpop.f32.mrb[0].mxu0
  %v2037 = vadd.f32 0.0, %v2036
  %v2038 = vpop.f32.mrb[0].mxu0
  %v2039 = vadd.f32 0.0, %v2038
  %v2040 = vpop.f32.mrb[0].mxu0
  %v2041 = vadd.f32 0.0, %v2040
  %v2042 = vpop.f32.mrb[0].mxu0
  %v2043 = vadd.f32 0.0, %v2042
  %2044 = vmatprep.mubr.bf16.mxu0 0
  %2045 = vmatmul.mubr.bf16.gmra.mrb[0].mxu0 %v1887
  %v2046 = vpop.f32.mrb[0].mxu0
  %v2047 = vadd.f32 0.0, %v2046
  %v2048 = vpop.f32.mrb[0].mxu0
  %v2049 = vadd.f32 0.0, %v2048
  %v2050 = vpop.f32.mrb[0].mxu0
  %v2051 = vadd.f32 0.0, %v2050
  %v2052 = vpop.f32.mrb[0].mxu0
  %v2053 = vadd.f32 0.0, %v2052
  %2054 = vmatprep.mubr.bf16.mxu0 0
  %2055 = vmatmul.mubr.bf16.gmra.mrb[0].mxu0 %v1890
  %v2056 = vpop.f32.mrb[0].mxu0
  %v2057 = vadd.f32 0.0, %v2056
  %v2058 = vpop.f32.mrb[0].mxu0
  %v2059 = vadd.f32 0.0, %v2058
  %v2060 = vpop.f32.mrb[0].mxu0
  %v2061 = vadd.f32 0.0, %v2060
  %v2062 = vpop.f32.mrb[0].mxu0
  %v2063 = vadd.f32 0.0, %v2062
  %2064 = vdwg.mxu0
  %v2065 = vadd.f32 %v1727, %v1927
  %v2066 = vadd.f32 %v1728, %v1929
  %v2067 = vadd.f32 %v1729, %v1931
  %v2068 = vadd.f32 %v1730, %v1933
  %v2069 = vadd.f32 %v1731, %v1937
  %v2070 = vadd.f32 %v1732, %v1939
  %v2071 = vadd.f32 %v1733, %v1941
  %v2072 = vadd.f32 %v1734, %v1943
  %v2073 = vadd.f32 %v1735, %v1947
  %v2074 = vadd.f32 %v1736, %v1949
  %v2075 = vadd.f32 %v1737, %v1951
  %v2076 = vadd.f32 %v1738, %v1953
  %v2077 = vadd.f32 %v1739, %v1957
  %v2078 = vadd.f32 %v1740, %v1959
  %v2079 = vadd.f32 %v1741, %v1961
  %v2080 = vadd.f32 %v1742, %v1963
  %v2081 = vadd.f32 %v1743, %v1967
  %v2082 = vadd.f32 %v1744, %v1969
  %v2083 = vadd.f32 %v1745, %v1971
  %v2084 = vadd.f32 %v1746, %v1973
  %v2085 = vadd.f32 %v1747, %v1977
  %v2086 = vadd.f32 %v1748, %v1979
  %v2087 = vadd.f32 %v1749, %v1981
  %v2088 = vadd.f32 %v1750, %v1983
  %v2089 = vadd.f32 %v1751, %v1987
  %v2090 = vadd.f32 %v1752, %v1989
  %v2091 = vadd.f32 %v1753, %v1991
  %v2092 = vadd.f32 %v1754, %v1993
  %v2093 = vadd.f32 %v1755, %v1997
  %v2094 = vadd.f32 %v1756, %v1999
  %v2095 = vadd.f32 %v1757, %v2001
  %v2096 = vadd.f32 %v1758, %v2003
  %v2097 = vadd.f32 %v1759, %v2007
  %v2098 = vadd.f32 %v1760, %v2009
  %v2099 = vadd.f32 %v1761, %v2011
  %v2100 = vadd.f32 %v1762, %v2013
  %v2101 = vadd.f32 %v1763, %v2017
  %v2102 = vadd.f32 %v1764, %v2019
  %v2103 = vadd.f32 %v1765, %v2021
  %v2104 = vadd.f32 %v1766, %v2023
  %v2105 = vadd.f32 %v1767, %v2027
  %v2106 = vadd.f32 %v1768, %v2029
  %v2107 = vadd.f32 %v1769, %v2031
  %v2108 = vadd.f32 %v1770, %v2033
  %v2109 = vadd.f32 %v1771, %v2037
  %v2110 = vadd.f32 %v1772, %v2039
  %v2111 = vadd.f32 %v1773, %v2041
  %v2112 = vadd.f32 %v1774, %v2043
  %v2113 = vadd.f32 %v1775, %v2047
  %v2114 = vadd.f32 %v1776, %v2049
  %v2115 = vadd.f32 %v1777, %v2051
  %v2116 = vadd.f32 %v1778, %v2053
  %v2117 = vadd.f32 %v1779, %v2057
  %v2118 = vadd.f32 %v1780, %v2059
  %v2119 = vadd.f32 %v1781, %v2061
  %v2120 = vadd.f32 %v1782, %v2063
  %2121 = vst [vmem:[#allocation2] sm:$0xff] %v2065
  %2122 = vst [vmem:[#allocation2 + $0x8] sm:$0xff] %v2066
  %2123 = vst [vmem:[#allocation2 + $0x10] sm:$0xff] %v2067
  %2124 = vst [vmem:[#allocation2 + $0x18] sm:$0xff] %v2068
  %2125 = vst [vmem:[#allocation2 + $0x20] sm:$0xff] %v2069
  %2126 = vst [vmem:[#allocation2 + $0x28] sm:$0xff] %v2070
  %2127 = vst [vmem:[#allocation2 + $0x30] sm:$0xff] %v2071
  %2128 = vst [vmem:[#allocation2 + $0x38] sm:$0xff] %v2072
  %2129 = vst [vmem:[#allocation2 + $0x40] sm:$0xff] %v2073
  %2130 = vst [vmem:[#allocation2 + $0x48] sm:$0xff] %v2074
  %2131 = vst [vmem:[#allocation2 + $0x50] sm:$0xff] %v2075
  %2132 = vst [vmem:[#allocation2 + $0x58] sm:$0xff] %v2076
  %2133 = vst [vmem:[#allocation2 + $0x60] sm:$0xff] %v2077
  %2134 = vst [vmem:[#allocation2 + $0x68] sm:$0xff] %v2078
  %2135 = vst [vmem:[#allocation2 + $0x70] sm:$0xff] %v2079
  %2136 = vst [vmem:[#allocation2 + $0x78] sm:$0xff] %v2080
  %2137 = vst [vmem:[#allocation2 + $0x80] sm:$0xff] %v2081
  %2138 = vst [vmem:[#allocation2 + $0x88] sm:$0xff] %v2082
  %2139 = vst [vmem:[#allocation2 + $0x90] sm:$0xff] %v2083
  %2140 = vst [vmem:[#allocation2 + $0x98] sm:$0xff] %v2084
  %2141 = vst [vmem:[#allocation2 + $0xa0] sm:$0xff] %v2085
  %2142 = vst [vmem:[#allocation2 + $0xa8] sm:$0xff] %v2086
  %2143 = vst [vmem:[#allocation2 + $0xb0] sm:$0xff] %v2087
  %2144 = vst [vmem:[#allocation2 + $0xb8] sm:$0xff] %v2088
  %2145 = vst [vmem:[#allocation2 + $0xc0] sm:$0xff] %v2089
  %2146 = vst [vmem:[#allocation2 + $0xc8] sm:$0xff] %v2090
  %2147 = vst [vmem:[#allocation2 + $0xd0] sm:$0xff] %v2091
  %2148 = vst [vmem:[#allocation2 + $0xd8] sm:$0xff] %v2092
  %2149 = vst [vmem:[#allocation2 + $0xe0] sm:$0xff] %v2093
  %2150 = vst [vmem:[#allocation2 + $0xe8] sm:$0xff] %v2094
  %2151 = vst [vmem:[#allocation2 + $0xf0] sm:$0xff] %v2095
  %2152 = vst [vmem:[#allocation2 + $0xf8] sm:$0xff] %v2096
  %2153 = vst [vmem:[#allocation2 + $0x100] sm:$0xff] %v2097
  %2154 = vst [vmem:[#allocation2 + $0x108] sm:$0xff] %v2098
  %2155 = vst [vmem:[#allocation2 + $0x110] sm:$0xff] %v2099
  %2156 = vst [vmem:[#allocation2 + $0x118] sm:$0xff] %v2100
  %2157 = vst [vmem:[#allocation2 + $0x120] sm:$0xff] %v2101
  %2158 = vst [vmem:[#allocation2 + $0x128] sm:$0xff] %v2102
  %2159 = vst [vmem:[#allocation2 + $0x130] sm:$0xff] %v2103
  %2160 = vst [vmem:[#allocation2 + $0x138] sm:$0xff] %v2104
  %2161 = vst [vmem:[#allocation2 + $0x140] sm:$0xff] %v2105
  %2162 = vst [vmem:[#allocation2 + $0x148] sm:$0xff] %v2106
  %2163 = vst [vmem:[#allocation2 + $0x150] sm:$0xff] %v2107
  %2164 = vst [vmem:[#allocation2 + $0x158] sm:$0xff] %v2108
  %2165 = vst [vmem:[#allocation2 + $0x160] sm:$0xff] %v2109
  %2166 = vst [vmem:[#allocation2 + $0x168] sm:$0xff] %v2110
  %2167 = vst [vmem:[#allocation2 + $0x170] sm:$0xff] %v2111
  %2168 = vst [vmem:[#allocation2 + $0x178] sm:$0xff] %v2112
  %2169 = vst [vmem:[#allocation2 + $0x180] sm:$0xff] %v2113
  %2170 = vst [vmem:[#allocation2 + $0x188] sm:$0xff] %v2114
  %2171 = vst [vmem:[#allocation2 + $0x190] sm:$0xff] %v2115
  %2172 = vst [vmem:[#allocation2 + $0x198] sm:$0xff] %v2116
  %2173 = vst [vmem:[#allocation2 + $0x1a0] sm:$0xff] %v2117
  %2174 = vst [vmem:[#allocation2 + $0x1a8] sm:$0xff] %v2118
  %2175 = vst [vmem:[#allocation2 + $0x1b0] sm:$0xff] %v2119
  %2176 = vst [vmem:[#allocation2 + $0x1b8] sm:$0xff] %v2120
  %v2177 = vld [vmem:[%s2] sm:$0x1]
  %v2179 = vlaneseq
  %v2180 = vshrl.u32 %v2179, 7
  %v2181 = vsub.s32 0, %v2180
  %v2182 = vrot.slane %v2177, %v2181
  %v2184 = vld [vmem:[#allocation2] sm:$0xff]
  %v2185 = vld [vmem:[#allocation2 + $0x8] sm:$0xff]
  %v2186 = vld [vmem:[#allocation2 + $0x10] sm:$0xff]
  %v2187 = vld [vmem:[#allocation2 + $0x18] sm:$0xff]
  %v2188 = vmax.f32 %v2184, %v2185
  %v2189 = vmax.f32 %v2186, %v2187
  %v2190 = vmax.f32 %v2188, %v2189
  %v2191 = vadd.f32 %v2190, %v2182
  %v2192 = vmax.f32 %v2191, 0.0
  %2193 = vst [vmem:[#allocation3] sm:$0xff] %v2192
  %v2194 = vld [vmem:[#allocation2 + $0x20] sm:$0xff]
  %v2195 = vld [vmem:[#allocation2 + $0x28] sm:$0xff]
  %v2196 = vld [vmem:[#allocation2 + $0x30] sm:$0xff]
  %v2197 = vld [vmem:[#allocation2 + $0x38] sm:$0xff]
  %v2198 = vmax.f32 %v2194, %v2195
  %v2199 = vmax.f32 %v2196, %v2197
  %v2200 = vmax.f32 %v2198, %v2199
  %v2201 = vadd.f32 %v2200, %v2182
  %v2202 = vmax.f32 %v2201, 0.0
  %2203 = vst [vmem:[#allocation3 + $0x8] sm:$0xff] %v2202
  %v2204 = vld [vmem:[#allocation2 + $0x40] sm:$0xff]
  %v2205 = vld [vmem:[#allocation2 + $0x48] sm:$0xff]
  %v2206 = vld [vmem:[#allocation2 + $0x50] sm:$0xff]
  %v2207 = vld [vmem:[#allocation2 + $0x58] sm:$0xff]
  %v2208 = vmax.f32 %v2204, %v2205
  %v2209 = vmax.f32 %v2206, %v2207
  %v2210 = vmax.f32 %v2208, %v2209
  %v2211 = vadd.f32 %v2210, %v2182
  %v2212 = vmax.f32 %v2211, 0.0
  %2213 = vst [vmem:[#allocation3 + $0x10] sm:$0xff] %v2212
  %v2214 = vld [vmem:[#allocation2 + $0x60] sm:$0xff]
  %v2215 = vld [vmem:[#allocation2 + $0x68] sm:$0xff]
  %v2216 = vld [vmem:[#allocation2 + $0x70] sm:$0xff]
  %v2217 = vld [vmem:[#allocation2 + $0x78] sm:$0xff]
  %v2218 = vmax.f32 %v2214, %v2215
  %v2219 = vmax.f32 %v2216, %v2217
  %v2220 = vmax.f32 %v2218, %v2219
  %v2221 = vadd.f32 %v2220, %v2182
  %v2222 = vmax.f32 %v2221, 0.0
  %2223 = vst [vmem:[#allocation3 + $0x18] sm:$0xff] %v2222
  %v2224 = vld [vmem:[#allocation2 + $0x80] sm:$0xff]
  %v2225 = vld [vmem:[#allocation2 + $0x88] sm:$0xff]
  %v2226 = vld [vmem:[#allocation2 + $0x90] sm:$0xff]
  %v2227 = vld [vmem:[#allocation2 + $0x98] sm:$0xff]
  %v2228 = vmax.f32 %v2224, %v2225
  %v2229 = vmax.f32 %v2226, %v2227
  %v2230 = vmax.f32 %v2228, %v2229
  %v2231 = vadd.f32 %v2230, %v2182
  %v2232 = vmax.f32 %v2231, 0.0
  %2233 = vst [vmem:[#allocation3 + $0x20] sm:$0xff] %v2232
  %v2234 = vld [vmem:[#allocation2 + $0xa0] sm:$0xff]
  %v2235 = vld [vmem:[#allocation2 + $0xa8] sm:$0xff]
  %v2236 = vld [vmem:[#allocation2 + $0xb0] sm:$0xff]
  %v2237 = vld [vmem:[#allocation2 + $0xb8] sm:$0xff]
  %v2238 = vmax.f32 %v2234, %v2235
  %v2239 = vmax.f32 %v2236, %v2237
  %v2240 = vmax.f32 %v2238, %v2239
  %v2241 = vadd.f32 %v2240, %v2182
  %v2242 = vmax.f32 %v2241, 0.0
  %2243 = vst [vmem:[#allocation3 + $0x28] sm:$0xff] %v2242
  %v2244 = vld [vmem:[#allocation2 + $0xc0] sm:$0xff]
  %v2245 = vld [vmem:[#allocation2 + $0xc8] sm:$0xff]
  %v2246 = vld [vmem:[#allocation2 + $0xd0] sm:$0xff]
  %v2247 = vld [vmem:[#allocation2 + $0xd8] sm:$0xff]
  %v2248 = vmax.f32 %v2244, %v2245
  %v2249 = vmax.f32 %v2246, %v2247
  %v2250 = vmax.f32 %v2248, %v2249
  %v2251 = vadd.f32 %v2250, %v2182
  %v2252 = vmax.f32 %v2251, 0.0
  %2253 = vst [vmem:[#allocation3 + $0x30] sm:$0xff] %v2252
  %v2254 = vld [vmem:[#allocation2 + $0xe0] sm:$0xff]
  %v2255 = vld [vmem:[#allocation2 + $0xe8] sm:$0xff]
  %v2256 = vld [vmem:[#allocation2 + $0xf0] sm:$0xff]
  %v2257 = vld [vmem:[#allocation2 + $0xf8] sm:$0xff]
  %v2258 = vmax.f32 %v2254, %v2255
  %v2259 = vmax.f32 %v2256, %v2257
  %v2260 = vmax.f32 %v2258, %v2259
  %v2261 = vadd.f32 %v2260, %v2182
  %v2262 = vmax.f32 %v2261, 0.0
  %2263 = vst [vmem:[#allocation3 + $0x38] sm:$0xff] %v2262
  %v2264 = vld [vmem:[#allocation2 + $0x100] sm:$0xff]
  %v2265 = vld [vmem:[#allocation2 + $0x108] sm:$0xff]
  %v2266 = vld [vmem:[#allocation2 + $0x110] sm:$0xff]
  %v2267 = vld [vmem:[#allocation2 + $0x118] sm:$0xff]
  %v2268 = vmax.f32 %v2264, %v2265
  %v2269 = vmax.f32 %v2266, %v2267
  %v2270 = vmax.f32 %v2268, %v2269
  %v2271 = vadd.f32 %v2270, %v2182
  %v2272 = vmax.f32 %v2271, 0.0
  %2273 = vst [vmem:[#allocation3 + $0x40] sm:$0xff] %v2272
  %v2274 = vld [vmem:[#allocation2 + $0x120] sm:$0xff]
  %v2275 = vld [vmem:[#allocation2 + $0x128] sm:$0xff]
  %v2276 = vld [vmem:[#allocation2 + $0x130] sm:$0xff]
  %v2277 = vld [vmem:[#allocation2 + $0x138] sm:$0xff]
  %v2278 = vmax.f32 %v2274, %v2275
  %v2279 = vmax.f32 %v2276, %v2277
  %v2280 = vmax.f32 %v2278, %v2279
  %v2281 = vadd.f32 %v2280, %v2182
  %v2282 = vmax.f32 %v2281, 0.0
  %2283 = vst [vmem:[#allocation3 + $0x48] sm:$0xff] %v2282
  %v2284 = vld [vmem:[#allocation2 + $0x140] sm:$0xff]
  %v2285 = vld [vmem:[#allocation2 + $0x148] sm:$0xff]
  %v2286 = vld [vmem:[#allocation2 + $0x150] sm:$0xff]
  %v2287 = vld [vmem:[#allocation2 + $0x158] sm:$0xff]
  %v2288 = vmax.f32 %v2284, %v2285
  %v2289 = vmax.f32 %v2286, %v2287
  %v2290 = vmax.f32 %v2288, %v2289
  %v2291 = vadd.f32 %v2290, %v2182
  %v2292 = vmax.f32 %v2291, 0.0
  %2293 = vst [vmem:[#allocation3 + $0x50] sm:$0xff] %v2292
  %v2294 = vld [vmem:[#allocation2 + $0x160] sm:$0xff]
  %v2295 = vld [vmem:[#allocation2 + $0x168] sm:$0xff]
  %v2296 = vld [vmem:[#allocation2 + $0x170] sm:$0xff]
  %v2297 = vld [vmem:[#allocation2 + $0x178] sm:$0xff]
  %v2298 = vmax.f32 %v2294, %v2295
  %v2299 = vmax.f32 %v2296, %v2297
  %v2300 = vmax.f32 %v2298, %v2299
  %v2301 = vadd.f32 %v2300, %v2182
  %v2302 = vmax.f32 %v2301, 0.0
  %2303 = vst [vmem:[#allocation3 + $0x58] sm:$0xff] %v2302
  %v2304 = vld [vmem:[#allocation2 + $0x180] sm:$0xff]
  %v2305 = vld [vmem:[#allocation2 + $0x188] sm:$0xff]
  %v2306 = vld [vmem:[#allocation2 + $0x190] sm:$0xff]
  %v2307 = vld [vmem:[#allocation2 + $0x198] sm:$0xff]
  %v2308 = vmax.f32 %v2304, %v2305
  %v2309 = vmax.f32 %v2306, %v2307
  %v2310 = vmax.f32 %v2308, %v2309
  %v2311 = vadd.f32 %v2310, %v2182
  %v2312 = vmax.f32 %v2311, 0.0
  %2313 = vst [vmem:[#allocation3 + $0x60] sm:$0xff] %v2312
  %v2314 = vld [vmem:[#allocation2 + $0x1a0] sm:$0xff]
  %v2315 = vld [vmem:[#allocation2 + $0x1a8] sm:$0xff]
  %v2316 = vld [vmem:[#allocation2 + $0x1b0] sm:$0xff]
  %v2317 = vld [vmem:[#allocation2 + $0x1b8] sm:$0xff]
  %v2318 = vmax.f32 %v2314, %v2315
  %v2319 = vmax.f32 %v2316, %v2317
  %v2320 = vmax.f32 %v2318, %v2319
  %v2321 = vadd.f32 %v2320, %v2182
  %v2322 = vmax.f32 %v2321, 0.0
  %2323 = vst [vmem:[#allocation3 + $0x68] sm:$0xff] %v2322
  %v2324 = vld [vmem:[#allocation3] sm:$0xff]
  %v2325 = vld [vmem:[#allocation3 + $0x8] sm:$0xff]
  %v2326 = vld [vmem:[#allocation3 + $0x10] sm:$0xff]
  %v2327 = vld [vmem:[#allocation3 + $0x18] sm:$0xff]
  %v2328 = vld [vmem:[#allocation3 + $0x20] sm:$0xff]
  %v2329 = vld [vmem:[#allocation3 + $0x28] sm:$0xff]
  %v2330 = vld [vmem:[#allocation3 + $0x30] sm:$0xff]
  %v2331 = vld [vmem:[#allocation3 + $0x38] sm:$0xff]
  %v2332 = vld [vmem:[#allocation3 + $0x40] sm:$0xff]
  %v2333 = vld [vmem:[#allocation3 + $0x48] sm:$0xff]
  %v2334 = vpack.c.bf16 %v2325, %v2324
  %v2335 = vpack.c.bf16 %v2327, %v2326
  %v2336 = vpack.c.bf16 %v2329, %v2328
  %v2337 = vpack.c.bf16 %v2331, %v2330
  %v2338 = vpack.c.bf16 %v2333, %v2332
  %v2339 = vld [vmem:[%s3] sm:$0xff]
  %v2340 = vld [vmem:[%s3 + $0x8] sm:$0xff]
  %v2341 = vld [vmem:[%s3 + $0x10] sm:$0xff]
  %v2342 = vld [vmem:[%s3 + $0x18] sm:$0xff]
  %v2343 = vld [vmem:[%s3 + $0x20] sm:$0xff]
  %v2344 = vld [vmem:[%s3 + $0x28] sm:$0xff]
  %v2345 = vld [vmem:[%s3 + $0x30] sm:$0xff]
  %v2346 = vld [vmem:[%s3 + $0x38] sm:$0xff]
  %v2347 = vld [vmem:[%s3 + $0x40] sm:$0xff]
  %v2348 = vld [vmem:[%s3 + $0x48] sm:$0xff]
  %v2349 = vld [vmem:[%s3 + $0x50] sm:$0xff]
  %v2350 = vld [vmem:[%s3 + $0x58] sm:$0xff]
  %v2351 = vld [vmem:[%s3 + $0x60] sm:$0xff]
  %v2352 = vld [vmem:[%s3 + $0x68] sm:$0xff]
  %v2353 = vld [vmem:[%s3 + $0x70] sm:$0xff]
  %v2354 = vld [vmem:[%s3 + $0x78] sm:$0xff]
  %v2371 = vunpack.c.l.b16 %v2339
  %v2372 = vunpack.c.h.b16 %v2339
  %v2373 = vunpack.c.l.b16 %v2340
  %v2374 = vunpack.c.h.b16 %v2340
  %v2375 = vunpack.c.l.b16 %v2341
  %v2376 = vunpack.c.h.b16 %v2341
  %v2377 = vunpack.c.l.b16 %v2342
  %v2378 = vunpack.c.h.b16 %v2342
  %v2379 = vunpack.c.l.b16 %v2343
  %v2380 = vunpack.c.h.b16 %v2343
  %v2381 = vunpack.c.l.b16 %v2344
  %v2382 = vunpack.c.h.b16 %v2344
  %v2383 = vunpack.c.l.b16 %v2345
  %v2384 = vunpack.c.h.b16 %v2345
  %v2385 = vunpack.c.l.b16 %v2346
  %v2386 = vunpack.c.h.b16 %v2346
  %v2387 = vunpack.c.l.b16 %v2347
  %v2388 = vunpack.c.h.b16 %v2347
  %v2389 = vunpack.c.l.b16 %v2348
  %v2390 = vunpack.c.h.b16 %v2348
  %v2391 = vunpack.c.l.b16 %v2349
  %v2392 = vunpack.c.h.b16 %v2349
  %v2393 = vunpack.c.l.b16 %v2350
  %v2394 = vunpack.c.h.b16 %v2350
  %v2395 = vunpack.c.l.b16 %v2351
  %v2396 = vunpack.c.h.b16 %v2351
  %v2397 = vunpack.c.l.b16 %v2352
  %v2398 = vunpack.c.h.b16 %v2352
  %v2399 = vunpack.c.l.b16 %v2353
  %v2400 = vunpack.c.h.b16 %v2353
  %v2401 = vunpack.c.l.b16 %v2354
  %v2402 = vunpack.c.h.b16 %v2354
  %v2403 = vpack.c.b16 %v2373, %v2371
  %v2404 = vpack.c.b16 %v2374, %v2372
  %v2405 = vpack.c.b16 %v2377, %v2375
  %v2406 = vpack.c.b16 %v2378, %v2376
  %v2407 = vpack.c.b16 %v2381, %v2379
  %v2408 = vpack.c.b16 %v2382, %v2380
  %v2409 = vpack.c.b16 %v2385, %v2383
  %v2410 = vpack.c.b16 %v2386, %v2384
  %v2411 = vpack.c.b16 %v2389, %v2387
  %v2412 = vpack.c.b16 %v2390, %v2388
  %v2413 = vpack.c.b16 %v2393, %v2391
  %v2414 = vpack.c.b16 %v2394, %v2392
  %v2415 = vpack.c.b16 %v2397, %v2395
  %v2416 = vpack.c.b16 %v2398, %v2396
  %v2417 = vpack.c.b16 %v2401, %v2399
  %v2418 = vpack.c.b16 %v2402, %v2400
  %2435 = vmatprep.subr.bf16.mxu0 %v2404
  %2436 = vmatpush1.bf16.msra.mxu0 %v2403
  %2437 = vmatprep.subr.bf16.mxu0 %v2406
  %2438 = vmatpush1.bf16.msra.mxu0 %v2405
  %2439 = vmatprep.subr.bf16.mxu0 %v2408
  %2440 = vmatpush1.bf16.msra.mxu0 %v2407
  %2441 = vmatprep.subr.bf16.mxu0 %v2410
  %2442 = vmatpush1.bf16.msra.mxu0 %v2409
  %2443 = vmatprep.subr.bf16.mxu0 %v2412
  %2444 = vmatpush1.bf16.msra.mxu0 %v2411
  %2445 = vmatprep.subr.bf16.mxu0 %v2414
  %2446 = vmatpush1.bf16.msra.mxu0 %v2413
  %2447 = vmatprep.subr.bf16.mxu0 %v2416
  %2448 = vmatpush1.bf16.msra.mxu0 %v2415
  %2449 = vmatprep.subr.bf16.mxu0 %v2418
  %2450 = vmatpush1.bf16.msra.mxu0 %v2417
  %2451 = vmatprep.subr.bf16.mxu0 0
  %2452 = vmatpush1.bf16.msra.mxu0 0
  %2453 = vmatprep.subr.bf16.mxu0 0
  %2454 = vmatpush1.bf16.msra.mxu0 0
  %2455 = vmatprep.subr.bf16.mxu0 0
  %2456 = vmatpush1.bf16.msra.mxu0 0
  %2457 = vmatprep.subr.bf16.mxu0 0
  %2458 = vmatpush1.bf16.msra.mxu0 0
  %2459 = vmatprep.subr.bf16.mxu0 0
  %2460 = vmatpush1.bf16.msra.mxu0 0
  %2461 = vmatprep.subr.bf16.mxu0 0
  %2462 = vmatpush1.bf16.msra.mxu0 0
  %2463 = vmatprep.subr.bf16.mxu0 0
  %2464 = vmatpush1.bf16.msra.mxu0 0
  %2465 = vmatprep.subr.bf16.mxu0 0
  %2466 = vmatpush1.bf16.msra.mxu0 0
  %2467 = vmatprep.mubr.bf16.mxu0 0
  %2468 = vmatmul.mubr.bf16.gmra.mrb[0].mxu0 %v2334
  %v2469 = vpop.f32.mrb[0].mxu0
  %v2470 = vadd.f32 0.0, %v2469
  %v2471 = vpop.f32.mrb[0].mxu0
  %v2472 = vadd.f32 0.0, %v2471
  %v2473 = vpop.f32.mrb[0].mxu0
  %v2474 = vadd.f32 0.0, %v2473
  %v2475 = vpop.f32.mrb[0].mxu0
  %v2476 = vadd.f32 0.0, %v2475
  %2477 = vmatprep.mubr.bf16.mxu0 0
  %2478 = vmatmul.mubr.bf16.gmra.mrb[0].mxu0 %v2335
  %v2479 = vpop.f32.mrb[0].mxu0
  %v2480 = vadd.f32 0.0, %v2479
  %v2481 = vpop.f32.mrb[0].mxu0
  %v2482 = vadd.f32 0.0, %v2481
  %v2483 = vpop.f32.mrb[0].mxu0
  %v2484 = vadd.f32 0.0, %v2483
  %v2485 = vpop.f32.mrb[0].mxu0
  %v2486 = vadd.f32 0.0, %v2485
  %2487 = vmatprep.mubr.bf16.mxu0 0
  %2488 = vmatmul.mubr.bf16.gmra.mrb[0].mxu0 %v2336
  %v2489 = vpop.f32.mrb[0].mxu0
  %v2490 = vadd.f32 0.0, %v2489
  %v2491 = vpop.f32.mrb[0].mxu0
  %v2492 = vadd.f32 0.0, %v2491
  %v2493 = vpop.f32.mrb[0].mxu0
  %v2494 = vadd.f32 0.0, %v2493
  %v2495 = vpop.f32.mrb[0].mxu0
  %v2496 = vadd.f32 0.0, %v2495
  %2497 = vmatprep.mubr.bf16.mxu0 0
  %2498 = vmatmul.mubr.bf16.gmra.mrb[0].mxu0 %v2337
  %v2499 = vpop.f32.mrb[0].mxu0
  %v2500 = vadd.f32 0.0, %v2499
  %v2501 = vpop.f32.mrb[0].mxu0
  %v2502 = vadd.f32 0.0, %v2501
  %v2503 = vpop.f32.mrb[0].mxu0
  %v2504 = vadd.f32 0.0, %v2503
  %v2505 = vpop.f32.mrb[0].mxu0
  %v2506 = vadd.f32 0.0, %v2505
  %2507 = vmatprep.mubr.bf16.mxu0 0
  %2508 = vmatmul.mubr.bf16.gmra.mrb[0].mxu0 %v2338
  %v2509 = vpop.f32.mrb[0].mxu0
  %v2510 = vadd.f32 0.0, %v2509
  %v2511 = vpop.f32.mrb[0].mxu0
  %v2512 = vadd.f32 0.0, %v2511
  %v2513 = vpop.f32.mrb[0].mxu0
  %v2514 = vadd.f32 0.0, %v2513
  %v2515 = vpop.f32.mrb[0].mxu0
  %v2516 = vadd.f32 0.0, %v2515
  %2517 = vdwg.mxu0
  %2518 = vst [vmem:[#allocation4] sm:$0xff] %v2470
  %2519 = vst [vmem:[#allocation4 + $0x8] sm:$0xff] %v2472
  %2520 = vst [vmem:[#allocation4 + $0x10] sm:$0xff] %v2474
  %2521 = vst [vmem:[#allocation4 + $0x18] sm:$0xff] %v2476
  %2522 = vst [vmem:[#allocation4 + $0x20] sm:$0xff] %v2480
  %2523 = vst [vmem:[#allocation4 + $0x28] sm:$0xff] %v2482
  %2524 = vst [vmem:[#allocation4 + $0x30] sm:$0xff] %v2484
  %2525 = vst [vmem:[#allocation4 + $0x38] sm:$0xff] %v2486
  %2526 = vst [vmem:[#allocation4 + $0x40] sm:$0xff] %v2490
  %2527 = vst [vmem:[#allocation4 + $0x48] sm:$0xff] %v2492
  %2528 = vst [vmem:[#allocation4 + $0x50] sm:$0xff] %v2494
  %2529 = vst [vmem:[#allocation4 + $0x58] sm:$0xff] %v2496
  %2530 = vst [vmem:[#allocation4 + $0x60] sm:$0xff] %v2500
  %2531 = vst [vmem:[#allocation4 + $0x68] sm:$0xff] %v2502
  %2532 = vst [vmem:[#allocation4 + $0x70] sm:$0xff] %v2504
  %2533 = vst [vmem:[#allocation4 + $0x78] sm:$0xff] %v2506
  %2534 = vst [vmem:[#allocation4 + $0x80] sm:$0xff] %v2510
  %2535 = vst [vmem:[#allocation4 + $0x88] sm:$0xff] %v2512
  %2536 = vst [vmem:[#allocation4 + $0x90] sm:$0xff] %v2514
  %2537 = vst [vmem:[#allocation4 + $0x98] sm:$0xff] %v2516
  %v2538 = vld [vmem:[#allocation4] sm:$0xff]
  %v2539 = vld [vmem:[#allocation4 + $0x8] sm:$0xff]
  %v2540 = vld [vmem:[#allocation4 + $0x10] sm:$0xff]
  %v2541 = vld [vmem:[#allocation4 + $0x18] sm:$0xff]
  %v2542 = vld [vmem:[#allocation4 + $0x20] sm:$0xff]
  %v2543 = vld [vmem:[#allocation4 + $0x28] sm:$0xff]
  %v2544 = vld [vmem:[#allocation4 + $0x30] sm:$0xff]
  %v2545 = vld [vmem:[#allocation4 + $0x38] sm:$0xff]
  %v2546 = vld [vmem:[#allocation4 + $0x40] sm:$0xff]
  %v2547 = vld [vmem:[#allocation4 + $0x48] sm:$0xff]
  %v2548 = vld [vmem:[#allocation4 + $0x50] sm:$0xff]
  %v2549 = vld [vmem:[#allocation4 + $0x58] sm:$0xff]
  %v2550 = vld [vmem:[#allocation4 + $0x60] sm:$0xff]
  %v2551 = vld [vmem:[#allocation4 + $0x68] sm:$0xff]
  %v2552 = vld [vmem:[#allocation4 + $0x70] sm:$0xff]
  %v2553 = vld [vmem:[#allocation4 + $0x78] sm:$0xff]
  %v2554 = vld [vmem:[#allocation4 + $0x80] sm:$0xff]
  %v2555 = vld [vmem:[#allocation4 + $0x88] sm:$0xff]
  %v2556 = vld [vmem:[#allocation4 + $0x90] sm:$0xff]
  %v2557 = vld [vmem:[#allocation4 + $0x98] sm:$0xff]
  %v2558 = vld [vmem:[#allocation3 + $0x8] sm:$0xff]
  %v2559 = vld [vmem:[#allocation3 + $0x10] sm:$0xff]
  %v2560 = vld [vmem:[#allocation3 + $0x18] sm:$0xff]
  %v2561 = vld [vmem:[#allocation3 + $0x20] sm:$0xff]
  %v2562 = vld [vmem:[#allocation3 + $0x28] sm:$0xff]
  %v2563 = vld [vmem:[#allocation3 + $0x30] sm:$0xff]
  %v2564 = vld [vmem:[#allocation3 + $0x38] sm:$0xff]
  %v2565 = vld [vmem:[#allocation3 + $0x40] sm:$0xff]
  %v2566 = vld [vmem:[#allocation3 + $0x48] sm:$0xff]
  %v2567 = vld [vmem:[#allocation3 + $0x50] sm:$0xff]
  %v2568 = vpack.c.bf16 %v2559, %v2558
  %v2569 = vpack.c.bf16 %v2561, %v2560
  %v2570 = vpack.c.bf16 %v2563, %v2562
  %v2571 = vpack.c.bf16 %v2565, %v2564
  %v2572 = vpack.c.bf16 %v2567, %v2566
  %s2573 = scalar_lea.vmem %s3, 128
  %v2574 = vld [vmem:[%s2573] sm:$0xff]
  %v2575 = vld [vmem:[%s2573 + $0x8] sm:$0xff]
  %v2576 = vld [vmem:[%s2573 + $0x10] sm:$0xff]
  %v2577 = vld [vmem:[%s2573 + $0x18] sm:$0xff]
  %v2578 = vld [vmem:[%s2573 + $0x20] sm:$0xff]
  %v2579 = vld [vmem:[%s2573 + $0x28] sm:$0xff]
  %v2580 = vld [vmem:[%s2573 + $0x30] sm:$0xff]
  %v2581 = vld [vmem:[%s2573 + $0x38] sm:$0xff]
  %v2582 = vld [vmem:[%s2573 + $0x40] sm:$0xff]
  %v2583 = vld [vmem:[%s2573 + $0x48] sm:$0xff]
  %v2584 = vld [vmem:[%s2573 + $0x50] sm:$0xff]
  %v2585 = vld [vmem:[%s2573 + $0x58] sm:$0xff]
  %v2586 = vld [vmem:[%s2573 + $0x60] sm:$0xff]
  %v2587 = vld [vmem:[%s2573 + $0x68] sm:$0xff]
  %v2588 = vld [vmem:[%s2573 + $0x70] sm:$0xff]
  %v2589 = vld [vmem:[%s2573 + $0x78] sm:$0xff]
  %v2606 = vunpack.c.l.b16 %v2574
  %v2607 = vunpack.c.h.b16 %v2574
  %v2608 = vunpack.c.l.b16 %v2575
  %v2609 = vunpack.c.h.b16 %v2575
  %v2610 = vunpack.c.l.b16 %v2576
  %v2611 = vunpack.c.h.b16 %v2576
  %v2612 = vunpack.c.l.b16 %v2577
  %v2613 = vunpack.c.h.b16 %v2577
  %v2614 = vunpack.c.l.b16 %v2578
  %v2615 = vunpack.c.h.b16 %v2578
  %v2616 = vunpack.c.l.b16 %v2579
  %v2617 = vunpack.c.h.b16 %v2579
  %v2618 = vunpack.c.l.b16 %v2580
  %v2619 = vunpack.c.h.b16 %v2580
  %v2620 = vunpack.c.l.b16 %v2581
  %v2621 = vunpack.c.h.b16 %v2581
  %v2622 = vunpack.c.l.b16 %v2582
  %v2623 = vunpack.c.h.b16 %v2582
  %v2624 = vunpack.c.l.b16 %v2583
  %v2625 = vunpack.c.h.b16 %v2583
  %v2626 = vunpack.c.l.b16 %v2584
  %v2627 = vunpack.c.h.b16 %v2584
  %v2628 = vunpack.c.l.b16 %v2585
  %v2629 = vunpack.c.h.b16 %v2585
  %v2630 = vunpack.c.l.b16 %v2586
  %v2631 = vunpack.c.h.b16 %v2586
  %v2632 = vunpack.c.l.b16 %v2587
  %v2633 = vunpack.c.h.b16 %v2587
  %v2634 = vunpack.c.l.b16 %v2588
  %v2635 = vunpack.c.h.b16 %v2588
  %v2636 = vunpack.c.l.b16 %v2589
  %v2637 = vunpack.c.h.b16 %v2589
  %v2638 = vpack.c.b16 %v2608, %v2606
  %v2639 = vpack.c.b16 %v2609, %v2607
  %v2640 = vpack.c.b16 %v2612, %v2610
  %v2641 = vpack.c.b16 %v2613, %v2611
  %v2642 = vpack.c.b16 %v2616, %v2614
  %v2643 = vpack.c.b16 %v2617, %v2615
  %v2644 = vpack.c.b16 %v2620, %v2618
  %v2645 = vpack.c.b16 %v2621, %v2619
  %v2646 = vpack.c.b16 %v2624, %v2622
  %v2647 = vpack.c.b16 %v2625, %v2623
  %v2648 = vpack.c.b16 %v2628, %v2626
  %v2649 = vpack.c.b16 %v2629, %v2627
  %v2650 = vpack.c.b16 %v2632, %v2630
  %v2651 = vpack.c.b16 %v2633, %v2631
  %v2652 = vpack.c.b16 %v2636, %v2634
  %v2653 = vpack.c.b16 %v2637, %v2635
  %2670 = vmatprep.subr.bf16.mxu0 %v2639
  %2671 = vmatpush1.bf16.msra.mxu0 %v2638
  %2672 = vmatprep.subr.bf16.mxu0 %v2641
  %2673 = vmatpush1.bf16.msra.mxu0 %v2640
  %2674 = vmatprep.subr.bf16.mxu0 %v2643
  %2675 = vmatpush1.bf16.msra.mxu0 %v2642
  %2676 = vmatprep.subr.bf16.mxu0 %v2645
  %2677 = vmatpush1.bf16.msra.mxu0 %v2644
  %2678 = vmatprep.subr.bf16.mxu0 %v2647
  %2679 = vmatpush1.bf16.msra.mxu0 %v2646
  %2680 = vmatprep.subr.bf16.mxu0 %v2649
  %2681 = vmatpush1.bf16.msra.mxu0 %v2648
  %2682 = vmatprep.subr.bf16.mxu0 %v2651
  %2683 = vmatpush1.bf16.msra.mxu0 %v2650
  %2684 = vmatprep.subr.bf16.mxu0 %v2653
  %2685 = vmatpush1.bf16.msra.mxu0 %v2652
  %2686 = vmatprep.subr.bf16.mxu0 0
  %2687 = vmatpush1.bf16.msra.mxu0 0
  %2688 = vmatprep.subr.bf16.mxu0 0
  %2689 = vmatpush1.bf16.msra.mxu0 0
  %2690 = vmatprep.subr.bf16.mxu0 0
  %2691 = vmatpush1.bf16.msra.mxu0 0
  %2692 = vmatprep.subr.bf16.mxu0 0
  %2693 = vmatpush1.bf16.msra.mxu0 0
  %2694 = vmatprep.subr.bf16.mxu0 0
  %2695 = vmatpush1.bf16.msra.mxu0 0
  %2696 = vmatprep.subr.bf16.mxu0 0
  %2697 = vmatpush1.bf16.msra.mxu0 0
  %2698 = vmatprep.subr.bf16.mxu0 0
  %2699 = vmatpush1.bf16.msra.mxu0 0
  %2700 = vmatprep.subr.bf16.mxu0 0
  %2701 = vmatpush1.bf16.msra.mxu0 0
  %2702 = vmatprep.mubr.bf16.mxu0 0
  %2703 = vmatmul.mubr.bf16.gmra.mrb[0].mxu0 %v2568
  %v2704 = vpop.f32.mrb[0].mxu0
  %v2705 = vadd.f32 0.0, %v2704
  %v2706 = vpop.f32.mrb[0].mxu0
  %v2707 = vadd.f32 0.0, %v2706
  %v2708 = vpop.f32.mrb[0].mxu0
  %v2709 = vadd.f32 0.0, %v2708
  %v2710 = vpop.f32.mrb[0].mxu0
  %v2711 = vadd.f32 0.0, %v2710
  %2712 = vmatprep.mubr.bf16.mxu0 0
  %2713 = vmatmul.mubr.bf16.gmra.mrb[0].mxu0 %v2569
  %v2714 = vpop.f32.mrb[0].mxu0
  %v2715 = vadd.f32 0.0, %v2714
  %v2716 = vpop.f32.mrb[0].mxu0
  %v2717 = vadd.f32 0.0, %v2716
  %v2718 = vpop.f32.mrb[0].mxu0
  %v2719 = vadd.f32 0.0, %v2718
  %v2720 = vpop.f32.mrb[0].mxu0
  %v2721 = vadd.f32 0.0, %v2720
  %2722 = vmatprep.mubr.bf16.mxu0 0
  %2723 = vmatmul.mubr.bf16.gmra.mrb[0].mxu0 %v2570
  %v2724 = vpop.f32.mrb[0].mxu0
  %v2725 = vadd.f32 0.0, %v2724
  %v2726 = vpop.f32.mrb[0].mxu0
  %v2727 = vadd.f32 0.0, %v2726
  %v2728 = vpop.f32.mrb[0].mxu0
  %v2729 = vadd.f32 0.0, %v2728
  %v2730 = vpop.f32.mrb[0].mxu0
  %v2731 = vadd.f32 0.0, %v2730
  %2732 = vmatprep.mubr.bf16.mxu0 0
  %2733 = vmatmul.mubr.bf16.gmra.mrb[0].mxu0 %v2571
  %v2734 = vpop.f32.mrb[0].mxu0
  %v2735 = vadd.f32 0.0, %v2734
  %v2736 = vpop.f32.mrb[0].mxu0
  %v2737 = vadd.f32 0.0, %v2736
  %v2738 = vpop.f32.mrb[0].mxu0
  %v2739 = vadd.f32 0.0, %v2738
  %v2740 = vpop.f32.mrb[0].mxu0
  %v2741 = vadd.f32 0.0, %v2740
  %2742 = vmatprep.mubr.bf16.mxu0 0
  %2743 = vmatmul.mubr.bf16.gmra.mrb[0].mxu0 %v2572
  %v2744 = vpop.f32.mrb[0].mxu0
  %v2745 = vadd.f32 0.0, %v2744
  %v2746 = vpop.f32.mrb[0].mxu0
  %v2747 = vadd.f32 0.0, %v2746
  %v2748 = vpop.f32.mrb[0].mxu0
  %v2749 = vadd.f32 0.0, %v2748
  %v2750 = vpop.f32.mrb[0].mxu0
  %v2751 = vadd.f32 0.0, %v2750
  %2752 = vdwg.mxu0
  %v2753 = vadd.f32 %v2538, %v2705
  %v2754 = vadd.f32 %v2539, %v2707
  %v2755 = vadd.f32 %v2540, %v2709
  %v2756 = vadd.f32 %v2541, %v2711
  %v2757 = vadd.f32 %v2542, %v2715
  %v2758 = vadd.f32 %v2543, %v2717
  %v2759 = vadd.f32 %v2544, %v2719
  %v2760 = vadd.f32 %v2545, %v2721
  %v2761 = vadd.f32 %v2546, %v2725
  %v2762 = vadd.f32 %v2547, %v2727
  %v2763 = vadd.f32 %v2548, %v2729
  %v2764 = vadd.f32 %v2549, %v2731
  %v2765 = vadd.f32 %v2550, %v2735
  %v2766 = vadd.f32 %v2551, %v2737
  %v2767 = vadd.f32 %v2552, %v2739
  %v2768 = vadd.f32 %v2553, %v2741
  %v2769 = vadd.f32 %v2554, %v2745
  %v2770 = vadd.f32 %v2555, %v2747
  %v2771 = vadd.f32 %v2556, %v2749
  %v2772 = vadd.f32 %v2557, %v2751
  %2773 = vst [vmem:[#allocation4] sm:$0xff] %v2753
  %2774 = vst [vmem:[#allocation4 + $0x8] sm:$0xff] %v2754
  %2775 = vst [vmem:[#allocation4 + $0x10] sm:$0xff] %v2755
  %2776 = vst [vmem:[#allocation4 + $0x18] sm:$0xff] %v2756
  %2777 = vst [vmem:[#allocation4 + $0x20] sm:$0xff] %v2757
  %2778 = vst [vmem:[#allocation4 + $0x28] sm:$0xff] %v2758
  %2779 = vst [vmem:[#allocation4 + $0x30] sm:$0xff] %v2759
  %2780 = vst [vmem:[#allocation4 + $0x38] sm:$0xff] %v2760
  %2781 = vst [vmem:[#allocation4 + $0x40] sm:$0xff] %v2761
  %2782 = vst [vmem:[#allocation4 + $0x48] sm:$0xff] %v2762
  %2783 = vst [vmem:[#allocation4 + $0x50] sm:$0xff] %v2763
  %2784 = vst [vmem:[#allocation4 + $0x58] sm:$0xff] %v2764
  %2785 = vst [vmem:[#allocation4 + $0x60] sm:$0xff] %v2765
  %2786 = vst [vmem:[#allocation4 + $0x68] sm:$0xff] %v2766
  %2787 = vst [vmem:[#allocation4 + $0x70] sm:$0xff] %v2767
  %2788 = vst [vmem:[#allocation4 + $0x78] sm:$0xff] %v2768
  %2789 = vst [vmem:[#allocation4 + $0x80] sm:$0xff] %v2769
  %2790 = vst [vmem:[#allocation4 + $0x88] sm:$0xff] %v2770
  %2791 = vst [vmem:[#allocation4 + $0x90] sm:$0xff] %v2771
  %2792 = vst [vmem:[#allocation4 + $0x98] sm:$0xff] %v2772
  %v2793 = vld [vmem:[#allocation4] sm:$0xff]
  %v2794 = vld [vmem:[#allocation4 + $0x8] sm:$0xff]
  %v2795 = vld [vmem:[#allocation4 + $0x10] sm:$0xff]
  %v2796 = vld [vmem:[#allocation4 + $0x18] sm:$0xff]
  %v2797 = vld [vmem:[#allocation4 + $0x20] sm:$0xff]
  %v2798 = vld [vmem:[#allocation4 + $0x28] sm:$0xff]
  %v2799 = vld [vmem:[#allocation4 + $0x30] sm:$0xff]
  %v2800 = vld [vmem:[#allocation4 + $0x38] sm:$0xff]
  %v2801 = vld [vmem:[#allocation4 + $0x40] sm:$0xff]
  %v2802 = vld [vmem:[#allocation4 + $0x48] sm:$0xff]
  %v2803 = vld [vmem:[#allocation4 + $0x50] sm:$0xff]
  %v2804 = vld [vmem:[#allocation4 + $0x58] sm:$0xff]
  %v2805 = vld [vmem:[#allocation4 + $0x60] sm:$0xff]
  %v2806 = vld [vmem:[#allocation4 + $0x68] sm:$0xff]
  %v2807 = vld [vmem:[#allocation4 + $0x70] sm:$0xff]
  %v2808 = vld [vmem:[#allocation4 + $0x78] sm:$0xff]
  %v2809 = vld [vmem:[#allocation4 + $0x80] sm:$0xff]
  %v2810 = vld [vmem:[#allocation4 + $0x88] sm:$0xff]
  %v2811 = vld [vmem:[#allocation4 + $0x90] sm:$0xff]
  %v2812 = vld [vmem:[#allocation4 + $0x98] sm:$0xff]
  %v2813 = vld [vmem:[#allocation3 + $0x10] sm:$0xff]
  %v2814 = vld [vmem:[#allocation3 + $0x18] sm:$0xff]
  %v2815 = vld [vmem:[#allocation3 + $0x20] sm:$0xff]
  %v2816 = vld [vmem:[#allocation3 + $0x28] sm:$0xff]
  %v2817 = vld [vmem:[#allocation3 + $0x30] sm:$0xff]
  %v2818 = vld [vmem:[#allocation3 + $0x38] sm:$0xff]
  %v2819 = vld [vmem:[#allocation3 + $0x40] sm:$0xff]
  %v2820 = vld [vmem:[#allocation3 + $0x48] sm:$0xff]
  %v2821 = vld [vmem:[#allocation3 + $0x50] sm:$0xff]
  %v2822 = vld [vmem:[#allocation3 + $0x58] sm:$0xff]
  %v2823 = vpack.c.bf16 %v2814, %v2813
  %v2824 = vpack.c.bf16 %v2816, %v2815
  %v2825 = vpack.c.bf16 %v2818, %v2817
  %v2826 = vpack.c.bf16 %v2820, %v2819
  %v2827 = vpack.c.bf16 %v2822, %v2821
  %s2828 = scalar_lea.vmem %s3, 256
  %v2829 = vld [vmem:[%s2828] sm:$0xff]
  %v2830 = vld [vmem:[%s2828 + $0x8] sm:$0xff]
  %v2831 = vld [vmem:[%s2828 + $0x10] sm:$0xff]
  %v2832 = vld [vmem:[%s2828 + $0x18] sm:$0xff]
  %v2833 = vld [vmem:[%s2828 + $0x20] sm:$0xff]
  %v2834 = vld [vmem:[%s2828 + $0x28] sm:$0xff]
  %v2835 = vld [vmem:[%s2828 + $0x30] sm:$0xff]
  %v2836 = vld [vmem:[%s2828 + $0x38] sm:$0xff]
  %v2837 = vld [vmem:[%s2828 + $0x40] sm:$0xff]
  %v2838 = vld [vmem:[%s2828 + $0x48] sm:$0xff]
  %v2839 = vld [vmem:[%s2828 + $0x50] sm:$0xff]
  %v2840 = vld [vmem:[%s2828 + $0x58] sm:$0xff]
  %v2841 = vld [vmem:[%s2828 + $0x60] sm:$0xff]
  %v2842 = vld [vmem:[%s2828 + $0x68] sm:$0xff]
  %v2843 = vld [vmem:[%s2828 + $0x70] sm:$0xff]
  %v2844 = vld [vmem:[%s2828 + $0x78] sm:$0xff]
  %v2861 = vunpack.c.l.b16 %v2829
  %v2862 = vunpack.c.h.b16 %v2829
  %v2863 = vunpack.c.l.b16 %v2830
  %v2864 = vunpack.c.h.b16 %v2830
  %v2865 = vunpack.c.l.b16 %v2831
  %v2866 = vunpack.c.h.b16 %v2831
  %v2867 = vunpack.c.l.b16 %v2832
  %v2868 = vunpack.c.h.b16 %v2832
  %v2869 = vunpack.c.l.b16 %v2833
  %v2870 = vunpack.c.h.b16 %v2833
  %v2871 = vunpack.c.l.b16 %v2834
  %v2872 = vunpack.c.h.b16 %v2834
  %v2873 = vunpack.c.l.b16 %v2835
  %v2874 = vunpack.c.h.b16 %v2835
  %v2875 = vunpack.c.l.b16 %v2836
  %v2876 = vunpack.c.h.b16 %v2836
  %v2877 = vunpack.c.l.b16 %v2837
  %v2878 = vunpack.c.h.b16 %v2837
  %v2879 = vunpack.c.l.b16 %v2838
  %v2880 = vunpack.c.h.b16 %v2838
  %v2881 = vunpack.c.l.b16 %v2839
  %v2882 = vunpack.c.h.b16 %v2839
  %v2883 = vunpack.c.l.b16 %v2840
  %v2884 = vunpack.c.h.b16 %v2840
  %v2885 = vunpack.c.l.b16 %v2841
  %v2886 = vunpack.c.h.b16 %v2841
  %v2887 = vunpack.c.l.b16 %v2842
  %v2888 = vunpack.c.h.b16 %v2842
  %v2889 = vunpack.c.l.b16 %v2843
  %v2890 = vunpack.c.h.b16 %v2843
  %v2891 = vunpack.c.l.b16 %v2844
  %v2892 = vunpack.c.h.b16 %v2844
  %v2893 = vpack.c.b16 %v2863, %v2861
  %v2894 = vpack.c.b16 %v2864, %v2862
  %v2895 = vpack.c.b16 %v2867, %v2865
  %v2896 = vpack.c.b16 %v2868, %v2866
  %v2897 = vpack.c.b16 %v2871, %v2869
  %v2898 = vpack.c.b16 %v2872, %v2870
  %v2899 = vpack.c.b16 %v2875, %v2873
  %v2900 = vpack.c.b16 %v2876, %v2874
  %v2901 = vpack.c.b16 %v2879, %v2877
  %v2902 = vpack.c.b16 %v2880, %v2878
  %v2903 = vpack.c.b16 %v2883, %v2881
  %v2904 = vpack.c.b16 %v2884, %v2882
  %v2905 = vpack.c.b16 %v2887, %v2885
  %v2906 = vpack.c.b16 %v2888, %v2886
  %v2907 = vpack.c.b16 %v2891, %v2889
  %v2908 = vpack.c.b16 %v2892, %v2890
  %2925 = vmatprep.subr.bf16.mxu0 %v2894
  %2926 = vmatpush1.bf16.msra.mxu0 %v2893
  %2927 = vmatprep.subr.bf16.mxu0 %v2896
  %2928 = vmatpush1.bf16.msra.mxu0 %v2895
  %2929 = vmatprep.subr.bf16.mxu0 %v2898
  %2930 = vmatpush1.bf16.msra.mxu0 %v2897
  %2931 = vmatprep.subr.bf16.mxu0 %v2900
  %2932 = vmatpush1.bf16.msra.mxu0 %v2899
  %2933 = vmatprep.subr.bf16.mxu0 %v2902
  %2934 = vmatpush1.bf16.msra.mxu0 %v2901
  %2935 = vmatprep.subr.bf16.mxu0 %v2904
  %2936 = vmatpush1.bf16.msra.mxu0 %v2903
  %2937 = vmatprep.subr.bf16.mxu0 %v2906
  %2938 = vmatpush1.bf16.msra.mxu0 %v2905
  %2939 = vmatprep.subr.bf16.mxu0 %v2908
  %2940 = vmatpush1.bf16.msra.mxu0 %v2907
  %2941 = vmatprep.subr.bf16.mxu0 0
  %2942 = vmatpush1.bf16.msra.mxu0 0
  %2943 = vmatprep.subr.bf16.mxu0 0
  %2944 = vmatpush1.bf16.msra.mxu0 0
  %2945 = vmatprep.subr.bf16.mxu0 0
  %2946 = vmatpush1.bf16.msra.mxu0 0
  %2947 = vmatprep.subr.bf16.mxu0 0
  %2948 = vmatpush1.bf16.msra.mxu0 0
  %2949 = vmatprep.subr.bf16.mxu0 0
  %2950 = vmatpush1.bf16.msra.mxu0 0
  %2951 = vmatprep.subr.bf16.mxu0 0
  %2952 = vmatpush1.bf16.msra.mxu0 0
  %2953 = vmatprep.subr.bf16.mxu0 0
  %2954 = vmatpush1.bf16.msra.mxu0 0
  %2955 = vmatprep.subr.bf16.mxu0 0
  %2956 = vmatpush1.bf16.msra.mxu0 0
  %2957 = vmatprep.mubr.bf16.mxu0 0
  %2958 = vmatmul.mubr.bf16.gmra.mrb[0].mxu0 %v2823
  %v2959 = vpop.f32.mrb[0].mxu0
  %v2960 = vadd.f32 0.0, %v2959
  %v2961 = vpop.f32.mrb[0].mxu0
  %v2962 = vadd.f32 0.0, %v2961
  %v2963 = vpop.f32.mrb[0].mxu0
  %v2964 = vadd.f32 0.0, %v2963
  %v2965 = vpop.f32.mrb[0].mxu0
  %v2966 = vadd.f32 0.0, %v2965
  %2967 = vmatprep.mubr.bf16.mxu0 0
  %2968 = vmatmul.mubr.bf16.gmra.mrb[0].mxu0 %v2824
  %v2969 = vpop.f32.mrb[0].mxu0
  %v2970 = vadd.f32 0.0, %v2969
  %v2971 = vpop.f32.mrb[0].mxu0
  %v2972 = vadd.f32 0.0, %v2971
  %v2973 = vpop.f32.mrb[0].mxu0
  %v2974 = vadd.f32 0.0, %v2973
  %v2975 = vpop.f32.mrb[0].mxu0
  %v2976 = vadd.f32 0.0, %v2975
  %2977 = vmatprep.mubr.bf16.mxu0 0
  %2978 = vmatmul.mubr.bf16.gmra.mrb[0].mxu0 %v2825
  %v2979 = vpop.f32.mrb[0].mxu0
  %v2980 = vadd.f32 0.0, %v2979
  %v2981 = vpop.f32.mrb[0].mxu0
  %v2982 = vadd.f32 0.0, %v2981
  %v2983 = vpop.f32.mrb[0].mxu0
  %v2984 = vadd.f32 0.0, %v2983
  %v2985 = vpop.f32.mrb[0].mxu0
  %v2986 = vadd.f32 0.0, %v2985
  %2987 = vmatprep.mubr.bf16.mxu0 0
  %2988 = vmatmul.mubr.bf16.gmra.mrb[0].mxu0 %v2826
  %v2989 = vpop.f32.mrb[0].mxu0
  %v2990 = vadd.f32 0.0, %v2989
  %v2991 = vpop.f32.mrb[0].mxu0
  %v2992 = vadd.f32 0.0, %v2991
  %v2993 = vpop.f32.mrb[0].mxu0
  %v2994 = vadd.f32 0.0, %v2993
  %v2995 = vpop.f32.mrb[0].mxu0
  %v2996 = vadd.f32 0.0, %v2995
  %2997 = vmatprep.mubr.bf16.mxu0 0
  %2998 = vmatmul.mubr.bf16.gmra.mrb[0].mxu0 %v2827
  %v2999 = vpop.f32.mrb[0].mxu0
  %v3000 = vadd.f32 0.0, %v2999
  %v3001 = vpop.f32.mrb[0].mxu0
  %v3002 = vadd.f32 0.0, %v3001
  %v3003 = vpop.f32.mrb[0].mxu0
  %v3004 = vadd.f32 0.0, %v3003
  %v3005 = vpop.f32.mrb[0].mxu0
  %v3006 = vadd.f32 0.0, %v3005
  %3007 = vdwg.mxu0
  %v3008 = vadd.f32 %v2793, %v2960
  %v3009 = vadd.f32 %v2794, %v2962
  %v3010 = vadd.f32 %v2795, %v2964
  %v3011 = vadd.f32 %v2796, %v2966
  %v3012 = vadd.f32 %v2797, %v2970
  %v3013 = vadd.f32 %v2798, %v2972
  %v3014 = vadd.f32 %v2799, %v2974
  %v3015 = vadd.f32 %v2800, %v2976
  %v3016 = vadd.f32 %v2801, %v2980
  %v3017 = vadd.f32 %v2802, %v2982
  %v3018 = vadd.f32 %v2803, %v2984
  %v3019 = vadd.f32 %v2804, %v2986
  %v3020 = vadd.f32 %v2805, %v2990
  %v3021 = vadd.f32 %v2806, %v2992
  %v3022 = vadd.f32 %v2807, %v2994
  %v3023 = vadd.f32 %v2808, %v2996
  %v3024 = vadd.f32 %v2809, %v3000
  %v3025 = vadd.f32 %v2810, %v3002
  %v3026 = vadd.f32 %v2811, %v3004
  %v3027 = vadd.f32 %v2812, %v3006
  %3028 = vst [vmem:[#allocation4] sm:$0xff] %v3008
  %3029 = vst [vmem:[#allocation4 + $0x8] sm:$0xff] %v3009
  %3030 = vst [vmem:[#allocation4 + $0x10] sm:$0xff] %v3010
  %3031 = vst [vmem:[#allocation4 + $0x18] sm:$0xff] %v3011
  %3032 = vst [vmem:[#allocation4 + $0x20] sm:$0xff] %v3012
  %3033 = vst [vmem:[#allocation4 + $0x28] sm:$0xff] %v3013
  %3034 = vst [vmem:[#allocation4 + $0x30] sm:$0xff] %v3014
  %3035 = vst [vmem:[#allocation4 + $0x38] sm:$0xff] %v3015
  %3036 = vst [vmem:[#allocation4 + $0x40] sm:$0xff] %v3016
  %3037 = vst [vmem:[#allocation4 + $0x48] sm:$0xff] %v3017
  %3038 = vst [vmem:[#allocation4 + $0x50] sm:$0xff] %v3018
  %3039 = vst [vmem:[#allocation4 + $0x58] sm:$0xff] %v3019
  %3040 = vst [vmem:[#allocation4 + $0x60] sm:$0xff] %v3020
  %3041 = vst [vmem:[#allocation4 + $0x68] sm:$0xff] %v3021
  %3042 = vst [vmem:[#allocation4 + $0x70] sm:$0xff] %v3022
  %3043 = vst [vmem:[#allocation4 + $0x78] sm:$0xff] %v3023
  %3044 = vst [vmem:[#allocation4 + $0x80] sm:$0xff] %v3024
  %3045 = vst [vmem:[#allocation4 + $0x88] sm:$0xff] %v3025
  %3046 = vst [vmem:[#allocation4 + $0x90] sm:$0xff] %v3026
  %3047 = vst [vmem:[#allocation4 + $0x98] sm:$0xff] %v3027
  %v3048 = vld [vmem:[#allocation4] sm:$0xff]
  %v3049 = vld [vmem:[#allocation4 + $0x8] sm:$0xff]
  %v3050 = vld [vmem:[#allocation4 + $0x10] sm:$0xff]
  %v3051 = vld [vmem:[#allocation4 + $0x18] sm:$0xff]
  %v3052 = vld [vmem:[#allocation4 + $0x20] sm:$0xff]
  %v3053 = vld [vmem:[#allocation4 + $0x28] sm:$0xff]
  %v3054 = vld [vmem:[#allocation4 + $0x30] sm:$0xff]
  %v3055 = vld [vmem:[#allocation4 + $0x38] sm:$0xff]
  %v3056 = vld [vmem:[#allocation4 + $0x40] sm:$0xff]
  %v3057 = vld [vmem:[#allocation4 + $0x48] sm:$0xff]
  %v3058 = vld [vmem:[#allocation4 + $0x50] sm:$0xff]
  %v3059 = vld [vmem:[#allocation4 + $0x58] sm:$0xff]
  %v3060 = vld [vmem:[#allocation4 + $0x60] sm:$0xff]
  %v3061 = vld [vmem:[#allocation4 + $0x68] sm:$0xff]
  %v3062 = vld [vmem:[#allocation4 + $0x70] sm:$0xff]
  %v3063 = vld [vmem:[#allocation4 + $0x78] sm:$0xff]
  %v3064 = vld [vmem:[#allocation4 + $0x80] sm:$0xff]
  %v3065 = vld [vmem:[#allocation4 + $0x88] sm:$0xff]
  %v3066 = vld [vmem:[#allocation4 + $0x90] sm:$0xff]
  %v3067 = vld [vmem:[#allocation4 + $0x98] sm:$0xff]
  %v3068 = vld [vmem:[#allocation3 + $0x18] sm:$0xff]
  %v3069 = vld [vmem:[#allocation3 + $0x20] sm:$0xff]
  %v3070 = vld [vmem:[#allocation3 + $0x28] sm:$0xff]
  %v3071 = vld [vmem:[#allocation3 + $0x30] sm:$0xff]
  %v3072 = vld [vmem:[#allocation3 + $0x38] sm:$0xff]
  %v3073 = vld [vmem:[#allocation3 + $0x40] sm:$0xff]
  %v3074 = vld [vmem:[#allocation3 + $0x48] sm:$0xff]
  %v3075 = vld [vmem:[#allocation3 + $0x50] sm:$0xff]
  %v3076 = vld [vmem:[#allocation3 + $0x58] sm:$0xff]
  %v3077 = vld [vmem:[#allocation3 + $0x60] sm:$0xff]
  %v3078 = vpack.c.bf16 %v3069, %v3068
  %v3079 = vpack.c.bf16 %v3071, %v3070
  %v3080 = vpack.c.bf16 %v3073, %v3072
  %v3081 = vpack.c.bf16 %v3075, %v3074
  %v3082 = vpack.c.bf16 %v3077, %v3076
  %s3083 = scalar_lea.vmem %s3, 384
  %v3084 = vld [vmem:[%s3083] sm:$0xff]
  %v3085 = vld [vmem:[%s3083 + $0x8] sm:$0xff]
  %v3086 = vld [vmem:[%s3083 + $0x10] sm:$0xff]
  %v3087 = vld [vmem:[%s3083 + $0x18] sm:$0xff]
  %v3088 = vld [vmem:[%s3083 + $0x20] sm:$0xff]
  %v3089 = vld [vmem:[%s3083 + $0x28] sm:$0xff]
  %v3090 = vld [vmem:[%s3083 + $0x30] sm:$0xff]
  %v3091 = vld [vmem:[%s3083 + $0x38] sm:$0xff]
  %v3092 = vld [vmem:[%s3083 + $0x40] sm:$0xff]
  %v3093 = vld [vmem:[%s3083 + $0x48] sm:$0xff]
  %v3094 = vld [vmem:[%s3083 + $0x50] sm:$0xff]
  %v3095 = vld [vmem:[%s3083 + $0x58] sm:$0xff]
  %v3096 = vld [vmem:[%s3083 + $0x60] sm:$0xff]
  %v3097 = vld [vmem:[%s3083 + $0x68] sm:$0xff]
  %v3098 = vld [vmem:[%s3083 + $0x70] sm:$0xff]
  %v3099 = vld [vmem:[%s3083 + $0x78] sm:$0xff]
  %v3116 = vunpack.c.l.b16 %v3084
  %v3117 = vunpack.c.h.b16 %v3084
  %v3118 = vunpack.c.l.b16 %v3085
  %v3119 = vunpack.c.h.b16 %v3085
  %v3120 = vunpack.c.l.b16 %v3086
  %v3121 = vunpack.c.h.b16 %v3086
  %v3122 = vunpack.c.l.b16 %v3087
  %v3123 = vunpack.c.h.b16 %v3087
  %v3124 = vunpack.c.l.b16 %v3088
  %v3125 = vunpack.c.h.b16 %v3088
  %v3126 = vunpack.c.l.b16 %v3089
  %v3127 = vunpack.c.h.b16 %v3089
  %v3128 = vunpack.c.l.b16 %v3090
  %v3129 = vunpack.c.h.b16 %v3090
  %v3130 = vunpack.c.l.b16 %v3091
  %v3131 = vunpack.c.h.b16 %v3091
  %v3132 = vunpack.c.l.b16 %v3092
  %v3133 = vunpack.c.h.b16 %v3092
  %v3134 = vunpack.c.l.b16 %v3093
  %v3135 = vunpack.c.h.b16 %v3093
  %v3136 = vunpack.c.l.b16 %v3094
  %v3137 = vunpack.c.h.b16 %v3094
  %v3138 = vunpack.c.l.b16 %v3095
  %v3139 = vunpack.c.h.b16 %v3095
  %v3140 = vunpack.c.l.b16 %v3096
  %v3141 = vunpack.c.h.b16 %v3096
  %v3142 = vunpack.c.l.b16 %v3097
  %v3143 = vunpack.c.h.b16 %v3097
  %v3144 = vunpack.c.l.b16 %v3098
  %v3145 = vunpack.c.h.b16 %v3098
  %v3146 = vunpack.c.l.b16 %v3099
  %v3147 = vunpack.c.h.b16 %v3099
  %v3148 = vpack.c.b16 %v3118, %v3116
  %v3149 = vpack.c.b16 %v3119, %v3117
  %v3150 = vpack.c.b16 %v3122, %v3120
  %v3151 = vpack.c.b16 %v3123, %v3121
  %v3152 = vpack.c.b16 %v3126, %v3124
  %v3153 = vpack.c.b16 %v3127, %v3125
  %v3154 = vpack.c.b16 %v3130, %v3128
  %v3155 = vpack.c.b16 %v3131, %v3129
  %v3156 = vpack.c.b16 %v3134, %v3132
  %v3157 = vpack.c.b16 %v3135, %v3133
  %v3158 = vpack.c.b16 %v3138, %v3136
  %v3159 = vpack.c.b16 %v3139, %v3137
  %v3160 = vpack.c.b16 %v3142, %v3140
  %v3161 = vpack.c.b16 %v3143, %v3141
  %v3162 = vpack.c.b16 %v3146, %v3144
  %v3163 = vpack.c.b16 %v3147, %v3145
  %3180 = vmatprep.subr.bf16.mxu0 %v3149
  %3181 = vmatpush1.bf16.msra.mxu0 %v3148
  %3182 = vmatprep.subr.bf16.mxu0 %v3151
  %3183 = vmatpush1.bf16.msra.mxu0 %v3150
  %3184 = vmatprep.subr.bf16.mxu0 %v3153
  %3185 = vmatpush1.bf16.msra.mxu0 %v3152
  %3186 = vmatprep.subr.bf16.mxu0 %v3155
  %3187 = vmatpush1.bf16.msra.mxu0 %v3154
  %3188 = vmatprep.subr.bf16.mxu0 %v3157
  %3189 = vmatpush1.bf16.msra.mxu0 %v3156
  %3190 = vmatprep.subr.bf16.mxu0 %v3159
  %3191 = vmatpush1.bf16.msra.mxu0 %v3158
  %3192 = vmatprep.subr.bf16.mxu0 %v3161
  %3193 = vmatpush1.bf16.msra.mxu0 %v3160
  %3194 = vmatprep.subr.bf16.mxu0 %v3163
  %3195 = vmatpush1.bf16.msra.mxu0 %v3162
  %3196 = vmatprep.subr.bf16.mxu0 0
  %3197 = vmatpush1.bf16.msra.mxu0 0
  %3198 = vmatprep.subr.bf16.mxu0 0
  %3199 = vmatpush1.bf16.msra.mxu0 0
  %3200 = vmatprep.subr.bf16.mxu0 0
  %3201 = vmatpush1.bf16.msra.mxu0 0
  %3202 = vmatprep.subr.bf16.mxu0 0
  %3203 = vmatpush1.bf16.msra.mxu0 0
  %3204 = vmatprep.subr.bf16.mxu0 0
  %3205 = vmatpush1.bf16.msra.mxu0 0
  %3206 = vmatprep.subr.bf16.mxu0 0
  %3207 = vmatpush1.bf16.msra.mxu0 0
  %3208 = vmatprep.subr.bf16.mxu0 0
  %3209 = vmatpush1.bf16.msra.mxu0 0
  %3210 = vmatprep.subr.bf16.mxu0 0
  %3211 = vmatpush1.bf16.msra.mxu0 0
  %3212 = vmatprep.mubr.bf16.mxu0 0
  %3213 = vmatmul.mubr.bf16.gmra.mrb[0].mxu0 %v3078
  %v3214 = vpop.f32.mrb[0].mxu0
  %v3215 = vadd.f32 0.0, %v3214
  %v3216 = vpop.f32.mrb[0].mxu0
  %v3217 = vadd.f32 0.0, %v3216
  %v3218 = vpop.f32.mrb[0].mxu0
  %v3219 = vadd.f32 0.0, %v3218
  %v3220 = vpop.f32.mrb[0].mxu0
  %v3221 = vadd.f32 0.0, %v3220
  %3222 = vmatprep.mubr.bf16.mxu0 0
  %3223 = vmatmul.mubr.bf16.gmra.mrb[0].mxu0 %v3079
  %v3224 = vpop.f32.mrb[0].mxu0
  %v3225 = vadd.f32 0.0, %v3224
  %v3226 = vpop.f32.mrb[0].mxu0
  %v3227 = vadd.f32 0.0, %v3226
  %v3228 = vpop.f32.mrb[0].mxu0
  %v3229 = vadd.f32 0.0, %v3228
  %v3230 = vpop.f32.mrb[0].mxu0
  %v3231 = vadd.f32 0.0, %v3230
  %3232 = vmatprep.mubr.bf16.mxu0 0
  %3233 = vmatmul.mubr.bf16.gmra.mrb[0].mxu0 %v3080
  %v3234 = vpop.f32.mrb[0].mxu0
  %v3235 = vadd.f32 0.0, %v3234
  %v3236 = vpop.f32.mrb[0].mxu0
  %v3237 = vadd.f32 0.0, %v3236
  %v3238 = vpop.f32.mrb[0].mxu0
  %v3239 = vadd.f32 0.0, %v3238
  %v3240 = vpop.f32.mrb[0].mxu0
  %v3241 = vadd.f32 0.0, %v3240
  %3242 = vmatprep.mubr.bf16.mxu0 0
  %3243 = vmatmul.mubr.bf16.gmra.mrb[0].mxu0 %v3081
  %v3244 = vpop.f32.mrb[0].mxu0
  %v3245 = vadd.f32 0.0, %v3244
  %v3246 = vpop.f32.mrb[0].mxu0
  %v3247 = vadd.f32 0.0, %v3246
  %v3248 = vpop.f32.mrb[0].mxu0
  %v3249 = vadd.f32 0.0, %v3248
  %v3250 = vpop.f32.mrb[0].mxu0
  %v3251 = vadd.f32 0.0, %v3250
  %3252 = vmatprep.mubr.bf16.mxu0 0
  %3253 = vmatmul.mubr.bf16.gmra.mrb[0].mxu0 %v3082
  %v3254 = vpop.f32.mrb[0].mxu0
  %v3255 = vadd.f32 0.0, %v3254
  %v3256 = vpop.f32.mrb[0].mxu0
  %v3257 = vadd.f32 0.0, %v3256
  %v3258 = vpop.f32.mrb[0].mxu0
  %v3259 = vadd.f32 0.0, %v3258
  %v3260 = vpop.f32.mrb[0].mxu0
  %v3261 = vadd.f32 0.0, %v3260
  %3262 = vdwg.mxu0
  %v3263 = vadd.f32 %v3048, %v3215
  %v3264 = vadd.f32 %v3049, %v3217
  %v3265 = vadd.f32 %v3050, %v3219
  %v3266 = vadd.f32 %v3051, %v3221
  %v3267 = vadd.f32 %v3052, %v3225
  %v3268 = vadd.f32 %v3053, %v3227
  %v3269 = vadd.f32 %v3054, %v3229
  %v3270 = vadd.f32 %v3055, %v3231
  %v3271 = vadd.f32 %v3056, %v3235
  %v3272 = vadd.f32 %v3057, %v3237
  %v3273 = vadd.f32 %v3058, %v3239
  %v3274 = vadd.f32 %v3059, %v3241
  %v3275 = vadd.f32 %v3060, %v3245
  %v3276 = vadd.f32 %v3061, %v3247
  %v3277 = vadd.f32 %v3062, %v3249
  %v3278 = vadd.f32 %v3063, %v3251
  %v3279 = vadd.f32 %v3064, %v3255
  %v3280 = vadd.f32 %v3065, %v3257
  %v3281 = vadd.f32 %v3066, %v3259
  %v3282 = vadd.f32 %v3067, %v3261
  %3283 = vst [vmem:[#allocation4] sm:$0xff] %v3263
  %3284 = vst [vmem:[#allocation4 + $0x8] sm:$0xff] %v3264
  %3285 = vst [vmem:[#allocation4 + $0x10] sm:$0xff] %v3265
  %3286 = vst [vmem:[#allocation4 + $0x18] sm:$0xff] %v3266
  %3287 = vst [vmem:[#allocation4 + $0x20] sm:$0xff] %v3267
  %3288 = vst [vmem:[#allocation4 + $0x28] sm:$0xff] %v3268
  %3289 = vst [vmem:[#allocation4 + $0x30] sm:$0xff] %v3269
  %3290 = vst [vmem:[#allocation4 + $0x38] sm:$0xff] %v3270
  %3291 = vst [vmem:[#allocation4 + $0x40] sm:$0xff] %v3271
  %3292 = vst [vmem:[#allocation4 + $0x48] sm:$0xff] %v3272
  %3293 = vst [vmem:[#allocation4 + $0x50] sm:$0xff] %v3273
  %3294 = vst [vmem:[#allocation4 + $0x58] sm:$0xff] %v3274
  %3295 = vst [vmem:[#allocation4 + $0x60] sm:$0xff] %v3275
  %3296 = vst [vmem:[#allocation4 + $0x68] sm:$0xff] %v3276
  %3297 = vst [vmem:[#allocation4 + $0x70] sm:$0xff] %v3277
  %3298 = vst [vmem:[#allocation4 + $0x78] sm:$0xff] %v3278
  %3299 = vst [vmem:[#allocation4 + $0x80] sm:$0xff] %v3279
  %3300 = vst [vmem:[#allocation4 + $0x88] sm:$0xff] %v3280
  %3301 = vst [vmem:[#allocation4 + $0x90] sm:$0xff] %v3281
  %3302 = vst [vmem:[#allocation4 + $0x98] sm:$0xff] %v3282
  %v3303 = vld [vmem:[#allocation4] sm:$0xff]
  %v3304 = vld [vmem:[#allocation4 + $0x8] sm:$0xff]
  %v3305 = vld [vmem:[#allocation4 + $0x10] sm:$0xff]
  %v3306 = vld [vmem:[#allocation4 + $0x18] sm:$0xff]
  %v3307 = vld [vmem:[#allocation4 + $0x20] sm:$0xff]
  %v3308 = vld [vmem:[#allocation4 + $0x28] sm:$0xff]
  %v3309 = vld [vmem:[#allocation4 + $0x30] sm:$0xff]
  %v3310 = vld [vmem:[#allocation4 + $0x38] sm:$0xff]
  %v3311 = vld [vmem:[#allocation4 + $0x40] sm:$0xff]
  %v3312 = vld [vmem:[#allocation4 + $0x48] sm:$0xff]
  %v3313 = vld [vmem:[#allocation4 + $0x50] sm:$0xff]
  %v3314 = vld [vmem:[#allocation4 + $0x58] sm:$0xff]
  %v3315 = vld [vmem:[#allocation4 + $0x60] sm:$0xff]
  %v3316 = vld [vmem:[#allocation4 + $0x68] sm:$0xff]
  %v3317 = vld [vmem:[#allocation4 + $0x70] sm:$0xff]
  %v3318 = vld [vmem:[#allocation4 + $0x78] sm:$0xff]
  %v3319 = vld [vmem:[#allocation4 + $0x80] sm:$0xff]
  %v3320 = vld [vmem:[#allocation4 + $0x88] sm:$0xff]
  %v3321 = vld [vmem:[#allocation4 + $0x90] sm:$0xff]
  %v3322 = vld [vmem:[#allocation4 + $0x98] sm:$0xff]
  %v3323 = vld [vmem:[#allocation3 + $0x20] sm:$0xff]
  %v3324 = vld [vmem:[#allocation3 + $0x28] sm:$0xff]
  %v3325 = vld [vmem:[#allocation3 + $0x30] sm:$0xff]
  %v3326 = vld [vmem:[#allocation3 + $0x38] sm:$0xff]
  %v3327 = vld [vmem:[#allocation3 + $0x40] sm:$0xff]
  %v3328 = vld [vmem:[#allocation3 + $0x48] sm:$0xff]
  %v3329 = vld [vmem:[#allocation3 + $0x50] sm:$0xff]
  %v3330 = vld [vmem:[#allocation3 + $0x58] sm:$0xff]
  %v3331 = vld [vmem:[#allocation3 + $0x60] sm:$0xff]
  %v3332 = vld [vmem:[#allocation3 + $0x68] sm:$0xff]
  %v3333 = vpack.c.bf16 %v3324, %v3323
  %v3334 = vpack.c.bf16 %v3326, %v3325
  %v3335 = vpack.c.bf16 %v3328, %v3327
  %v3336 = vpack.c.bf16 %v3330, %v3329
  %v3337 = vpack.c.bf16 %v3332, %v3331
  %s3338 = scalar_lea.vmem %s3, 512
  %v3339 = vld [vmem:[%s3338] sm:$0xff]
  %v3340 = vld [vmem:[%s3338 + $0x8] sm:$0xff]
  %v3341 = vld [vmem:[%s3338 + $0x10] sm:$0xff]
  %v3342 = vld [vmem:[%s3338 + $0x18] sm:$0xff]
  %v3343 = vld [vmem:[%s3338 + $0x20] sm:$0xff]
  %v3344 = vld [vmem:[%s3338 + $0x28] sm:$0xff]
  %v3345 = vld [vmem:[%s3338 + $0x30] sm:$0xff]
  %v3346 = vld [vmem:[%s3338 + $0x38] sm:$0xff]
  %v3347 = vld [vmem:[%s3338 + $0x40] sm:$0xff]
  %v3348 = vld [vmem:[%s3338 + $0x48] sm:$0xff]
  %v3349 = vld [vmem:[%s3338 + $0x50] sm:$0xff]
  %v3350 = vld [vmem:[%s3338 + $0x58] sm:$0xff]
  %v3351 = vld [vmem:[%s3338 + $0x60] sm:$0xff]
  %v3352 = vld [vmem:[%s3338 + $0x68] sm:$0xff]
  %v3353 = vld [vmem:[%s3338 + $0x70] sm:$0xff]
  %v3354 = vld [vmem:[%s3338 + $0x78] sm:$0xff]
  %v3371 = vunpack.c.l.b16 %v3339
  %v3372 = vunpack.c.h.b16 %v3339
  %v3373 = vunpack.c.l.b16 %v3340
  %v3374 = vunpack.c.h.b16 %v3340
  %v3375 = vunpack.c.l.b16 %v3341
  %v3376 = vunpack.c.h.b16 %v3341
  %v3377 = vunpack.c.l.b16 %v3342
  %v3378 = vunpack.c.h.b16 %v3342
  %v3379 = vunpack.c.l.b16 %v3343
  %v3380 = vunpack.c.h.b16 %v3343
  %v3381 = vunpack.c.l.b16 %v3344
  %v3382 = vunpack.c.h.b16 %v3344
  %v3383 = vunpack.c.l.b16 %v3345
  %v3384 = vunpack.c.h.b16 %v3345
  %v3385 = vunpack.c.l.b16 %v3346
  %v3386 = vunpack.c.h.b16 %v3346
  %v3387 = vunpack.c.l.b16 %v3347
  %v3388 = vunpack.c.h.b16 %v3347
  %v3389 = vunpack.c.l.b16 %v3348
  %v3390 = vunpack.c.h.b16 %v3348
  %v3391 = vunpack.c.l.b16 %v3349
  %v3392 = vunpack.c.h.b16 %v3349
  %v3393 = vunpack.c.l.b16 %v3350
  %v3394 = vunpack.c.h.b16 %v3350
  %v3395 = vunpack.c.l.b16 %v3351
  %v3396 = vunpack.c.h.b16 %v3351
  %v3397 = vunpack.c.l.b16 %v3352
  %v3398 = vunpack.c.h.b16 %v3352
  %v3399 = vunpack.c.l.b16 %v3353
  %v3400 = vunpack.c.h.b16 %v3353
  %v3401 = vunpack.c.l.b16 %v3354
  %v3402 = vunpack.c.h.b16 %v3354
  %v3403 = vpack.c.b16 %v3373, %v3371
  %v3404 = vpack.c.b16 %v3374, %v3372
  %v3405 = vpack.c.b16 %v3377, %v3375
  %v3406 = vpack.c.b16 %v3378, %v3376
  %v3407 = vpack.c.b16 %v3381, %v3379
  %v3408 = vpack.c.b16 %v3382, %v3380
  %v3409 = vpack.c.b16 %v3385, %v3383
  %v3410 = vpack.c.b16 %v3386, %v3384
  %v3411 = vpack.c.b16 %v3389, %v3387
  %v3412 = vpack.c.b16 %v3390, %v3388
  %v3413 = vpack.c.b16 %v3393, %v3391
  %v3414 = vpack.c.b16 %v3394, %v3392
  %v3415 = vpack.c.b16 %v3397, %v3395
  %v3416 = vpack.c.b16 %v3398, %v3396
  %v3417 = vpack.c.b16 %v3401, %v3399
  %v3418 = vpack.c.b16 %v3402, %v3400
  %3435 = vmatprep.subr.bf16.mxu0 %v3404
  %3436 = vmatpush1.bf16.msra.mxu0 %v3403
  %3437 = vmatprep.subr.bf16.mxu0 %v3406
  %3438 = vmatpush1.bf16.msra.mxu0 %v3405
  %3439 = vmatprep.subr.bf16.mxu0 %v3408
  %3440 = vmatpush1.bf16.msra.mxu0 %v3407
  %3441 = vmatprep.subr.bf16.mxu0 %v3410
  %3442 = vmatpush1.bf16.msra.mxu0 %v3409
  %3443 = vmatprep.subr.bf16.mxu0 %v3412
  %3444 = vmatpush1.bf16.msra.mxu0 %v3411
  %3445 = vmatprep.subr.bf16.mxu0 %v3414
  %3446 = vmatpush1.bf16.msra.mxu0 %v3413
  %3447 = vmatprep.subr.bf16.mxu0 %v3416
  %3448 = vmatpush1.bf16.msra.mxu0 %v3415
  %3449 = vmatprep.subr.bf16.mxu0 %v3418
  %3450 = vmatpush1.bf16.msra.mxu0 %v3417
  %3451 = vmatprep.subr.bf16.mxu0 0
  %3452 = vmatpush1.bf16.msra.mxu0 0
  %3453 = vmatprep.subr.bf16.mxu0 0
  %3454 = vmatpush1.bf16.msra.mxu0 0
  %3455 = vmatprep.subr.bf16.mxu0 0
  %3456 = vmatpush1.bf16.msra.mxu0 0
  %3457 = vmatprep.subr.bf16.mxu0 0
  %3458 = vmatpush1.bf16.msra.mxu0 0
  %3459 = vmatprep.subr.bf16.mxu0 0
  %3460 = vmatpush1.bf16.msra.mxu0 0
  %3461 = vmatprep.subr.bf16.mxu0 0
  %3462 = vmatpush1.bf16.msra.mxu0 0
  %3463 = vmatprep.subr.bf16.mxu0 0
  %3464 = vmatpush1.bf16.msra.mxu0 0
  %3465 = vmatprep.subr.bf16.mxu0 0
  %3466 = vmatpush1.bf16.msra.mxu0 0
  %3467 = vmatprep.mubr.bf16.mxu0 0
  %3468 = vmatmul.mubr.bf16.gmra.mrb[0].mxu0 %v3333
  %v3469 = vpop.f32.mrb[0].mxu0
  %v3470 = vadd.f32 0.0, %v3469
  %v3471 = vpop.f32.mrb[0].mxu0
  %v3472 = vadd.f32 0.0, %v3471
  %v3473 = vpop.f32.mrb[0].mxu0
  %v3474 = vadd.f32 0.0, %v3473
  %v3475 = vpop.f32.mrb[0].mxu0
  %v3476 = vadd.f32 0.0, %v3475
  %3477 = vmatprep.mubr.bf16.mxu0 0
  %3478 = vmatmul.mubr.bf16.gmra.mrb[0].mxu0 %v3334
  %v3479 = vpop.f32.mrb[0].mxu0
  %v3480 = vadd.f32 0.0, %v3479
  %v3481 = vpop.f32.mrb[0].mxu0
  %v3482 = vadd.f32 0.0, %v3481
  %v3483 = vpop.f32.mrb[0].mxu0
  %v3484 = vadd.f32 0.0, %v3483
  %v3485 = vpop.f32.mrb[0].mxu0
  %v3486 = vadd.f32 0.0, %v3485
  %3487 = vmatprep.mubr.bf16.mxu0 0
  %3488 = vmatmul.mubr.bf16.gmra.mrb[0].mxu0 %v3335
  %v3489 = vpop.f32.mrb[0].mxu0
  %v3490 = vadd.f32 0.0, %v3489
  %v3491 = vpop.f32.mrb[0].mxu0
  %v3492 = vadd.f32 0.0, %v3491
  %v3493 = vpop.f32.mrb[0].mxu0
  %v3494 = vadd.f32 0.0, %v3493
  %v3495 = vpop.f32.mrb[0].mxu0
  %v3496 = vadd.f32 0.0, %v3495
  %3497 = vmatprep.mubr.bf16.mxu0 0
  %3498 = vmatmul.mubr.bf16.gmra.mrb[0].mxu0 %v3336
  %v3499 = vpop.f32.mrb[0].mxu0
  %v3500 = vadd.f32 0.0, %v3499
  %v3501 = vpop.f32.mrb[0].mxu0
  %v3502 = vadd.f32 0.0, %v3501
  %v3503 = vpop.f32.mrb[0].mxu0
  %v3504 = vadd.f32 0.0, %v3503
  %v3505 = vpop.f32.mrb[0].mxu0
  %v3506 = vadd.f32 0.0, %v3505
  %3507 = vmatprep.mubr.bf16.mxu0 0
  %3508 = vmatmul.mubr.bf16.gmra.mrb[0].mxu0 %v3337
  %v3509 = vpop.f32.mrb[0].mxu0
  %v3510 = vadd.f32 0.0, %v3509
  %v3511 = vpop.f32.mrb[0].mxu0
  %v3512 = vadd.f32 0.0, %v3511
  %v3513 = vpop.f32.mrb[0].mxu0
  %v3514 = vadd.f32 0.0, %v3513
  %v3515 = vpop.f32.mrb[0].mxu0
  %v3516 = vadd.f32 0.0, %v3515
  %3517 = vdwg.mxu0
  %v3518 = vadd.f32 %v3303, %v3470
  %v3519 = vadd.f32 %v3304, %v3472
  %v3520 = vadd.f32 %v3305, %v3474
  %v3521 = vadd.f32 %v3306, %v3476
  %v3522 = vadd.f32 %v3307, %v3480
  %v3523 = vadd.f32 %v3308, %v3482
  %v3524 = vadd.f32 %v3309, %v3484
  %v3525 = vadd.f32 %v3310, %v3486
  %v3526 = vadd.f32 %v3311, %v3490
  %v3527 = vadd.f32 %v3312, %v3492
  %v3528 = vadd.f32 %v3313, %v3494
  %v3529 = vadd.f32 %v3314, %v3496
  %v3530 = vadd.f32 %v3315, %v3500
  %v3531 = vadd.f32 %v3316, %v3502
  %v3532 = vadd.f32 %v3317, %v3504
  %v3533 = vadd.f32 %v3318, %v3506
  %v3534 = vadd.f32 %v3319, %v3510
  %v3535 = vadd.f32 %v3320, %v3512
  %v3536 = vadd.f32 %v3321, %v3514
  %v3537 = vadd.f32 %v3322, %v3516
  %3538 = vst [vmem:[#allocation4] sm:$0xff] %v3518
  %3539 = vst [vmem:[#allocation4 + $0x8] sm:$0xff] %v3519
  %3540 = vst [vmem:[#allocation4 + $0x10] sm:$0xff] %v3520
  %3541 = vst [vmem:[#allocation4 + $0x18] sm:$0xff] %v3521
  %3542 = vst [vmem:[#allocation4 + $0x20] sm:$0xff] %v3522
  %3543 = vst [vmem:[#allocation4 + $0x28] sm:$0xff] %v3523
  %3544 = vst [vmem:[#allocation4 + $0x30] sm:$0xff] %v3524
  %3545 = vst [vmem:[#allocation4 + $0x38] sm:$0xff] %v3525
  %3546 = vst [vmem:[#allocation4 + $0x40] sm:$0xff] %v3526
  %3547 = vst [vmem:[#allocation4 + $0x48] sm:$0xff] %v3527
  %3548 = vst [vmem:[#allocation4 + $0x50] sm:$0xff] %v3528
  %3549 = vst [vmem:[#allocation4 + $0x58] sm:$0xff] %v3529
  %3550 = vst [vmem:[#allocation4 + $0x60] sm:$0xff] %v3530
  %3551 = vst [vmem:[#allocation4 + $0x68] sm:$0xff] %v3531
  %3552 = vst [vmem:[#allocation4 + $0x70] sm:$0xff] %v3532
  %3553 = vst [vmem:[#allocation4 + $0x78] sm:$0xff] %v3533
  %3554 = vst [vmem:[#allocation4 + $0x80] sm:$0xff] %v3534
  %3555 = vst [vmem:[#allocation4 + $0x88] sm:$0xff] %v3535
  %3556 = vst [vmem:[#allocation4 + $0x90] sm:$0xff] %v3536
  %3557 = vst [vmem:[#allocation4 + $0x98] sm:$0xff] %v3537
  %v3558 = vld [vmem:[%s4] sm:$0x1]
  %v3560 = vlaneseq
  %v3561 = vshrl.u32 %v3560, 7
  %v3562 = vsub.s32 0, %v3561
  %v3563 = vrot.slane %v3558, %v3562
  %v3565 = vld [vmem:[#allocation4] sm:$0xff]
  %v3566 = vld [vmem:[#allocation4 + $0x8] sm:$0xff]
  %v3567 = vld [vmem:[#allocation4 + $0x10] sm:$0xff]
  %v3568 = vld [vmem:[#allocation4 + $0x18] sm:$0xff]
  %v3569 = vmax.f32 %v3565, %v3566
  %v3570 = vmax.f32 %v3567, %v3568
  %v3571 = vmax.f32 %v3569, %v3570
  %v3572 = vadd.f32 %v3571, %v3563
  %v3573 = vmax.f32 %v3572, 0.0
  %v3574 = vpack.c.bf16 %v3573, %v3573
  %v3575 = vld [vmem:[#allocation4 + $0x20] sm:$0xff]
  %v3576 = vld [vmem:[#allocation4 + $0x28] sm:$0xff]
  %v3577 = vld [vmem:[#allocation4 + $0x30] sm:$0xff]
  %v3578 = vld [vmem:[#allocation4 + $0x38] sm:$0xff]
  %v3579 = vmax.f32 %v3575, %v3576
  %v3580 = vmax.f32 %v3577, %v3578
  %v3581 = vmax.f32 %v3579, %v3580
  %v3582 = vadd.f32 %v3581, %v3563
  %v3583 = vmax.f32 %v3582, 0.0
  %v3584 = vpack.c.bf16 %v3583, %v3583
  %v3585 = vld [vmem:[#allocation4 + $0x40] sm:$0xff]
  %v3586 = vld [vmem:[#allocation4 + $0x48] sm:$0xff]
  %v3587 = vld [vmem:[#allocation4 + $0x50] sm:$0xff]
  %v3588 = vld [vmem:[#allocation4 + $0x58] sm:$0xff]
  %v3589 = vmax.f32 %v3585, %v3586
  %v3590 = vmax.f32 %v3587, %v3588
  %v3591 = vmax.f32 %v3589, %v3590
  %v3592 = vadd.f32 %v3591, %v3563
  %v3593 = vmax.f32 %v3592, 0.0
  %v3594 = vpack.c.bf16 %v3593, %v3593
  %v3595 = vld [vmem:[#allocation4 + $0x60] sm:$0xff]
  %v3596 = vld [vmem:[#allocation4 + $0x68] sm:$0xff]
  %v3597 = vld [vmem:[#allocation4 + $0x70] sm:$0xff]
  %v3598 = vld [vmem:[#allocation4 + $0x78] sm:$0xff]
  %v3599 = vmax.f32 %v3595, %v3596
  %v3600 = vmax.f32 %v3597, %v3598
  %v3601 = vmax.f32 %v3599, %v3600
  %v3602 = vadd.f32 %v3601, %v3563
  %v3603 = vmax.f32 %v3602, 0.0
  %v3604 = vpack.c.bf16 %v3603, %v3603
  %v3605 = vld [vmem:[#allocation4 + $0x80] sm:$0xff]
  %v3606 = vld [vmem:[#allocation4 + $0x88] sm:$0xff]
  %v3607 = vld [vmem:[#allocation4 + $0x90] sm:$0xff]
  %v3608 = vld [vmem:[#allocation4 + $0x98] sm:$0xff]
  %v3609 = vmax.f32 %v3605, %v3606
  %v3610 = vmax.f32 %v3607, %v3608
  %v3611 = vmax.f32 %v3609, %v3610
  %v3612 = vadd.f32 %v3611, %v3563
  %v3613 = vmax.f32 %v3612, 0.0
  %v3614 = vpack.c.bf16 %v3613, %v3613
  %v3615 = vld [vmem:[%s5] sm:$0xff]
  %v3616 = vld [vmem:[%s5 + $0x8] sm:$0xff]
  %v3617 = vld [vmem:[%s5 + $0x10] sm:$0xff]
  %v3618 = vld [vmem:[%s5 + $0x18] sm:$0xff]
  %v3619 = vld [vmem:[%s5 + $0x20] sm:$0xff]
  %v3620 = vld [vmem:[%s5 + $0x28] sm:$0xff]
  %v3621 = vld [vmem:[%s5 + $0x30] sm:$0xff]
  %v3622 = vld [vmem:[%s5 + $0x38] sm:$0xff]
  %v3623 = vld [vmem:[%s5 + $0x40] sm:$0xff]
  %v3624 = vld [vmem:[%s5 + $0x48] sm:$0xff]
  %v3625 = vld [vmem:[%s5 + $0x50] sm:$0xff]
  %v3626 = vld [vmem:[%s5 + $0x58] sm:$0xff]
  %v3627 = vld [vmem:[%s5 + $0x60] sm:$0xff]
  %v3628 = vld [vmem:[%s5 + $0x68] sm:$0xff]
  %v3629 = vld [vmem:[%s5 + $0x70] sm:$0xff]
  %v3630 = vld [vmem:[%s5 + $0x78] sm:$0xff]
  %v3631 = vld [vmem:[%s5 + $0x80] sm:$0xff]
  %v3632 = vld [vmem:[%s5 + $0x88] sm:$0xff]
  %v3633 = vld [vmem:[%s5 + $0x90] sm:$0xff]
  %v3634 = vld [vmem:[%s5 + $0x98] sm:$0xff]
  %v3635 = vld [vmem:[%s5 + $0xa0] sm:$0xff]
  %v3636 = vld [vmem:[%s5 + $0xa8] sm:$0xff]
  %v3637 = vld [vmem:[%s5 + $0xb0] sm:$0xff]
  %v3638 = vld [vmem:[%s5 + $0xb8] sm:$0xff]
  %v3639 = vld [vmem:[%s5 + $0xc0] sm:$0xff]
  %v3640 = vld [vmem:[%s5 + $0xc8] sm:$0xff]
  %v3641 = vld [vmem:[%s5 + $0xd0] sm:$0xff]
  %v3642 = vld [vmem:[%s5 + $0xd8] sm:$0xff]
  %v3643 = vld [vmem:[%s5 + $0xe0] sm:$0xff]
  %v3644 = vld [vmem:[%s5 + $0xe8] sm:$0xff]
  %v3645 = vld [vmem:[%s5 + $0xf0] sm:$0xff]
  %v3646 = vld [vmem:[%s5 + $0xf8] sm:$0xff]
  %v3647 = vld [vmem:[%s5 + $0x100] sm:$0xff]
  %v3648 = vld [vmem:[%s5 + $0x108] sm:$0xff]
  %v3649 = vld [vmem:[%s5 + $0x110] sm:$0xff]
  %v3650 = vld [vmem:[%s5 + $0x118] sm:$0xff]
  %v3651 = vld [vmem:[%s5 + $0x120] sm:$0xff]
  %v3652 = vld [vmem:[%s5 + $0x128] sm:$0xff]
  %v3653 = vld [vmem:[%s5 + $0x130] sm:$0xff]
  %v3654 = vld [vmem:[%s5 + $0x138] sm:$0xff]
  %v3655 = vld [vmem:[%s5 + $0x140] sm:$0xff]
  %v3656 = vld [vmem:[%s5 + $0x148] sm:$0xff]
  %v3657 = vld [vmem:[%s5 + $0x150] sm:$0xff]
  %v3658 = vld [vmem:[%s5 + $0x158] sm:$0xff]
  %v3659 = vld [vmem:[%s5 + $0x160] sm:$0xff]
  %v3660 = vld [vmem:[%s5 + $0x168] sm:$0xff]
  %v3661 = vld [vmem:[%s5 + $0x170] sm:$0xff]
  %v3662 = vld [vmem:[%s5 + $0x178] sm:$0xff]
  %v3663 = vld [vmem:[%s5 + $0x180] sm:$0xff]
  %v3664 = vld [vmem:[%s5 + $0x188] sm:$0xff]
  %v3665 = vld [vmem:[%s5 + $0x190] sm:$0xff]
  %v3666 = vld [vmem:[%s5 + $0x198] sm:$0xff]
  %v3667 = vld [vmem:[%s5 + $0x1a0] sm:$0xff]
  %v3668 = vld [vmem:[%s5 + $0x1a8] sm:$0xff]
  %v3669 = vld [vmem:[%s5 + $0x1b0] sm:$0xff]
  %v3670 = vld [vmem:[%s5 + $0x1b8] sm:$0xff]
  %v3671 = vld [vmem:[%s5 + $0x1c0] sm:$0xff]
  %v3672 = vld [vmem:[%s5 + $0x1c8] sm:$0xff]
  %v3673 = vld [vmem:[%s5 + $0x1d0] sm:$0xff]
  %v3674 = vld [vmem:[%s5 + $0x1d8] sm:$0xff]
  %v3675 = vld [vmem:[%s5 + $0x1e0] sm:$0xff]
  %v3676 = vld [vmem:[%s5 + $0x1e8] sm:$0xff]
  %v3677 = vld [vmem:[%s5 + $0x1f0] sm:$0xff]
  %v3678 = vld [vmem:[%s5 + $0x1f8] sm:$0xff]
  %s3679 = scalar_lea.vmem %s5, 512
  %v3680 = vld [vmem:[%s3679] sm:$0xff]
  %v3681 = vld [vmem:[%s3679 + $0x8] sm:$0xff]
  %v3682 = vld [vmem:[%s3679 + $0x10] sm:$0xff]
  %v3683 = vld [vmem:[%s3679 + $0x18] sm:$0xff]
  %v3684 = vld [vmem:[%s3679 + $0x20] sm:$0xff]
  %v3685 = vld [vmem:[%s3679 + $0x28] sm:$0xff]
  %v3686 = vld [vmem:[%s3679 + $0x30] sm:$0xff]
  %v3687 = vld [vmem:[%s3679 + $0x38] sm:$0xff]
  %v3688 = vld [vmem:[%s3679 + $0x40] sm:$0xff]
  %v3689 = vld [vmem:[%s3679 + $0x48] sm:$0xff]
  %v3690 = vld [vmem:[%s3679 + $0x50] sm:$0xff]
  %v3691 = vld [vmem:[%s3679 + $0x58] sm:$0xff]
  %v3692 = vld [vmem:[%s3679 + $0x60] sm:$0xff]
  %v3693 = vld [vmem:[%s3679 + $0x68] sm:$0xff]
  %v3694 = vld [vmem:[%s3679 + $0x70] sm:$0xff]
  %v3695 = vld [vmem:[%s3679 + $0x78] sm:$0xff]
  %v3696 = vld [vmem:[%s3679 + $0x80] sm:$0xff]
  %v3697 = vld [vmem:[%s3679 + $0x88] sm:$0xff]
  %v3698 = vld [vmem:[%s3679 + $0x90] sm:$0xff]
  %v3699 = vld [vmem:[%s3679 + $0x98] sm:$0xff]
  %v3700 = vld [vmem:[%s3679 + $0xa0] sm:$0xff]
  %v3701 = vld [vmem:[%s3679 + $0xa8] sm:$0xff]
  %v3702 = vld [vmem:[%s3679 + $0xb0] sm:$0xff]
  %v3703 = vld [vmem:[%s3679 + $0xb8] sm:$0xff]
  %v3704 = vld [vmem:[%s3679 + $0xc0] sm:$0xff]
  %v3705 = vld [vmem:[%s3679 + $0xc8] sm:$0xff]
  %v3706 = vld [vmem:[%s3679 + $0xd0] sm:$0xff]
  %v3707 = vld [vmem:[%s3679 + $0xd8] sm:$0xff]
  %v3708 = vld [vmem:[%s3679 + $0xe0] sm:$0xff]
  %v3709 = vld [vmem:[%s3679 + $0xe8] sm:$0xff]
  %v3710 = vld [vmem:[%s3679 + $0xf0] sm:$0xff]
  %v3711 = vld [vmem:[%s3679 + $0xf8] sm:$0xff]
  %v3712 = vld [vmem:[%s3679 + $0x100] sm:$0xff]
  %v3713 = vld [vmem:[%s3679 + $0x108] sm:$0xff]
  %v3714 = vld [vmem:[%s3679 + $0x110] sm:$0xff]
  %v3715 = vld [vmem:[%s3679 + $0x118] sm:$0xff]
  %v3716 = vld [vmem:[%s3679 + $0x120] sm:$0xff]
  %v3717 = vld [vmem:[%s3679 + $0x128] sm:$0xff]
  %v3718 = vld [vmem:[%s3679 + $0x130] sm:$0xff]
  %v3719 = vld [vmem:[%s3679 + $0x138] sm:$0xff]
  %v3720 = vld [vmem:[%s3679 + $0x140] sm:$0xff]
  %v3721 = vld [vmem:[%s3679 + $0x148] sm:$0xff]
  %v3722 = vld [vmem:[%s3679 + $0x150] sm:$0xff]
  %v3723 = vld [vmem:[%s3679 + $0x158] sm:$0xff]
  %v3724 = vld [vmem:[%s3679 + $0x160] sm:$0xff]
  %v3725 = vld [vmem:[%s3679 + $0x168] sm:$0xff]
  %v3726 = vld [vmem:[%s3679 + $0x170] sm:$0xff]
  %v3727 = vld [vmem:[%s3679 + $0x178] sm:$0xff]
  %v3728 = vld [vmem:[%s3679 + $0x180] sm:$0xff]
  %v3729 = vld [vmem:[%s3679 + $0x188] sm:$0xff]
  %v3730 = vld [vmem:[%s3679 + $0x190] sm:$0xff]
  %v3731 = vld [vmem:[%s3679 + $0x198] sm:$0xff]
  %v3732 = vld [vmem:[%s3679 + $0x1a0] sm:$0xff]
  %v3733 = vld [vmem:[%s3679 + $0x1a8] sm:$0xff]
  %v3734 = vld [vmem:[%s3679 + $0x1b0] sm:$0xff]
  %v3735 = vld [vmem:[%s3679 + $0x1b8] sm:$0xff]
  %v3736 = vld [vmem:[%s3679 + $0x1c0] sm:$0xff]
  %v3737 = vld [vmem:[%s3679 + $0x1c8] sm:$0xff]
  %v3738 = vld [vmem:[%s3679 + $0x1d0] sm:$0xff]
  %v3739 = vld [vmem:[%s3679 + $0x1d8] sm:$0xff]
  %v3740 = vld [vmem:[%s3679 + $0x1e0] sm:$0xff]
  %v3741 = vld [vmem:[%s3679 + $0x1e8] sm:$0xff]
  %v3742 = vld [vmem:[%s3679 + $0x1f0] sm:$0xff]
  %v3743 = vld [vmem:[%s3679 + $0x1f8] sm:$0xff]
  %v3808 = vunpack.c.l.b16 %v3680
  %v3809 = vunpack.c.h.b16 %v3680
  %v3810 = vunpack.c.l.b16 %v3681
  %v3811 = vunpack.c.h.b16 %v3681
  %v3812 = vunpack.c.l.b16 %v3682
  %v3813 = vunpack.c.h.b16 %v3682
  %v3814 = vunpack.c.l.b16 %v3683
  %v3815 = vunpack.c.h.b16 %v3683
  %v3816 = vunpack.c.l.b16 %v3684
  %v3817 = vunpack.c.h.b16 %v3684
  %v3818 = vunpack.c.l.b16 %v3685
  %v3819 = vunpack.c.h.b16 %v3685
  %v3820 = vunpack.c.l.b16 %v3686
  %v3821 = vunpack.c.h.b16 %v3686
  %v3822 = vunpack.c.l.b16 %v3687
  %v3823 = vunpack.c.h.b16 %v3687
  %v3824 = vunpack.c.l.b16 %v3688
  %v3825 = vunpack.c.h.b16 %v3688
  %v3826 = vunpack.c.l.b16 %v3689
  %v3827 = vunpack.c.h.b16 %v3689
  %v3828 = vunpack.c.l.b16 %v3690
  %v3829 = vunpack.c.h.b16 %v3690
  %v3830 = vunpack.c.l.b16 %v3691
  %v3831 = vunpack.c.h.b16 %v3691
  %v3832 = vunpack.c.l.b16 %v3692
  %v3833 = vunpack.c.h.b16 %v3692
  %v3834 = vunpack.c.l.b16 %v3693
  %v3835 = vunpack.c.h.b16 %v3693
  %v3836 = vunpack.c.l.b16 %v3694
  %v3837 = vunpack.c.h.b16 %v3694
  %v3838 = vunpack.c.l.b16 %v3695
  %v3839 = vunpack.c.h.b16 %v3695
  %v3840 = vunpack.c.l.b16 %v3696
  %v3841 = vunpack.c.h.b16 %v3696
  %v3842 = vunpack.c.l.b16 %v3697
  %v3843 = vunpack.c.h.b16 %v3697
  %v3844 = vunpack.c.l.b16 %v3698
  %v3845 = vunpack.c.h.b16 %v3698
  %v3846 = vunpack.c.l.b16 %v3699
  %v3847 = vunpack.c.h.b16 %v3699
  %v3848 = vunpack.c.l.b16 %v3700
  %v3849 = vunpack.c.h.b16 %v3700
  %v3850 = vunpack.c.l.b16 %v3701
  %v3851 = vunpack.c.h.b16 %v3701
  %v3852 = vunpack.c.l.b16 %v3702
  %v3853 = vunpack.c.h.b16 %v3702
  %v3854 = vunpack.c.l.b16 %v3703
  %v3855 = vunpack.c.h.b16 %v3703
  %v3856 = vunpack.c.l.b16 %v3704
  %v3857 = vunpack.c.h.b16 %v3704
  %v3858 = vunpack.c.l.b16 %v3705
  %v3859 = vunpack.c.h.b16 %v3705
  %v3860 = vunpack.c.l.b16 %v3706
  %v3861 = vunpack.c.h.b16 %v3706
  %v3862 = vunpack.c.l.b16 %v3707
  %v3863 = vunpack.c.h.b16 %v3707
  %v3864 = vunpack.c.l.b16 %v3708
  %v3865 = vunpack.c.h.b16 %v3708
  %v3866 = vunpack.c.l.b16 %v3709
  %v3867 = vunpack.c.h.b16 %v3709
  %v3868 = vunpack.c.l.b16 %v3710
  %v3869 = vunpack.c.h.b16 %v3710
  %v3870 = vunpack.c.l.b16 %v3711
  %v3871 = vunpack.c.h.b16 %v3711
  %v3872 = vunpack.c.l.b16 %v3712
  %v3873 = vunpack.c.h.b16 %v3712
  %v3874 = vunpack.c.l.b16 %v3713
  %v3875 = vunpack.c.h.b16 %v3713
  %v3876 = vunpack.c.l.b16 %v3714
  %v3877 = vunpack.c.h.b16 %v3714
  %v3878 = vunpack.c.l.b16 %v3715
  %v3879 = vunpack.c.h.b16 %v3715
  %v3880 = vunpack.c.l.b16 %v3716
  %v3881 = vunpack.c.h.b16 %v3716
  %v3882 = vunpack.c.l.b16 %v3717
  %v3883 = vunpack.c.h.b16 %v3717
  %v3884 = vunpack.c.l.b16 %v3718
  %v3885 = vunpack.c.h.b16 %v3718
  %v3886 = vunpack.c.l.b16 %v3719
  %v3887 = vunpack.c.h.b16 %v3719
  %v3888 = vunpack.c.l.b16 %v3720
  %v3889 = vunpack.c.h.b16 %v3720
  %v3890 = vunpack.c.l.b16 %v3721
  %v3891 = vunpack.c.h.b16 %v3721
  %v3892 = vunpack.c.l.b16 %v3722
  %v3893 = vunpack.c.h.b16 %v3722
  %v3894 = vunpack.c.l.b16 %v3723
  %v3895 = vunpack.c.h.b16 %v3723
  %v3896 = vunpack.c.l.b16 %v3724
  %v3897 = vunpack.c.h.b16 %v3724
  %v3898 = vunpack.c.l.b16 %v3725
  %v3899 = vunpack.c.h.b16 %v3725
  %v3900 = vunpack.c.l.b16 %v3726
  %v3901 = vunpack.c.h.b16 %v3726
  %v3902 = vunpack.c.l.b16 %v3727
  %v3903 = vunpack.c.h.b16 %v3727
  %v3904 = vunpack.c.l.b16 %v3728
  %v3905 = vunpack.c.h.b16 %v3728
  %v3906 = vunpack.c.l.b16 %v3729
  %v3907 = vunpack.c.h.b16 %v3729
  %v3908 = vunpack.c.l.b16 %v3730
  %v3909 = vunpack.c.h.b16 %v3730
  %v3910 = vunpack.c.l.b16 %v3731
  %v3911 = vunpack.c.h.b16 %v3731
  %v3912 = vunpack.c.l.b16 %v3732
  %v3913 = vunpack.c.h.b16 %v3732
  %v3914 = vunpack.c.l.b16 %v3733
  %v3915 = vunpack.c.h.b16 %v3733
  %v3916 = vunpack.c.l.b16 %v3734
  %v3917 = vunpack.c.h.b16 %v3734
  %v3918 = vunpack.c.l.b16 %v3735
  %v3919 = vunpack.c.h.b16 %v3735
  %v3920 = vunpack.c.l.b16 %v3736
  %v3921 = vunpack.c.h.b16 %v3736
  %v3922 = vunpack.c.l.b16 %v3737
  %v3923 = vunpack.c.h.b16 %v3737
  %v3924 = vunpack.c.l.b16 %v3738
  %v3925 = vunpack.c.h.b16 %v3738
  %v3926 = vunpack.c.l.b16 %v3739
  %v3927 = vunpack.c.h.b16 %v3739
  %v3928 = vunpack.c.l.b16 %v3740
  %v3929 = vunpack.c.h.b16 %v3740
  %v3930 = vunpack.c.l.b16 %v3741
  %v3931 = vunpack.c.h.b16 %v3741
  %v3932 = vunpack.c.l.b16 %v3742
  %v3933 = vunpack.c.h.b16 %v3742
  %v3934 = vunpack.c.l.b16 %v3743
  %v3935 = vunpack.c.h.b16 %v3743
  %v3936 = vpack.c.b16 %v3816, %v3808
  %v3937 = vpack.c.b16 %v3817, %v3809
  %v3938 = vpack.c.b16 %v3818, %v3810
  %v3939 = vpack.c.b16 %v3819, %v3811
  %v3940 = vpack.c.b16 %v3820, %v3812
  %v3941 = vpack.c.b16 %v3821, %v3813
  %v3942 = vpack.c.b16 %v3822, %v3814
  %v3943 = vpack.c.b16 %v3823, %v3815
  %v3944 = vpack.c.b16 %v3832, %v3824
  %v3945 = vpack.c.b16 %v3833, %v3825
  %v3946 = vpack.c.b16 %v3834, %v3826
  %v3947 = vpack.c.b16 %v3835, %v3827
  %v3948 = vpack.c.b16 %v3836, %v3828
  %v3949 = vpack.c.b16 %v3837, %v3829
  %v3950 = vpack.c.b16 %v3838, %v3830
  %v3951 = vpack.c.b16 %v3839, %v3831
  %v3952 = vpack.c.b16 %v3848, %v3840
  %v3953 = vpack.c.b16 %v3849, %v3841
  %v3954 = vpack.c.b16 %v3850, %v3842
  %v3955 = vpack.c.b16 %v3851, %v3843
  %v3956 = vpack.c.b16 %v3852, %v3844
  %v3957 = vpack.c.b16 %v3853, %v3845
  %v3958 = vpack.c.b16 %v3854, %v3846
  %v3959 = vpack.c.b16 %v3855, %v3847
  %v3960 = vpack.c.b16 %v3864, %v3856
  %v3961 = vpack.c.b16 %v3865, %v3857
  %v3962 = vpack.c.b16 %v3866, %v3858
  %v3963 = vpack.c.b16 %v3867, %v3859
  %v3964 = vpack.c.b16 %v3868, %v3860
  %v3965 = vpack.c.b16 %v3869, %v3861
  %v3966 = vpack.c.b16 %v3870, %v3862
  %v3967 = vpack.c.b16 %v3871, %v3863
  %v3968 = vpack.c.b16 %v3880, %v3872
  %v3969 = vpack.c.b16 %v3881, %v3873
  %v3970 = vpack.c.b16 %v3882, %v3874
  %v3971 = vpack.c.b16 %v3883, %v3875
  %v3972 = vpack.c.b16 %v3884, %v3876
  %v3973 = vpack.c.b16 %v3885, %v3877
  %v3974 = vpack.c.b16 %v3886, %v3878
  %v3975 = vpack.c.b16 %v3887, %v3879
  %v3976 = vpack.c.b16 %v3896, %v3888
  %v3977 = vpack.c.b16 %v3897, %v3889
  %v3978 = vpack.c.b16 %v3898, %v3890
  %v3979 = vpack.c.b16 %v3899, %v3891
  %v3980 = vpack.c.b16 %v3900, %v3892
  %v3981 = vpack.c.b16 %v3901, %v3893
  %v3982 = vpack.c.b16 %v3902, %v3894
  %v3983 = vpack.c.b16 %v3903, %v3895
  %v3984 = vpack.c.b16 %v3912, %v3904
  %v3985 = vpack.c.b16 %v3913, %v3905
  %v3986 = vpack.c.b16 %v3914, %v3906
  %v3987 = vpack.c.b16 %v3915, %v3907
  %v3988 = vpack.c.b16 %v3916, %v3908
  %v3989 = vpack.c.b16 %v3917, %v3909
  %v3990 = vpack.c.b16 %v3918, %v3910
  %v3991 = vpack.c.b16 %v3919, %v3911
  %v3992 = vpack.c.b16 %v3928, %v3920
  %v3993 = vpack.c.b16 %v3929, %v3921
  %v3994 = vpack.c.b16 %v3930, %v3922
  %v3995 = vpack.c.b16 %v3931, %v3923
  %v3996 = vpack.c.b16 %v3932, %v3924
  %v3997 = vpack.c.b16 %v3933, %v3925
  %v3998 = vpack.c.b16 %v3934, %v3926
  %v3999 = vpack.c.b16 %v3935, %v3927
  %4064 = vmatprep.subr.bf16.mxu0 %v3937
  %4065 = vmatpush1.bf16.msra.mxu0 %v3936
  %4066 = vmatprep.subr.bf16.mxu0 %v3945
  %4067 = vmatpush1.bf16.msra.mxu0 %v3944
  %4068 = vmatprep.subr.bf16.mxu0 %v3953
  %4069 = vmatpush1.bf16.msra.mxu0 %v3952
  %4070 = vmatprep.subr.bf16.mxu0 %v3961
  %4071 = vmatpush1.bf16.msra.mxu0 %v3960
  %4072 = vmatprep.subr.bf16.mxu0 %v3969
  %4073 = vmatpush1.bf16.msra.mxu0 %v3968
  %4074 = vmatprep.subr.bf16.mxu0 %v3977
  %4075 = vmatpush1.bf16.msra.mxu0 %v3976
  %4076 = vmatprep.subr.bf16.mxu0 %v3985
  %4077 = vmatpush1.bf16.msra.mxu0 %v3984
  %4078 = vmatprep.subr.bf16.mxu0 %v3993
  %4079 = vmatpush1.bf16.msra.mxu0 %v3992
  %4080 = vmatprep.subr.bf16.mxu0 0
  %4081 = vmatpush1.bf16.msra.mxu0 0
  %4082 = vmatprep.subr.bf16.mxu0 0
  %4083 = vmatpush1.bf16.msra.mxu0 0
  %4084 = vmatprep.subr.bf16.mxu0 0
  %4085 = vmatpush1.bf16.msra.mxu0 0
  %4086 = vmatprep.subr.bf16.mxu0 0
  %4087 = vmatpush1.bf16.msra.mxu0 0
  %4088 = vmatprep.subr.bf16.mxu0 0
  %4089 = vmatpush1.bf16.msra.mxu0 0
  %4090 = vmatprep.subr.bf16.mxu0 0
  %4091 = vmatpush1.bf16.msra.mxu0 0
  %4092 = vmatprep.subr.bf16.mxu0 0
  %4093 = vmatpush1.bf16.msra.mxu0 0
  %4094 = vmatprep.subr.bf16.mxu0 0
  %4095 = vmatpush1.bf16.msra.mxu0 0
  %4096 = vmatprep.mubr.bf16.mxu0 0
  %4097 = vmatmul.mubr.bf16.gmra.mrb[0].mxu0 %v3584
  %v4098 = vpop.f32.mrb[0].mxu0
  %v4099 = vadd.f32 0.0, %v4098
  %v4100 = vpop.f32.mrb[0].mxu0
  %v4101 = vadd.f32 0.0, %v4100
  %v4102 = vpop.f32.mrb[0].mxu0
  %v4103 = vpop.f32.mrb[0].mxu0
  %4104 = vdwg.mxu0
  %4105 = vmatprep.subr.bf16.mxu0 %v3939
  %4106 = vmatpush1.bf16.msra.mxu0 %v3938
  %4107 = vmatprep.subr.bf16.mxu0 %v3947
  %4108 = vmatpush1.bf16.msra.mxu0 %v3946
  %4109 = vmatprep.subr.bf16.mxu0 %v3955
  %4110 = vmatpush1.bf16.msra.mxu0 %v3954
  %4111 = vmatprep.subr.bf16.mxu0 %v3963
  %4112 = vmatpush1.bf16.msra.mxu0 %v3962
  %4113 = vmatprep.subr.bf16.mxu0 %v3971
  %4114 = vmatpush1.bf16.msra.mxu0 %v3970
  %4115 = vmatprep.subr.bf16.mxu0 %v3979
  %4116 = vmatpush1.bf16.msra.mxu0 %v3978
  %4117 = vmatprep.subr.bf16.mxu0 %v3987
  %4118 = vmatpush1.bf16.msra.mxu0 %v3986
  %4119 = vmatprep.subr.bf16.mxu0 %v3995
  %4120 = vmatpush1.bf16.msra.mxu0 %v3994
  %4121 = vmatprep.subr.bf16.mxu0 0
  %4122 = vmatpush1.bf16.msra.mxu0 0
  %4123 = vmatprep.subr.bf16.mxu0 0
  %4124 = vmatpush1.bf16.msra.mxu0 0
  %4125 = vmatprep.subr.bf16.mxu0 0
  %4126 = vmatpush1.bf16.msra.mxu0 0
  %4127 = vmatprep.subr.bf16.mxu0 0
  %4128 = vmatpush1.bf16.msra.mxu0 0
  %4129 = vmatprep.subr.bf16.mxu0 0
  %4130 = vmatpush1.bf16.msra.mxu0 0
  %4131 = vmatprep.subr.bf16.mxu0 0
  %4132 = vmatpush1.bf16.msra.mxu0 0
  %4133 = vmatprep.subr.bf16.mxu0 0
  %4134 = vmatpush1.bf16.msra.mxu0 0
  %4135 = vmatprep.subr.bf16.mxu0 0
  %4136 = vmatpush1.bf16.msra.mxu0 0
  %4137 = vmatprep.mubr.bf16.mxu0 0
  %4138 = vmatmul.mubr.bf16.gmra.mrb[0].mxu0 %v3584
  %v4139 = vpop.f32.mrb[0].mxu0
  %v4140 = vadd.f32 0.0, %v4139
  %v4141 = vpop.f32.mrb[0].mxu0
  %v4142 = vadd.f32 0.0, %v4141
  %v4143 = vpop.f32.mrb[0].mxu0
  %v4144 = vpop.f32.mrb[0].mxu0
  %4145 = vdwg.mxu0
  %4146 = vmatprep.subr.bf16.mxu0 %v3941
  %4147 = vmatpush1.bf16.msra.mxu0 %v3940
  %4148 = vmatprep.subr.bf16.mxu0 %v3949
  %4149 = vmatpush1.bf16.msra.mxu0 %v3948
  %4150 = vmatprep.subr.bf16.mxu0 %v3957
  %4151 = vmatpush1.bf16.msra.mxu0 %v3956
  %4152 = vmatprep.subr.bf16.mxu0 %v3965
  %4153 = vmatpush1.bf16.msra.mxu0 %v3964
  %4154 = vmatprep.subr.bf16.mxu0 %v3973
  %4155 = vmatpush1.bf16.msra.mxu0 %v3972
  %4156 = vmatprep.subr.bf16.mxu0 %v3981
  %4157 = vmatpush1.bf16.msra.mxu0 %v3980
  %4158 = vmatprep.subr.bf16.mxu0 %v3989
  %4159 = vmatpush1.bf16.msra.mxu0 %v3988
  %4160 = vmatprep.subr.bf16.mxu0 %v3997
  %4161 = vmatpush1.bf16.msra.mxu0 %v3996
  %4162 = vmatprep.subr.bf16.mxu0 0
  %4163 = vmatpush1.bf16.msra.mxu0 0
  %4164 = vmatprep.subr.bf16.mxu0 0
  %4165 = vmatpush1.bf16.msra.mxu0 0
  %4166 = vmatprep.subr.bf16.mxu0 0
  %4167 = vmatpush1.bf16.msra.mxu0 0
  %4168 = vmatprep.subr.bf16.mxu0 0
  %4169 = vmatpush1.bf16.msra.mxu0 0
  %4170 = vmatprep.subr.bf16.mxu0 0
  %4171 = vmatpush1.bf16.msra.mxu0 0
  %4172 = vmatprep.subr.bf16.mxu0 0
  %4173 = vmatpush1.bf16.msra.mxu0 0
  %4174 = vmatprep.subr.bf16.mxu0 0
  %4175 = vmatpush1.bf16.msra.mxu0 0
  %4176 = vmatprep.subr.bf16.mxu0 0
  %4177 = vmatpush1.bf16.msra.mxu0 0
  %4178 = vmatprep.mubr.bf16.mxu0 0
  %4179 = vmatmul.mubr.bf16.gmra.mrb[0].mxu0 %v3584
  %v4180 = vpop.f32.mrb[0].mxu0
  %v4181 = vadd.f32 0.0, %v4180
  %v4182 = vpop.f32.mrb[0].mxu0
  %v4183 = vadd.f32 0.0, %v4182
  %v4184 = vpop.f32.mrb[0].mxu0
  %v4185 = vpop.f32.mrb[0].mxu0
  %4186 = vdwg.mxu0
  %4187 = vmatprep.subr.bf16.mxu0 %v3943
  %4188 = vmatpush1.bf16.msra.mxu0 %v3942
  %4189 = vmatprep.subr.bf16.mxu0 %v3951
  %4190 = vmatpush1.bf16.msra.mxu0 %v3950
  %4191 = vmatprep.subr.bf16.mxu0 %v3959
  %4192 = vmatpush1.bf16.msra.mxu0 %v3958
  %4193 = vmatprep.subr.bf16.mxu0 %v3967
  %4194 = vmatpush1.bf16.msra.mxu0 %v3966
  %4195 = vmatprep.subr.bf16.mxu0 %v3975
  %4196 = vmatpush1.bf16.msra.mxu0 %v3974
  %4197 = vmatprep.subr.bf16.mxu0 %v3983
  %4198 = vmatpush1.bf16.msra.mxu0 %v3982
  %4199 = vmatprep.subr.bf16.mxu0 %v3991
  %4200 = vmatpush1.bf16.msra.mxu0 %v3990
  %4201 = vmatprep.subr.bf16.mxu0 %v3999
  %4202 = vmatpush1.bf16.msra.mxu0 %v3998
  %4203 = vmatprep.subr.bf16.mxu0 0
  %4204 = vmatpush1.bf16.msra.mxu0 0
  %4205 = vmatprep.subr.bf16.mxu0 0
  %4206 = vmatpush1.bf16.msra.mxu0 0
  %4207 = vmatprep.subr.bf16.mxu0 0
  %4208 = vmatpush1.bf16.msra.mxu0 0
  %4209 = vmatprep.subr.bf16.mxu0 0
  %4210 = vmatpush1.bf16.msra.mxu0 0
  %4211 = vmatprep.subr.bf16.mxu0 0
  %4212 = vmatpush1.bf16.msra.mxu0 0
  %4213 = vmatprep.subr.bf16.mxu0 0
  %4214 = vmatpush1.bf16.msra.mxu0 0
  %4215 = vmatprep.subr.bf16.mxu0 0
  %4216 = vmatpush1.bf16.msra.mxu0 0
  %4217 = vmatprep.subr.bf16.mxu0 0
  %4218 = vmatpush1.bf16.msra.mxu0 0
  %4219 = vmatprep.mubr.bf16.mxu0 0
  %4220 = vmatmul.mubr.bf16.gmra.mrb[0].mxu0 %v3584
  %v4221 = vpop.f32.mrb[0].mxu0
  %v4222 = vadd.f32 0.0, %v4221
  %v4223 = vpop.f32.mrb[0].mxu0
  %v4224 = vadd.f32 0.0, %v4223
  %v4225 = vpop.f32.mrb[0].mxu0
  %v4226 = vpop.f32.mrb[0].mxu0
  %4227 = vdwg.mxu0
  %v4292 = vunpack.c.l.b16 %v3615
  %v4293 = vunpack.c.h.b16 %v3615
  %v4294 = vunpack.c.l.b16 %v3616
  %v4295 = vunpack.c.h.b16 %v3616
  %v4296 = vunpack.c.l.b16 %v3617
  %v4297 = vunpack.c.h.b16 %v3617
  %v4298 = vunpack.c.l.b16 %v3618
  %v4299 = vunpack.c.h.b16 %v3618
  %v4300 = vunpack.c.l.b16 %v3619
  %v4301 = vunpack.c.h.b16 %v3619
  %v4302 = vunpack.c.l.b16 %v3620
  %v4303 = vunpack.c.h.b16 %v3620
  %v4304 = vunpack.c.l.b16 %v3621
  %v4305 = vunpack.c.h.b16 %v3621
  %v4306 = vunpack.c.l.b16 %v3622
  %v4307 = vunpack.c.h.b16 %v3622
  %v4308 = vunpack.c.l.b16 %v3623
  %v4309 = vunpack.c.h.b16 %v3623
  %v4310 = vunpack.c.l.b16 %v3624
  %v4311 = vunpack.c.h.b16 %v3624
  %v4312 = vunpack.c.l.b16 %v3625
  %v4313 = vunpack.c.h.b16 %v3625
  %v4314 = vunpack.c.l.b16 %v3626
  %v4315 = vunpack.c.h.b16 %v3626
  %v4316 = vunpack.c.l.b16 %v3627
  %v4317 = vunpack.c.h.b16 %v3627
  %v4318 = vunpack.c.l.b16 %v3628
  %v4319 = vunpack.c.h.b16 %v3628
  %v4320 = vunpack.c.l.b16 %v3629
  %v4321 = vunpack.c.h.b16 %v3629
  %v4322 = vunpack.c.l.b16 %v3630
  %v4323 = vunpack.c.h.b16 %v3630
  %v4324 = vunpack.c.l.b16 %v3631
  %v4325 = vunpack.c.h.b16 %v3631
  %v4326 = vunpack.c.l.b16 %v3632
  %v4327 = vunpack.c.h.b16 %v3632
  %v4328 = vunpack.c.l.b16 %v3633
  %v4329 = vunpack.c.h.b16 %v3633
  %v4330 = vunpack.c.l.b16 %v3634
  %v4331 = vunpack.c.h.b16 %v3634
  %v4332 = vunpack.c.l.b16 %v3635
  %v4333 = vunpack.c.h.b16 %v3635
  %v4334 = vunpack.c.l.b16 %v3636
  %v4335 = vunpack.c.h.b16 %v3636
  %v4336 = vunpack.c.l.b16 %v3637
  %v4337 = vunpack.c.h.b16 %v3637
  %v4338 = vunpack.c.l.b16 %v3638
  %v4339 = vunpack.c.h.b16 %v3638
  %v4340 = vunpack.c.l.b16 %v3639
  %v4341 = vunpack.c.h.b16 %v3639
  %v4342 = vunpack.c.l.b16 %v3640
  %v4343 = vunpack.c.h.b16 %v3640
  %v4344 = vunpack.c.l.b16 %v3641
  %v4345 = vunpack.c.h.b16 %v3641
  %v4346 = vunpack.c.l.b16 %v3642
  %v4347 = vunpack.c.h.b16 %v3642
  %v4348 = vunpack.c.l.b16 %v3643
  %v4349 = vunpack.c.h.b16 %v3643
  %v4350 = vunpack.c.l.b16 %v3644
  %v4351 = vunpack.c.h.b16 %v3644
  %v4352 = vunpack.c.l.b16 %v3645
  %v4353 = vunpack.c.h.b16 %v3645
  %v4354 = vunpack.c.l.b16 %v3646
  %v4355 = vunpack.c.h.b16 %v3646
  %v4356 = vunpack.c.l.b16 %v3647
  %v4357 = vunpack.c.h.b16 %v3647
  %v4358 = vunpack.c.l.b16 %v3648
  %v4359 = vunpack.c.h.b16 %v3648
  %v4360 = vunpack.c.l.b16 %v3649
  %v4361 = vunpack.c.h.b16 %v3649
  %v4362 = vunpack.c.l.b16 %v3650
  %v4363 = vunpack.c.h.b16 %v3650
  %v4364 = vunpack.c.l.b16 %v3651
  %v4365 = vunpack.c.h.b16 %v3651
  %v4366 = vunpack.c.l.b16 %v3652
  %v4367 = vunpack.c.h.b16 %v3652
  %v4368 = vunpack.c.l.b16 %v3653
  %v4369 = vunpack.c.h.b16 %v3653
  %v4370 = vunpack.c.l.b16 %v3654
  %v4371 = vunpack.c.h.b16 %v3654
  %v4372 = vunpack.c.l.b16 %v3655
  %v4373 = vunpack.c.h.b16 %v3655
  %v4374 = vunpack.c.l.b16 %v3656
  %v4375 = vunpack.c.h.b16 %v3656
  %v4376 = vunpack.c.l.b16 %v3657
  %v4377 = vunpack.c.h.b16 %v3657
  %v4378 = vunpack.c.l.b16 %v3658
  %v4379 = vunpack.c.h.b16 %v3658
  %v4380 = vunpack.c.l.b16 %v3659
  %v4381 = vunpack.c.h.b16 %v3659
  %v4382 = vunpack.c.l.b16 %v3660
  %v4383 = vunpack.c.h.b16 %v3660
  %v4384 = vunpack.c.l.b16 %v3661
  %v4385 = vunpack.c.h.b16 %v3661
  %v4386 = vunpack.c.l.b16 %v3662
  %v4387 = vunpack.c.h.b16 %v3662
  %v4388 = vunpack.c.l.b16 %v3663
  %v4389 = vunpack.c.h.b16 %v3663
  %v4390 = vunpack.c.l.b16 %v3664
  %v4391 = vunpack.c.h.b16 %v3664
  %v4392 = vunpack.c.l.b16 %v3665
  %v4393 = vunpack.c.h.b16 %v3665
  %v4394 = vunpack.c.l.b16 %v3666
  %v4395 = vunpack.c.h.b16 %v3666
  %v4396 = vunpack.c.l.b16 %v3667
  %v4397 = vunpack.c.h.b16 %v3667
  %v4398 = vunpack.c.l.b16 %v3668
  %v4399 = vunpack.c.h.b16 %v3668
  %v4400 = vunpack.c.l.b16 %v3669
  %v4401 = vunpack.c.h.b16 %v3669
  %v4402 = vunpack.c.l.b16 %v3670
  %v4403 = vunpack.c.h.b16 %v3670
  %v4404 = vunpack.c.l.b16 %v3671
  %v4405 = vunpack.c.h.b16 %v3671
  %v4406 = vunpack.c.l.b16 %v3672
  %v4407 = vunpack.c.h.b16 %v3672
  %v4408 = vunpack.c.l.b16 %v3673
  %v4409 = vunpack.c.h.b16 %v3673
  %v4410 = vunpack.c.l.b16 %v3674
  %v4411 = vunpack.c.h.b16 %v3674
  %v4412 = vunpack.c.l.b16 %v3675
  %v4413 = vunpack.c.h.b16 %v3675
  %v4414 = vunpack.c.l.b16 %v3676
  %v4415 = vunpack.c.h.b16 %v3676
  %v4416 = vunpack.c.l.b16 %v3677
  %v4417 = vunpack.c.h.b16 %v3677
  %v4418 = vunpack.c.l.b16 %v3678
  %v4419 = vunpack.c.h.b16 %v3678
  %v4420 = vpack.c.b16 %v4300, %v4292
  %v4421 = vpack.c.b16 %v4301, %v4293
  %v4422 = vpack.c.b16 %v4302, %v4294
  %v4423 = vpack.c.b16 %v4303, %v4295
  %v4424 = vpack.c.b16 %v4304, %v4296
  %v4425 = vpack.c.b16 %v4305, %v4297
  %v4426 = vpack.c.b16 %v4306, %v4298
  %v4427 = vpack.c.b16 %v4307, %v4299
  %v4428 = vpack.c.b16 %v4316, %v4308
  %v4429 = vpack.c.b16 %v4317, %v4309
  %v4430 = vpack.c.b16 %v4318, %v4310
  %v4431 = vpack.c.b16 %v4319, %v4311
  %v4432 = vpack.c.b16 %v4320, %v4312
  %v4433 = vpack.c.b16 %v4321, %v4313
  %v4434 = vpack.c.b16 %v4322, %v4314
  %v4435 = vpack.c.b16 %v4323, %v4315
  %v4436 = vpack.c.b16 %v4332, %v4324
  %v4437 = vpack.c.b16 %v4333, %v4325
  %v4438 = vpack.c.b16 %v4334, %v4326
  %v4439 = vpack.c.b16 %v4335, %v4327
  %v4440 = vpack.c.b16 %v4336, %v4328
  %v4441 = vpack.c.b16 %v4337, %v4329
  %v4442 = vpack.c.b16 %v4338, %v4330
  %v4443 = vpack.c.b16 %v4339, %v4331
  %v4444 = vpack.c.b16 %v4348, %v4340
  %v4445 = vpack.c.b16 %v4349, %v4341
  %v4446 = vpack.c.b16 %v4350, %v4342
  %v4447 = vpack.c.b16 %v4351, %v4343
  %v4448 = vpack.c.b16 %v4352, %v4344
  %v4449 = vpack.c.b16 %v4353, %v4345
  %v4450 = vpack.c.b16 %v4354, %v4346
  %v4451 = vpack.c.b16 %v4355, %v4347
  %v4452 = vpack.c.b16 %v4364, %v4356
  %v4453 = vpack.c.b16 %v4365, %v4357
  %v4454 = vpack.c.b16 %v4366, %v4358
  %v4455 = vpack.c.b16 %v4367, %v4359
  %v4456 = vpack.c.b16 %v4368, %v4360
  %v4457 = vpack.c.b16 %v4369, %v4361
  %v4458 = vpack.c.b16 %v4370, %v4362
  %v4459 = vpack.c.b16 %v4371, %v4363
  %v4460 = vpack.c.b16 %v4380, %v4372
  %v4461 = vpack.c.b16 %v4381, %v4373
  %v4462 = vpack.c.b16 %v4382, %v4374
  %v4463 = vpack.c.b16 %v4383, %v4375
  %v4464 = vpack.c.b16 %v4384, %v4376
  %v4465 = vpack.c.b16 %v4385, %v4377
  %v4466 = vpack.c.b16 %v4386, %v4378
  %v4467 = vpack.c.b16 %v4387, %v4379
  %v4468 = vpack.c.b16 %v4396, %v4388
  %v4469 = vpack.c.b16 %v4397, %v4389
  %v4470 = vpack.c.b16 %v4398, %v4390
  %v4471 = vpack.c.b16 %v4399, %v4391
  %v4472 = vpack.c.b16 %v4400, %v4392
  %v4473 = vpack.c.b16 %v4401, %v4393
  %v4474 = vpack.c.b16 %v4402, %v4394
  %v4475 = vpack.c.b16 %v4403, %v4395
  %v4476 = vpack.c.b16 %v4412, %v4404
  %v4477 = vpack.c.b16 %v4413, %v4405
  %v4478 = vpack.c.b16 %v4414, %v4406
  %v4479 = vpack.c.b16 %v4415, %v4407
  %v4480 = vpack.c.b16 %v4416, %v4408
  %v4481 = vpack.c.b16 %v4417, %v4409
  %v4482 = vpack.c.b16 %v4418, %v4410
  %v4483 = vpack.c.b16 %v4419, %v4411
  %4548 = vmatprep.subr.bf16.mxu0 %v4421
  %4549 = vmatpush1.bf16.msra.mxu0 %v4420
  %4550 = vmatprep.subr.bf16.mxu0 %v4429
  %4551 = vmatpush1.bf16.msra.mxu0 %v4428
  %4552 = vmatprep.subr.bf16.mxu0 %v4437
  %4553 = vmatpush1.bf16.msra.mxu0 %v4436
  %4554 = vmatprep.subr.bf16.mxu0 %v4445
  %4555 = vmatpush1.bf16.msra.mxu0 %v4444
  %4556 = vmatprep.subr.bf16.mxu0 %v4453
  %4557 = vmatpush1.bf16.msra.mxu0 %v4452
  %4558 = vmatprep.subr.bf16.mxu0 %v4461
  %4559 = vmatpush1.bf16.msra.mxu0 %v4460
  %4560 = vmatprep.subr.bf16.mxu0 %v4469
  %4561 = vmatpush1.bf16.msra.mxu0 %v4468
  %4562 = vmatprep.subr.bf16.mxu0 %v4477
  %4563 = vmatpush1.bf16.msra.mxu0 %v4476
  %4564 = vmatprep.subr.bf16.mxu0 0
  %4565 = vmatpush1.bf16.msra.mxu0 0
  %4566 = vmatprep.subr.bf16.mxu0 0
  %4567 = vmatpush1.bf16.msra.mxu0 0
  %4568 = vmatprep.subr.bf16.mxu0 0
  %4569 = vmatpush1.bf16.msra.mxu0 0
  %4570 = vmatprep.subr.bf16.mxu0 0
  %4571 = vmatpush1.bf16.msra.mxu0 0
  %4572 = vmatprep.subr.bf16.mxu0 0
  %4573 = vmatpush1.bf16.msra.mxu0 0
  %4574 = vmatprep.subr.bf16.mxu0 0
  %4575 = vmatpush1.bf16.msra.mxu0 0
  %4576 = vmatprep.subr.bf16.mxu0 0
  %4577 = vmatpush1.bf16.msra.mxu0 0
  %4578 = vmatprep.subr.bf16.mxu0 0
  %4579 = vmatpush1.bf16.msra.mxu0 0
  %4580 = vmatprep.mubr.bf16.mxu0 0
  %4581 = vmatmul.mubr.bf16.gmra.mrb[0].mxu0 %v3574
  %v4582 = vpop.f32.mrb[0].mxu0
  %v4583 = vadd.f32 %v4099, %v4582
  %v4584 = vpop.f32.mrb[0].mxu0
  %v4585 = vadd.f32 %v4101, %v4584
  %v4586 = vpop.f32.mrb[0].mxu0
  %v4587 = vpop.f32.mrb[0].mxu0
  %4588 = vdwg.mxu0
  %4589 = vmatprep.subr.bf16.mxu0 %v4423
  %4590 = vmatpush1.bf16.msra.mxu0 %v4422
  %4591 = vmatprep.subr.bf16.mxu0 %v4431
  %4592 = vmatpush1.bf16.msra.mxu0 %v4430
  %4593 = vmatprep.subr.bf16.mxu0 %v4439
  %4594 = vmatpush1.bf16.msra.mxu0 %v4438
  %4595 = vmatprep.subr.bf16.mxu0 %v4447
  %4596 = vmatpush1.bf16.msra.mxu0 %v4446
  %4597 = vmatprep.subr.bf16.mxu0 %v4455
  %4598 = vmatpush1.bf16.msra.mxu0 %v4454
  %4599 = vmatprep.subr.bf16.mxu0 %v4463
  %4600 = vmatpush1.bf16.msra.mxu0 %v4462
  %4601 = vmatprep.subr.bf16.mxu0 %v4471
  %4602 = vmatpush1.bf16.msra.mxu0 %v4470
  %4603 = vmatprep.subr.bf16.mxu0 %v4479
  %4604 = vmatpush1.bf16.msra.mxu0 %v4478
  %4605 = vmatprep.subr.bf16.mxu0 0
  %4606 = vmatpush1.bf16.msra.mxu0 0
  %4607 = vmatprep.subr.bf16.mxu0 0
  %4608 = vmatpush1.bf16.msra.mxu0 0
  %4609 = vmatprep.subr.bf16.mxu0 0
  %4610 = vmatpush1.bf16.msra.mxu0 0
  %4611 = vmatprep.subr.bf16.mxu0 0
  %4612 = vmatpush1.bf16.msra.mxu0 0
  %4613 = vmatprep.subr.bf16.mxu0 0
  %4614 = vmatpush1.bf16.msra.mxu0 0
  %4615 = vmatprep.subr.bf16.mxu0 0
  %4616 = vmatpush1.bf16.msra.mxu0 0
  %4617 = vmatprep.subr.bf16.mxu0 0
  %4618 = vmatpush1.bf16.msra.mxu0 0
  %4619 = vmatprep.subr.bf16.mxu0 0
  %4620 = vmatpush1.bf16.msra.mxu0 0
  %4621 = vmatprep.mubr.bf16.mxu0 0
  %4622 = vmatmul.mubr.bf16.gmra.mrb[0].mxu0 %v3574
  %v4623 = vpop.f32.mrb[0].mxu0
  %v4624 = vadd.f32 %v4140, %v4623
  %v4625 = vpop.f32.mrb[0].mxu0
  %v4626 = vadd.f32 %v4142, %v4625
  %v4627 = vpop.f32.mrb[0].mxu0
  %v4628 = vpop.f32.mrb[0].mxu0
  %4629 = vdwg.mxu0
  %4630 = vmatprep.subr.bf16.mxu0 %v4425
  %4631 = vmatpush1.bf16.msra.mxu0 %v4424
  %4632 = vmatprep.subr.bf16.mxu0 %v4433
  %4633 = vmatpush1.bf16.msra.mxu0 %v4432
  %4634 = vmatprep.subr.bf16.mxu0 %v4441
  %4635 = vmatpush1.bf16.msra.mxu0 %v4440
  %4636 = vmatprep.subr.bf16.mxu0 %v4449
  %4637 = vmatpush1.bf16.msra.mxu0 %v4448
  %4638 = vmatprep.subr.bf16.mxu0 %v4457
  %4639 = vmatpush1.bf16.msra.mxu0 %v4456
  %4640 = vmatprep.subr.bf16.mxu0 %v4465
  %4641 = vmatpush1.bf16.msra.mxu0 %v4464
  %4642 = vmatprep.subr.bf16.mxu0 %v4473
  %4643 = vmatpush1.bf16.msra.mxu0 %v4472
  %4644 = vmatprep.subr.bf16.mxu0 %v4481
  %4645 = vmatpush1.bf16.msra.mxu0 %v4480
  %4646 = vmatprep.subr.bf16.mxu0 0
  %4647 = vmatpush1.bf16.msra.mxu0 0
  %4648 = vmatprep.subr.bf16.mxu0 0
  %4649 = vmatpush1.bf16.msra.mxu0 0
  %4650 = vmatprep.subr.bf16.mxu0 0
  %4651 = vmatpush1.bf16.msra.mxu0 0
  %4652 = vmatprep.subr.bf16.mxu0 0
  %4653 = vmatpush1.bf16.msra.mxu0 0
  %4654 = vmatprep.subr.bf16.mxu0 0
  %4655 = vmatpush1.bf16.msra.mxu0 0
  %4656 = vmatprep.subr.bf16.mxu0 0
  %4657 = vmatpush1.bf16.msra.mxu0 0
  %4658 = vmatprep.subr.bf16.mxu0 0
  %4659 = vmatpush1.bf16.msra.mxu0 0
  %4660 = vmatprep.subr.bf16.mxu0 0
  %4661 = vmatpush1.bf16.msra.mxu0 0
  %4662 = vmatprep.mubr.bf16.mxu0 0
  %4663 = vmatmul.mubr.bf16.gmra.mrb[0].mxu0 %v3574
  %v4664 = vpop.f32.mrb[0].mxu0
  %v4665 = vadd.f32 %v4181, %v4664
  %v4666 = vpop.f32.mrb[0].mxu0
  %v4667 = vadd.f32 %v4183, %v4666
  %v4668 = vpop.f32.mrb[0].mxu0
  %v4669 = vpop.f32.mrb[0].mxu0
  %4670 = vdwg.mxu0
  %4671 = vmatprep.subr.bf16.mxu0 %v4427
  %4672 = vmatpush1.bf16.msra.mxu0 %v4426
  %4673 = vmatprep.subr.bf16.mxu0 %v4435
  %4674 = vmatpush1.bf16.msra.mxu0 %v4434
  %4675 = vmatprep.subr.bf16.mxu0 %v4443
  %4676 = vmatpush1.bf16.msra.mxu0 %v4442
  %4677 = vmatprep.subr.bf16.mxu0 %v4451
  %4678 = vmatpush1.bf16.msra.mxu0 %v4450
  %4679 = vmatprep.subr.bf16.mxu0 %v4459
  %4680 = vmatpush1.bf16.msra.mxu0 %v4458
  %4681 = vmatprep.subr.bf16.mxu0 %v4467
  %4682 = vmatpush1.bf16.msra.mxu0 %v4466
  %4683 = vmatprep.subr.bf16.mxu0 %v4475
  %4684 = vmatpush1.bf16.msra.mxu0 %v4474
  %4685 = vmatprep.subr.bf16.mxu0 %v4483
  %4686 = vmatpush1.bf16.msra.mxu0 %v4482
  %4687 = vmatprep.subr.bf16.mxu0 0
  %4688 = vmatpush1.bf16.msra.mxu0 0
  %4689 = vmatprep.subr.bf16.mxu0 0
  %4690 = vmatpush1.bf16.msra.mxu0 0
  %4691 = vmatprep.subr.bf16.mxu0 0
  %4692 = vmatpush1.bf16.msra.mxu0 0
  %4693 = vmatprep.subr.bf16.mxu0 0
  %4694 = vmatpush1.bf16.msra.mxu0 0
  %4695 = vmatprep.subr.bf16.mxu0 0
  %4696 = vmatpush1.bf16.msra.mxu0 0
  %4697 = vmatprep.subr.bf16.mxu0 0
  %4698 = vmatpush1.bf16.msra.mxu0 0
  %4699 = vmatprep.subr.bf16.mxu0 0
  %4700 = vmatpush1.bf16.msra.mxu0 0
  %4701 = vmatprep.subr.bf16.mxu0 0
  %4702 = vmatpush1.bf16.msra.mxu0 0
  %4703 = vmatprep.mubr.bf16.mxu0 0
  %4704 = vmatmul.mubr.bf16.gmra.mrb[0].mxu0 %v3574
  %v4705 = vpop.f32.mrb[0].mxu0
  %v4706 = vadd.f32 %v4222, %v4705
  %v4707 = vpop.f32.mrb[0].mxu0
  %v4708 = vadd.f32 %v4224, %v4707
  %v4709 = vpop.f32.mrb[0].mxu0
  %v4710 = vpop.f32.mrb[0].mxu0
  %4711 = vdwg.mxu0
  %s4712 = scalar_lea.vmem %s5, 1024
  %v4713 = vld [vmem:[%s4712] sm:$0xff]
  %v4714 = vld [vmem:[%s4712 + $0x8] sm:$0xff]
  %v4715 = vld [vmem:[%s4712 + $0x10] sm:$0xff]
  %v4716 = vld [vmem:[%s4712 + $0x18] sm:$0xff]
  %v4717 = vld [vmem:[%s4712 + $0x20] sm:$0xff]
  %v4718 = vld [vmem:[%s4712 + $0x28] sm:$0xff]
  %v4719 = vld [vmem:[%s4712 + $0x30] sm:$0xff]
  %v4720 = vld [vmem:[%s4712 + $0x38] sm:$0xff]
  %v4721 = vld [vmem:[%s4712 + $0x40] sm:$0xff]
  %v4722 = vld [vmem:[%s4712 + $0x48] sm:$0xff]
  %v4723 = vld [vmem:[%s4712 + $0x50] sm:$0xff]
  %v4724 = vld [vmem:[%s4712 + $0x58] sm:$0xff]
  %v4725 = vld [vmem:[%s4712 + $0x60] sm:$0xff]
  %v4726 = vld [vmem:[%s4712 + $0x68] sm:$0xff]
  %v4727 = vld [vmem:[%s4712 + $0x70] sm:$0xff]
  %v4728 = vld [vmem:[%s4712 + $0x78] sm:$0xff]
  %v4729 = vld [vmem:[%s4712 + $0x80] sm:$0xff]
  %v4730 = vld [vmem:[%s4712 + $0x88] sm:$0xff]
  %v4731 = vld [vmem:[%s4712 + $0x90] sm:$0xff]
  %v4732 = vld [vmem:[%s4712 + $0x98] sm:$0xff]
  %v4733 = vld [vmem:[%s4712 + $0xa0] sm:$0xff]
  %v4734 = vld [vmem:[%s4712 + $0xa8] sm:$0xff]
  %v4735 = vld [vmem:[%s4712 + $0xb0] sm:$0xff]
  %v4736 = vld [vmem:[%s4712 + $0xb8] sm:$0xff]
  %v4737 = vld [vmem:[%s4712 + $0xc0] sm:$0xff]
  %v4738 = vld [vmem:[%s4712 + $0xc8] sm:$0xff]
  %v4739 = vld [vmem:[%s4712 + $0xd0] sm:$0xff]
  %v4740 = vld [vmem:[%s4712 + $0xd8] sm:$0xff]
  %v4741 = vld [vmem:[%s4712 + $0xe0] sm:$0xff]
  %v4742 = vld [vmem:[%s4712 + $0xe8] sm:$0xff]
  %v4743 = vld [vmem:[%s4712 + $0xf0] sm:$0xff]
  %v4744 = vld [vmem:[%s4712 + $0xf8] sm:$0xff]
  %v4745 = vld [vmem:[%s4712 + $0x100] sm:$0xff]
  %v4746 = vld [vmem:[%s4712 + $0x108] sm:$0xff]
  %v4747 = vld [vmem:[%s4712 + $0x110] sm:$0xff]
  %v4748 = vld [vmem:[%s4712 + $0x118] sm:$0xff]
  %v4749 = vld [vmem:[%s4712 + $0x120] sm:$0xff]
  %v4750 = vld [vmem:[%s4712 + $0x128] sm:$0xff]
  %v4751 = vld [vmem:[%s4712 + $0x130] sm:$0xff]
  %v4752 = vld [vmem:[%s4712 + $0x138] sm:$0xff]
  %v4753 = vld [vmem:[%s4712 + $0x140] sm:$0xff]
  %v4754 = vld [vmem:[%s4712 + $0x148] sm:$0xff]
  %v4755 = vld [vmem:[%s4712 + $0x150] sm:$0xff]
  %v4756 = vld [vmem:[%s4712 + $0x158] sm:$0xff]
  %v4757 = vld [vmem:[%s4712 + $0x160] sm:$0xff]
  %v4758 = vld [vmem:[%s4712 + $0x168] sm:$0xff]
  %v4759 = vld [vmem:[%s4712 + $0x170] sm:$0xff]
  %v4760 = vld [vmem:[%s4712 + $0x178] sm:$0xff]
  %v4761 = vld [vmem:[%s4712 + $0x180] sm:$0xff]
  %v4762 = vld [vmem:[%s4712 + $0x188] sm:$0xff]
  %v4763 = vld [vmem:[%s4712 + $0x190] sm:$0xff]
  %v4764 = vld [vmem:[%s4712 + $0x198] sm:$0xff]
  %v4765 = vld [vmem:[%s4712 + $0x1a0] sm:$0xff]
  %v4766 = vld [vmem:[%s4712 + $0x1a8] sm:$0xff]
  %v4767 = vld [vmem:[%s4712 + $0x1b0] sm:$0xff]
  %v4768 = vld [vmem:[%s4712 + $0x1b8] sm:$0xff]
  %v4769 = vld [vmem:[%s4712 + $0x1c0] sm:$0xff]
  %v4770 = vld [vmem:[%s4712 + $0x1c8] sm:$0xff]
  %v4771 = vld [vmem:[%s4712 + $0x1d0] sm:$0xff]
  %v4772 = vld [vmem:[%s4712 + $0x1d8] sm:$0xff]
  %v4773 = vld [vmem:[%s4712 + $0x1e0] sm:$0xff]
  %v4774 = vld [vmem:[%s4712 + $0x1e8] sm:$0xff]
  %v4775 = vld [vmem:[%s4712 + $0x1f0] sm:$0xff]
  %v4776 = vld [vmem:[%s4712 + $0x1f8] sm:$0xff]
  %v4841 = vunpack.c.l.b16 %v4713
  %v4842 = vunpack.c.h.b16 %v4713
  %v4843 = vunpack.c.l.b16 %v4714
  %v4844 = vunpack.c.h.b16 %v4714
  %v4845 = vunpack.c.l.b16 %v4715
  %v4846 = vunpack.c.h.b16 %v4715
  %v4847 = vunpack.c.l.b16 %v4716
  %v4848 = vunpack.c.h.b16 %v4716
  %v4849 = vunpack.c.l.b16 %v4717
  %v4850 = vunpack.c.h.b16 %v4717
  %v4851 = vunpack.c.l.b16 %v4718
  %v4852 = vunpack.c.h.b16 %v4718
  %v4853 = vunpack.c.l.b16 %v4719
  %v4854 = vunpack.c.h.b16 %v4719
  %v4855 = vunpack.c.l.b16 %v4720
  %v4856 = vunpack.c.h.b16 %v4720
  %v4857 = vunpack.c.l.b16 %v4721
  %v4858 = vunpack.c.h.b16 %v4721
  %v4859 = vunpack.c.l.b16 %v4722
  %v4860 = vunpack.c.h.b16 %v4722
  %v4861 = vunpack.c.l.b16 %v4723
  %v4862 = vunpack.c.h.b16 %v4723
  %v4863 = vunpack.c.l.b16 %v4724
  %v4864 = vunpack.c.h.b16 %v4724
  %v4865 = vunpack.c.l.b16 %v4725
  %v4866 = vunpack.c.h.b16 %v4725
  %v4867 = vunpack.c.l.b16 %v4726
  %v4868 = vunpack.c.h.b16 %v4726
  %v4869 = vunpack.c.l.b16 %v4727
  %v4870 = vunpack.c.h.b16 %v4727
  %v4871 = vunpack.c.l.b16 %v4728
  %v4872 = vunpack.c.h.b16 %v4728
  %v4873 = vunpack.c.l.b16 %v4729
  %v4874 = vunpack.c.h.b16 %v4729
  %v4875 = vunpack.c.l.b16 %v4730
  %v4876 = vunpack.c.h.b16 %v4730
  %v4877 = vunpack.c.l.b16 %v4731
  %v4878 = vunpack.c.h.b16 %v4731
  %v4879 = vunpack.c.l.b16 %v4732
  %v4880 = vunpack.c.h.b16 %v4732
  %v4881 = vunpack.c.l.b16 %v4733
  %v4882 = vunpack.c.h.b16 %v4733
  %v4883 = vunpack.c.l.b16 %v4734
  %v4884 = vunpack.c.h.b16 %v4734
  %v4885 = vunpack.c.l.b16 %v4735
  %v4886 = vunpack.c.h.b16 %v4735
  %v4887 = vunpack.c.l.b16 %v4736
  %v4888 = vunpack.c.h.b16 %v4736
  %v4889 = vunpack.c.l.b16 %v4737
  %v4890 = vunpack.c.h.b16 %v4737
  %v4891 = vunpack.c.l.b16 %v4738
  %v4892 = vunpack.c.h.b16 %v4738
  %v4893 = vunpack.c.l.b16 %v4739
  %v4894 = vunpack.c.h.b16 %v4739
  %v4895 = vunpack.c.l.b16 %v4740
  %v4896 = vunpack.c.h.b16 %v4740
  %v4897 = vunpack.c.l.b16 %v4741
  %v4898 = vunpack.c.h.b16 %v4741
  %v4899 = vunpack.c.l.b16 %v4742
  %v4900 = vunpack.c.h.b16 %v4742
  %v4901 = vunpack.c.l.b16 %v4743
  %v4902 = vunpack.c.h.b16 %v4743
  %v4903 = vunpack.c.l.b16 %v4744
  %v4904 = vunpack.c.h.b16 %v4744
  %v4905 = vunpack.c.l.b16 %v4745
  %v4906 = vunpack.c.h.b16 %v4745
  %v4907 = vunpack.c.l.b16 %v4746
  %v4908 = vunpack.c.h.b16 %v4746
  %v4909 = vunpack.c.l.b16 %v4747
  %v4910 = vunpack.c.h.b16 %v4747
  %v4911 = vunpack.c.l.b16 %v4748
  %v4912 = vunpack.c.h.b16 %v4748
  %v4913 = vunpack.c.l.b16 %v4749
  %v4914 = vunpack.c.h.b16 %v4749
  %v4915 = vunpack.c.l.b16 %v4750
  %v4916 = vunpack.c.h.b16 %v4750
  %v4917 = vunpack.c.l.b16 %v4751
  %v4918 = vunpack.c.h.b16 %v4751
  %v4919 = vunpack.c.l.b16 %v4752
  %v4920 = vunpack.c.h.b16 %v4752
  %v4921 = vunpack.c.l.b16 %v4753
  %v4922 = vunpack.c.h.b16 %v4753
  %v4923 = vunpack.c.l.b16 %v4754
  %v4924 = vunpack.c.h.b16 %v4754
  %v4925 = vunpack.c.l.b16 %v4755
  %v4926 = vunpack.c.h.b16 %v4755
  %v4927 = vunpack.c.l.b16 %v4756
  %v4928 = vunpack.c.h.b16 %v4756
  %v4929 = vunpack.c.l.b16 %v4757
  %v4930 = vunpack.c.h.b16 %v4757
  %v4931 = vunpack.c.l.b16 %v4758
  %v4932 = vunpack.c.h.b16 %v4758
  %v4933 = vunpack.c.l.b16 %v4759
  %v4934 = vunpack.c.h.b16 %v4759
  %v4935 = vunpack.c.l.b16 %v4760
  %v4936 = vunpack.c.h.b16 %v4760
  %v4937 = vunpack.c.l.b16 %v4761
  %v4938 = vunpack.c.h.b16 %v4761
  %v4939 = vunpack.c.l.b16 %v4762
  %v4940 = vunpack.c.h.b16 %v4762
  %v4941 = vunpack.c.l.b16 %v4763
  %v4942 = vunpack.c.h.b16 %v4763
  %v4943 = vunpack.c.l.b16 %v4764
  %v4944 = vunpack.c.h.b16 %v4764
  %v4945 = vunpack.c.l.b16 %v4765
  %v4946 = vunpack.c.h.b16 %v4765
  %v4947 = vunpack.c.l.b16 %v4766
  %v4948 = vunpack.c.h.b16 %v4766
  %v4949 = vunpack.c.l.b16 %v4767
  %v4950 = vunpack.c.h.b16 %v4767
  %v4951 = vunpack.c.l.b16 %v4768
  %v4952 = vunpack.c.h.b16 %v4768
  %v4953 = vunpack.c.l.b16 %v4769
  %v4954 = vunpack.c.h.b16 %v4769
  %v4955 = vunpack.c.l.b16 %v4770
  %v4956 = vunpack.c.h.b16 %v4770
  %v4957 = vunpack.c.l.b16 %v4771
  %v4958 = vunpack.c.h.b16 %v4771
  %v4959 = vunpack.c.l.b16 %v4772
  %v4960 = vunpack.c.h.b16 %v4772
  %v4961 = vunpack.c.l.b16 %v4773
  %v4962 = vunpack.c.h.b16 %v4773
  %v4963 = vunpack.c.l.b16 %v4774
  %v4964 = vunpack.c.h.b16 %v4774
  %v4965 = vunpack.c.l.b16 %v4775
  %v4966 = vunpack.c.h.b16 %v4775
  %v4967 = vunpack.c.l.b16 %v4776
  %v4968 = vunpack.c.h.b16 %v4776
  %v4969 = vpack.c.b16 %v4849, %v4841
  %v4970 = vpack.c.b16 %v4850, %v4842
  %v4971 = vpack.c.b16 %v4851, %v4843
  %v4972 = vpack.c.b16 %v4852, %v4844
  %v4973 = vpack.c.b16 %v4853, %v4845
  %v4974 = vpack.c.b16 %v4854, %v4846
  %v4975 = vpack.c.b16 %v4855, %v4847
  %v4976 = vpack.c.b16 %v4856, %v4848
  %v4977 = vpack.c.b16 %v4865, %v4857
  %v4978 = vpack.c.b16 %v4866, %v4858
  %v4979 = vpack.c.b16 %v4867, %v4859
  %v4980 = vpack.c.b16 %v4868, %v4860
  %v4981 = vpack.c.b16 %v4869, %v4861
  %v4982 = vpack.c.b16 %v4870, %v4862
  %v4983 = vpack.c.b16 %v4871, %v4863
  %v4984 = vpack.c.b16 %v4872, %v4864
  %v4985 = vpack.c.b16 %v4881, %v4873
  %v4986 = vpack.c.b16 %v4882, %v4874
  %v4987 = vpack.c.b16 %v4883, %v4875
  %v4988 = vpack.c.b16 %v4884, %v4876
  %v4989 = vpack.c.b16 %v4885, %v4877
  %v4990 = vpack.c.b16 %v4886, %v4878
  %v4991 = vpack.c.b16 %v4887, %v4879
  %v4992 = vpack.c.b16 %v4888, %v4880
  %v4993 = vpack.c.b16 %v4897, %v4889
  %v4994 = vpack.c.b16 %v4898, %v4890
  %v4995 = vpack.c.b16 %v4899, %v4891
  %v4996 = vpack.c.b16 %v4900, %v4892
  %v4997 = vpack.c.b16 %v4901, %v4893
  %v4998 = vpack.c.b16 %v4902, %v4894
  %v4999 = vpack.c.b16 %v4903, %v4895
  %v5000 = vpack.c.b16 %v4904, %v4896
  %v5001 = vpack.c.b16 %v4913, %v4905
  %v5002 = vpack.c.b16 %v4914, %v4906
  %v5003 = vpack.c.b16 %v4915, %v4907
  %v5004 = vpack.c.b16 %v4916, %v4908
  %v5005 = vpack.c.b16 %v4917, %v4909
  %v5006 = vpack.c.b16 %v4918, %v4910
  %v5007 = vpack.c.b16 %v4919, %v4911
  %v5008 = vpack.c.b16 %v4920, %v4912
  %v5009 = vpack.c.b16 %v4929, %v4921
  %v5010 = vpack.c.b16 %v4930, %v4922
  %v5011 = vpack.c.b16 %v4931, %v4923
  %v5012 = vpack.c.b16 %v4932, %v4924
  %v5013 = vpack.c.b16 %v4933, %v4925
  %v5014 = vpack.c.b16 %v4934, %v4926
  %v5015 = vpack.c.b16 %v4935, %v4927
  %v5016 = vpack.c.b16 %v4936, %v4928
  %v5017 = vpack.c.b16 %v4945, %v4937
  %v5018 = vpack.c.b16 %v4946, %v4938
  %v5019 = vpack.c.b16 %v4947, %v4939
  %v5020 = vpack.c.b16 %v4948, %v4940
  %v5021 = vpack.c.b16 %v4949, %v4941
  %v5022 = vpack.c.b16 %v4950, %v4942
  %v5023 = vpack.c.b16 %v4951, %v4943
  %v5024 = vpack.c.b16 %v4952, %v4944
  %v5025 = vpack.c.b16 %v4961, %v4953
  %v5026 = vpack.c.b16 %v4962, %v4954
  %v5027 = vpack.c.b16 %v4963, %v4955
  %v5028 = vpack.c.b16 %v4964, %v4956
  %v5029 = vpack.c.b16 %v4965, %v4957
  %v5030 = vpack.c.b16 %v4966, %v4958
  %v5031 = vpack.c.b16 %v4967, %v4959
  %v5032 = vpack.c.b16 %v4968, %v4960
  %5097 = vmatprep.subr.bf16.mxu0 %v4970
  %5098 = vmatpush1.bf16.msra.mxu0 %v4969
  %5099 = vmatprep.subr.bf16.mxu0 %v4978
  %5100 = vmatpush1.bf16.msra.mxu0 %v4977
  %5101 = vmatprep.subr.bf16.mxu0 %v4986
  %5102 = vmatpush1.bf16.msra.mxu0 %v4985
  %5103 = vmatprep.subr.bf16.mxu0 %v4994
  %5104 = vmatpush1.bf16.msra.mxu0 %v4993
  %5105 = vmatprep.subr.bf16.mxu0 %v5002
  %5106 = vmatpush1.bf16.msra.mxu0 %v5001
  %5107 = vmatprep.subr.bf16.mxu0 %v5010
  %5108 = vmatpush1.bf16.msra.mxu0 %v5009
  %5109 = vmatprep.subr.bf16.mxu0 %v5018
  %5110 = vmatpush1.bf16.msra.mxu0 %v5017
  %5111 = vmatprep.subr.bf16.mxu0 %v5026
  %5112 = vmatpush1.bf16.msra.mxu0 %v5025
  %5113 = vmatprep.subr.bf16.mxu0 0
  %5114 = vmatpush1.bf16.msra.mxu0 0
  %5115 = vmatprep.subr.bf16.mxu0 0
  %5116 = vmatpush1.bf16.msra.mxu0 0
  %5117 = vmatprep.subr.bf16.mxu0 0
  %5118 = vmatpush1.bf16.msra.mxu0 0
  %5119 = vmatprep.subr.bf16.mxu0 0
  %5120 = vmatpush1.bf16.msra.mxu0 0
  %5121 = vmatprep.subr.bf16.mxu0 0
  %5122 = vmatpush1.bf16.msra.mxu0 0
  %5123 = vmatprep.subr.bf16.mxu0 0
  %5124 = vmatpush1.bf16.msra.mxu0 0
  %5125 = vmatprep.subr.bf16.mxu0 0
  %5126 = vmatpush1.bf16.msra.mxu0 0
  %5127 = vmatprep.subr.bf16.mxu0 0
  %5128 = vmatpush1.bf16.msra.mxu0 0
  %5129 = vmatprep.mubr.bf16.mxu0 0
  %5130 = vmatmul.mubr.bf16.gmra.mrb[0].mxu0 %v3594
  %v5131 = vpop.f32.mrb[0].mxu0
  %v5132 = vadd.f32 0.0, %v5131
  %v5133 = vpop.f32.mrb[0].mxu0
  %v5134 = vadd.f32 0.0, %v5133
  %v5135 = vpop.f32.mrb[0].mxu0
  %v5136 = vpop.f32.mrb[0].mxu0
  %5137 = vdwg.mxu0
  %5138 = vmatprep.subr.bf16.mxu0 %v4972
  %5139 = vmatpush1.bf16.msra.mxu0 %v4971
  %5140 = vmatprep.subr.bf16.mxu0 %v4980
  %5141 = vmatpush1.bf16.msra.mxu0 %v4979
  %5142 = vmatprep.subr.bf16.mxu0 %v4988
  %5143 = vmatpush1.bf16.msra.mxu0 %v4987
  %5144 = vmatprep.subr.bf16.mxu0 %v4996
  %5145 = vmatpush1.bf16.msra.mxu0 %v4995
  %5146 = vmatprep.subr.bf16.mxu0 %v5004
  %5147 = vmatpush1.bf16.msra.mxu0 %v5003
  %5148 = vmatprep.subr.bf16.mxu0 %v5012
  %5149 = vmatpush1.bf16.msra.mxu0 %v5011
  %5150 = vmatprep.subr.bf16.mxu0 %v5020
  %5151 = vmatpush1.bf16.msra.mxu0 %v5019
  %5152 = vmatprep.subr.bf16.mxu0 %v5028
  %5153 = vmatpush1.bf16.msra.mxu0 %v5027
  %5154 = vmatprep.subr.bf16.mxu0 0
  %5155 = vmatpush1.bf16.msra.mxu0 0
  %5156 = vmatprep.subr.bf16.mxu0 0
  %5157 = vmatpush1.bf16.msra.mxu0 0
  %5158 = vmatprep.subr.bf16.mxu0 0
  %5159 = vmatpush1.bf16.msra.mxu0 0
  %5160 = vmatprep.subr.bf16.mxu0 0
  %5161 = vmatpush1.bf16.msra.mxu0 0
  %5162 = vmatprep.subr.bf16.mxu0 0
  %5163 = vmatpush1.bf16.msra.mxu0 0
  %5164 = vmatprep.subr.bf16.mxu0 0
  %5165 = vmatpush1.bf16.msra.mxu0 0
  %5166 = vmatprep.subr.bf16.mxu0 0
  %5167 = vmatpush1.bf16.msra.mxu0 0
  %5168 = vmatprep.subr.bf16.mxu0 0
  %5169 = vmatpush1.bf16.msra.mxu0 0
  %5170 = vmatprep.mubr.bf16.mxu0 0
  %5171 = vmatmul.mubr.bf16.gmra.mrb[0].mxu0 %v3594
  %v5172 = vpop.f32.mrb[0].mxu0
  %v5173 = vadd.f32 0.0, %v5172
  %v5174 = vpop.f32.mrb[0].mxu0
  %v5175 = vadd.f32 0.0, %v5174
  %v5176 = vpop.f32.mrb[0].mxu0
  %v5177 = vpop.f32.mrb[0].mxu0
  %5178 = vdwg.mxu0
  %5179 = vmatprep.subr.bf16.mxu0 %v4974
  %5180 = vmatpush1.bf16.msra.mxu0 %v4973
  %5181 = vmatprep.subr.bf16.mxu0 %v4982
  %5182 = vmatpush1.bf16.msra.mxu0 %v4981
  %5183 = vmatprep.subr.bf16.mxu0 %v4990
  %5184 = vmatpush1.bf16.msra.mxu0 %v4989
  %5185 = vmatprep.subr.bf16.mxu0 %v4998
  %5186 = vmatpush1.bf16.msra.mxu0 %v4997
  %5187 = vmatprep.subr.bf16.mxu0 %v5006
  %5188 = vmatpush1.bf16.msra.mxu0 %v5005
  %5189 = vmatprep.subr.bf16.mxu0 %v5014
  %5190 = vmatpush1.bf16.msra.mxu0 %v5013
  %5191 = vmatprep.subr.bf16.mxu0 %v5022
  %5192 = vmatpush1.bf16.msra.mxu0 %v5021
  %5193 = vmatprep.subr.bf16.mxu0 %v5030
  %5194 = vmatpush1.bf16.msra.mxu0 %v5029
  %5195 = vmatprep.subr.bf16.mxu0 0
  %5196 = vmatpush1.bf16.msra.mxu0 0
  %5197 = vmatprep.subr.bf16.mxu0 0
  %5198 = vmatpush1.bf16.msra.mxu0 0
  %5199 = vmatprep.subr.bf16.mxu0 0
  %5200 = vmatpush1.bf16.msra.mxu0 0
  %5201 = vmatprep.subr.bf16.mxu0 0
  %5202 = vmatpush1.bf16.msra.mxu0 0
  %5203 = vmatprep.subr.bf16.mxu0 0
  %5204 = vmatpush1.bf16.msra.mxu0 0
  %5205 = vmatprep.subr.bf16.mxu0 0
  %5206 = vmatpush1.bf16.msra.mxu0 0
  %5207 = vmatprep.subr.bf16.mxu0 0
  %5208 = vmatpush1.bf16.msra.mxu0 0
  %5209 = vmatprep.subr.bf16.mxu0 0
  %5210 = vmatpush1.bf16.msra.mxu0 0
  %5211 = vmatprep.mubr.bf16.mxu0 0
  %5212 = vmatmul.mubr.bf16.gmra.mrb[0].mxu0 %v3594
  %v5213 = vpop.f32.mrb[0].mxu0
  %v5214 = vadd.f32 0.0, %v5213
  %v5215 = vpop.f32.mrb[0].mxu0
  %v5216 = vadd.f32 0.0, %v5215
  %v5217 = vpop.f32.mrb[0].mxu0
  %v5218 = vpop.f32.mrb[0].mxu0
  %5219 = vdwg.mxu0
  %5220 = vmatprep.subr.bf16.mxu0 %v4976
  %5221 = vmatpush1.bf16.msra.mxu0 %v4975
  %5222 = vmatprep.subr.bf16.mxu0 %v4984
  %5223 = vmatpush1.bf16.msra.mxu0 %v4983
  %5224 = vmatprep.subr.bf16.mxu0 %v4992
  %5225 = vmatpush1.bf16.msra.mxu0 %v4991
  %5226 = vmatprep.subr.bf16.mxu0 %v5000
  %5227 = vmatpush1.bf16.msra.mxu0 %v4999
  %5228 = vmatprep.subr.bf16.mxu0 %v5008
  %5229 = vmatpush1.bf16.msra.mxu0 %v5007
  %5230 = vmatprep.subr.bf16.mxu0 %v5016
  %5231 = vmatpush1.bf16.msra.mxu0 %v5015
  %5232 = vmatprep.subr.bf16.mxu0 %v5024
  %5233 = vmatpush1.bf16.msra.mxu0 %v5023
  %5234 = vmatprep.subr.bf16.mxu0 %v5032
  %5235 = vmatpush1.bf16.msra.mxu0 %v5031
  %5236 = vmatprep.subr.bf16.mxu0 0
  %5237 = vmatpush1.bf16.msra.mxu0 0
  %5238 = vmatprep.subr.bf16.mxu0 0
  %5239 = vmatpush1.bf16.msra.mxu0 0
  %5240 = vmatprep.subr.bf16.mxu0 0
  %5241 = vmatpush1.bf16.msra.mxu0 0
  %5242 = vmatprep.subr.bf16.mxu0 0
  %5243 = vmatpush1.bf16.msra.mxu0 0
  %5244 = vmatprep.subr.bf16.mxu0 0
  %5245 = vmatpush1.bf16.msra.mxu0 0
  %5246 = vmatprep.subr.bf16.mxu0 0
  %5247 = vmatpush1.bf16.msra.mxu0 0
  %5248 = vmatprep.subr.bf16.mxu0 0
  %5249 = vmatpush1.bf16.msra.mxu0 0
  %5250 = vmatprep.subr.bf16.mxu0 0
  %5251 = vmatpush1.bf16.msra.mxu0 0
  %5252 = vmatprep.mubr.bf16.mxu0 0
  %5253 = vmatmul.mubr.bf16.gmra.mrb[0].mxu0 %v3594
  %v5254 = vpop.f32.mrb[0].mxu0
  %v5255 = vadd.f32 0.0, %v5254
  %v5256 = vpop.f32.mrb[0].mxu0
  %v5257 = vadd.f32 0.0, %v5256
  %v5258 = vpop.f32.mrb[0].mxu0
  %v5259 = vpop.f32.mrb[0].mxu0
  %5260 = vdwg.mxu0
  %v5261 = vadd.f32 %v4583, %v5132
  %v5262 = vadd.f32 %v4585, %v5134
  %v5263 = vadd.f32 %v4624, %v5173
  %v5264 = vadd.f32 %v4626, %v5175
  %v5265 = vadd.f32 %v4665, %v5214
  %v5266 = vadd.f32 %v4667, %v5216
  %v5267 = vadd.f32 %v4706, %v5255
  %v5268 = vadd.f32 %v4708, %v5257
  %s5269 = scalar_lea.vmem %s5, 1536
  %v5270 = vld [vmem:[%s5269] sm:$0xff]
  %v5271 = vld [vmem:[%s5269 + $0x8] sm:$0xff]
  %v5272 = vld [vmem:[%s5269 + $0x10] sm:$0xff]
  %v5273 = vld [vmem:[%s5269 + $0x18] sm:$0xff]
  %v5274 = vld [vmem:[%s5269 + $0x20] sm:$0xff]
  %v5275 = vld [vmem:[%s5269 + $0x28] sm:$0xff]
  %v5276 = vld [vmem:[%s5269 + $0x30] sm:$0xff]
  %v5277 = vld [vmem:[%s5269 + $0x38] sm:$0xff]
  %v5278 = vld [vmem:[%s5269 + $0x40] sm:$0xff]
  %v5279 = vld [vmem:[%s5269 + $0x48] sm:$0xff]
  %v5280 = vld [vmem:[%s5269 + $0x50] sm:$0xff]
  %v5281 = vld [vmem:[%s5269 + $0x58] sm:$0xff]
  %v5282 = vld [vmem:[%s5269 + $0x60] sm:$0xff]
  %v5283 = vld [vmem:[%s5269 + $0x68] sm:$0xff]
  %v5284 = vld [vmem:[%s5269 + $0x70] sm:$0xff]
  %v5285 = vld [vmem:[%s5269 + $0x78] sm:$0xff]
  %v5286 = vld [vmem:[%s5269 + $0x80] sm:$0xff]
  %v5287 = vld [vmem:[%s5269 + $0x88] sm:$0xff]
  %v5288 = vld [vmem:[%s5269 + $0x90] sm:$0xff]
  %v5289 = vld [vmem:[%s5269 + $0x98] sm:$0xff]
  %v5290 = vld [vmem:[%s5269 + $0xa0] sm:$0xff]
  %v5291 = vld [vmem:[%s5269 + $0xa8] sm:$0xff]
  %v5292 = vld [vmem:[%s5269 + $0xb0] sm:$0xff]
  %v5293 = vld [vmem:[%s5269 + $0xb8] sm:$0xff]
  %v5294 = vld [vmem:[%s5269 + $0xc0] sm:$0xff]
  %v5295 = vld [vmem:[%s5269 + $0xc8] sm:$0xff]
  %v5296 = vld [vmem:[%s5269 + $0xd0] sm:$0xff]
  %v5297 = vld [vmem:[%s5269 + $0xd8] sm:$0xff]
  %v5298 = vld [vmem:[%s5269 + $0xe0] sm:$0xff]
  %v5299 = vld [vmem:[%s5269 + $0xe8] sm:$0xff]
  %v5300 = vld [vmem:[%s5269 + $0xf0] sm:$0xff]
  %v5301 = vld [vmem:[%s5269 + $0xf8] sm:$0xff]
  %v5302 = vld [vmem:[%s5269 + $0x100] sm:$0xff]
  %v5303 = vld [vmem:[%s5269 + $0x108] sm:$0xff]
  %v5304 = vld [vmem:[%s5269 + $0x110] sm:$0xff]
  %v5305 = vld [vmem:[%s5269 + $0x118] sm:$0xff]
  %v5306 = vld [vmem:[%s5269 + $0x120] sm:$0xff]
  %v5307 = vld [vmem:[%s5269 + $0x128] sm:$0xff]
  %v5308 = vld [vmem:[%s5269 + $0x130] sm:$0xff]
  %v5309 = vld [vmem:[%s5269 + $0x138] sm:$0xff]
  %v5310 = vld [vmem:[%s5269 + $0x140] sm:$0xff]
  %v5311 = vld [vmem:[%s5269 + $0x148] sm:$0xff]
  %v5312 = vld [vmem:[%s5269 + $0x150] sm:$0xff]
  %v5313 = vld [vmem:[%s5269 + $0x158] sm:$0xff]
  %v5314 = vld [vmem:[%s5269 + $0x160] sm:$0xff]
  %v5315 = vld [vmem:[%s5269 + $0x168] sm:$0xff]
  %v5316 = vld [vmem:[%s5269 + $0x170] sm:$0xff]
  %v5317 = vld [vmem:[%s5269 + $0x178] sm:$0xff]
  %v5318 = vld [vmem:[%s5269 + $0x180] sm:$0xff]
  %v5319 = vld [vmem:[%s5269 + $0x188] sm:$0xff]
  %v5320 = vld [vmem:[%s5269 + $0x190] sm:$0xff]
  %v5321 = vld [vmem:[%s5269 + $0x198] sm:$0xff]
  %v5322 = vld [vmem:[%s5269 + $0x1a0] sm:$0xff]
  %v5323 = vld [vmem:[%s5269 + $0x1a8] sm:$0xff]
  %v5324 = vld [vmem:[%s5269 + $0x1b0] sm:$0xff]
  %v5325 = vld [vmem:[%s5269 + $0x1b8] sm:$0xff]
  %v5326 = vld [vmem:[%s5269 + $0x1c0] sm:$0xff]
  %v5327 = vld [vmem:[%s5269 + $0x1c8] sm:$0xff]
  %v5328 = vld [vmem:[%s5269 + $0x1d0] sm:$0xff]
  %v5329 = vld [vmem:[%s5269 + $0x1d8] sm:$0xff]
  %v5330 = vld [vmem:[%s5269 + $0x1e0] sm:$0xff]
  %v5331 = vld [vmem:[%s5269 + $0x1e8] sm:$0xff]
  %v5332 = vld [vmem:[%s5269 + $0x1f0] sm:$0xff]
  %v5333 = vld [vmem:[%s5269 + $0x1f8] sm:$0xff]
  %v5398 = vunpack.c.l.b16 %v5270
  %v5399 = vunpack.c.h.b16 %v5270
  %v5400 = vunpack.c.l.b16 %v5271
  %v5401 = vunpack.c.h.b16 %v5271
  %v5402 = vunpack.c.l.b16 %v5272
  %v5403 = vunpack.c.h.b16 %v5272
  %v5404 = vunpack.c.l.b16 %v5273
  %v5405 = vunpack.c.h.b16 %v5273
  %v5406 = vunpack.c.l.b16 %v5274
  %v5407 = vunpack.c.h.b16 %v5274
  %v5408 = vunpack.c.l.b16 %v5275
  %v5409 = vunpack.c.h.b16 %v5275
  %v5410 = vunpack.c.l.b16 %v5276
  %v5411 = vunpack.c.h.b16 %v5276
  %v5412 = vunpack.c.l.b16 %v5277
  %v5413 = vunpack.c.h.b16 %v5277
  %v5414 = vunpack.c.l.b16 %v5278
  %v5415 = vunpack.c.h.b16 %v5278
  %v5416 = vunpack.c.l.b16 %v5279
  %v5417 = vunpack.c.h.b16 %v5279
  %v5418 = vunpack.c.l.b16 %v5280
  %v5419 = vunpack.c.h.b16 %v5280
  %v5420 = vunpack.c.l.b16 %v5281
  %v5421 = vunpack.c.h.b16 %v5281
  %v5422 = vunpack.c.l.b16 %v5282
  %v5423 = vunpack.c.h.b16 %v5282
  %v5424 = vunpack.c.l.b16 %v5283
  %v5425 = vunpack.c.h.b16 %v5283
  %v5426 = vunpack.c.l.b16 %v5284
  %v5427 = vunpack.c.h.b16 %v5284
  %v5428 = vunpack.c.l.b16 %v5285
  %v5429 = vunpack.c.h.b16 %v5285
  %v5430 = vunpack.c.l.b16 %v5286
  %v5431 = vunpack.c.h.b16 %v5286
  %v5432 = vunpack.c.l.b16 %v5287
  %v5433 = vunpack.c.h.b16 %v5287
  %v5434 = vunpack.c.l.b16 %v5288
  %v5435 = vunpack.c.h.b16 %v5288
  %v5436 = vunpack.c.l.b16 %v5289
  %v5437 = vunpack.c.h.b16 %v5289
  %v5438 = vunpack.c.l.b16 %v5290
  %v5439 = vunpack.c.h.b16 %v5290
  %v5440 = vunpack.c.l.b16 %v5291
  %v5441 = vunpack.c.h.b16 %v5291
  %v5442 = vunpack.c.l.b16 %v5292
  %v5443 = vunpack.c.h.b16 %v5292
  %v5444 = vunpack.c.l.b16 %v5293
  %v5445 = vunpack.c.h.b16 %v5293
  %v5446 = vunpack.c.l.b16 %v5294
  %v5447 = vunpack.c.h.b16 %v5294
  %v5448 = vunpack.c.l.b16 %v5295
  %v5449 = vunpack.c.h.b16 %v5295
  %v5450 = vunpack.c.l.b16 %v5296
  %v5451 = vunpack.c.h.b16 %v5296
  %v5452 = vunpack.c.l.b16 %v5297
  %v5453 = vunpack.c.h.b16 %v5297
  %v5454 = vunpack.c.l.b16 %v5298
  %v5455 = vunpack.c.h.b16 %v5298
  %v5456 = vunpack.c.l.b16 %v5299
  %v5457 = vunpack.c.h.b16 %v5299
  %v5458 = vunpack.c.l.b16 %v5300
  %v5459 = vunpack.c.h.b16 %v5300
  %v5460 = vunpack.c.l.b16 %v5301
  %v5461 = vunpack.c.h.b16 %v5301
  %v5462 = vunpack.c.l.b16 %v5302
  %v5463 = vunpack.c.h.b16 %v5302
  %v5464 = vunpack.c.l.b16 %v5303
  %v5465 = vunpack.c.h.b16 %v5303
  %v5466 = vunpack.c.l.b16 %v5304
  %v5467 = vunpack.c.h.b16 %v5304
  %v5468 = vunpack.c.l.b16 %v5305
  %v5469 = vunpack.c.h.b16 %v5305
  %v5470 = vunpack.c.l.b16 %v5306
  %v5471 = vunpack.c.h.b16 %v5306
  %v5472 = vunpack.c.l.b16 %v5307
  %v5473 = vunpack.c.h.b16 %v5307
  %v5474 = vunpack.c.l.b16 %v5308
  %v5475 = vunpack.c.h.b16 %v5308
  %v5476 = vunpack.c.l.b16 %v5309
  %v5477 = vunpack.c.h.b16 %v5309
  %v5478 = vunpack.c.l.b16 %v5310
  %v5479 = vunpack.c.h.b16 %v5310
  %v5480 = vunpack.c.l.b16 %v5311
  %v5481 = vunpack.c.h.b16 %v5311
  %v5482 = vunpack.c.l.b16 %v5312
  %v5483 = vunpack.c.h.b16 %v5312
  %v5484 = vunpack.c.l.b16 %v5313
  %v5485 = vunpack.c.h.b16 %v5313
  %v5486 = vunpack.c.l.b16 %v5314
  %v5487 = vunpack.c.h.b16 %v5314
  %v5488 = vunpack.c.l.b16 %v5315
  %v5489 = vunpack.c.h.b16 %v5315
  %v5490 = vunpack.c.l.b16 %v5316
  %v5491 = vunpack.c.h.b16 %v5316
  %v5492 = vunpack.c.l.b16 %v5317
  %v5493 = vunpack.c.h.b16 %v5317
  %v5494 = vunpack.c.l.b16 %v5318
  %v5495 = vunpack.c.h.b16 %v5318
  %v5496 = vunpack.c.l.b16 %v5319
  %v5497 = vunpack.c.h.b16 %v5319
  %v5498 = vunpack.c.l.b16 %v5320
  %v5499 = vunpack.c.h.b16 %v5320
  %v5500 = vunpack.c.l.b16 %v5321
  %v5501 = vunpack.c.h.b16 %v5321
  %v5502 = vunpack.c.l.b16 %v5322
  %v5503 = vunpack.c.h.b16 %v5322
  %v5504 = vunpack.c.l.b16 %v5323
  %v5505 = vunpack.c.h.b16 %v5323
  %v5506 = vunpack.c.l.b16 %v5324
  %v5507 = vunpack.c.h.b16 %v5324
  %v5508 = vunpack.c.l.b16 %v5325
  %v5509 = vunpack.c.h.b16 %v5325
  %v5510 = vunpack.c.l.b16 %v5326
  %v5511 = vunpack.c.h.b16 %v5326
  %v5512 = vunpack.c.l.b16 %v5327
  %v5513 = vunpack.c.h.b16 %v5327
  %v5514 = vunpack.c.l.b16 %v5328
  %v5515 = vunpack.c.h.b16 %v5328
  %v5516 = vunpack.c.l.b16 %v5329
  %v5517 = vunpack.c.h.b16 %v5329
  %v5518 = vunpack.c.l.b16 %v5330
  %v5519 = vunpack.c.h.b16 %v5330
  %v5520 = vunpack.c.l.b16 %v5331
  %v5521 = vunpack.c.h.b16 %v5331
  %v5522 = vunpack.c.l.b16 %v5332
  %v5523 = vunpack.c.h.b16 %v5332
  %v5524 = vunpack.c.l.b16 %v5333
  %v5525 = vunpack.c.h.b16 %v5333
  %v5526 = vpack.c.b16 %v5406, %v5398
  %v5527 = vpack.c.b16 %v5407, %v5399
  %v5528 = vpack.c.b16 %v5408, %v5400
  %v5529 = vpack.c.b16 %v5409, %v5401
  %v5530 = vpack.c.b16 %v5410, %v5402
  %v5531 = vpack.c.b16 %v5411, %v5403
  %v5532 = vpack.c.b16 %v5412, %v5404
  %v5533 = vpack.c.b16 %v5413, %v5405
  %v5534 = vpack.c.b16 %v5422, %v5414
  %v5535 = vpack.c.b16 %v5423, %v5415
  %v5536 = vpack.c.b16 %v5424, %v5416
  %v5537 = vpack.c.b16 %v5425, %v5417
  %v5538 = vpack.c.b16 %v5426, %v5418
  %v5539 = vpack.c.b16 %v5427, %v5419
  %v5540 = vpack.c.b16 %v5428, %v5420
  %v5541 = vpack.c.b16 %v5429, %v5421
  %v5542 = vpack.c.b16 %v5438, %v5430
  %v5543 = vpack.c.b16 %v5439, %v5431
  %v5544 = vpack.c.b16 %v5440, %v5432
  %v5545 = vpack.c.b16 %v5441, %v5433
  %v5546 = vpack.c.b16 %v5442, %v5434
  %v5547 = vpack.c.b16 %v5443, %v5435
  %v5548 = vpack.c.b16 %v5444, %v5436
  %v5549 = vpack.c.b16 %v5445, %v5437
  %v5550 = vpack.c.b16 %v5454, %v5446
  %v5551 = vpack.c.b16 %v5455, %v5447
  %v5552 = vpack.c.b16 %v5456, %v5448
  %v5553 = vpack.c.b16 %v5457, %v5449
  %v5554 = vpack.c.b16 %v5458, %v5450
  %v5555 = vpack.c.b16 %v5459, %v5451
  %v5556 = vpack.c.b16 %v5460, %v5452
  %v5557 = vpack.c.b16 %v5461, %v5453
  %v5558 = vpack.c.b16 %v5470, %v5462
  %v5559 = vpack.c.b16 %v5471, %v5463
  %v5560 = vpack.c.b16 %v5472, %v5464
  %v5561 = vpack.c.b16 %v5473, %v5465
  %v5562 = vpack.c.b16 %v5474, %v5466
  %v5563 = vpack.c.b16 %v5475, %v5467
  %v5564 = vpack.c.b16 %v5476, %v5468
  %v5565 = vpack.c.b16 %v5477, %v5469
  %v5566 = vpack.c.b16 %v5486, %v5478
  %v5567 = vpack.c.b16 %v5487, %v5479
  %v5568 = vpack.c.b16 %v5488, %v5480
  %v5569 = vpack.c.b16 %v5489, %v5481
  %v5570 = vpack.c.b16 %v5490, %v5482
  %v5571 = vpack.c.b16 %v5491, %v5483
  %v5572 = vpack.c.b16 %v5492, %v5484
  %v5573 = vpack.c.b16 %v5493, %v5485
  %v5574 = vpack.c.b16 %v5502, %v5494
  %v5575 = vpack.c.b16 %v5503, %v5495
  %v5576 = vpack.c.b16 %v5504, %v5496
  %v5577 = vpack.c.b16 %v5505, %v5497
  %v5578 = vpack.c.b16 %v5506, %v5498
  %v5579 = vpack.c.b16 %v5507, %v5499
  %v5580 = vpack.c.b16 %v5508, %v5500
  %v5581 = vpack.c.b16 %v5509, %v5501
  %v5582 = vpack.c.b16 %v5518, %v5510
  %v5583 = vpack.c.b16 %v5519, %v5511
  %v5584 = vpack.c.b16 %v5520, %v5512
  %v5585 = vpack.c.b16 %v5521, %v5513
  %v5586 = vpack.c.b16 %v5522, %v5514
  %v5587 = vpack.c.b16 %v5523, %v5515
  %v5588 = vpack.c.b16 %v5524, %v5516
  %v5589 = vpack.c.b16 %v5525, %v5517
  %5654 = vmatprep.subr.bf16.mxu0 %v5527
  %5655 = vmatpush1.bf16.msra.mxu0 %v5526
  %5656 = vmatprep.subr.bf16.mxu0 %v5535
  %5657 = vmatpush1.bf16.msra.mxu0 %v5534
  %5658 = vmatprep.subr.bf16.mxu0 %v5543
  %5659 = vmatpush1.bf16.msra.mxu0 %v5542
  %5660 = vmatprep.subr.bf16.mxu0 %v5551
  %5661 = vmatpush1.bf16.msra.mxu0 %v5550
  %5662 = vmatprep.subr.bf16.mxu0 %v5559
  %5663 = vmatpush1.bf16.msra.mxu0 %v5558
  %5664 = vmatprep.subr.bf16.mxu0 %v5567
  %5665 = vmatpush1.bf16.msra.mxu0 %v5566
  %5666 = vmatprep.subr.bf16.mxu0 %v5575
  %5667 = vmatpush1.bf16.msra.mxu0 %v5574
  %5668 = vmatprep.subr.bf16.mxu0 %v5583
  %5669 = vmatpush1.bf16.msra.mxu0 %v5582
  %5670 = vmatprep.subr.bf16.mxu0 0
  %5671 = vmatpush1.bf16.msra.mxu0 0
  %5672 = vmatprep.subr.bf16.mxu0 0
  %5673 = vmatpush1.bf16.msra.mxu0 0
  %5674 = vmatprep.subr.bf16.mxu0 0
  %5675 = vmatpush1.bf16.msra.mxu0 0
  %5676 = vmatprep.subr.bf16.mxu0 0
  %5677 = vmatpush1.bf16.msra.mxu0 0
  %5678 = vmatprep.subr.bf16.mxu0 0
  %5679 = vmatpush1.bf16.msra.mxu0 0
  %5680 = vmatprep.subr.bf16.mxu0 0
  %5681 = vmatpush1.bf16.msra.mxu0 0
  %5682 = vmatprep.subr.bf16.mxu0 0
  %5683 = vmatpush1.bf16.msra.mxu0 0
  %5684 = vmatprep.subr.bf16.mxu0 0
  %5685 = vmatpush1.bf16.msra.mxu0 0
  %5686 = vmatprep.mubr.bf16.mxu0 0
  %5687 = vmatmul.mubr.bf16.gmra.mrb[0].mxu0 %v3604
  %v5688 = vpop.f32.mrb[0].mxu0
  %v5689 = vadd.f32 0.0, %v5688
  %v5690 = vpop.f32.mrb[0].mxu0
  %v5691 = vadd.f32 0.0, %v5690
  %v5692 = vpop.f32.mrb[0].mxu0
  %v5693 = vpop.f32.mrb[0].mxu0
  %5694 = vdwg.mxu0
  %5695 = vmatprep.subr.bf16.mxu0 %v5529
  %5696 = vmatpush1.bf16.msra.mxu0 %v5528
  %5697 = vmatprep.subr.bf16.mxu0 %v5537
  %5698 = vmatpush1.bf16.msra.mxu0 %v5536
  %5699 = vmatprep.subr.bf16.mxu0 %v5545
  %5700 = vmatpush1.bf16.msra.mxu0 %v5544
  %5701 = vmatprep.subr.bf16.mxu0 %v5553
  %5702 = vmatpush1.bf16.msra.mxu0 %v5552
  %5703 = vmatprep.subr.bf16.mxu0 %v5561
  %5704 = vmatpush1.bf16.msra.mxu0 %v5560
  %5705 = vmatprep.subr.bf16.mxu0 %v5569
  %5706 = vmatpush1.bf16.msra.mxu0 %v5568
  %5707 = vmatprep.subr.bf16.mxu0 %v5577
  %5708 = vmatpush1.bf16.msra.mxu0 %v5576
  %5709 = vmatprep.subr.bf16.mxu0 %v5585
  %5710 = vmatpush1.bf16.msra.mxu0 %v5584
  %5711 = vmatprep.subr.bf16.mxu0 0
  %5712 = vmatpush1.bf16.msra.mxu0 0
  %5713 = vmatprep.subr.bf16.mxu0 0
  %5714 = vmatpush1.bf16.msra.mxu0 0
  %5715 = vmatprep.subr.bf16.mxu0 0
  %5716 = vmatpush1.bf16.msra.mxu0 0
  %5717 = vmatprep.subr.bf16.mxu0 0
  %5718 = vmatpush1.bf16.msra.mxu0 0
  %5719 = vmatprep.subr.bf16.mxu0 0
  %5720 = vmatpush1.bf16.msra.mxu0 0
  %5721 = vmatprep.subr.bf16.mxu0 0
  %5722 = vmatpush1.bf16.msra.mxu0 0
  %5723 = vmatprep.subr.bf16.mxu0 0
  %5724 = vmatpush1.bf16.msra.mxu0 0
  %5725 = vmatprep.subr.bf16.mxu0 0
  %5726 = vmatpush1.bf16.msra.mxu0 0
  %5727 = vmatprep.mubr.bf16.mxu0 0
  %5728 = vmatmul.mubr.bf16.gmra.mrb[0].mxu0 %v3604
  %v5729 = vpop.f32.mrb[0].mxu0
  %v5730 = vadd.f32 0.0, %v5729
  %v5731 = vpop.f32.mrb[0].mxu0
  %v5732 = vadd.f32 0.0, %v5731
  %v5733 = vpop.f32.mrb[0].mxu0
  %v5734 = vpop.f32.mrb[0].mxu0
  %5735 = vdwg.mxu0
  %5736 = vmatprep.subr.bf16.mxu0 %v5531
  %5737 = vmatpush1.bf16.msra.mxu0 %v5530
  %5738 = vmatprep.subr.bf16.mxu0 %v5539
  %5739 = vmatpush1.bf16.msra.mxu0 %v5538
  %5740 = vmatprep.subr.bf16.mxu0 %v5547
  %5741 = vmatpush1.bf16.msra.mxu0 %v5546
  %5742 = vmatprep.subr.bf16.mxu0 %v5555
  %5743 = vmatpush1.bf16.msra.mxu0 %v5554
  %5744 = vmatprep.subr.bf16.mxu0 %v5563
  %5745 = vmatpush1.bf16.msra.mxu0 %v5562
  %5746 = vmatprep.subr.bf16.mxu0 %v5571
  %5747 = vmatpush1.bf16.msra.mxu0 %v5570
  %5748 = vmatprep.subr.bf16.mxu0 %v5579
  %5749 = vmatpush1.bf16.msra.mxu0 %v5578
  %5750 = vmatprep.subr.bf16.mxu0 %v5587
  %5751 = vmatpush1.bf16.msra.mxu0 %v5586
  %5752 = vmatprep.subr.bf16.mxu0 0
  %5753 = vmatpush1.bf16.msra.mxu0 0
  %5754 = vmatprep.subr.bf16.mxu0 0
  %5755 = vmatpush1.bf16.msra.mxu0 0
  %5756 = vmatprep.subr.bf16.mxu0 0
  %5757 = vmatpush1.bf16.msra.mxu0 0
  %5758 = vmatprep.subr.bf16.mxu0 0
  %5759 = vmatpush1.bf16.msra.mxu0 0
  %5760 = vmatprep.subr.bf16.mxu0 0
  %5761 = vmatpush1.bf16.msra.mxu0 0
  %5762 = vmatprep.subr.bf16.mxu0 0
  %5763 = vmatpush1.bf16.msra.mxu0 0
  %5764 = vmatprep.subr.bf16.mxu0 0
  %5765 = vmatpush1.bf16.msra.mxu0 0
  %5766 = vmatprep.subr.bf16.mxu0 0
  %5767 = vmatpush1.bf16.msra.mxu0 0
  %5768 = vmatprep.mubr.bf16.mxu0 0
  %5769 = vmatmul.mubr.bf16.gmra.mrb[0].mxu0 %v3604
  %v5770 = vpop.f32.mrb[0].mxu0
  %v5771 = vadd.f32 0.0, %v5770
  %v5772 = vpop.f32.mrb[0].mxu0
  %v5773 = vadd.f32 0.0, %v5772
  %v5774 = vpop.f32.mrb[0].mxu0
  %v5775 = vpop.f32.mrb[0].mxu0
  %5776 = vdwg.mxu0
  %5777 = vmatprep.subr.bf16.mxu0 %v5533
  %5778 = vmatpush1.bf16.msra.mxu0 %v5532
  %5779 = vmatprep.subr.bf16.mxu0 %v5541
  %5780 = vmatpush1.bf16.msra.mxu0 %v5540
  %5781 = vmatprep.subr.bf16.mxu0 %v5549
  %5782 = vmatpush1.bf16.msra.mxu0 %v5548
  %5783 = vmatprep.subr.bf16.mxu0 %v5557
  %5784 = vmatpush1.bf16.msra.mxu0 %v5556
  %5785 = vmatprep.subr.bf16.mxu0 %v5565
  %5786 = vmatpush1.bf16.msra.mxu0 %v5564
  %5787 = vmatprep.subr.bf16.mxu0 %v5573
  %5788 = vmatpush1.bf16.msra.mxu0 %v5572
  %5789 = vmatprep.subr.bf16.mxu0 %v5581
  %5790 = vmatpush1.bf16.msra.mxu0 %v5580
  %5791 = vmatprep.subr.bf16.mxu0 %v5589
  %5792 = vmatpush1.bf16.msra.mxu0 %v5588
  %5793 = vmatprep.subr.bf16.mxu0 0
  %5794 = vmatpush1.bf16.msra.mxu0 0
  %5795 = vmatprep.subr.bf16.mxu0 0
  %5796 = vmatpush1.bf16.msra.mxu0 0
  %5797 = vmatprep.subr.bf16.mxu0 0
  %5798 = vmatpush1.bf16.msra.mxu0 0
  %5799 = vmatprep.subr.bf16.mxu0 0
  %5800 = vmatpush1.bf16.msra.mxu0 0
  %5801 = vmatprep.subr.bf16.mxu0 0
  %5802 = vmatpush1.bf16.msra.mxu0 0
  %5803 = vmatprep.subr.bf16.mxu0 0
  %5804 = vmatpush1.bf16.msra.mxu0 0
  %5805 = vmatprep.subr.bf16.mxu0 0
  %5806 = vmatpush1.bf16.msra.mxu0 0
  %5807 = vmatprep.subr.bf16.mxu0 0
  %5808 = vmatpush1.bf16.msra.mxu0 0
  %5809 = vmatprep.mubr.bf16.mxu0 0
  %5810 = vmatmul.mubr.bf16.gmra.mrb[0].mxu0 %v3604
  %v5811 = vpop.f32.mrb[0].mxu0
  %v5812 = vadd.f32 0.0, %v5811
  %v5813 = vpop.f32.mrb[0].mxu0
  %v5814 = vadd.f32 0.0, %v5813
  %v5815 = vpop.f32.mrb[0].mxu0
  %v5816 = vpop.f32.mrb[0].mxu0
  %5817 = vdwg.mxu0
  %v5818 = vadd.f32 %v5261, %v5689
  %v5819 = vadd.f32 %v5262, %v5691
  %v5820 = vadd.f32 %v5263, %v5730
  %v5821 = vadd.f32 %v5264, %v5732
  %v5822 = vadd.f32 %v5265, %v5771
  %v5823 = vadd.f32 %v5266, %v5773
  %v5824 = vadd.f32 %v5267, %v5812
  %v5825 = vadd.f32 %v5268, %v5814
  %s5826 = scalar_lea.vmem %s5, 2048
  %v5827 = vld [vmem:[%s5826] sm:$0xff]
  %v5828 = vld [vmem:[%s5826 + $0x8] sm:$0xff]
  %v5829 = vld [vmem:[%s5826 + $0x10] sm:$0xff]
  %v5830 = vld [vmem:[%s5826 + $0x18] sm:$0xff]
  %v5831 = vld [vmem:[%s5826 + $0x20] sm:$0xff]
  %v5832 = vld [vmem:[%s5826 + $0x28] sm:$0xff]
  %v5833 = vld [vmem:[%s5826 + $0x30] sm:$0xff]
  %v5834 = vld [vmem:[%s5826 + $0x38] sm:$0xff]
  %v5835 = vld [vmem:[%s5826 + $0x40] sm:$0xff]
  %v5836 = vld [vmem:[%s5826 + $0x48] sm:$0xff]
  %v5837 = vld [vmem:[%s5826 + $0x50] sm:$0xff]
  %v5838 = vld [vmem:[%s5826 + $0x58] sm:$0xff]
  %v5839 = vld [vmem:[%s5826 + $0x60] sm:$0xff]
  %v5840 = vld [vmem:[%s5826 + $0x68] sm:$0xff]
  %v5841 = vld [vmem:[%s5826 + $0x70] sm:$0xff]
  %v5842 = vld [vmem:[%s5826 + $0x78] sm:$0xff]
  %v5843 = vld [vmem:[%s5826 + $0x80] sm:$0xff]
  %v5844 = vld [vmem:[%s5826 + $0x88] sm:$0xff]
  %v5845 = vld [vmem:[%s5826 + $0x90] sm:$0xff]
  %v5846 = vld [vmem:[%s5826 + $0x98] sm:$0xff]
  %v5847 = vld [vmem:[%s5826 + $0xa0] sm:$0xff]
  %v5848 = vld [vmem:[%s5826 + $0xa8] sm:$0xff]
  %v5849 = vld [vmem:[%s5826 + $0xb0] sm:$0xff]
  %v5850 = vld [vmem:[%s5826 + $0xb8] sm:$0xff]
  %v5851 = vld [vmem:[%s5826 + $0xc0] sm:$0xff]
  %v5852 = vld [vmem:[%s5826 + $0xc8] sm:$0xff]
  %v5853 = vld [vmem:[%s5826 + $0xd0] sm:$0xff]
  %v5854 = vld [vmem:[%s5826 + $0xd8] sm:$0xff]
  %v5855 = vld [vmem:[%s5826 + $0xe0] sm:$0xff]
  %v5856 = vld [vmem:[%s5826 + $0xe8] sm:$0xff]
  %v5857 = vld [vmem:[%s5826 + $0xf0] sm:$0xff]
  %v5858 = vld [vmem:[%s5826 + $0xf8] sm:$0xff]
  %v5859 = vld [vmem:[%s5826 + $0x100] sm:$0xff]
  %v5860 = vld [vmem:[%s5826 + $0x108] sm:$0xff]
  %v5861 = vld [vmem:[%s5826 + $0x110] sm:$0xff]
  %v5862 = vld [vmem:[%s5826 + $0x118] sm:$0xff]
  %v5863 = vld [vmem:[%s5826 + $0x120] sm:$0xff]
  %v5864 = vld [vmem:[%s5826 + $0x128] sm:$0xff]
  %v5865 = vld [vmem:[%s5826 + $0x130] sm:$0xff]
  %v5866 = vld [vmem:[%s5826 + $0x138] sm:$0xff]
  %v5867 = vld [vmem:[%s5826 + $0x140] sm:$0xff]
  %v5868 = vld [vmem:[%s5826 + $0x148] sm:$0xff]
  %v5869 = vld [vmem:[%s5826 + $0x150] sm:$0xff]
  %v5870 = vld [vmem:[%s5826 + $0x158] sm:$0xff]
  %v5871 = vld [vmem:[%s5826 + $0x160] sm:$0xff]
  %v5872 = vld [vmem:[%s5826 + $0x168] sm:$0xff]
  %v5873 = vld [vmem:[%s5826 + $0x170] sm:$0xff]
  %v5874 = vld [vmem:[%s5826 + $0x178] sm:$0xff]
  %v5875 = vld [vmem:[%s5826 + $0x180] sm:$0xff]
  %v5876 = vld [vmem:[%s5826 + $0x188] sm:$0xff]
  %v5877 = vld [vmem:[%s5826 + $0x190] sm:$0xff]
  %v5878 = vld [vmem:[%s5826 + $0x198] sm:$0xff]
  %v5879 = vld [vmem:[%s5826 + $0x1a0] sm:$0xff]
  %v5880 = vld [vmem:[%s5826 + $0x1a8] sm:$0xff]
  %v5881 = vld [vmem:[%s5826 + $0x1b0] sm:$0xff]
  %v5882 = vld [vmem:[%s5826 + $0x1b8] sm:$0xff]
  %v5883 = vld [vmem:[%s5826 + $0x1c0] sm:$0xff]
  %v5884 = vld [vmem:[%s5826 + $0x1c8] sm:$0xff]
  %v5885 = vld [vmem:[%s5826 + $0x1d0] sm:$0xff]
  %v5886 = vld [vmem:[%s5826 + $0x1d8] sm:$0xff]
  %v5887 = vld [vmem:[%s5826 + $0x1e0] sm:$0xff]
  %v5888 = vld [vmem:[%s5826 + $0x1e8] sm:$0xff]
  %v5889 = vld [vmem:[%s5826 + $0x1f0] sm:$0xff]
  %v5890 = vld [vmem:[%s5826 + $0x1f8] sm:$0xff]
  %v5955 = vunpack.c.l.b16 %v5827
  %v5956 = vunpack.c.h.b16 %v5827
  %v5957 = vunpack.c.l.b16 %v5828
  %v5958 = vunpack.c.h.b16 %v5828
  %v5959 = vunpack.c.l.b16 %v5829
  %v5960 = vunpack.c.h.b16 %v5829
  %v5961 = vunpack.c.l.b16 %v5830
  %v5962 = vunpack.c.h.b16 %v5830
  %v5963 = vunpack.c.l.b16 %v5831
  %v5964 = vunpack.c.h.b16 %v5831
  %v5965 = vunpack.c.l.b16 %v5832
  %v5966 = vunpack.c.h.b16 %v5832
  %v5967 = vunpack.c.l.b16 %v5833
  %v5968 = vunpack.c.h.b16 %v5833
  %v5969 = vunpack.c.l.b16 %v5834
  %v5970 = vunpack.c.h.b16 %v5834
  %v5971 = vunpack.c.l.b16 %v5835
  %v5972 = vunpack.c.h.b16 %v5835
  %v5973 = vunpack.c.l.b16 %v5836
  %v5974 = vunpack.c.h.b16 %v5836
  %v5975 = vunpack.c.l.b16 %v5837
  %v5976 = vunpack.c.h.b16 %v5837
  %v5977 = vunpack.c.l.b16 %v5838
  %v5978 = vunpack.c.h.b16 %v5838
  %v5979 = vunpack.c.l.b16 %v5839
  %v5980 = vunpack.c.h.b16 %v5839
  %v5981 = vunpack.c.l.b16 %v5840
  %v5982 = vunpack.c.h.b16 %v5840
  %v5983 = vunpack.c.l.b16 %v5841
  %v5984 = vunpack.c.h.b16 %v5841
  %v5985 = vunpack.c.l.b16 %v5842
  %v5986 = vunpack.c.h.b16 %v5842
  %v5987 = vunpack.c.l.b16 %v5843
  %v5988 = vunpack.c.h.b16 %v5843
  %v5989 = vunpack.c.l.b16 %v5844
  %v5990 = vunpack.c.h.b16 %v5844
  %v5991 = vunpack.c.l.b16 %v5845
  %v5992 = vunpack.c.h.b16 %v5845
  %v5993 = vunpack.c.l.b16 %v5846
  %v5994 = vunpack.c.h.b16 %v5846
  %v5995 = vunpack.c.l.b16 %v5847
  %v5996 = vunpack.c.h.b16 %v5847
  %v5997 = vunpack.c.l.b16 %v5848
  %v5998 = vunpack.c.h.b16 %v5848
  %v5999 = vunpack.c.l.b16 %v5849
  %v6000 = vunpack.c.h.b16 %v5849
  %v6001 = vunpack.c.l.b16 %v5850
  %v6002 = vunpack.c.h.b16 %v5850
  %v6003 = vunpack.c.l.b16 %v5851
  %v6004 = vunpack.c.h.b16 %v5851
  %v6005 = vunpack.c.l.b16 %v5852
  %v6006 = vunpack.c.h.b16 %v5852
  %v6007 = vunpack.c.l.b16 %v5853
  %v6008 = vunpack.c.h.b16 %v5853
  %v6009 = vunpack.c.l.b16 %v5854
  %v6010 = vunpack.c.h.b16 %v5854
  %v6011 = vunpack.c.l.b16 %v5855
  %v6012 = vunpack.c.h.b16 %v5855
  %v6013 = vunpack.c.l.b16 %v5856
  %v6014 = vunpack.c.h.b16 %v5856
  %v6015 = vunpack.c.l.b16 %v5857
  %v6016 = vunpack.c.h.b16 %v5857
  %v6017 = vunpack.c.l.b16 %v5858
  %v6018 = vunpack.c.h.b16 %v5858
  %v6019 = vunpack.c.l.b16 %v5859
  %v6020 = vunpack.c.h.b16 %v5859
  %v6021 = vunpack.c.l.b16 %v5860
  %v6022 = vunpack.c.h.b16 %v5860
  %v6023 = vunpack.c.l.b16 %v5861
  %v6024 = vunpack.c.h.b16 %v5861
  %v6025 = vunpack.c.l.b16 %v5862
  %v6026 = vunpack.c.h.b16 %v5862
  %v6027 = vunpack.c.l.b16 %v5863
  %v6028 = vunpack.c.h.b16 %v5863
  %v6029 = vunpack.c.l.b16 %v5864
  %v6030 = vunpack.c.h.b16 %v5864
  %v6031 = vunpack.c.l.b16 %v5865
  %v6032 = vunpack.c.h.b16 %v5865
  %v6033 = vunpack.c.l.b16 %v5866
  %v6034 = vunpack.c.h.b16 %v5866
  %v6035 = vunpack.c.l.b16 %v5867
  %v6036 = vunpack.c.h.b16 %v5867
  %v6037 = vunpack.c.l.b16 %v5868
  %v6038 = vunpack.c.h.b16 %v5868
  %v6039 = vunpack.c.l.b16 %v5869
  %v6040 = vunpack.c.h.b16 %v5869
  %v6041 = vunpack.c.l.b16 %v5870
  %v6042 = vunpack.c.h.b16 %v5870
  %v6043 = vunpack.c.l.b16 %v5871
  %v6044 = vunpack.c.h.b16 %v5871
  %v6045 = vunpack.c.l.b16 %v5872
  %v6046 = vunpack.c.h.b16 %v5872
  %v6047 = vunpack.c.l.b16 %v5873
  %v6048 = vunpack.c.h.b16 %v5873
  %v6049 = vunpack.c.l.b16 %v5874
  %v6050 = vunpack.c.h.b16 %v5874
  %v6051 = vunpack.c.l.b16 %v5875
  %v6052 = vunpack.c.h.b16 %v5875
  %v6053 = vunpack.c.l.b16 %v5876
  %v6054 = vunpack.c.h.b16 %v5876
  %v6055 = vunpack.c.l.b16 %v5877
  %v6056 = vunpack.c.h.b16 %v5877
  %v6057 = vunpack.c.l.b16 %v5878
  %v6058 = vunpack.c.h.b16 %v5878
  %v6059 = vunpack.c.l.b16 %v5879
  %v6060 = vunpack.c.h.b16 %v5879
  %v6061 = vunpack.c.l.b16 %v5880
  %v6062 = vunpack.c.h.b16 %v5880
  %v6063 = vunpack.c.l.b16 %v5881
  %v6064 = vunpack.c.h.b16 %v5881
  %v6065 = vunpack.c.l.b16 %v5882
  %v6066 = vunpack.c.h.b16 %v5882
  %v6067 = vunpack.c.l.b16 %v5883
  %v6068 = vunpack.c.h.b16 %v5883
  %v6069 = vunpack.c.l.b16 %v5884
  %v6070 = vunpack.c.h.b16 %v5884
  %v6071 = vunpack.c.l.b16 %v5885
  %v6072 = vunpack.c.h.b16 %v5885
  %v6073 = vunpack.c.l.b16 %v5886
  %v6074 = vunpack.c.h.b16 %v5886
  %v6075 = vunpack.c.l.b16 %v5887
  %v6076 = vunpack.c.h.b16 %v5887
  %v6077 = vunpack.c.l.b16 %v5888
  %v6078 = vunpack.c.h.b16 %v5888
  %v6079 = vunpack.c.l.b16 %v5889
  %v6080 = vunpack.c.h.b16 %v5889
  %v6081 = vunpack.c.l.b16 %v5890
  %v6082 = vunpack.c.h.b16 %v5890
  %v6083 = vpack.c.b16 %v5963, %v5955
  %v6084 = vpack.c.b16 %v5964, %v5956
  %v6085 = vpack.c.b16 %v5965, %v5957
  %v6086 = vpack.c.b16 %v5966, %v5958
  %v6087 = vpack.c.b16 %v5967, %v5959
  %v6088 = vpack.c.b16 %v5968, %v5960
  %v6089 = vpack.c.b16 %v5969, %v5961
  %v6090 = vpack.c.b16 %v5970, %v5962
  %v6091 = vpack.c.b16 %v5979, %v5971
  %v6092 = vpack.c.b16 %v5980, %v5972
  %v6093 = vpack.c.b16 %v5981, %v5973
  %v6094 = vpack.c.b16 %v5982, %v5974
  %v6095 = vpack.c.b16 %v5983, %v5975
  %v6096 = vpack.c.b16 %v5984, %v5976
  %v6097 = vpack.c.b16 %v5985, %v5977
  %v6098 = vpack.c.b16 %v5986, %v5978
  %v6099 = vpack.c.b16 %v5995, %v5987
  %v6100 = vpack.c.b16 %v5996, %v5988
  %v6101 = vpack.c.b16 %v5997, %v5989
  %v6102 = vpack.c.b16 %v5998, %v5990
  %v6103 = vpack.c.b16 %v5999, %v5991
  %v6104 = vpack.c.b16 %v6000, %v5992
  %v6105 = vpack.c.b16 %v6001, %v5993
  %v6106 = vpack.c.b16 %v6002, %v5994
  %v6107 = vpack.c.b16 %v6011, %v6003
  %v6108 = vpack.c.b16 %v6012, %v6004
  %v6109 = vpack.c.b16 %v6013, %v6005
  %v6110 = vpack.c.b16 %v6014, %v6006
  %v6111 = vpack.c.b16 %v6015, %v6007
  %v6112 = vpack.c.b16 %v6016, %v6008
  %v6113 = vpack.c.b16 %v6017, %v6009
  %v6114 = vpack.c.b16 %v6018, %v6010
  %v6115 = vpack.c.b16 %v6027, %v6019
  %v6116 = vpack.c.b16 %v6028, %v6020
  %v6117 = vpack.c.b16 %v6029, %v6021
  %v6118 = vpack.c.b16 %v6030, %v6022
  %v6119 = vpack.c.b16 %v6031, %v6023
  %v6120 = vpack.c.b16 %v6032, %v6024
  %v6121 = vpack.c.b16 %v6033, %v6025
  %v6122 = vpack.c.b16 %v6034, %v6026
  %v6123 = vpack.c.b16 %v6043, %v6035
  %v6124 = vpack.c.b16 %v6044, %v6036
  %v6125 = vpack.c.b16 %v6045, %v6037
  %v6126 = vpack.c.b16 %v6046, %v6038
  %v6127 = vpack.c.b16 %v6047, %v6039
  %v6128 = vpack.c.b16 %v6048, %v6040
  %v6129 = vpack.c.b16 %v6049, %v6041
  %v6130 = vpack.c.b16 %v6050, %v6042
  %v6131 = vpack.c.b16 %v6059, %v6051
  %v6132 = vpack.c.b16 %v6060, %v6052
  %v6133 = vpack.c.b16 %v6061, %v6053
  %v6134 = vpack.c.b16 %v6062, %v6054
  %v6135 = vpack.c.b16 %v6063, %v6055
  %v6136 = vpack.c.b16 %v6064, %v6056
  %v6137 = vpack.c.b16 %v6065, %v6057
  %v6138 = vpack.c.b16 %v6066, %v6058
  %v6139 = vpack.c.b16 %v6075, %v6067
  %v6140 = vpack.c.b16 %v6076, %v6068
  %v6141 = vpack.c.b16 %v6077, %v6069
  %v6142 = vpack.c.b16 %v6078, %v6070
  %v6143 = vpack.c.b16 %v6079, %v6071
  %v6144 = vpack.c.b16 %v6080, %v6072
  %v6145 = vpack.c.b16 %v6081, %v6073
  %v6146 = vpack.c.b16 %v6082, %v6074
  %6211 = vmatprep.subr.bf16.mxu0 %v6084
  %6212 = vmatpush1.bf16.msra.mxu0 %v6083
  %6213 = vmatprep.subr.bf16.mxu0 %v6092
  %6214 = vmatpush1.bf16.msra.mxu0 %v6091
  %6215 = vmatprep.subr.bf16.mxu0 %v6100
  %6216 = vmatpush1.bf16.msra.mxu0 %v6099
  %6217 = vmatprep.subr.bf16.mxu0 %v6108
  %6218 = vmatpush1.bf16.msra.mxu0 %v6107
  %6219 = vmatprep.subr.bf16.mxu0 %v6116
  %6220 = vmatpush1.bf16.msra.mxu0 %v6115
  %6221 = vmatprep.subr.bf16.mxu0 %v6124
  %6222 = vmatpush1.bf16.msra.mxu0 %v6123
  %6223 = vmatprep.subr.bf16.mxu0 %v6132
  %6224 = vmatpush1.bf16.msra.mxu0 %v6131
  %6225 = vmatprep.subr.bf16.mxu0 %v6140
  %6226 = vmatpush1.bf16.msra.mxu0 %v6139
  %6227 = vmatprep.subr.bf16.mxu0 0
  %6228 = vmatpush1.bf16.msra.mxu0 0
  %6229 = vmatprep.subr.bf16.mxu0 0
  %6230 = vmatpush1.bf16.msra.mxu0 0
  %6231 = vmatprep.subr.bf16.mxu0 0
  %6232 = vmatpush1.bf16.msra.mxu0 0
  %6233 = vmatprep.subr.bf16.mxu0 0
  %6234 = vmatpush1.bf16.msra.mxu0 0
  %6235 = vmatprep.subr.bf16.mxu0 0
  %6236 = vmatpush1.bf16.msra.mxu0 0
  %6237 = vmatprep.subr.bf16.mxu0 0
  %6238 = vmatpush1.bf16.msra.mxu0 0
  %6239 = vmatprep.subr.bf16.mxu0 0
  %6240 = vmatpush1.bf16.msra.mxu0 0
  %6241 = vmatprep.subr.bf16.mxu0 0
  %6242 = vmatpush1.bf16.msra.mxu0 0
  %6243 = vmatprep.mubr.bf16.mxu0 0
  %6244 = vmatmul.mubr.bf16.gmra.mrb[0].mxu0 %v3614
  %v6245 = vpop.f32.mrb[0].mxu0
  %v6246 = vadd.f32 0.0, %v6245
  %v6247 = vpop.f32.mrb[0].mxu0
  %v6248 = vadd.f32 0.0, %v6247
  %v6249 = vpop.f32.mrb[0].mxu0
  %v6250 = vpop.f32.mrb[0].mxu0
  %6251 = vdwg.mxu0
  %6252 = vmatprep.subr.bf16.mxu0 %v6086
  %6253 = vmatpush1.bf16.msra.mxu0 %v6085
  %6254 = vmatprep.subr.bf16.mxu0 %v6094
  %6255 = vmatpush1.bf16.msra.mxu0 %v6093
  %6256 = vmatprep.subr.bf16.mxu0 %v6102
  %6257 = vmatpush1.bf16.msra.mxu0 %v6101
  %6258 = vmatprep.subr.bf16.mxu0 %v6110
  %6259 = vmatpush1.bf16.msra.mxu0 %v6109
  %6260 = vmatprep.subr.bf16.mxu0 %v6118
  %6261 = vmatpush1.bf16.msra.mxu0 %v6117
  %6262 = vmatprep.subr.bf16.mxu0 %v6126
  %6263 = vmatpush1.bf16.msra.mxu0 %v6125
  %6264 = vmatprep.subr.bf16.mxu0 %v6134
  %6265 = vmatpush1.bf16.msra.mxu0 %v6133
  %6266 = vmatprep.subr.bf16.mxu0 %v6142
  %6267 = vmatpush1.bf16.msra.mxu0 %v6141
  %6268 = vmatprep.subr.bf16.mxu0 0
  %6269 = vmatpush1.bf16.msra.mxu0 0
  %6270 = vmatprep.subr.bf16.mxu0 0
  %6271 = vmatpush1.bf16.msra.mxu0 0
  %6272 = vmatprep.subr.bf16.mxu0 0
  %6273 = vmatpush1.bf16.msra.mxu0 0
  %6274 = vmatprep.subr.bf16.mxu0 0
  %6275 = vmatpush1.bf16.msra.mxu0 0
  %6276 = vmatprep.subr.bf16.mxu0 0
  %6277 = vmatpush1.bf16.msra.mxu0 0
  %6278 = vmatprep.subr.bf16.mxu0 0
  %6279 = vmatpush1.bf16.msra.mxu0 0
  %6280 = vmatprep.subr.bf16.mxu0 0
  %6281 = vmatpush1.bf16.msra.mxu0 0
  %6282 = vmatprep.subr.bf16.mxu0 0
  %6283 = vmatpush1.bf16.msra.mxu0 0
  %6284 = vmatprep.mubr.bf16.mxu0 0
  %6285 = vmatmul.mubr.bf16.gmra.mrb[0].mxu0 %v3614
  %v6286 = vpop.f32.mrb[0].mxu0
  %v6287 = vadd.f32 0.0, %v6286
  %v6288 = vpop.f32.mrb[0].mxu0
  %v6289 = vadd.f32 0.0, %v6288
  %v6290 = vpop.f32.mrb[0].mxu0
  %v6291 = vpop.f32.mrb[0].mxu0
  %6292 = vdwg.mxu0
  %6293 = vmatprep.subr.bf16.mxu0 %v6088
  %6294 = vmatpush1.bf16.msra.mxu0 %v6087
  %6295 = vmatprep.subr.bf16.mxu0 %v6096
  %6296 = vmatpush1.bf16.msra.mxu0 %v6095
  %6297 = vmatprep.subr.bf16.mxu0 %v6104
  %6298 = vmatpush1.bf16.msra.mxu0 %v6103
  %6299 = vmatprep.subr.bf16.mxu0 %v6112
  %6300 = vmatpush1.bf16.msra.mxu0 %v6111
  %6301 = vmatprep.subr.bf16.mxu0 %v6120
  %6302 = vmatpush1.bf16.msra.mxu0 %v6119
  %6303 = vmatprep.subr.bf16.mxu0 %v6128
  %6304 = vmatpush1.bf16.msra.mxu0 %v6127
  %6305 = vmatprep.subr.bf16.mxu0 %v6136
  %6306 = vmatpush1.bf16.msra.mxu0 %v6135
  %6307 = vmatprep.subr.bf16.mxu0 %v6144
  %6308 = vmatpush1.bf16.msra.mxu0 %v6143
  %6309 = vmatprep.subr.bf16.mxu0 0
  %6310 = vmatpush1.bf16.msra.mxu0 0
  %6311 = vmatprep.subr.bf16.mxu0 0
  %6312 = vmatpush1.bf16.msra.mxu0 0
  %6313 = vmatprep.subr.bf16.mxu0 0
  %6314 = vmatpush1.bf16.msra.mxu0 0
  %6315 = vmatprep.subr.bf16.mxu0 0
  %6316 = vmatpush1.bf16.msra.mxu0 0
  %6317 = vmatprep.subr.bf16.mxu0 0
  %6318 = vmatpush1.bf16.msra.mxu0 0
  %6319 = vmatprep.subr.bf16.mxu0 0
  %6320 = vmatpush1.bf16.msra.mxu0 0
  %6321 = vmatprep.subr.bf16.mxu0 0
  %6322 = vmatpush1.bf16.msra.mxu0 0
  %6323 = vmatprep.subr.bf16.mxu0 0
  %6324 = vmatpush1.bf16.msra.mxu0 0
  %6325 = vmatprep.mubr.bf16.mxu0 0
  %6326 = vmatmul.mubr.bf16.gmra.mrb[0].mxu0 %v3614
  %v6327 = vpop.f32.mrb[0].mxu0
  %v6328 = vadd.f32 0.0, %v6327
  %v6329 = vpop.f32.mrb[0].mxu0
  %v6330 = vadd.f32 0.0, %v6329
  %v6331 = vpop.f32.mrb[0].mxu0
  %v6332 = vpop.f32.mrb[0].mxu0
  %6333 = vdwg.mxu0
  %6334 = vmatprep.subr.bf16.mxu0 %v6090
  %6335 = vmatpush1.bf16.msra.mxu0 %v6089
  %6336 = vmatprep.subr.bf16.mxu0 %v6098
  %6337 = vmatpush1.bf16.msra.mxu0 %v6097
  %6338 = vmatprep.subr.bf16.mxu0 %v6106
  %6339 = vmatpush1.bf16.msra.mxu0 %v6105
  %6340 = vmatprep.subr.bf16.mxu0 %v6114
  %6341 = vmatpush1.bf16.msra.mxu0 %v6113
  %6342 = vmatprep.subr.bf16.mxu0 %v6122
  %6343 = vmatpush1.bf16.msra.mxu0 %v6121
  %6344 = vmatprep.subr.bf16.mxu0 %v6130
  %6345 = vmatpush1.bf16.msra.mxu0 %v6129
  %6346 = vmatprep.subr.bf16.mxu0 %v6138
  %6347 = vmatpush1.bf16.msra.mxu0 %v6137
  %6348 = vmatprep.subr.bf16.mxu0 %v6146
  %6349 = vmatpush1.bf16.msra.mxu0 %v6145
  %6350 = vmatprep.subr.bf16.mxu0 0
  %6351 = vmatpush1.bf16.msra.mxu0 0
  %6352 = vmatprep.subr.bf16.mxu0 0
  %6353 = vmatpush1.bf16.msra.mxu0 0
  %6354 = vmatprep.subr.bf16.mxu0 0
  %6355 = vmatpush1.bf16.msra.mxu0 0
  %6356 = vmatprep.subr.bf16.mxu0 0
  %6357 = vmatpush1.bf16.msra.mxu0 0
  %6358 = vmatprep.subr.bf16.mxu0 0
  %6359 = vmatpush1.bf16.msra.mxu0 0
  %6360 = vmatprep.subr.bf16.mxu0 0
  %6361 = vmatpush1.bf16.msra.mxu0 0
  %6362 = vmatprep.subr.bf16.mxu0 0
  %6363 = vmatpush1.bf16.msra.mxu0 0
  %6364 = vmatprep.subr.bf16.mxu0 0
  %6365 = vmatpush1.bf16.msra.mxu0 0
  %6366 = vmatprep.mubr.bf16.mxu0 0
  %6367 = vmatmul.mubr.bf16.gmra.mrb[0].mxu0 %v3614
  %v6368 = vpop.f32.mrb[0].mxu0
  %v6369 = vadd.f32 0.0, %v6368
  %v6370 = vpop.f32.mrb[0].mxu0
  %v6371 = vadd.f32 0.0, %v6370
  %v6372 = vpop.f32.mrb[0].mxu0
  %v6373 = vpop.f32.mrb[0].mxu0
  %6374 = vdwg.mxu0
  %v6375 = vadd.f32 %v5818, %v6246
  %v6376 = vadd.f32 %v5819, %v6248
  %v6377 = vadd.f32 %v5820, %v6287
  %v6378 = vadd.f32 %v5821, %v6289
  %v6379 = vadd.f32 %v5822, %v6328
  %v6380 = vadd.f32 %v5823, %v6330
  %v6381 = vadd.f32 %v5824, %v6369
  %v6382 = vadd.f32 %v5825, %v6371
  %v6383 = vld [vmem:[%s6] sm:$0xff]
  %v6385 = vlaneseq
  %v6386 = vshrl.u32 %v6385, 7
  %v6387 = vsub.s32 0, %v6386
  %v6388 = vrot.slane %v6383, %v6387
  %v6389 = vlaneseq
  %v6390 = vshrl.u32 %v6389, 7
  %v6391 = vsub.s32 1, %v6390
  %v6392 = vrot.slane %v6383, %v6391
  %v6393 = vlaneseq
  %v6394 = vshrl.u32 %v6393, 7
  %v6395 = vsub.s32 2, %v6394
  %v6396 = vrot.slane %v6383, %v6395
  %v6397 = vlaneseq
  %v6398 = vshrl.u32 %v6397, 7
  %v6399 = vsub.s32 3, %v6398
  %v6400 = vrot.slane %v6383, %v6399
  %v6401 = vlaneseq
  %v6402 = vshrl.u32 %v6401, 7
  %v6403 = vsub.s32 4, %v6402
  %v6404 = vrot.slane %v6383, %v6403
  %v6405 = vlaneseq
  %v6406 = vshrl.u32 %v6405, 7
  %v6407 = vsub.s32 5, %v6406
  %v6408 = vrot.slane %v6383, %v6407
  %v6409 = vlaneseq
  %v6410 = vshrl.u32 %v6409, 7
  %v6411 = vsub.s32 6, %v6410
  %v6412 = vrot.slane %v6383, %v6411
  %v6413 = vlaneseq
  %v6414 = vshrl.u32 %v6413, 7
  %v6415 = vsub.s32 7, %v6414
  %v6416 = vrot.slane %v6383, %v6415
  %v6425 = vadd.f32 %v6375, %v6388
  %v6426 = vadd.f32 %v6376, %v6392
  %v6427 = vadd.f32 %v6377, %v6396
  %v6428 = vadd.f32 %v6378, %v6400
  %v6429 = vadd.f32 %v6379, %v6404
  %v6430 = vadd.f32 %v6380, %v6408
  %v6431 = vadd.f32 %v6381, %v6412
  %v6432 = vadd.f32 %v6382, %v6416
  %v6433 = vmax.f32 %v6425, 0.0
  %v6434 = vmax.f32 %v6426, 0.0
  %v6435 = vmax.f32 %v6427, 0.0
  %v6436 = vmax.f32 %v6428, 0.0
  %v6437 = vmax.f32 %v6429, 0.0
  %v6438 = vmax.f32 %v6430, 0.0
  %v6439 = vmax.f32 %v6431, 0.0
  %v6440 = vmax.f32 %v6432, 0.0
  %v6441 = vpack.c.bf16 %v6433, %v6433
  %v6442 = vpack.c.bf16 %v6434, %v6434
  %v6443 = vpack.c.bf16 %v6435, %v6435
  %v6444 = vpack.c.bf16 %v6436, %v6436
  %v6445 = vpack.c.bf16 %v6437, %v6437
  %v6446 = vpack.c.bf16 %v6438, %v6438
  %v6447 = vpack.c.bf16 %v6439, %v6439
  %v6448 = vpack.c.bf16 %v6440, %v6440
  %v6449 = vld [vmem:[%s7] sm:$0xf]
  %v6450 = vld [vmem:[%s7 + $0x4] sm:$0xf]
  %v6451 = vld [vmem:[%s7 + $0x8] sm:$0xf]
  %v6452 = vld [vmem:[%s7 + $0xc] sm:$0xf]
  %v6453 = vld [vmem:[%s7 + $0x10] sm:$0xf]
  %v6454 = vld [vmem:[%s7 + $0x14] sm:$0xf]
  %v6455 = vld [vmem:[%s7 + $0x18] sm:$0xf]
  %v6456 = vld [vmem:[%s7 + $0x1c] sm:$0xf]
  %v6457 = vld [vmem:[%s7 + $0x20] sm:$0xf]
  %v6458 = vld [vmem:[%s7 + $0x24] sm:$0xf]
  %v6459 = vld [vmem:[%s7 + $0x28] sm:$0xf]
  %v6460 = vld [vmem:[%s7 + $0x2c] sm:$0xf]
  %v6461 = vld [vmem:[%s7 + $0x30] sm:$0xf]
  %v6462 = vld [vmem:[%s7 + $0x34] sm:$0xf]
  %v6463 = vld [vmem:[%s7 + $0x38] sm:$0xf]
  %v6464 = vld [vmem:[%s7 + $0x3c] sm:$0xf]
  %v6465 = vld [vmem:[%s7 + $0x40] sm:$0xf]
  %v6466 = vld [vmem:[%s7 + $0x44] sm:$0xf]
  %v6467 = vld [vmem:[%s7 + $0x48] sm:$0xf]
  %v6468 = vld [vmem:[%s7 + $0x4c] sm:$0xf]
  %v6469 = vld [vmem:[%s7 + $0x50] sm:$0xf]
  %v6470 = vld [vmem:[%s7 + $0x54] sm:$0xf]
  %v6471 = vld [vmem:[%s7 + $0x58] sm:$0xf]
  %v6472 = vld [vmem:[%s7 + $0x5c] sm:$0xf]
  %v6473 = vld [vmem:[%s7 + $0x60] sm:$0xf]
  %v6474 = vld [vmem:[%s7 + $0x64] sm:$0xf]
  %v6475 = vld [vmem:[%s7 + $0x68] sm:$0xf]
  %v6476 = vld [vmem:[%s7 + $0x6c] sm:$0xf]
  %v6477 = vld [vmem:[%s7 + $0x70] sm:$0xf]
  %v6478 = vld [vmem:[%s7 + $0x74] sm:$0xf]
  %v6479 = vld [vmem:[%s7 + $0x78] sm:$0xf]
  %v6480 = vld [vmem:[%s7 + $0x7c] sm:$0xf]
  %v6481 = vld [vmem:[%s7 + $0x80] sm:$0xf]
  %v6482 = vld [vmem:[%s7 + $0x84] sm:$0xf]
  %v6483 = vld [vmem:[%s7 + $0x88] sm:$0xf]
  %v6484 = vld [vmem:[%s7 + $0x8c] sm:$0xf]
  %v6485 = vld [vmem:[%s7 + $0x90] sm:$0xf]
  %v6486 = vld [vmem:[%s7 + $0x94] sm:$0xf]
  %v6487 = vld [vmem:[%s7 + $0x98] sm:$0xf]
  %v6488 = vld [vmem:[%s7 + $0x9c] sm:$0xf]
  %v6489 = vld [vmem:[%s7 + $0xa0] sm:$0xf]
  %v6490 = vld [vmem:[%s7 + $0xa4] sm:$0xf]
  %v6491 = vld [vmem:[%s7 + $0xa8] sm:$0xf]
  %v6492 = vld [vmem:[%s7 + $0xac] sm:$0xf]
  %v6493 = vld [vmem:[%s7 + $0xb0] sm:$0xf]
  %v6494 = vld [vmem:[%s7 + $0xb4] sm:$0xf]
  %v6495 = vld [vmem:[%s7 + $0xb8] sm:$0xf]
  %v6496 = vld [vmem:[%s7 + $0xbc] sm:$0xf]
  %v6497 = vld [vmem:[%s7 + $0xc0] sm:$0xf]
  %v6498 = vld [vmem:[%s7 + $0xc4] sm:$0xf]
  %v6499 = vld [vmem:[%s7 + $0xc8] sm:$0xf]
  %v6500 = vld [vmem:[%s7 + $0xcc] sm:$0xf]
  %v6501 = vld [vmem:[%s7 + $0xd0] sm:$0xf]
  %v6502 = vld [vmem:[%s7 + $0xd4] sm:$0xf]
  %v6503 = vld [vmem:[%s7 + $0xd8] sm:$0xf]
  %v6504 = vld [vmem:[%s7 + $0xdc] sm:$0xf]
  %v6505 = vld [vmem:[%s7 + $0xe0] sm:$0xf]
  %v6506 = vld [vmem:[%s7 + $0xe4] sm:$0xf]
  %v6507 = vld [vmem:[%s7 + $0xe8] sm:$0xf]
  %v6508 = vld [vmem:[%s7 + $0xec] sm:$0xf]
  %v6509 = vld [vmem:[%s7 + $0xf0] sm:$0xf]
  %v6510 = vld [vmem:[%s7 + $0xf4] sm:$0xf]
  %v6511 = vld [vmem:[%s7 + $0xf8] sm:$0xf]
  %v6512 = vld [vmem:[%s7 + $0xfc] sm:$0xf]
  %v6513 = vld [vmem:[%s7 + $0x100] sm:$0xf]
  %v6514 = vld [vmem:[%s7 + $0x104] sm:$0xf]
  %v6515 = vld [vmem:[%s7 + $0x108] sm:$0xf]
  %v6516 = vld [vmem:[%s7 + $0x10c] sm:$0xf]
  %v6517 = vld [vmem:[%s7 + $0x110] sm:$0xf]
  %v6518 = vld [vmem:[%s7 + $0x114] sm:$0xf]
  %v6519 = vld [vmem:[%s7 + $0x118] sm:$0xf]
  %v6520 = vld [vmem:[%s7 + $0x11c] sm:$0xf]
  %v6521 = vld [vmem:[%s7 + $0x120] sm:$0xf]
  %v6522 = vld [vmem:[%s7 + $0x124] sm:$0xf]
  %v6523 = vld [vmem:[%s7 + $0x128] sm:$0xf]
  %v6524 = vld [vmem:[%s7 + $0x12c] sm:$0xf]
  %v6525 = vld [vmem:[%s7 + $0x130] sm:$0xf]
  %v6526 = vld [vmem:[%s7 + $0x134] sm:$0xf]
  %v6527 = vld [vmem:[%s7 + $0x138] sm:$0xf]
  %v6528 = vld [vmem:[%s7 + $0x13c] sm:$0xf]
  %v6529 = vld [vmem:[%s7 + $0x140] sm:$0xf]
  %v6530 = vld [vmem:[%s7 + $0x144] sm:$0xf]
  %v6531 = vld [vmem:[%s7 + $0x148] sm:$0xf]
  %v6532 = vld [vmem:[%s7 + $0x14c] sm:$0xf]
  %v6533 = vld [vmem:[%s7 + $0x150] sm:$0xf]
  %v6534 = vld [vmem:[%s7 + $0x154] sm:$0xf]
  %v6535 = vld [vmem:[%s7 + $0x158] sm:$0xf]
  %v6536 = vld [vmem:[%s7 + $0x15c] sm:$0xf]
  %v6537 = vld [vmem:[%s7 + $0x160] sm:$0xf]
  %v6538 = vld [vmem:[%s7 + $0x164] sm:$0xf]
  %v6539 = vld [vmem:[%s7 + $0x168] sm:$0xf]
  %v6540 = vld [vmem:[%s7 + $0x16c] sm:$0xf]
  %v6541 = vld [vmem:[%s7 + $0x170] sm:$0xf]
  %v6542 = vld [vmem:[%s7 + $0x174] sm:$0xf]
  %v6543 = vld [vmem:[%s7 + $0x178] sm:$0xf]
  %v6544 = vld [vmem:[%s7 + $0x17c] sm:$0xf]
  %v6545 = vld [vmem:[%s7 + $0x180] sm:$0xf]
  %v6546 = vld [vmem:[%s7 + $0x184] sm:$0xf]
  %v6547 = vld [vmem:[%s7 + $0x188] sm:$0xf]
  %v6548 = vld [vmem:[%s7 + $0x18c] sm:$0xf]
  %v6549 = vld [vmem:[%s7 + $0x190] sm:$0xf]
  %v6550 = vld [vmem:[%s7 + $0x194] sm:$0xf]
  %v6551 = vld [vmem:[%s7 + $0x198] sm:$0xf]
  %v6552 = vld [vmem:[%s7 + $0x19c] sm:$0xf]
  %v6553 = vld [vmem:[%s7 + $0x1a0] sm:$0xf]
  %v6554 = vld [vmem:[%s7 + $0x1a4] sm:$0xf]
  %v6555 = vld [vmem:[%s7 + $0x1a8] sm:$0xf]
  %v6556 = vld [vmem:[%s7 + $0x1ac] sm:$0xf]
  %v6557 = vld [vmem:[%s7 + $0x1b0] sm:$0xf]
  %v6558 = vld [vmem:[%s7 + $0x1b4] sm:$0xf]
  %v6559 = vld [vmem:[%s7 + $0x1b8] sm:$0xf]
  %v6560 = vld [vmem:[%s7 + $0x1bc] sm:$0xf]
  %v6561 = vld [vmem:[%s7 + $0x1c0] sm:$0xf]
  %v6562 = vld [vmem:[%s7 + $0x1c4] sm:$0xf]
  %v6563 = vld [vmem:[%s7 + $0x1c8] sm:$0xf]
  %v6564 = vld [vmem:[%s7 + $0x1cc] sm:$0xf]
  %v6565 = vld [vmem:[%s7 + $0x1d0] sm:$0xf]
  %v6566 = vld [vmem:[%s7 + $0x1d4] sm:$0xf]
  %v6567 = vld [vmem:[%s7 + $0x1d8] sm:$0xf]
  %v6568 = vld [vmem:[%s7 + $0x1dc] sm:$0xf]
  %v6569 = vld [vmem:[%s7 + $0x1e0] sm:$0xf]
  %v6570 = vld [vmem:[%s7 + $0x1e4] sm:$0xf]
  %v6571 = vld [vmem:[%s7 + $0x1e8] sm:$0xf]
  %v6572 = vld [vmem:[%s7 + $0x1ec] sm:$0xf]
  %v6573 = vld [vmem:[%s7 + $0x1f0] sm:$0xf]
  %v6574 = vld [vmem:[%s7 + $0x1f4] sm:$0xf]
  %v6575 = vld [vmem:[%s7 + $0x1f8] sm:$0xf]
  %v6576 = vld [vmem:[%s7 + $0x1fc] sm:$0xf]
  %v6577 = vld [vmem:[%s8] sm:$0x1]
  %v6579 = vlaneseq
  %v6580 = vshrl.u32 %v6579, 7
  %v6581 = vsub.s32 0, %v6580
  %v6582 = vrot.slane %v6577, %v6581
  %v6712 = vunpack.c.l.b16 %v6449
  %v6713 = vunpack.c.l.b16 %v6450
  %v6714 = vunpack.c.l.b16 %v6451
  %v6715 = vunpack.c.l.b16 %v6452
  %v6716 = vunpack.c.l.b16 %v6453
  %v6717 = vunpack.c.l.b16 %v6454
  %v6718 = vunpack.c.l.b16 %v6455
  %v6719 = vunpack.c.l.b16 %v6456
  %v6720 = vunpack.c.l.b16 %v6457
  %v6721 = vunpack.c.l.b16 %v6458
  %v6722 = vunpack.c.l.b16 %v6459
  %v6723 = vunpack.c.l.b16 %v6460
  %v6724 = vunpack.c.l.b16 %v6461
  %v6725 = vunpack.c.l.b16 %v6462
  %v6726 = vunpack.c.l.b16 %v6463
  %v6727 = vunpack.c.l.b16 %v6464
  %v6728 = vunpack.c.l.b16 %v6465
  %v6729 = vunpack.c.l.b16 %v6466
  %v6730 = vunpack.c.l.b16 %v6467
  %v6731 = vunpack.c.l.b16 %v6468
  %v6732 = vunpack.c.l.b16 %v6469
  %v6733 = vunpack.c.l.b16 %v6470
  %v6734 = vunpack.c.l.b16 %v6471
  %v6735 = vunpack.c.l.b16 %v6472
  %v6736 = vunpack.c.l.b16 %v6473
  %v6737 = vunpack.c.l.b16 %v6474
  %v6738 = vunpack.c.l.b16 %v6475
  %v6739 = vunpack.c.l.b16 %v6476
  %v6740 = vunpack.c.l.b16 %v6477
  %v6741 = vunpack.c.l.b16 %v6478
  %v6742 = vunpack.c.l.b16 %v6479
  %v6743 = vunpack.c.l.b16 %v6480
  %v6744 = vunpack.c.l.b16 %v6481
  %v6745 = vunpack.c.l.b16 %v6482
  %v6746 = vunpack.c.l.b16 %v6483
  %v6747 = vunpack.c.l.b16 %v6484
  %v6748 = vunpack.c.l.b16 %v6485
  %v6749 = vunpack.c.l.b16 %v6486
  %v6750 = vunpack.c.l.b16 %v6487
  %v6751 = vunpack.c.l.b16 %v6488
  %v6752 = vunpack.c.l.b16 %v6489
  %v6753 = vunpack.c.l.b16 %v6490
  %v6754 = vunpack.c.l.b16 %v6491
  %v6755 = vunpack.c.l.b16 %v6492
  %v6756 = vunpack.c.l.b16 %v6493
  %v6757 = vunpack.c.l.b16 %v6494
  %v6758 = vunpack.c.l.b16 %v6495
  %v6759 = vunpack.c.l.b16 %v6496
  %v6760 = vunpack.c.l.b16 %v6497
  %v6761 = vunpack.c.l.b16 %v6498
  %v6762 = vunpack.c.l.b16 %v6499
  %v6763 = vunpack.c.l.b16 %v6500
  %v6764 = vunpack.c.l.b16 %v6501
  %v6765 = vunpack.c.l.b16 %v6502
  %v6766 = vunpack.c.l.b16 %v6503
  %v6767 = vunpack.c.l.b16 %v6504
  %v6768 = vunpack.c.l.b16 %v6505
  %v6769 = vunpack.c.l.b16 %v6506
  %v6770 = vunpack.c.l.b16 %v6507
  %v6771 = vunpack.c.l.b16 %v6508
  %v6772 = vunpack.c.l.b16 %v6509
  %v6773 = vunpack.c.l.b16 %v6510
  %v6774 = vunpack.c.l.b16 %v6511
  %v6775 = vunpack.c.l.b16 %v6512
  %v6776 = vunpack.c.l.b16 %v6513
  %v6777 = vunpack.c.l.b16 %v6514
  %v6778 = vunpack.c.l.b16 %v6515
  %v6779 = vunpack.c.l.b16 %v6516
  %v6780 = vunpack.c.l.b16 %v6517
  %v6781 = vunpack.c.l.b16 %v6518
  %v6782 = vunpack.c.l.b16 %v6519
  %v6783 = vunpack.c.l.b16 %v6520
  %v6784 = vunpack.c.l.b16 %v6521
  %v6785 = vunpack.c.l.b16 %v6522
  %v6786 = vunpack.c.l.b16 %v6523
  %v6787 = vunpack.c.l.b16 %v6524
  %v6788 = vunpack.c.l.b16 %v6525
  %v6789 = vunpack.c.l.b16 %v6526
  %v6790 = vunpack.c.l.b16 %v6527
  %v6791 = vunpack.c.l.b16 %v6528
  %v6792 = vunpack.c.l.b16 %v6529
  %v6793 = vunpack.c.l.b16 %v6530
  %v6794 = vunpack.c.l.b16 %v6531
  %v6795 = vunpack.c.l.b16 %v6532
  %v6796 = vunpack.c.l.b16 %v6533
  %v6797 = vunpack.c.l.b16 %v6534
  %v6798 = vunpack.c.l.b16 %v6535
  %v6799 = vunpack.c.l.b16 %v6536
  %v6800 = vunpack.c.l.b16 %v6537
  %v6801 = vunpack.c.l.b16 %v6538
  %v6802 = vunpack.c.l.b16 %v6539
  %v6803 = vunpack.c.l.b16 %v6540
  %v6804 = vunpack.c.l.b16 %v6541
  %v6805 = vunpack.c.l.b16 %v6542
  %v6806 = vunpack.c.l.b16 %v6543
  %v6807 = vunpack.c.l.b16 %v6544
  %v6808 = vunpack.c.l.b16 %v6545
  %v6809 = vunpack.c.l.b16 %v6546
  %v6810 = vunpack.c.l.b16 %v6547
  %v6811 = vunpack.c.l.b16 %v6548
  %v6812 = vunpack.c.l.b16 %v6549
  %v6813 = vunpack.c.l.b16 %v6550
  %v6814 = vunpack.c.l.b16 %v6551
  %v6815 = vunpack.c.l.b16 %v6552
  %v6816 = vunpack.c.l.b16 %v6553
  %v6817 = vunpack.c.l.b16 %v6554
  %v6818 = vunpack.c.l.b16 %v6555
  %v6819 = vunpack.c.l.b16 %v6556
  %v6820 = vunpack.c.l.b16 %v6557
  %v6821 = vunpack.c.l.b16 %v6558
  %v6822 = vunpack.c.l.b16 %v6559
  %v6823 = vunpack.c.l.b16 %v6560
  %v6824 = vunpack.c.l.b16 %v6561
  %v6825 = vunpack.c.l.b16 %v6562
  %v6826 = vunpack.c.l.b16 %v6563
  %v6827 = vunpack.c.l.b16 %v6564
  %v6828 = vunpack.c.l.b16 %v6565
  %v6829 = vunpack.c.l.b16 %v6566
  %v6830 = vunpack.c.l.b16 %v6567
  %v6831 = vunpack.c.l.b16 %v6568
  %v6832 = vunpack.c.l.b16 %v6569
  %v6833 = vunpack.c.l.b16 %v6570
  %v6834 = vunpack.c.l.b16 %v6571
  %v6835 = vunpack.c.l.b16 %v6572
  %v6836 = vunpack.c.l.b16 %v6573
  %v6837 = vunpack.c.l.b16 %v6574
  %v6838 = vunpack.c.l.b16 %v6575
  %v6839 = vunpack.c.l.b16 %v6576
  %v6840 = vpack.c.b16 %v6713, %v6712
  %v6841 = vpack.c.b16 %v6715, %v6714
  %v6842 = vpack.c.b16 %v6717, %v6716
  %v6843 = vpack.c.b16 %v6719, %v6718
  %v6844 = vpack.c.b16 %v6721, %v6720
  %v6845 = vpack.c.b16 %v6723, %v6722
  %v6846 = vpack.c.b16 %v6725, %v6724
  %v6847 = vpack.c.b16 %v6727, %v6726
  %v6848 = vpack.c.b16 %v6729, %v6728
  %v6849 = vpack.c.b16 %v6731, %v6730
  %v6850 = vpack.c.b16 %v6733, %v6732
  %v6851 = vpack.c.b16 %v6735, %v6734
  %v6852 = vpack.c.b16 %v6737, %v6736
  %v6853 = vpack.c.b16 %v6739, %v6738
  %v6854 = vpack.c.b16 %v6741, %v6740
  %v6855 = vpack.c.b16 %v6743, %v6742
  %v6856 = vpack.c.b16 %v6745, %v6744
  %v6857 = vpack.c.b16 %v6747, %v6746
  %v6858 = vpack.c.b16 %v6749, %v6748
  %v6859 = vpack.c.b16 %v6751, %v6750
  %v6860 = vpack.c.b16 %v6753, %v6752
  %v6861 = vpack.c.b16 %v6755, %v6754
  %v6862 = vpack.c.b16 %v6757, %v6756
  %v6863 = vpack.c.b16 %v6759, %v6758
  %v6864 = vpack.c.b16 %v6761, %v6760
  %v6865 = vpack.c.b16 %v6763, %v6762
  %v6866 = vpack.c.b16 %v6765, %v6764
  %v6867 = vpack.c.b16 %v6767, %v6766
  %v6868 = vpack.c.b16 %v6769, %v6768
  %v6869 = vpack.c.b16 %v6771, %v6770
  %v6870 = vpack.c.b16 %v6773, %v6772
  %v6871 = vpack.c.b16 %v6775, %v6774
  %v6872 = vpack.c.b16 %v6777, %v6776
  %v6873 = vpack.c.b16 %v6779, %v6778
  %v6874 = vpack.c.b16 %v6781, %v6780
  %v6875 = vpack.c.b16 %v6783, %v6782
  %v6876 = vpack.c.b16 %v6785, %v6784
  %v6877 = vpack.c.b16 %v6787, %v6786
  %v6878 = vpack.c.b16 %v6789, %v6788
  %v6879 = vpack.c.b16 %v6791, %v6790
  %v6880 = vpack.c.b16 %v6793, %v6792
  %v6881 = vpack.c.b16 %v6795, %v6794
  %v6882 = vpack.c.b16 %v6797, %v6796
  %v6883 = vpack.c.b16 %v6799, %v6798
  %v6884 = vpack.c.b16 %v6801, %v6800
  %v6885 = vpack.c.b16 %v6803, %v6802
  %v6886 = vpack.c.b16 %v6805, %v6804
  %v6887 = vpack.c.b16 %v6807, %v6806
  %v6888 = vpack.c.b16 %v6809, %v6808
  %v6889 = vpack.c.b16 %v6811, %v6810
  %v6890 = vpack.c.b16 %v6813, %v6812
  %v6891 = vpack.c.b16 %v6815, %v6814
  %v6892 = vpack.c.b16 %v6817, %v6816
  %v6893 = vpack.c.b16 %v6819, %v6818
  %v6894 = vpack.c.b16 %v6821, %v6820
  %v6895 = vpack.c.b16 %v6823, %v6822
  %v6896 = vpack.c.b16 %v6825, %v6824
  %v6897 = vpack.c.b16 %v6827, %v6826
  %v6898 = vpack.c.b16 %v6829, %v6828
  %v6899 = vpack.c.b16 %v6831, %v6830
  %v6900 = vpack.c.b16 %v6833, %v6832
  %v6901 = vpack.c.b16 %v6835, %v6834
  %v6902 = vpack.c.b16 %v6837, %v6836
  %v6903 = vpack.c.b16 %v6839, %v6838
  %6968 = vmatprep.subr.bf16.mxu0 0
  %6969 = vmatpush1.bf16.msra.mxu0 %v6840
  %6970 = vmatprep.subr.bf16.mxu0 0
  %6971 = vmatpush1.bf16.msra.mxu0 %v6841
  %6972 = vmatprep.subr.bf16.mxu0 0
  %6973 = vmatpush1.bf16.msra.mxu0 %v6842
  %6974 = vmatprep.subr.bf16.mxu0 0
  %6975 = vmatpush1.bf16.msra.mxu0 %v6843
  %6976 = vmatprep.subr.bf16.mxu0 0
  %6977 = vmatpush1.bf16.msra.mxu0 %v6844
  %6978 = vmatprep.subr.bf16.mxu0 0
  %6979 = vmatpush1.bf16.msra.mxu0 %v6845
  %6980 = vmatprep.subr.bf16.mxu0 0
  %6981 = vmatpush1.bf16.msra.mxu0 %v6846
  %6982 = vmatprep.subr.bf16.mxu0 0
  %6983 = vmatpush1.bf16.msra.mxu0 %v6847
  %6984 = vmatprep.subr.bf16.mxu0 0
  %6985 = vmatpush1.bf16.msra.mxu0 %v6848
  %6986 = vmatprep.subr.bf16.mxu0 0
  %6987 = vmatpush1.bf16.msra.mxu0 %v6849
  %6988 = vmatprep.subr.bf16.mxu0 0
  %6989 = vmatpush1.bf16.msra.mxu0 %v6850
  %6990 = vmatprep.subr.bf16.mxu0 0
  %6991 = vmatpush1.bf16.msra.mxu0 %v6851
  %6992 = vmatprep.subr.bf16.mxu0 0
  %6993 = vmatpush1.bf16.msra.mxu0 %v6852
  %6994 = vmatprep.subr.bf16.mxu0 0
  %6995 = vmatpush1.bf16.msra.mxu0 %v6853
  %6996 = vmatprep.subr.bf16.mxu0 0
  %6997 = vmatpush1.bf16.msra.mxu0 %v6854
  %6998 = vmatprep.subr.bf16.mxu0 0
  %6999 = vmatpush1.bf16.msra.mxu0 %v6855
  %7000 = vmatprep.mubr.bf16.mxu0 %v6442
  %7001 = vmatmul.mubr.bf16.gmra.mrb[0].mxu0 %v6441
  %v7002 = vpop.f32.mrb[0].mxu0
  %v7003 = vadd.f32 %v6582, %v7002
  %v7004 = vpop.f32.mrb[0].mxu0
  %v7005 = vpop.f32.mrb[0].mxu0
  %v7006 = vpop.f32.mrb[0].mxu0
  %7007 = vdwg.mxu0
  %7008 = vmatprep.subr.bf16.mxu0 0
  %7009 = vmatpush1.bf16.msra.mxu0 %v6856
  %7010 = vmatprep.subr.bf16.mxu0 0
  %7011 = vmatpush1.bf16.msra.mxu0 %v6857
  %7012 = vmatprep.subr.bf16.mxu0 0
  %7013 = vmatpush1.bf16.msra.mxu0 %v6858
  %7014 = vmatprep.subr.bf16.mxu0 0
  %7015 = vmatpush1.bf16.msra.mxu0 %v6859
  %7016 = vmatprep.subr.bf16.mxu0 0
  %7017 = vmatpush1.bf16.msra.mxu0 %v6860
  %7018 = vmatprep.subr.bf16.mxu0 0
  %7019 = vmatpush1.bf16.msra.mxu0 %v6861
  %7020 = vmatprep.subr.bf16.mxu0 0
  %7021 = vmatpush1.bf16.msra.mxu0 %v6862
  %7022 = vmatprep.subr.bf16.mxu0 0
  %7023 = vmatpush1.bf16.msra.mxu0 %v6863
  %7024 = vmatprep.subr.bf16.mxu0 0
  %7025 = vmatpush1.bf16.msra.mxu0 %v6864
  %7026 = vmatprep.subr.bf16.mxu0 0
  %7027 = vmatpush1.bf16.msra.mxu0 %v6865
  %7028 = vmatprep.subr.bf16.mxu0 0
  %7029 = vmatpush1.bf16.msra.mxu0 %v6866
  %7030 = vmatprep.subr.bf16.mxu0 0
  %7031 = vmatpush1.bf16.msra.mxu0 %v6867
  %7032 = vmatprep.subr.bf16.mxu0 0
  %7033 = vmatpush1.bf16.msra.mxu0 %v6868
  %7034 = vmatprep.subr.bf16.mxu0 0
  %7035 = vmatpush1.bf16.msra.mxu0 %v6869
  %7036 = vmatprep.subr.bf16.mxu0 0
  %7037 = vmatpush1.bf16.msra.mxu0 %v6870
  %7038 = vmatprep.subr.bf16.mxu0 0
  %7039 = vmatpush1.bf16.msra.mxu0 %v6871
  %7040 = vmatprep.mubr.bf16.mxu0 %v6444
  %7041 = vmatmul.mubr.bf16.gmra.mrb[0].mxu0 %v6443
  %v7042 = vpop.f32.mrb[0].mxu0
  %v7043 = vadd.f32 %v7003, %v7042
  %v7044 = vpop.f32.mrb[0].mxu0
  %v7045 = vpop.f32.mrb[0].mxu0
  %v7046 = vpop.f32.mrb[0].mxu0
  %7047 = vdwg.mxu0
  %7048 = vmatprep.subr.bf16.mxu0 0
  %7049 = vmatpush1.bf16.msra.mxu0 %v6872
  %7050 = vmatprep.subr.bf16.mxu0 0
  %7051 = vmatpush1.bf16.msra.mxu0 %v6873
  %7052 = vmatprep.subr.bf16.mxu0 0
  %7053 = vmatpush1.bf16.msra.mxu0 %v6874
  %7054 = vmatprep.subr.bf16.mxu0 0
  %7055 = vmatpush1.bf16.msra.mxu0 %v6875
  %7056 = vmatprep.subr.bf16.mxu0 0
  %7057 = vmatpush1.bf16.msra.mxu0 %v6876
  %7058 = vmatprep.subr.bf16.mxu0 0
  %7059 = vmatpush1.bf16.msra.mxu0 %v6877
  %7060 = vmatprep.subr.bf16.mxu0 0
  %7061 = vmatpush1.bf16.msra.mxu0 %v6878
  %7062 = vmatprep.subr.bf16.mxu0 0
  %7063 = vmatpush1.bf16.msra.mxu0 %v6879
  %7064 = vmatprep.subr.bf16.mxu0 0
  %7065 = vmatpush1.bf16.msra.mxu0 %v6880
  %7066 = vmatprep.subr.bf16.mxu0 0
  %7067 = vmatpush1.bf16.msra.mxu0 %v6881
  %7068 = vmatprep.subr.bf16.mxu0 0
  %7069 = vmatpush1.bf16.msra.mxu0 %v6882
  %7070 = vmatprep.subr.bf16.mxu0 0
  %7071 = vmatpush1.bf16.msra.mxu0 %v6883
  %7072 = vmatprep.subr.bf16.mxu0 0
  %7073 = vmatpush1.bf16.msra.mxu0 %v6884
  %7074 = vmatprep.subr.bf16.mxu0 0
  %7075 = vmatpush1.bf16.msra.mxu0 %v6885
  %7076 = vmatprep.subr.bf16.mxu0 0
  %7077 = vmatpush1.bf16.msra.mxu0 %v6886
  %7078 = vmatprep.subr.bf16.mxu0 0
  %7079 = vmatpush1.bf16.msra.mxu0 %v6887
  %7080 = vmatprep.mubr.bf16.mxu0 %v6446
  %7081 = vmatmul.mubr.bf16.gmra.mrb[0].mxu0 %v6445
  %v7082 = vpop.f32.mrb[0].mxu0
  %v7083 = vadd.f32 %v7043, %v7082
  %v7084 = vpop.f32.mrb[0].mxu0
  %v7085 = vpop.f32.mrb[0].mxu0
  %v7086 = vpop.f32.mrb[0].mxu0
  %7087 = vdwg.mxu0
  %7088 = vmatprep.subr.bf16.mxu0 0
  %7089 = vmatpush1.bf16.msra.mxu0 %v6888
  %7090 = vmatprep.subr.bf16.mxu0 0
  %7091 = vmatpush1.bf16.msra.mxu0 %v6889
  %7092 = vmatprep.subr.bf16.mxu0 0
  %7093 = vmatpush1.bf16.msra.mxu0 %v6890
  %7094 = vmatprep.subr.bf16.mxu0 0
  %7095 = vmatpush1.bf16.msra.mxu0 %v6891
  %7096 = vmatprep.subr.bf16.mxu0 0
  %7097 = vmatpush1.bf16.msra.mxu0 %v6892
  %7098 = vmatprep.subr.bf16.mxu0 0
  %7099 = vmatpush1.bf16.msra.mxu0 %v6893
  %7100 = vmatprep.subr.bf16.mxu0 0
  %7101 = vmatpush1.bf16.msra.mxu0 %v6894
  %7102 = vmatprep.subr.bf16.mxu0 0
  %7103 = vmatpush1.bf16.msra.mxu0 %v6895
  %7104 = vmatprep.subr.bf16.mxu0 0
  %7105 = vmatpush1.bf16.msra.mxu0 %v6896
  %7106 = vmatprep.subr.bf16.mxu0 0
  %7107 = vmatpush1.bf16.msra.mxu0 %v6897
  %7108 = vmatprep.subr.bf16.mxu0 0
  %7109 = vmatpush1.bf16.msra.mxu0 %v6898
  %7110 = vmatprep.subr.bf16.mxu0 0
  %7111 = vmatpush1.bf16.msra.mxu0 %v6899
  %7112 = vmatprep.subr.bf16.mxu0 0
  %7113 = vmatpush1.bf16.msra.mxu0 %v6900
  %7114 = vmatprep.subr.bf16.mxu0 0
  %7115 = vmatpush1.bf16.msra.mxu0 %v6901
  %7116 = vmatprep.subr.bf16.mxu0 0
  %7117 = vmatpush1.bf16.msra.mxu0 %v6902
  %7118 = vmatprep.subr.bf16.mxu0 0
  %7119 = vmatpush1.bf16.msra.mxu0 %v6903
  %7120 = vmatprep.mubr.bf16.mxu0 %v6448
  %7121 = vmatmul.mubr.bf16.gmra.mrb[0].mxu0 %v6447
  %v7122 = vpop.f32.mrb[0].mxu0
  %v7123 = vadd.f32 %v7083, %v7122
  %v7124 = vpop.f32.mrb[0].mxu0
  %v7125 = vpop.f32.mrb[0].mxu0
  %v7126 = vpop.f32.mrb[0].mxu0
  %7127 = vdwg.mxu0
  %v7128 = vmax.f32 %v7123, 0.0
  %v7129 = vpack.c.bf16 %v7128, %v7128
  %v7130 = vld [vmem:[%s9] sm:$0xf]
  %v7131 = vld [vmem:[%s9 + $0x4] sm:$0xf]
  %v7132 = vld [vmem:[%s9 + $0x8] sm:$0xf]
  %v7133 = vld [vmem:[%s9 + $0xc] sm:$0xf]
  %v7134 = vld [vmem:[%s9 + $0x10] sm:$0xf]
  %v7135 = vld [vmem:[%s9 + $0x14] sm:$0xf]
  %v7136 = vld [vmem:[%s9 + $0x18] sm:$0xf]
  %v7137 = vld [vmem:[%s9 + $0x1c] sm:$0xf]
  %v7138 = vld [vmem:[%s9 + $0x20] sm:$0xf]
  %v7139 = vld [vmem:[%s9 + $0x24] sm:$0xf]
  %v7140 = vld [vmem:[%s9 + $0x28] sm:$0xf]
  %v7141 = vld [vmem:[%s9 + $0x2c] sm:$0xf]
  %v7142 = vld [vmem:[%s9 + $0x30] sm:$0xf]
  %v7143 = vld [vmem:[%s9 + $0x34] sm:$0xf]
  %v7144 = vld [vmem:[%s9 + $0x38] sm:$0xf]
  %v7145 = vld [vmem:[%s9 + $0x3c] sm:$0xf]
  %v7146 = vld [vmem:[%s10] sm:$0x1]
  %v7148 = vlaneseq
  %v7149 = vshrl.u32 %v7148, 7
  %v7150 = vsub.s32 0, %v7149
  %v7151 = vrot.slane %v7146, %v7150
  %v7169 = vunpack.c.l.b16 %v7130
  %v7170 = vunpack.c.l.b16 %v7131
  %v7171 = vunpack.c.l.b16 %v7132
  %v7172 = vunpack.c.l.b16 %v7133
  %v7173 = vunpack.c.l.b16 %v7134
  %v7174 = vunpack.c.l.b16 %v7135
  %v7175 = vunpack.c.l.b16 %v7136
  %v7176 = vunpack.c.l.b16 %v7137
  %v7177 = vunpack.c.l.b16 %v7138
  %v7178 = vunpack.c.l.b16 %v7139
  %v7179 = vunpack.c.l.b16 %v7140
  %v7180 = vunpack.c.l.b16 %v7141
  %v7181 = vunpack.c.l.b16 %v7142
  %v7182 = vunpack.c.l.b16 %v7143
  %v7183 = vunpack.c.l.b16 %v7144
  %v7184 = vunpack.c.l.b16 %v7145
  %v7185 = vpack.c.b16 %v7170, %v7169
  %v7186 = vpack.c.b16 %v7172, %v7171
  %v7187 = vpack.c.b16 %v7174, %v7173
  %v7188 = vpack.c.b16 %v7176, %v7175
  %v7189 = vpack.c.b16 %v7178, %v7177
  %v7190 = vpack.c.b16 %v7180, %v7179
  %v7191 = vpack.c.b16 %v7182, %v7181
  %v7192 = vpack.c.b16 %v7184, %v7183
  %7201 = vmatprep.subr.bf16.mxu0 0
  %7202 = vmatpush1.bf16.msra.mxu0 %v7185
  %7203 = vmatprep.subr.bf16.mxu0 0
  %7204 = vmatpush1.bf16.msra.mxu0 %v7186
  %7205 = vmatprep.subr.bf16.mxu0 0
  %7206 = vmatpush1.bf16.msra.mxu0 %v7187
  %7207 = vmatprep.subr.bf16.mxu0 0
  %7208 = vmatpush1.bf16.msra.mxu0 %v7188
  %7209 = vmatprep.subr.bf16.mxu0 0
  %7210 = vmatpush1.bf16.msra.mxu0 %v7189
  %7211 = vmatprep.subr.bf16.mxu0 0
  %7212 = vmatpush1.bf16.msra.mxu0 %v7190
  %7213 = vmatprep.subr.bf16.mxu0 0
  %7214 = vmatpush1.bf16.msra.mxu0 %v7191
  %7215 = vmatprep.subr.bf16.mxu0 0
  %7216 = vmatpush1.bf16.msra.mxu0 %v7192
  %7217 = vmatprep.subr.bf16.mxu0 0
  %7218 = vmatpush1.bf16.msra.mxu0 0
  %7219 = vmatprep.subr.bf16.mxu0 0
  %7220 = vmatpush1.bf16.msra.mxu0 0
  %7221 = vmatprep.subr.bf16.mxu0 0
  %7222 = vmatpush1.bf16.msra.mxu0 0
  %7223 = vmatprep.subr.bf16.mxu0 0
  %7224 = vmatpush1.bf16.msra.mxu0 0
  %7225 = vmatprep.subr.bf16.mxu0 0
  %7226 = vmatpush1.bf16.msra.mxu0 0
  %7227 = vmatprep.subr.bf16.mxu0 0
  %7228 = vmatpush1.bf16.msra.mxu0 0
  %7229 = vmatprep.subr.bf16.mxu0 0
  %7230 = vmatpush1.bf16.msra.mxu0 0
  %7231 = vmatprep.subr.bf16.mxu0 0
  %7232 = vmatpush1.bf16.msra.mxu0 0
  %7233 = vmatprep.mubr.bf16.mxu0 0
  %7234 = vmatmul.mubr.bf16.gmra.mrb[0].mxu0 %v7129
  %v7235 = vpop.f32.mrb[0].mxu0
  %v7236 = vadd.f32 %v7151, %v7235
  %v7237 = vpop.f32.mrb[0].mxu0
  %v7238 = vpop.f32.mrb[0].mxu0
  %v7239 = vpop.f32.mrb[0].mxu0
  %7240 = vdwg.mxu0
  %7241 = vst [vmem:[%s11] sm:$0xff] %v7236
  // Predicated region
  $region46: #{lenet5_forward.1} parent=0 // pred_check
    _
  $region47: #{lenet5_forward.1} parent=0 // pred_check_branch
    %7243 = sbr.rel (0) target = $region49
  $region48: #{lenet5_forward.1} parent=0 // pred_region
    _
  $region49: #{lenet5_forward.1} parent=0 // pred_fallthru
    _
  // Predicated region
  $region50: #{lenet5_forward.1} parent=0 // pred_check
    _
  $region51: #{lenet5_forward.1} parent=0 // pred_check_branch
    %7245 = sbr.rel (0) target = $region53
  $region52: #{lenet5_forward.1} parent=0 // pred_region
    _
  $region53: #{lenet5_forward.1} parent=0 // pred_fallthru
    _

</llo_original>
